<compile_context>
chip_gen: v7x
topology: tpu7x:2x2x1
jax: 0.10.0
libtpu: 0.0.40
codegen_flags: <defaults>
</compile_context>

<pallas_src>
import functools

import jax
import jax.numpy as jnp
from jax import lax
from jax.experimental import pallas as pl
from jax.experimental.pallas import tpu as pltpu


# ---------------------------------------------------------------------------
# Fused Conv2d + bias + ReLU + MaxPool kernel (used for conv1 and conv2)
# ---------------------------------------------------------------------------
def _conv_pool_kernel(u_ref, w_ref, b_ref, o_ref, *, taps, row_step, pool,
                      rows_per_step):
    """u_ref : (1, Hu, wo, K) bf16  width-unfolded input; the width axis is
               pre-permuted so column j*wp + pc is original conv column
               pc*pool + j (makes the column pool a contiguous-slice max).
       w_ref : (taps, K, Cout) bf16;  b_ref: (1, Cout) f32.
       o_ref : (1, rows_per_step, wo // pool, Cout) bf16 pooled+ReLU output.
       Conv output row y = sum_t  u[y + row_step * t] @ w[t]   (f32 accum).
    """
    t = pl.program_id(1)
    wo = u_ref.shape[2]
    wp = wo // pool
    cout = w_ref.shape[2]
    bias = jnp.broadcast_to(b_ref[...], (wp, cout))      # hoisted broadcast

    def body(p, carry):
        y0 = (t * rows_per_step + p) * pool               # first conv row
        accs = [jnp.zeros((wo, cout), jnp.float32) for _ in range(pool)]
        for tt in range(taps):                            # static, unrolled
            w_t = w_ref[tt]
            for j in range(pool):                         # static, unrolled
                lhs = u_ref[0, y0 + j + row_step * tt, :, :]     # (wo, K) bf16
                accs[j] = accs[j] + jnp.dot(
                    lhs, w_t, preferred_element_type=jnp.float32)
        # max over the `pool` conv rows (elementwise, VPU)
        rmax = accs[0]
        for j in range(1, pool):
            rmax = jnp.maximum(rmax, accs[j])
        # max over window columns: permuted layout -> contiguous slices
        pooled = rmax[0:wp]
        for j in range(1, pool):
            pooled = jnp.maximum(pooled, rmax[j * wp:(j + 1) * wp])
        # bias + ReLU commute with max-pool (monotone), applied post-pool
        o_ref[0, p, :, :] = jnp.maximum(pooled + bias, 0.0).astype(o_ref.dtype)
        return carry

    lax.fori_loop(0, rows_per_step, body, 0)


def conv_pool(u, w_taps, b, *, taps, row_step, pool, row_tiles, rows_per_step):
    n = u.shape[0]
    wp = u.shape[2] // pool
    cout = w_taps.shape[2]
    kernel = functools.partial(_conv_pool_kernel, taps=taps, row_step=row_step,
                               pool=pool, rows_per_step=rows_per_step)
    return pl.pallas_call(
        kernel,
        out_shape=jax.ShapeDtypeStruct(
            (n, row_tiles * rows_per_step, wp, cout), jnp.bfloat16),
        grid=(n, row_tiles),
        in_specs=[
            pl.BlockSpec((1,) + tuple(u.shape[1:]), lambda i, t: (i, 0, 0, 0)),
            pl.BlockSpec(tuple(w_taps.shape), lambda i, t: (0, 0, 0)),
            pl.BlockSpec(tuple(b.shape), lambda i, t: (0, 0)),
        ],
        out_specs=pl.BlockSpec((1, rows_per_step, wp, cout),
                               lambda i, t: (i, t, 0, 0)),
        compiler_params=pltpu.CompilerParams(
            dimension_semantics=("parallel", "parallel")),
    )(u, w_taps, b)


# ---------------------------------------------------------------------------
# Fused tail: conv3 -> pool2 -> conv4 -> pool2 -> flatten -> FC1 -> ReLU
#             -> FC2 -> Softmax   (one grid step per image)
# ---------------------------------------------------------------------------
def _tail_kernel(x_ref, w3_ref, b3_ref, w4_ref, b4_ref,
                 fw1_ref, fb1_ref, fw2_ref, fb2_ref, o_ref):
    c3 = w3_ref.shape[2]
    c4 = w4_ref.shape[3]
    b3 = jnp.broadcast_to(b3_ref[...], (8, c3))
    b4 = jnp.broadcast_to(b4_ref[...], (2, c4))

    x3 = x_ref[0]                                    # (10, 8, 192) bf16

    # conv3 (3x3, 64->c3) + bias + ReLU + 2x2 max-pool -> 4 rows of (4, c3)
    p3 = []
    for pr in range(4):
        rows = []
        for rr in (2 * pr, 2 * pr + 1):              # two conv3 output rows
            acc = jnp.zeros((8, c3), jnp.float32)
            for dy in range(3):
                acc = acc + jnp.dot(x3[rr + dy], w3_ref[dy],
                                    preferred_element_type=jnp.float32)
            rows.append(acc)
        rm = jnp.maximum(jnp.maximum(rows[0], rows[1]) + b3, 0.0)   # (8, c3)
        cols = [jnp.maximum(rm[2 * pc:2 * pc + 1, :],
                            rm[2 * pc + 1:2 * pc + 2, :]) for pc in range(4)]
        p3.append(jnp.concatenate(cols, axis=0).astype(jnp.bfloat16))  # (4, c3)

    # conv4 (3x3, c3->c4) + bias + ReLU + 2x2 max-pool -> (1, c4)
    row_maxes = []
    for i in range(2):                               # conv4 output row
        acc = jnp.zeros((2, c4), jnp.float32)        # both output columns
        for dy in range(3):
            for dx in range(3):
                acc = acc + jnp.dot(p3[i + dy][dx:dx + 2, :], w4_ref[dy, dx],
                                    preferred_element_type=jnp.float32)
        r = jnp.maximum(acc + b4, 0.0)                       # (2, c4)
        row_maxes.append(jnp.maximum(r[0:1, :], r[1:2, :]))  # (1, c4)
    feat = jnp.maximum(row_maxes[0], row_maxes[1])           # (1, c4) f32

    # FC1 -> ReLU -> FC2 -> Softmax(dim=1)
    h = jnp.dot(feat.astype(jnp.bfloat16), fw1_ref[...],
                preferred_element_type=jnp.float32) + fb1_ref[...]
    h = jnp.maximum(h, 0.0)
    logits = jnp.dot(h.astype(jnp.bfloat16), fw2_ref[...],
                     preferred_element_type=jnp.float32) + fb2_ref[...]
    m = jnp.max(logits, axis=1, keepdims=True)
    e = jnp.exp(logits - m)
    s = jnp.sum(e, axis=1, keepdims=True)
    o_ref[0] = e * pl.reciprocal(s, approx=True)


# ---------------------------------------------------------------------------
# Plain-JAX glue: cheap width-unfold (partial im2col) + column permutation
# ---------------------------------------------------------------------------
def _unfold_width(x, *, kw, row_group):
    """x: (N, H, W, C) -> (N, H - row_group + 1, W - kw + 1, row_group*kw*C)
    out[n, y, v, g*kw*C + dx*C + c] = x[n, y + g, v + dx, c]."""
    n, h, w, c = x.shape
    hu = h - row_group + 1
    wo = w - kw + 1
    cols = []
    for g in range(row_group):
        for dx in range(kw):
            cols.append(x[:, g:g + hu, dx:dx + wo, :])
    return jnp.concatenate(cols, axis=-1)


def _permute_pool_cols(u, *, pool):
    """Reorder the width axis so column j*wp + pc holds original column
    pc*pool + j; the in-kernel column max-pool becomes a max over `pool`
    contiguous slices."""
    n, h, wo, k = u.shape
    wp = wo // pool
    u = u.reshape(n, h, wp, pool, k).transpose(0, 1, 3, 2, 4)
    return u.reshape(n, h, wo, k)


# ---------------------------------------------------------------------------
# LeafNet forward
# ---------------------------------------------------------------------------
def leafnet_forward(x_nchw, params):
    n = x_nchw.shape[0]
    x = jnp.transpose(x_nchw, (0, 2, 3, 1)).astype(jnp.bfloat16)   # NHWC

    # stage 1: Conv2d(3, 32, 10) + ReLU + MaxPool2d(3)
    u1 = _unfold_width(x, kw=10, row_group=5)          # (N, 107, 102, 150) bf16
    u1 = _permute_pool_cols(u1, pool=3)
    w1 = params["cw1"].reshape(2, 150, 32).astype(jnp.bfloat16)
    p1 = conv_pool(u1, w1, params["cb1"], taps=2, row_step=5, pool=3,
                   row_tiles=2, rows_per_step=17)      # (N, 34, 34, 32) bf16

    # stage 2: Conv2d(32, 64, 5) + ReLU + MaxPool2d(3)
    u2 = _unfold_width(p1, kw=5, row_group=5)          # (N, 30, 30, 800) bf16
    u2 = _permute_pool_cols(u2, pool=3)
    w2 = params["cw2"].reshape(1, 800, 64).astype(jnp.bfloat16)
    p2 = conv_pool(u2, w2, params["cb2"], taps=1, row_step=5, pool=3,
                   row_tiles=2, rows_per_step=5)       # (N, 10, 10, 64) bf16

    # fused tail: conv3 -> pool2 -> conv4 -> pool2 -> flatten -> FC head
    # (final map is 1x1x128 so NHWC / NCHW flatten orders coincide)
    u3 = _unfold_width(p2, kw=3, row_group=1)          # (N, 10, 8, 192) bf16
    c3 = params["cw3"].shape[3]
    c4 = params["cw4"].shape[3]
    dim = params["fw1"].shape[0]
    nf = params["fw2"].shape[1]
    w3 = params["cw3"].reshape(3, 3 * 64, c3).astype(jnp.bfloat16)
    out = pl.pallas_call(
        _tail_kernel,
        out_shape=jax.ShapeDtypeStruct((n, 1, nf), jnp.float32),
        grid=(n,),
        in_specs=[
            pl.BlockSpec((1, 10, 8, 192), lambda i: (i, 0, 0, 0)),
            pl.BlockSpec((3, 192, c3), lambda i: (0, 0, 0)),
            pl.BlockSpec((1, c3), lambda i: (0, 0)),
            pl.BlockSpec((3, 3, c3, c4), lambda i: (0, 0, 0, 0)),
            pl.BlockSpec((1, c4), lambda i: (0, 0)),
            pl.BlockSpec((dim, dim), lambda i: (0, 0)),
            pl.BlockSpec((1, dim), lambda i: (0, 0)),
            pl.BlockSpec((dim, nf), lambda i: (0, 0)),
            pl.BlockSpec((1, nf), lambda i: (0, 0)),
        ],
        out_specs=pl.BlockSpec((1, 1, nf), lambda i: (i, 0, 0)),
        compiler_params=pltpu.CompilerParams(dimension_semantics=("parallel",)),
    )(u3,
      w3, params["cb3"],
      params["cw4"].astype(jnp.bfloat16), params["cb4"],
      params["fw1"].astype(jnp.bfloat16), params["fb1"],
      params["fw2"].astype(jnp.bfloat16), params["fb2"])
    return out.reshape(n, nf)


def init_params(key, num_features, dim):
    ks = jax.random.split(key, 12)

    def conv(kw_, kh, kwd, cin, cout):
        fan_in = kh * kwd * cin
        return jax.random.normal(kw_, (kh, kwd, cin, cout), jnp.float32) * jnp.sqrt(2.0 / fan_in)

    def lin(kw_, din, dout):
        return jax.random.normal(kw_, (din, dout), jnp.float32) * jnp.sqrt(2.0 / din)

    def bias(kw_, cout):
        return jax.random.normal(kw_, (1, cout), jnp.float32) * 0.01

    return dict(
        cw1=conv(ks[0], 10, 10, 3, 32),   cb1=bias(ks[1], 32),
        cw2=conv(ks[2], 5, 5, 32, 64),    cb2=bias(ks[3], 64),
        cw3=conv(ks[4], 3, 3, 64, 128),   cb3=bias(ks[5], 128),
        cw4=conv(ks[6], 3, 3, 128, 128),  cb4=bias(ks[7], 128),
        fw1=lin(ks[8], dim, dim),         fb1=bias(ks[9], dim),
        fw2=lin(ks[10], dim, num_features), fb2=bias(ks[11], num_features),
    )


if __name__ == "__main__":
    num_features, dim = 10, 128
    key = jax.random.PRNGKey(0)
    k_in, k_par = jax.random.split(key)

    # NCHW input, as the PyTorch module expects (batch=2, 3 channels, 111x111).
    x = jax.random.normal(k_in, (2, 3, 111, 111), jnp.float32)
    params = init_params(k_par, num_features, dim)

    fwd = jax.jit(leafnet_forward)
    out = jax.block_until_ready(fwd(x, params))

    assert out.shape == (2, num_features), out.shape
    assert bool(jnp.all(jnp.isfinite(out)))
    # approx reciprocal in the softmax -> rows sum to 1 within ~2^-12
    assert bool(jnp.allclose(jnp.sum(out, axis=1), 1.0, atol=2e-3))
    print("KERNEL_OK")
</pallas_src>

<mosaic_0001>
module attributes {stable_mosaic.version = 11 : i64} {
  func.func @_conv_pool_kernel(%arg0: i32, %arg1: i32, %arg2: memref<1x107x102x150xbf16, #tpu.memory_space<vmem>>, %arg3: memref<2x150x32xbf16, #tpu.memory_space<vmem>>, %arg4: memref<1x32xf32, #tpu.memory_space<vmem>>, %arg5: memref<1x17x34x32xbf16, #tpu.memory_space<vmem>>) attributes {dimension_semantics = [#tpu.dimension_semantics<parallel>, #tpu.dimension_semantics<parallel>], iteration_bounds = array<i64: 2, 2>, scalar_prefetch = 0 : i64, scratch_operands = 0 : i64, tpu.core_type = #tpu.core_type<tc>, window_params = [{transform_indices = @transform_0, window_bounds = array<i64: 1, 107, 102, 150>}, {pipeline_mode = #tpu.pipeline_mode<synchronous>, transform_indices = @transform_1, window_bounds = array<i64: 2, 150, 32>}, {pipeline_mode = #tpu.pipeline_mode<synchronous>, transform_indices = @transform_2, window_bounds = array<i64: 1, 32>}, {transform_indices = @transform_3, window_bounds = array<i64: 1, 17, 34, 32>}]} {
    %c0 = arith.constant 0 : index
    %c0_0 = arith.constant 0 : index
    %0 = vector.load %arg4[%c0, %c0_0] : memref<1x32xf32, #tpu.memory_space<vmem>>, vector<1x32xf32>
    %1 = vector.shape_cast %0 : vector<1x32xf32> to vector<1x32xf32>
    %2 = vector.broadcast %1 : vector<1x32xf32> to vector<34x32xf32>
    %c0_i32 = arith.constant 0 : i32
    %c17_i32 = arith.constant 17 : i32
    %3 = arith.addi %c0_i32, %c17_i32 : i32
    %c1_i32 = arith.constant 1 : i32
    scf.for %arg6 = %c0_i32 to %3 step %c1_i32  : i32 {
      %c17_i32_2 = arith.constant 17 : i32
      %4 = arith.muli %arg1, %c17_i32_2 : i32
      %5 = arith.addi %4, %arg6 : i32
      %c3_i32 = arith.constant 3 : i32
      %6 = arith.muli %5, %c3_i32 : i32
      %cst = arith.constant 0.000000e+00 : f32
      %7 = vector.broadcast %cst : f32 to vector<102x32xf32>
      %cst_3 = arith.constant 0.000000e+00 : f32
      %8 = vector.broadcast %cst_3 : f32 to vector<102x32xf32>
      %cst_4 = arith.constant 0.000000e+00 : f32
      %9 = vector.broadcast %cst_4 : f32 to vector<102x32xf32>
      %c0_5 = arith.constant 0 : index
      %c0_6 = arith.constant 0 : index
      %c0_7 = arith.constant 0 : index
      %10 = vector.load %arg3[%c0_5, %c0_6, %c0_7] : memref<2x150x32xbf16, #tpu.memory_space<vmem>>, vector<1x150x32xbf16>
      %11 = vector.shape_cast %10 : vector<1x150x32xbf16> to vector<150x32xbf16>
      %c0_i32_8 = arith.constant 0 : i32
      %12 = arith.addi %6, %c0_i32_8 : i32
      %c0_i32_9 = arith.constant 0 : i32
      %13 = arith.addi %12, %c0_i32_9 : i32
      %c0_10 = arith.constant 0 : index
      %14 = arith.index_cast %13 : i32 to index
      %c0_11 = arith.constant 0 : index
      %c0_12 = arith.constant 0 : index
      %15 = vector.load %arg2[%c0_10, %14, %c0_11, %c0_12] : memref<1x107x102x150xbf16, #tpu.memory_space<vmem>>, vector<1x1x102x150xbf16>
      %16 = vector.shape_cast %15 : vector<1x1x102x150xbf16> to vector<102x150xbf16>
      %cst_13 = arith.constant dense<0.000000e+00> : vector<102x32xf32>
      %17 = tpu.matmul %16, %11, %cst_13 {dimension_numbers = #tpu.dot_dimension_numbers<[1], [0], [0], [1], [0, 0, 1, 1], [], []>} : vector<102x150xbf16>, vector<150x32xbf16>, vector<102x32xf32> -> vector<102x32xf32>
      %18 = arith.addf %7, %17 : vector<102x32xf32>
      %c1_i32_14 = arith.constant 1 : i32
      %19 = arith.addi %6, %c1_i32_14 : i32
      %c0_i32_15 = arith.constant 0 : i32
      %20 = arith.addi %19, %c0_i32_15 : i32
      %c0_16 = arith.constant 0 : index
      %21 = arith.index_cast %20 : i32 to index
      %c0_17 = arith.constant 0 : index
      %c0_18 = arith.constant 0 : index
      %22 = vector.load %arg2[%c0_16, %21, %c0_17, %c0_18] : memref<1x107x102x150xbf16, #tpu.memory_space<vmem>>, vector<1x1x102x150xbf16>
      %23 = vector.shape_cast %22 : vector<1x1x102x150xbf16> to vector<102x150xbf16>
      %cst_19 = arith.constant dense<0.000000e+00> : vector<102x32xf32>
      %24 = tpu.matmul %23, %11, %cst_19 {dimension_numbers = #tpu.dot_dimension_numbers<[1], [0], [0], [1], [0, 0, 1, 1], [], []>} : vector<102x150xbf16>, vector<150x32xbf16>, vector<102x32xf32> -> vector<102x32xf32>
      %25 = arith.addf %8, %24 : vector<102x32xf32>
      %c2_i32 = arith.constant 2 : i32
      %26 = arith.addi %6, %c2_i32 : i32
      %c0_i32_20 = arith.constant 0 : i32
      %27 = arith.addi %26, %c0_i32_20 : i32
      %c0_21 = arith.constant 0 : index
      %28 = arith.index_cast %27 : i32 to index
      %c0_22 = arith.constant 0 : index
      %c0_23 = arith.constant 0 : index
      %29 = vector.load %arg2[%c0_21, %28, %c0_22, %c0_23] : memref<1x107x102x150xbf16, #tpu.memory_space<vmem>>, vector<1x1x102x150xbf16>
      %30 = vector.shape_cast %29 : vector<1x1x102x150xbf16> to vector<102x150xbf16>
      %cst_24 = arith.constant dense<0.000000e+00> : vector<102x32xf32>
      %31 = tpu.matmul %30, %11, %cst_24 {dimension_numbers = #tpu.dot_dimension_numbers<[1], [0], [0], [1], [0, 0, 1, 1], [], []>} : vector<102x150xbf16>, vector<150x32xbf16>, vector<102x32xf32> -> vector<102x32xf32>
      %32 = arith.addf %9, %31 : vector<102x32xf32>
      %c1 = arith.constant 1 : index
      %c0_25 = arith.constant 0 : index
      %c0_26 = arith.constant 0 : index
      %33 = vector.load %arg3[%c1, %c0_25, %c0_26] : memref<2x150x32xbf16, #tpu.memory_space<vmem>>, vector<1x150x32xbf16>
      %34 = vector.shape_cast %33 : vector<1x150x32xbf16> to vector<150x32xbf16>
      %c0_i32_27 = arith.constant 0 : i32
      %35 = arith.addi %6, %c0_i32_27 : i32
      %c5_i32 = arith.constant 5 : i32
      %36 = arith.addi %35, %c5_i32 : i32
      %c0_28 = arith.constant 0 : index
      %37 = arith.index_cast %36 : i32 to index
      %c0_29 = arith.constant 0 : index
      %c0_30 = arith.constant 0 : index
      %38 = vector.load %arg2[%c0_28, %37, %c0_29, %c0_30] : memref<1x107x102x150xbf16, #tpu.memory_space<vmem>>, vector<1x1x102x150xbf16>
      %39 = vector.shape_cast %38 : vector<1x1x102x150xbf16> to vector<102x150xbf16>
      %cst_31 = arith.constant dense<0.000000e+00> : vector<102x32xf32>
      %40 = tpu.matmul %39, %34, %cst_31 {dimension_numbers = #tpu.dot_dimension_numbers<[1], [0], [0], [1], [0, 0, 1, 1], [], []>} : vector<102x150xbf16>, vector<150x32xbf16>, vector<102x32xf32> -> vector<102x32xf32>
      %41 = arith.addf %18, %40 : vector<102x32xf32>
      %c1_i32_32 = arith.constant 1 : i32
      %42 = arith.addi %6, %c1_i32_32 : i32
      %c5_i32_33 = arith.constant 5 : i32
      %43 = arith.addi %42, %c5_i32_33 : i32
      %c0_34 = arith.constant 0 : index
      %44 = arith.index_cast %43 : i32 to index
      %c0_35 = arith.constant 0 : index
      %c0_36 = arith.constant 0 : index
      %45 = vector.load %arg2[%c0_34, %44, %c0_35, %c0_36] : memref<1x107x102x150xbf16, #tpu.memory_space<vmem>>, vector<1x1x102x150xbf16>
      %46 = vector.shape_cast %45 : vector<1x1x102x150xbf16> to vector<102x150xbf16>
      %cst_37 = arith.constant dense<0.000000e+00> : vector<102x32xf32>
      %47 = tpu.matmul %46, %34, %cst_37 {dimension_numbers = #tpu.dot_dimension_numbers<[1], [0], [0], [1], [0, 0, 1, 1], [], []>} : vector<102x150xbf16>, vector<150x32xbf16>, vector<102x32xf32> -> vector<102x32xf32>
      %48 = arith.addf %25, %47 : vector<102x32xf32>
      %c2_i32_38 = arith.constant 2 : i32
      %49 = arith.addi %6, %c2_i32_38 : i32
      %c5_i32_39 = arith.constant 5 : i32
      %50 = arith.addi %49, %c5_i32_39 : i32
      %c0_40 = arith.constant 0 : index
      %51 = arith.index_cast %50 : i32 to index
      %c0_41 = arith.constant 0 : index
      %c0_42 = arith.constant 0 : index
      %52 = vector.load %arg2[%c0_40, %51, %c0_41, %c0_42] : memref<1x107x102x150xbf16, #tpu.memory_space<vmem>>, vector<1x1x102x150xbf16>
      %53 = vector.shape_cast %52 : vector<1x1x102x150xbf16> to vector<102x150xbf16>
      %cst_43 = arith.constant dense<0.000000e+00> : vector<102x32xf32>
      %54 = tpu.matmul %53, %34, %cst_43 {dimension_numbers = #tpu.dot_dimension_numbers<[1], [0], [0], [1], [0, 0, 1, 1], [], []>} : vector<102x150xbf16>, vector<150x32xbf16>, vector<102x32xf32> -> vector<102x32xf32>
      %55 = arith.addf %32, %54 : vector<102x32xf32>
      %56 = arith.maximumf %41, %48 : vector<102x32xf32>
      %57 = arith.maximumf %56, %55 : vector<102x32xf32>
      %58 = vector.extract_strided_slice %57 {offsets = [0, 0], sizes = [34, 32], strides = [1, 1]} : vector<102x32xf32> to vector<34x32xf32>
      %59 = vector.extract_strided_slice %57 {offsets = [34, 0], sizes = [34, 32], strides = [1, 1]} : vector<102x32xf32> to vector<34x32xf32>
      %60 = arith.maximumf %58, %59 : vector<34x32xf32>
      %61 = vector.extract_strided_slice %57 {offsets = [68, 0], sizes = [34, 32], strides = [1, 1]} : vector<102x32xf32> to vector<34x32xf32>
      %62 = arith.maximumf %60, %61 : vector<34x32xf32>
      %63 = arith.addf %62, %2 : vector<34x32xf32>
      %cst_44 = arith.constant 0.000000e+00 : f32
      %64 = vector.broadcast %cst_44 : f32 to vector<34x32xf32>
      %65 = arith.maximumf %63, %64 : vector<34x32xf32>
      %66 = arith.truncf %65 : vector<34x32xf32> to vector<34x32xbf16>
      %c0_45 = arith.constant 0 : index
      %67 = arith.index_cast %arg6 : i32 to index
      %c0_46 = arith.constant 0 : index
      %c0_47 = arith.constant 0 : index
      %68 = vector.load %arg5[%c0_45, %67, %c0_46, %c0_47] : memref<1x17x34x32xbf16, #tpu.memory_space<vmem>>, vector<1x1x34x32xbf16>
      %69 = vector.shape_cast %68 : vector<1x1x34x32xbf16> to vector<34x32xbf16>
      %70 = vector.shape_cast %66 : vector<34x32xbf16> to vector<1x1x34x32xbf16>
      tpu.vector_store %arg5[%c0_45, %67, %c0_46, %c0_47], %70 {strides = array<i32>} : memref<1x17x34x32xbf16, #tpu.memory_space<vmem>>, vector<1x1x34x32xbf16>,
    }
    %c17_i32_1 = arith.constant 17 : i32
    return
  }
  func.func @transform_0(%arg0: i32, %arg1: i32) -> (i32, i32, i32, i32) {
    %c0_i32 = arith.constant 0 : i32
    %c0_i32_0 = arith.constant 0 : i32
    %c0_i32_1 = arith.constant 0 : i32
    %c0_i32_2 = arith.constant 0 : i32
    return %arg0, %c0_i32, %c0_i32_0, %c0_i32_1 : i32, i32, i32, i32
  }
  func.func @transform_1(%arg0: i32, %arg1: i32) -> (i32, i32, i32) {
    %c0_i32 = arith.constant 0 : i32
    %c0_i32_0 = arith.constant 0 : i32
    %c0_i32_1 = arith.constant 0 : i32
    %c0_i32_2 = arith.constant 0 : i32
    return %c0_i32, %c0_i32_0, %c0_i32_1 : i32, i32, i32
  }
  func.func @transform_2(%arg0: i32, %arg1: i32) -> (i32, i32) {
    %c0_i32 = arith.constant 0 : i32
    %c0_i32_0 = arith.constant 0 : i32
    %c0_i32_1 = arith.constant 0 : i32
    return %c0_i32, %c0_i32_0 : i32, i32
  }
  func.func @transform_3(%arg0: i32, %arg1: i32) -> (i32, i32, i32, i32) {
    %c0_i32 = arith.constant 0 : i32
    %c0_i32_0 = arith.constant 0 : i32
    %c0_i32_1 = arith.constant 0 : i32
    return %arg0, %arg1, %c0_i32, %c0_i32_0 : i32, i32, i32, i32
  }
}

module attributes {stable_mosaic.version = 11 : i64} {
  func.func @_conv_pool_kernel(%arg0: i32, %arg1: i32, %arg2: memref<1x30x30x800xbf16, #tpu.memory_space<vmem>>, %arg3: memref<1x800x64xbf16, #tpu.memory_space<vmem>>, %arg4: memref<1x64xf32, #tpu.memory_space<vmem>>, %arg5: memref<1x5x10x64xbf16, #tpu.memory_space<vmem>>) attributes {dimension_semantics = [#tpu.dimension_semantics<parallel>, #tpu.dimension_semantics<parallel>], iteration_bounds = array<i64: 2, 2>, scalar_prefetch = 0 : i64, scratch_operands = 0 : i64, tpu.core_type = #tpu.core_type<tc>, window_params = [{transform_indices = @transform_0, window_bounds = array<i64: 1, 30, 30, 800>}, {pipeline_mode = #tpu.pipeline_mode<synchronous>, transform_indices = @transform_1, window_bounds = array<i64: 1, 800, 64>}, {pipeline_mode = #tpu.pipeline_mode<synchronous>, transform_indices = @transform_2, window_bounds = array<i64: 1, 64>}, {transform_indices = @transform_3, window_bounds = array<i64: 1, 5, 10, 64>}]} {
    %c0 = arith.constant 0 : index
    %c0_0 = arith.constant 0 : index
    %0 = vector.load %arg4[%c0, %c0_0] : memref<1x64xf32, #tpu.memory_space<vmem>>, vector<1x64xf32>
    %1 = vector.shape_cast %0 : vector<1x64xf32> to vector<1x64xf32>
    %2 = vector.broadcast %1 : vector<1x64xf32> to vector<10x64xf32>
    %c0_i32 = arith.constant 0 : i32
    %c5_i32 = arith.constant 5 : i32
    %3 = arith.addi %c0_i32, %c5_i32 : i32
    %c1_i32 = arith.constant 1 : i32
    scf.for %arg6 = %c0_i32 to %3 step %c1_i32  : i32 {
      %c5_i32_2 = arith.constant 5 : i32
      %4 = arith.muli %arg1, %c5_i32_2 : i32
      %5 = arith.addi %4, %arg6 : i32
      %c3_i32 = arith.constant 3 : i32
      %6 = arith.muli %5, %c3_i32 : i32
      %cst = arith.constant 0.000000e+00 : f32
      %7 = vector.broadcast %cst : f32 to vector<30x64xf32>
      %cst_3 = arith.constant 0.000000e+00 : f32
      %8 = vector.broadcast %cst_3 : f32 to vector<30x64xf32>
      %cst_4 = arith.constant 0.000000e+00 : f32
      %9 = vector.broadcast %cst_4 : f32 to vector<30x64xf32>
      %c0_5 = arith.constant 0 : index
      %c0_6 = arith.constant 0 : index
      %c0_7 = arith.constant 0 : index
      %10 = vector.load %arg3[%c0_5, %c0_6, %c0_7] : memref<1x800x64xbf16, #tpu.memory_space<vmem>>, vector<1x800x64xbf16>
      %11 = vector.shape_cast %10 : vector<1x800x64xbf16> to vector<800x64xbf16>
      %c0_i32_8 = arith.constant 0 : i32
      %12 = arith.addi %6, %c0_i32_8 : i32
      %c0_i32_9 = arith.constant 0 : i32
      %13 = arith.addi %12, %c0_i32_9 : i32
      %c0_10 = arith.constant 0 : index
      %14 = arith.index_cast %13 : i32 to index
      %c0_11 = arith.constant 0 : index
      %c0_12 = arith.constant 0 : index
      %15 = vector.load %arg2[%c0_10, %14, %c0_11, %c0_12] : memref<1x30x30x800xbf16, #tpu.memory_space<vmem>>, vector<1x1x30x800xbf16>
      %16 = vector.shape_cast %15 : vector<1x1x30x800xbf16> to vector<30x800xbf16>
      %cst_13 = arith.constant dense<0.000000e+00> : vector<30x64xf32>
      %17 = tpu.matmul %16, %11, %cst_13 {dimension_numbers = #tpu.dot_dimension_numbers<[1], [0], [0], [1], [0, 0, 1, 1], [], []>} : vector<30x800xbf16>, vector<800x64xbf16>, vector<30x64xf32> -> vector<30x64xf32>
      %18 = arith.addf %7, %17 : vector<30x64xf32>
      %c1_i32_14 = arith.constant 1 : i32
      %19 = arith.addi %6, %c1_i32_14 : i32
      %c0_i32_15 = arith.constant 0 : i32
      %20 = arith.addi %19, %c0_i32_15 : i32
      %c0_16 = arith.constant 0 : index
      %21 = arith.index_cast %20 : i32 to index
      %c0_17 = arith.constant 0 : index
      %c0_18 = arith.constant 0 : index
      %22 = vector.load %arg2[%c0_16, %21, %c0_17, %c0_18] : memref<1x30x30x800xbf16, #tpu.memory_space<vmem>>, vector<1x1x30x800xbf16>
      %23 = vector.shape_cast %22 : vector<1x1x30x800xbf16> to vector<30x800xbf16>
      %cst_19 = arith.constant dense<0.000000e+00> : vector<30x64xf32>
      %24 = tpu.matmul %23, %11, %cst_19 {dimension_numbers = #tpu.dot_dimension_numbers<[1], [0], [0], [1], [0, 0, 1, 1], [], []>} : vector<30x800xbf16>, vector<800x64xbf16>, vector<30x64xf32> -> vector<30x64xf32>
      %25 = arith.addf %8, %24 : vector<30x64xf32>
      %c2_i32 = arith.constant 2 : i32
      %26 = arith.addi %6, %c2_i32 : i32
      %c0_i32_20 = arith.constant 0 : i32
      %27 = arith.addi %26, %c0_i32_20 : i32
      %c0_21 = arith.constant 0 : index
      %28 = arith.index_cast %27 : i32 to index
      %c0_22 = arith.constant 0 : index
      %c0_23 = arith.constant 0 : index
      %29 = vector.load %arg2[%c0_21, %28, %c0_22, %c0_23] : memref<1x30x30x800xbf16, #tpu.memory_space<vmem>>, vector<1x1x30x800xbf16>
      %30 = vector.shape_cast %29 : vector<1x1x30x800xbf16> to vector<30x800xbf16>
      %cst_24 = arith.constant dense<0.000000e+00> : vector<30x64xf32>
      %31 = tpu.matmul %30, %11, %cst_24 {dimension_numbers = #tpu.dot_dimension_numbers<[1], [0], [0], [1], [0, 0, 1, 1], [], []>} : vector<30x800xbf16>, vector<800x64xbf16>, vector<30x64xf32> -> vector<30x64xf32>
      %32 = arith.addf %9, %31 : vector<30x64xf32>
      %33 = arith.maximumf %18, %25 : vector<30x64xf32>
      %34 = arith.maximumf %33, %32 : vector<30x64xf32>
      %35 = vector.extract_strided_slice %34 {offsets = [0, 0], sizes = [10, 64], strides = [1, 1]} : vector<30x64xf32> to vector<10x64xf32>
      %36 = vector.extract_strided_slice %34 {offsets = [10, 0], sizes = [10, 64], strides = [1, 1]} : vector<30x64xf32> to vector<10x64xf32>
      %37 = arith.maximumf %35, %36 : vector<10x64xf32>
      %38 = vector.extract_strided_slice %34 {offsets = [20, 0], sizes = [10, 64], strides = [1, 1]} : vector<30x64xf32> to vector<10x64xf32>
      %39 = arith.maximumf %37, %38 : vector<10x64xf32>
      %40 = arith.addf %39, %2 : vector<10x64xf32>
      %cst_25 = arith.constant 0.000000e+00 : f32
      %41 = vector.broadcast %cst_25 : f32 to vector<10x64xf32>
      %42 = arith.maximumf %40, %41 : vector<10x64xf32>
      %43 = arith.truncf %42 : vector<10x64xf32> to vector<10x64xbf16>
      %c0_26 = arith.constant 0 : index
      %44 = arith.index_cast %arg6 : i32 to index
      %c0_27 = arith.constant 0 : index
      %c0_28 = arith.constant 0 : index
      %45 = vector.load %arg5[%c0_26, %44, %c0_27, %c0_28] : memref<1x5x10x64xbf16, #tpu.memory_space<vmem>>, vector<1x1x10x64xbf16>
      %46 = vector.shape_cast %45 : vector<1x1x10x64xbf16> to vector<10x64xbf16>
      %47 = vector.shape_cast %43 : vector<10x64xbf16> to vector<1x1x10x64xbf16>
      tpu.vector_store %arg5[%c0_26, %44, %c0_27, %c0_28], %47 {strides = array<i32>} : memref<1x5x10x64xbf16, #tpu.memory_space<vmem>>, vector<1x1x10x64xbf16>,
    }
    %c5_i32_1 = arith.constant 5 : i32
    return
  }
  func.func @transform_0(%arg0: i32, %arg1: i32) -> (i32, i32, i32, i32) {
    %c0_i32 = arith.constant 0 : i32
    %c0_i32_0 = arith.constant 0 : i32
    %c0_i32_1 = arith.constant 0 : i32
    %c0_i32_2 = arith.constant 0 : i32
    return %arg0, %c0_i32, %c0_i32_0, %c0_i32_1 : i32, i32, i32, i32
  }
  func.func @transform_1(%arg0: i32, %arg1: i32) -> (i32, i32, i32) {
    %c0_i32 = arith.constant 0 : i32
    %c0_i32_0 = arith.constant 0 : i32
    %c0_i32_1 = arith.constant 0 : i32
    %c0_i32_2 = arith.constant 0 : i32
    return %c0_i32, %c0_i32_0, %c0_i32_1 : i32, i32, i32
  }
  func.func @transform_2(%arg0: i32, %arg1: i32) -> (i32, i32) {
    %c0_i32 = arith.constant 0 : i32
    %c0_i32_0 = arith.constant 0 : i32
    %c0_i32_1 = arith.constant 0 : i32
    return %c0_i32, %c0_i32_0 : i32, i32
  }
  func.func @transform_3(%arg0: i32, %arg1: i32) -> (i32, i32, i32, i32) {
    %c0_i32 = arith.constant 0 : i32
    %c0_i32_0 = arith.constant 0 : i32
    %c0_i32_1 = arith.constant 0 : i32
    return %arg0, %arg1, %c0_i32, %c0_i32_0 : i32, i32, i32, i32
  }
}

module attributes {stable_mosaic.version = 11 : i64} {
  func.func @_tail_kernel(%arg0: i32, %arg1: memref<1x10x8x192xbf16, #tpu.memory_space<vmem>>, %arg2: memref<3x192x128xbf16, #tpu.memory_space<vmem>>, %arg3: memref<1x128xf32, #tpu.memory_space<vmem>>, %arg4: memref<3x3x128x128xbf16, #tpu.memory_space<vmem>>, %arg5: memref<1x128xf32, #tpu.memory_space<vmem>>, %arg6: memref<128x128xbf16, #tpu.memory_space<vmem>>, %arg7: memref<1x128xf32, #tpu.memory_space<vmem>>, %arg8: memref<128x10xbf16, #tpu.memory_space<vmem>>, %arg9: memref<1x10xf32, #tpu.memory_space<vmem>>, %arg10: memref<1x1x10xf32, #tpu.memory_space<vmem>>) attributes {dimension_semantics = [#tpu.dimension_semantics<parallel>], iteration_bounds = array<i64: 2>, scalar_prefetch = 0 : i64, scratch_operands = 0 : i64, tpu.core_type = #tpu.core_type<tc>, window_params = [{transform_indices = @transform_0, window_bounds = array<i64: 1, 10, 8, 192>}, {pipeline_mode = #tpu.pipeline_mode<synchronous>, transform_indices = @transform_1, window_bounds = array<i64: 3, 192, 128>}, {pipeline_mode = #tpu.pipeline_mode<synchronous>, transform_indices = @transform_2, window_bounds = array<i64: 1, 128>}, {pipeline_mode = #tpu.pipeline_mode<synchronous>, transform_indices = @transform_3, window_bounds = array<i64: 3, 3, 128, 128>}, {pipeline_mode = #tpu.pipeline_mode<synchronous>, transform_indices = @transform_4, window_bounds = array<i64: 1, 128>}, {pipeline_mode = #tpu.pipeline_mode<synchronous>, transform_indices = @transform_5, window_bounds = array<i64: 128, 128>}, {pipeline_mode = #tpu.pipeline_mode<synchronous>, transform_indices = @transform_6, window_bounds = array<i64: 1, 128>}, {pipeline_mode = #tpu.pipeline_mode<synchronous>, transform_indices = @transform_7, window_bounds = array<i64: 128, 10>}, {pipeline_mode = #tpu.pipeline_mode<synchronous>, transform_indices = @transform_8, window_bounds = array<i64: 1, 10>}, {transform_indices = @transform_9, window_bounds = array<i64: 1, 1, 10>}]} {
    %c0 = arith.constant 0 : index
    %c0_0 = arith.constant 0 : index
    %0 = vector.load %arg3[%c0, %c0_0] : memref<1x128xf32, #tpu.memory_space<vmem>>, vector<1x128xf32>
    %1 = vector.shape_cast %0 : vector<1x128xf32> to vector<1x128xf32>
    %2 = vector.broadcast %1 : vector<1x128xf32> to vector<8x128xf32>
    %c0_1 = arith.constant 0 : index
    %c0_2 = arith.constant 0 : index
    %3 = vector.load %arg5[%c0_1, %c0_2] : memref<1x128xf32, #tpu.memory_space<vmem>>, vector<1x128xf32>
    %4 = vector.shape_cast %3 : vector<1x128xf32> to vector<1x128xf32>
    %5 = vector.broadcast %4 : vector<1x128xf32> to vector<2x128xf32>
    %c0_3 = arith.constant 0 : index
    %c0_4 = arith.constant 0 : index
    %c0_5 = arith.constant 0 : index
    %c0_6 = arith.constant 0 : index
    %6 = vector.load %arg1[%c0_3, %c0_4, %c0_5, %c0_6] : memref<1x10x8x192xbf16, #tpu.memory_space<vmem>>, vector<1x10x8x192xbf16>
    %7 = vector.shape_cast %6 : vector<1x10x8x192xbf16> to vector<10x8x192xbf16>
    %cst = arith.constant 0.000000e+00 : f32
    %8 = vector.broadcast %cst : f32 to vector<8x128xf32>
    %9 = vector.extract_strided_slice %7 {offsets = [0, 0, 0], sizes = [1, 8, 192], strides = [1, 1, 1]} : vector<10x8x192xbf16> to vector<1x8x192xbf16>
    %10 = vector.shape_cast %9 : vector<1x8x192xbf16> to vector<8x192xbf16>
    %c0_7 = arith.constant 0 : index
    %c0_8 = arith.constant 0 : index
    %c0_9 = arith.constant 0 : index
    %11 = vector.load %arg2[%c0_7, %c0_8, %c0_9] : memref<3x192x128xbf16, #tpu.memory_space<vmem>>, vector<1x192x128xbf16>
    %12 = vector.shape_cast %11 : vector<1x192x128xbf16> to vector<192x128xbf16>
    %cst_10 = arith.constant dense<0.000000e+00> : vector<8x128xf32>
    %13 = tpu.matmul %10, %12, %cst_10 {dimension_numbers = #tpu.dot_dimension_numbers<[1], [0], [0], [1], [0, 0, 1, 1], [], []>} : vector<8x192xbf16>, vector<192x128xbf16>, vector<8x128xf32> -> vector<8x128xf32>
    %14 = arith.addf %8, %13 : vector<8x128xf32>
    %15 = vector.extract_strided_slice %7 {offsets = [1, 0, 0], sizes = [1, 8, 192], strides = [1, 1, 1]} : vector<10x8x192xbf16> to vector<1x8x192xbf16>
    %16 = vector.shape_cast %15 : vector<1x8x192xbf16> to vector<8x192xbf16>
    %c1 = arith.constant 1 : index
    %c0_11 = arith.constant 0 : index
    %c0_12 = arith.constant 0 : index
    %17 = vector.load %arg2[%c1, %c0_11, %c0_12] : memref<3x192x128xbf16, #tpu.memory_space<vmem>>, vector<1x192x128xbf16>
    %18 = vector.shape_cast %17 : vector<1x192x128xbf16> to vector<192x128xbf16>
    %cst_13 = arith.constant dense<0.000000e+00> : vector<8x128xf32>
    %19 = tpu.matmul %16, %18, %cst_13 {dimension_numbers = #tpu.dot_dimension_numbers<[1], [0], [0], [1], [0, 0, 1, 1], [], []>} : vector<8x192xbf16>, vector<192x128xbf16>, vector<8x128xf32> -> vector<8x128xf32>
    %20 = arith.addf %14, %19 : vector<8x128xf32>
    %21 = vector.extract_strided_slice %7 {offsets = [2, 0, 0], sizes = [1, 8, 192], strides = [1, 1, 1]} : vector<10x8x192xbf16> to vector<1x8x192xbf16>
    %22 = vector.shape_cast %21 : vector<1x8x192xbf16> to vector<8x192xbf16>
    %c2 = arith.constant 2 : index
    %c0_14 = arith.constant 0 : index
    %c0_15 = arith.constant 0 : index
    %23 = vector.load %arg2[%c2, %c0_14, %c0_15] : memref<3x192x128xbf16, #tpu.memory_space<vmem>>, vector<1x192x128xbf16>
    %24 = vector.shape_cast %23 : vector<1x192x128xbf16> to vector<192x128xbf16>
    %cst_16 = arith.constant dense<0.000000e+00> : vector<8x128xf32>
    %25 = tpu.matmul %22, %24, %cst_16 {dimension_numbers = #tpu.dot_dimension_numbers<[1], [0], [0], [1], [0, 0, 1, 1], [], []>} : vector<8x192xbf16>, vector<192x128xbf16>, vector<8x128xf32> -> vector<8x128xf32>
    %26 = arith.addf %20, %25 : vector<8x128xf32>
    %cst_17 = arith.constant 0.000000e+00 : f32
    %27 = vector.broadcast %cst_17 : f32 to vector<8x128xf32>
    %28 = vector.extract_strided_slice %7 {offsets = [1, 0, 0], sizes = [1, 8, 192], strides = [1, 1, 1]} : vector<10x8x192xbf16> to vector<1x8x192xbf16>
    %29 = vector.shape_cast %28 : vector<1x8x192xbf16> to vector<8x192xbf16>
    %c0_18 = arith.constant 0 : index
    %c0_19 = arith.constant 0 : index
    %c0_20 = arith.constant 0 : index
    %30 = vector.load %arg2[%c0_18, %c0_19, %c0_20] : memref<3x192x128xbf16, #tpu.memory_space<vmem>>, vector<1x192x128xbf16>
    %31 = vector.shape_cast %30 : vector<1x192x128xbf16> to vector<192x128xbf16>
    %cst_21 = arith.constant dense<0.000000e+00> : vector<8x128xf32>
    %32 = tpu.matmul %29, %31, %cst_21 {dimension_numbers = #tpu.dot_dimension_numbers<[1], [0], [0], [1], [0, 0, 1, 1], [], []>} : vector<8x192xbf16>, vector<192x128xbf16>, vector<8x128xf32> -> vector<8x128xf32>
    %33 = arith.addf %27, %32 : vector<8x128xf32>
    %34 = vector.extract_strided_slice %7 {offsets = [2, 0, 0], sizes = [1, 8, 192], strides = [1, 1, 1]} : vector<10x8x192xbf16> to vector<1x8x192xbf16>
    %35 = vector.shape_cast %34 : vector<1x8x192xbf16> to vector<8x192xbf16>
    %c1_22 = arith.constant 1 : index
    %c0_23 = arith.constant 0 : index
    %c0_24 = arith.constant 0 : index
    %36 = vector.load %arg2[%c1_22, %c0_23, %c0_24] : memref<3x192x128xbf16, #tpu.memory_space<vmem>>, vector<1x192x128xbf16>
    %37 = vector.shape_cast %36 : vector<1x192x128xbf16> to vector<192x128xbf16>
    %cst_25 = arith.constant dense<0.000000e+00> : vector<8x128xf32>
    %38 = tpu.matmul %35, %37, %cst_25 {dimension_numbers = #tpu.dot_dimension_numbers<[1], [0], [0], [1], [0, 0, 1, 1], [], []>} : vector<8x192xbf16>, vector<192x128xbf16>, vector<8x128xf32> -> vector<8x128xf32>
    %39 = arith.addf %33, %38 : vector<8x128xf32>
    %40 = vector.extract_strided_slice %7 {offsets = [3, 0, 0], sizes = [1, 8, 192], strides = [1, 1, 1]} : vector<10x8x192xbf16> to vector<1x8x192xbf16>
    %41 = vector.shape_cast %40 : vector<1x8x192xbf16> to vector<8x192xbf16>
    %c2_26 = arith.constant 2 : index
    %c0_27 = arith.constant 0 : index
    %c0_28 = arith.constant 0 : index
    %42 = vector.load %arg2[%c2_26, %c0_27, %c0_28] : memref<3x192x128xbf16, #tpu.memory_space<vmem>>, vector<1x192x128xbf16>
    %43 = vector.shape_cast %42 : vector<1x192x128xbf16> to vector<192x128xbf16>
    %cst_29 = arith.constant dense<0.000000e+00> : vector<8x128xf32>
    %44 = tpu.matmul %41, %43, %cst_29 {dimension_numbers = #tpu.dot_dimension_numbers<[1], [0], [0], [1], [0, 0, 1, 1], [], []>} : vector<8x192xbf16>, vector<192x128xbf16>, vector<8x128xf32> -> vector<8x128xf32>
    %45 = arith.addf %39, %44 : vector<8x128xf32>
    %46 = arith.maximumf %26, %45 : vector<8x128xf32>
    %47 = arith.addf %46, %2 : vector<8x128xf32>
    %cst_30 = arith.constant 0.000000e+00 : f32
    %48 = vector.broadcast %cst_30 : f32 to vector<8x128xf32>
    %49 = arith.maximumf %47, %48 : vector<8x128xf32>
    %50 = vector.extract_strided_slice %49 {offsets = [0, 0], sizes = [1, 128], strides = [1, 1]} : vector<8x128xf32> to vector<1x128xf32>
    %51 = vector.extract_strided_slice %49 {offsets = [1, 0], sizes = [1, 128], strides = [1, 1]} : vector<8x128xf32> to vector<1x128xf32>
    %52 = arith.maximumf %50, %51 : vector<1x128xf32>
    %53 = vector.extract_strided_slice %49 {offsets = [2, 0], sizes = [1, 128], strides = [1, 1]} : vector<8x128xf32> to vector<1x128xf32>
    %54 = vector.extract_strided_slice %49 {offsets = [3, 0], sizes = [1, 128], strides = [1, 1]} : vector<8x128xf32> to vector<1x128xf32>
    %55 = arith.maximumf %53, %54 : vector<1x128xf32>
    %56 = vector.extract_strided_slice %49 {offsets = [4, 0], sizes = [1, 128], strides = [1, 1]} : vector<8x128xf32> to vector<1x128xf32>
    %57 = vector.extract_strided_slice %49 {offsets = [5, 0], sizes = [1, 128], strides = [1, 1]} : vector<8x128xf32> to vector<1x128xf32>
    %58 = arith.maximumf %56, %57 : vector<1x128xf32>
    %59 = vector.extract_strided_slice %49 {offsets = [6, 0], sizes = [1, 128], strides = [1, 1]} : vector<8x128xf32> to vector<1x128xf32>
    %60 = vector.extract_strided_slice %49 {offsets = [7, 0], sizes = [1, 128], strides = [1, 1]} : vector<8x128xf32> to vector<1x128xf32>
    %61 = arith.maximumf %59, %60 : vector<1x128xf32>
    %62 = tpu.concatenate %52, %55, %58, %61 in 0 : vector<1x128xf32>, vector<1x128xf32>, vector<1x128xf32>, vector<1x128xf32> -> vector<4x128xf32>
    %63 = arith.truncf %62 : vector<4x128xf32> to vector<4x128xbf16>
    %cst_31 = arith.constant 0.000000e+00 : f32
    %64 = vector.broadcast %cst_31 : f32 to vector<8x128xf32>
    %65 = vector.extract_strided_slice %7 {offsets = [2, 0, 0], sizes = [1, 8, 192], strides = [1, 1, 1]} : vector<10x8x192xbf16> to vector<1x8x192xbf16>
    %66 = vector.shape_cast %65 : vector<1x8x192xbf16> to vector<8x192xbf16>
    %c0_32 = arith.constant 0 : index
    %c0_33 = arith.constant 0 : index
    %c0_34 = arith.constant 0 : index
    %67 = vector.load %arg2[%c0_32, %c0_33, %c0_34] : memref<3x192x128xbf16, #tpu.memory_space<vmem>>, vector<1x192x128xbf16>
    %68 = vector.shape_cast %67 : vector<1x192x128xbf16> to vector<192x128xbf16>
    %cst_35 = arith.constant dense<0.000000e+00> : vector<8x128xf32>
    %69 = tpu.matmul %66, %68, %cst_35 {dimension_numbers = #tpu.dot_dimension_numbers<[1], [0], [0], [1], [0, 0, 1, 1], [], []>} : vector<8x192xbf16>, vector<192x128xbf16>, vector<8x128xf32> -> vector<8x128xf32>
    %70 = arith.addf %64, %69 : vector<8x128xf32>
    %71 = vector.extract_strided_slice %7 {offsets = [3, 0, 0], sizes = [1, 8, 192], strides = [1, 1, 1]} : vector<10x8x192xbf16> to vector<1x8x192xbf16>
    %72 = vector.shape_cast %71 : vector<1x8x192xbf16> to vector<8x192xbf16>
    %c1_36 = arith.constant 1 : index
    %c0_37 = arith.constant 0 : index
    %c0_38 = arith.constant 0 : index
    %73 = vector.load %arg2[%c1_36, %c0_37, %c0_38] : memref<3x192x128xbf16, #tpu.memory_space<vmem>>, vector<1x192x128xbf16>
    %74 = vector.shape_cast %73 : vector<1x192x128xbf16> to vector<192x128xbf16>
    %cst_39 = arith.constant dense<0.000000e+00> : vector<8x128xf32>
    %75 = tpu.matmul %72, %74, %cst_39 {dimension_numbers = #tpu.dot_dimension_numbers<[1], [0], [0], [1], [0, 0, 1, 1], [], []>} : vector<8x192xbf16>, vector<192x128xbf16>, vector<8x128xf32> -> vector<8x128xf32>
    %76 = arith.addf %70, %75 : vector<8x128xf32>
    %77 = vector.extract_strided_slice %7 {offsets = [4, 0, 0], sizes = [1, 8, 192], strides = [1, 1, 1]} : vector<10x8x192xbf16> to vector<1x8x192xbf16>
    %78 = vector.shape_cast %77 : vector<1x8x192xbf16> to vector<8x192xbf16>
    %c2_40 = arith.constant 2 : index
    %c0_41 = arith.constant 0 : index
    %c0_42 = arith.constant 0 : index
    %79 = vector.load %arg2[%c2_40, %c0_41, %c0_42] : memref<3x192x128xbf16, #tpu.memory_space<vmem>>, vector<1x192x128xbf16>
    %80 = vector.shape_cast %79 : vector<1x192x128xbf16> to vector<192x128xbf16>
    %cst_43 = arith.constant dense<0.000000e+00> : vector<8x128xf32>
    %81 = tpu.matmul %78, %80, %cst_43 {dimension_numbers = #tpu.dot_dimension_numbers<[1], [0], [0], [1], [0, 0, 1, 1], [], []>} : vector<8x192xbf16>, vector<192x128xbf16>, vector<8x128xf32> -> vector<8x128xf32>
    %82 = arith.addf %76, %81 : vector<8x128xf32>
    %cst_44 = arith.constant 0.000000e+00 : f32
    %83 = vector.broadcast %cst_44 : f32 to vector<8x128xf32>
    %84 = vector.extract_strided_slice %7 {offsets = [3, 0, 0], sizes = [1, 8, 192], strides = [1, 1, 1]} : vector<10x8x192xbf16> to vector<1x8x192xbf16>
    %85 = vector.shape_cast %84 : vector<1x8x192xbf16> to vector<8x192xbf16>
    %c0_45 = arith.constant 0 : index
    %c0_46 = arith.constant 0 : index
    %c0_47 = arith.constant 0 : index
    %86 = vector.load %arg2[%c0_45, %c0_46, %c0_47] : memref<3x192x128xbf16, #tpu.memory_space<vmem>>, vector<1x192x128xbf16>
    %87 = vector.shape_cast %86 : vector<1x192x128xbf16> to vector<192x128xbf16>
    %cst_48 = arith.constant dense<0.000000e+00> : vector<8x128xf32>
    %88 = tpu.matmul %85, %87, %cst_48 {dimension_numbers = #tpu.dot_dimension_numbers<[1], [0], [0], [1], [0, 0, 1, 1], [], []>} : vector<8x192xbf16>, vector<192x128xbf16>, vector<8x128xf32> -> vector<8x128xf32>
    %89 = arith.addf %83, %88 : vector<8x128xf32>
    %90 = vector.extract_strided_slice %7 {offsets = [4, 0, 0], sizes = [1, 8, 192], strides = [1, 1, 1]} : vector<10x8x192xbf16> to vector<1x8x192xbf16>
    %91 = vector.shape_cast %90 : vector<1x8x192xbf16> to vector<8x192xbf16>
    %c1_49 = arith.constant 1 : index
    %c0_50 = arith.constant 0 : index
    %c0_51 = arith.constant 0 : index
    %92 = vector.load %arg2[%c1_49, %c0_50, %c0_51] : memref<3x192x128xbf16, #tpu.memory_space<vmem>>, vector<1x192x128xbf16>
    %93 = vector.shape_cast %92 : vector<1x192x128xbf16> to vector<192x128xbf16>
    %cst_52 = arith.constant dense<0.000000e+00> : vector<8x128xf32>
    %94 = tpu.matmul %91, %93, %cst_52 {dimension_numbers = #tpu.dot_dimension_numbers<[1], [0], [0], [1], [0, 0, 1, 1], [], []>} : vector<8x192xbf16>, vector<192x128xbf16>, vector<8x128xf32> -> vector<8x128xf32>
    %95 = arith.addf %89, %94 : vector<8x128xf32>
    %96 = vector.extract_strided_slice %7 {offsets = [5, 0, 0], sizes = [1, 8, 192], strides = [1, 1, 1]} : vector<10x8x192xbf16> to vector<1x8x192xbf16>
    %97 = vector.shape_cast %96 : vector<1x8x192xbf16> to vector<8x192xbf16>
    %c2_53 = arith.constant 2 : index
    %c0_54 = arith.constant 0 : index
    %c0_55 = arith.constant 0 : index
    %98 = vector.load %arg2[%c2_53, %c0_54, %c0_55] : memref<3x192x128xbf16, #tpu.memory_space<vmem>>, vector<1x192x128xbf16>
    %99 = vector.shape_cast %98 : vector<1x192x128xbf16> to vector<192x128xbf16>
    %cst_56 = arith.constant dense<0.000000e+00> : vector<8x128xf32>
    %100 = tpu.matmul %97, %99, %cst_56 {dimension_numbers = #tpu.dot_dimension_numbers<[1], [0], [0], [1], [0, 0, 1, 1], [], []>} : vector<8x192xbf16>, vector<192x128xbf16>, vector<8x128xf32> -> vector<8x128xf32>
    %101 = arith.addf %95, %100 : vector<8x128xf32>
    %102 = arith.maximumf %82, %101 : vector<8x128xf32>
    %103 = arith.addf %102, %2 : vector<8x128xf32>
    %cst_57 = arith.constant 0.000000e+00 : f32
    %104 = vector.broadcast %cst_57 : f32 to vector<8x128xf32>
    %105 = arith.maximumf %103, %104 : vector<8x128xf32>
    %106 = vector.extract_strided_slice %105 {offsets = [0, 0], sizes = [1, 128], strides = [1, 1]} : vector<8x128xf32> to vector<1x128xf32>
    %107 = vector.extract_strided_slice %105 {offsets = [1, 0], sizes = [1, 128], strides = [1, 1]} : vector<8x128xf32> to vector<1x128xf32>
    %108 = arith.maximumf %106, %107 : vector<1x128xf32>
    %109 = vector.extract_strided_slice %105 {offsets = [2, 0], sizes = [1, 128], strides = [1, 1]} : vector<8x128xf32> to vector<1x128xf32>
    %110 = vector.extract_strided_slice %105 {offsets = [3, 0], sizes = [1, 128], strides = [1, 1]} : vector<8x128xf32> to vector<1x128xf32>
    %111 = arith.maximumf %109, %110 : vector<1x128xf32>
    %112 = vector.extract_strided_slice %105 {offsets = [4, 0], sizes = [1, 128], strides = [1, 1]} : vector<8x128xf32> to vector<1x128xf32>
    %113 = vector.extract_strided_slice %105 {offsets = [5, 0], sizes = [1, 128], strides = [1, 1]} : vector<8x128xf32> to vector<1x128xf32>
    %114 = arith.maximumf %112, %113 : vector<1x128xf32>
    %115 = vector.extract_strided_slice %105 {offsets = [6, 0], sizes = [1, 128], strides = [1, 1]} : vector<8x128xf32> to vector<1x128xf32>
    %116 = vector.extract_strided_slice %105 {offsets = [7, 0], sizes = [1, 128], strides = [1, 1]} : vector<8x128xf32> to vector<1x128xf32>
    %117 = arith.maximumf %115, %116 : vector<1x128xf32>
    %118 = tpu.concatenate %108, %111, %114, %117 in 0 : vector<1x128xf32>, vector<1x128xf32>, vector<1x128xf32>, vector<1x128xf32> -> vector<4x128xf32>
    %119 = arith.truncf %118 : vector<4x128xf32> to vector<4x128xbf16>
    %cst_58 = arith.constant 0.000000e+00 : f32
    %120 = vector.broadcast %cst_58 : f32 to vector<8x128xf32>
    %121 = vector.extract_strided_slice %7 {offsets = [4, 0, 0], sizes = [1, 8, 192], strides = [1, 1, 1]} : vector<10x8x192xbf16> to vector<1x8x192xbf16>
    %122 = vector.shape_cast %121 : vector<1x8x192xbf16> to vector<8x192xbf16>
    %c0_59 = arith.constant 0 : index
    %c0_60 = arith.constant 0 : index
    %c0_61 = arith.constant 0 : index
    %123 = vector.load %arg2[%c0_59, %c0_60, %c0_61] : memref<3x192x128xbf16, #tpu.memory_space<vmem>>, vector<1x192x128xbf16>
    %124 = vector.shape_cast %123 : vector<1x192x128xbf16> to vector<192x128xbf16>
    %cst_62 = arith.constant dense<0.000000e+00> : vector<8x128xf32>
    %125 = tpu.matmul %122, %124, %cst_62 {dimension_numbers = #tpu.dot_dimension_numbers<[1], [0], [0], [1], [0, 0, 1, 1], [], []>} : vector<8x192xbf16>, vector<192x128xbf16>, vector<8x128xf32> -> vector<8x128xf32>
    %126 = arith.addf %120, %125 : vector<8x128xf32>
    %127 = vector.extract_strided_slice %7 {offsets = [5, 0, 0], sizes = [1, 8, 192], strides = [1, 1, 1]} : vector<10x8x192xbf16> to vector<1x8x192xbf16>
    %128 = vector.shape_cast %127 : vector<1x8x192xbf16> to vector<8x192xbf16>
    %c1_63 = arith.constant 1 : index
    %c0_64 = arith.constant 0 : index
    %c0_65 = arith.constant 0 : index
    %129 = vector.load %arg2[%c1_63, %c0_64, %c0_65] : memref<3x192x128xbf16, #tpu.memory_space<vmem>>, vector<1x192x128xbf16>
    %130 = vector.shape_cast %129 : vector<1x192x128xbf16> to vector<192x128xbf16>
    %cst_66 = arith.constant dense<0.000000e+00> : vector<8x128xf32>
    %131 = tpu.matmul %128, %130, %cst_66 {dimension_numbers = #tpu.dot_dimension_numbers<[1], [0], [0], [1], [0, 0, 1, 1], [], []>} : vector<8x192xbf16>, vector<192x128xbf16>, vector<8x128xf32> -> vector<8x128xf32>
    %132 = arith.addf %126, %131 : vector<8x128xf32>
    %133 = vector.extract_strided_slice %7 {offsets = [6, 0, 0], sizes = [1, 8, 192], strides = [1, 1, 1]} : vector<10x8x192xbf16> to vector<1x8x192xbf16>
    %134 = vector.shape_cast %133 : vector<1x8x192xbf16> to vector<8x192xbf16>
    %c2_67 = arith.constant 2 : index
    %c0_68 = arith.constant 0 : index
    %c0_69 = arith.constant 0 : index
    %135 = vector.load %arg2[%c2_67, %c0_68, %c0_69] : memref<3x192x128xbf16, #tpu.memory_space<vmem>>, vector<1x192x128xbf16>
    %136 = vector.shape_cast %135 : vector<1x192x128xbf16> to vector<192x128xbf16>
    %cst_70 = arith.constant dense<0.000000e+00> : vector<8x128xf32>
    %137 = tpu.matmul %134, %136, %cst_70 {dimension_numbers = #tpu.dot_dimension_numbers<[1], [0], [0], [1], [0, 0, 1, 1], [], []>} : vector<8x192xbf16>, vector<192x128xbf16>, vector<8x128xf32> -> vector<8x128xf32>
    %138 = arith.addf %132, %137 : vector<8x128xf32>
    %cst_71 = arith.constant 0.000000e+00 : f32
    %139 = vector.broadcast %cst_71 : f32 to vector<8x128xf32>
    %140 = vector.extract_strided_slice %7 {offsets = [5, 0, 0], sizes = [1, 8, 192], strides = [1, 1, 1]} : vector<10x8x192xbf16> to vector<1x8x192xbf16>
    %141 = vector.shape_cast %140 : vector<1x8x192xbf16> to vector<8x192xbf16>
    %c0_72 = arith.constant 0 : index
    %c0_73 = arith.constant 0 : index
    %c0_74 = arith.constant 0 : index
    %142 = vector.load %arg2[%c0_72, %c0_73, %c0_74] : memref<3x192x128xbf16, #tpu.memory_space<vmem>>, vector<1x192x128xbf16>
    %143 = vector.shape_cast %142 : vector<1x192x128xbf16> to vector<192x128xbf16>
    %cst_75 = arith.constant dense<0.000000e+00> : vector<8x128xf32>
    %144 = tpu.matmul %141, %143, %cst_75 {dimension_numbers = #tpu.dot_dimension_numbers<[1], [0], [0], [1], [0, 0, 1, 1], [], []>} : vector<8x192xbf16>, vector<192x128xbf16>, vector<8x128xf32> -> vector<8x128xf32>
    %145 = arith.addf %139, %144 : vector<8x128xf32>
    %146 = vector.extract_strided_slice %7 {offsets = [6, 0, 0], sizes = [1, 8, 192], strides = [1, 1, 1]} : vector<10x8x192xbf16> to vector<1x8x192xbf16>
    %147 = vector.shape_cast %146 : vector<1x8x192xbf16> to vector<8x192xbf16>
    %c1_76 = arith.constant 1 : index
    %c0_77 = arith.constant 0 : index
    %c0_78 = arith.constant 0 : index
    %148 = vector.load %arg2[%c1_76, %c0_77, %c0_78] : memref<3x192x128xbf16, #tpu.memory_space<vmem>>, vector<1x192x128xbf16>
    %149 = vector.shape_cast %148 : vector<1x192x128xbf16> to vector<192x128xbf16>
    %cst_79 = arith.constant dense<0.000000e+00> : vector<8x128xf32>
    %150 = tpu.matmul %147, %149, %cst_79 {dimension_numbers = #tpu.dot_dimension_numbers<[1], [0], [0], [1], [0, 0, 1, 1], [], []>} : vector<8x192xbf16>, vector<192x128xbf16>, vector<8x128xf32> -> vector<8x128xf32>
    %151 = arith.addf %145, %150 : vector<8x128xf32>
    %152 = vector.extract_strided_slice %7 {offsets = [7, 0, 0], sizes = [1, 8, 192], strides = [1, 1, 1]} : vector<10x8x192xbf16> to vector<1x8x192xbf16>
    %153 = vector.shape_cast %152 : vector<1x8x192xbf16> to vector<8x192xbf16>
    %c2_80 = arith.constant 2 : index
    %c0_81 = arith.constant 0 : index
    %c0_82 = arith.constant 0 : index
    %154 = vector.load %arg2[%c2_80, %c0_81, %c0_82] : memref<3x192x128xbf16, #tpu.memory_space<vmem>>, vector<1x192x128xbf16>
    %155 = vector.shape_cast %154 : vector<1x192x128xbf16> to vector<192x128xbf16>
    %cst_83 = arith.constant dense<0.000000e+00> : vector<8x128xf32>
    %156 = tpu.matmul %153, %155, %cst_83 {dimension_numbers = #tpu.dot_dimension_numbers<[1], [0], [0], [1], [0, 0, 1, 1], [], []>} : vector<8x192xbf16>, vector<192x128xbf16>, vector<8x128xf32> -> vector<8x128xf32>
    %157 = arith.addf %151, %156 : vector<8x128xf32>
    %158 = arith.maximumf %138, %157 : vector<8x128xf32>
    %159 = arith.addf %158, %2 : vector<8x128xf32>
    %cst_84 = arith.constant 0.000000e+00 : f32
    %160 = vector.broadcast %cst_84 : f32 to vector<8x128xf32>
    %161 = arith.maximumf %159, %160 : vector<8x128xf32>
    %162 = vector.extract_strided_slice %161 {offsets = [0, 0], sizes = [1, 128], strides = [1, 1]} : vector<8x128xf32> to vector<1x128xf32>
    %163 = vector.extract_strided_slice %161 {offsets = [1, 0], sizes = [1, 128], strides = [1, 1]} : vector<8x128xf32> to vector<1x128xf32>
    %164 = arith.maximumf %162, %163 : vector<1x128xf32>
    %165 = vector.extract_strided_slice %161 {offsets = [2, 0], sizes = [1, 128], strides = [1, 1]} : vector<8x128xf32> to vector<1x128xf32>
    %166 = vector.extract_strided_slice %161 {offsets = [3, 0], sizes = [1, 128], strides = [1, 1]} : vector<8x128xf32> to vector<1x128xf32>
    %167 = arith.maximumf %165, %166 : vector<1x128xf32>
    %168 = vector.extract_strided_slice %161 {offsets = [4, 0], sizes = [1, 128], strides = [1, 1]} : vector<8x128xf32> to vector<1x128xf32>
    %169 = vector.extract_strided_slice %161 {offsets = [5, 0], sizes = [1, 128], strides = [1, 1]} : vector<8x128xf32> to vector<1x128xf32>
    %170 = arith.maximumf %168, %169 : vector<1x128xf32>
    %171 = vector.extract_strided_slice %161 {offsets = [6, 0], sizes = [1, 128], strides = [1, 1]} : vector<8x128xf32> to vector<1x128xf32>
    %172 = vector.extract_strided_slice %161 {offsets = [7, 0], sizes = [1, 128], strides = [1, 1]} : vector<8x128xf32> to vector<1x128xf32>
    %173 = arith.maximumf %171, %172 : vector<1x128xf32>
    %174 = tpu.concatenate %164, %167, %170, %173 in 0 : vector<1x128xf32>, vector<1x128xf32>, vector<1x128xf32>, vector<1x128xf32> -> vector<4x128xf32>
    %175 = arith.truncf %174 : vector<4x128xf32> to vector<4x128xbf16>
    %cst_85 = arith.constant 0.000000e+00 : f32
    %176 = vector.broadcast %cst_85 : f32 to vector<8x128xf32>
    %177 = vector.extract_strided_slice %7 {offsets = [6, 0, 0], sizes = [1, 8, 192], strides = [1, 1, 1]} : vector<10x8x192xbf16> to vector<1x8x192xbf16>
    %178 = vector.shape_cast %177 : vector<1x8x192xbf16> to vector<8x192xbf16>
    %c0_86 = arith.constant 0 : index
    %c0_87 = arith.constant 0 : index
    %c0_88 = arith.constant 0 : index
    %179 = vector.load %arg2[%c0_86, %c0_87, %c0_88] : memref<3x192x128xbf16, #tpu.memory_space<vmem>>, vector<1x192x128xbf16>
    %180 = vector.shape_cast %179 : vector<1x192x128xbf16> to vector<192x128xbf16>
    %cst_89 = arith.constant dense<0.000000e+00> : vector<8x128xf32>
    %181 = tpu.matmul %178, %180, %cst_89 {dimension_numbers = #tpu.dot_dimension_numbers<[1], [0], [0], [1], [0, 0, 1, 1], [], []>} : vector<8x192xbf16>, vector<192x128xbf16>, vector<8x128xf32> -> vector<8x128xf32>
    %182 = arith.addf %176, %181 : vector<8x128xf32>
    %183 = vector.extract_strided_slice %7 {offsets = [7, 0, 0], sizes = [1, 8, 192], strides = [1, 1, 1]} : vector<10x8x192xbf16> to vector<1x8x192xbf16>
    %184 = vector.shape_cast %183 : vector<1x8x192xbf16> to vector<8x192xbf16>
    %c1_90 = arith.constant 1 : index
    %c0_91 = arith.constant 0 : index
    %c0_92 = arith.constant 0 : index
    %185 = vector.load %arg2[%c1_90, %c0_91, %c0_92] : memref<3x192x128xbf16, #tpu.memory_space<vmem>>, vector<1x192x128xbf16>
    %186 = vector.shape_cast %185 : vector<1x192x128xbf16> to vector<192x128xbf16>
    %cst_93 = arith.constant dense<0.000000e+00> : vector<8x128xf32>
    %187 = tpu.matmul %184, %186, %cst_93 {dimension_numbers = #tpu.dot_dimension_numbers<[1], [0], [0], [1], [0, 0, 1, 1], [], []>} : vector<8x192xbf16>, vector<192x128xbf16>, vector<8x128xf32> -> vector<8x128xf32>
    %188 = arith.addf %182, %187 : vector<8x128xf32>
    %189 = vector.extract_strided_slice %7 {offsets = [8, 0, 0], sizes = [1, 8, 192], strides = [1, 1, 1]} : vector<10x8x192xbf16> to vector<1x8x192xbf16>
    %190 = vector.shape_cast %189 : vector<1x8x192xbf16> to vector<8x192xbf16>
    %c2_94 = arith.constant 2 : index
    %c0_95 = arith.constant 0 : index
    %c0_96 = arith.constant 0 : index
    %191 = vector.load %arg2[%c2_94, %c0_95, %c0_96] : memref<3x192x128xbf16, #tpu.memory_space<vmem>>, vector<1x192x128xbf16>
    %192 = vector.shape_cast %191 : vector<1x192x128xbf16> to vector<192x128xbf16>
    %cst_97 = arith.constant dense<0.000000e+00> : vector<8x128xf32>
    %193 = tpu.matmul %190, %192, %cst_97 {dimension_numbers = #tpu.dot_dimension_numbers<[1], [0], [0], [1], [0, 0, 1, 1], [], []>} : vector<8x192xbf16>, vector<192x128xbf16>, vector<8x128xf32> -> vector<8x128xf32>
    %194 = arith.addf %188, %193 : vector<8x128xf32>
    %cst_98 = arith.constant 0.000000e+00 : f32
    %195 = vector.broadcast %cst_98 : f32 to vector<8x128xf32>
    %196 = vector.extract_strided_slice %7 {offsets = [7, 0, 0], sizes = [1, 8, 192], strides = [1, 1, 1]} : vector<10x8x192xbf16> to vector<1x8x192xbf16>
    %197 = vector.shape_cast %196 : vector<1x8x192xbf16> to vector<8x192xbf16>
    %c0_99 = arith.constant 0 : index
    %c0_100 = arith.constant 0 : index
    %c0_101 = arith.constant 0 : index
    %198 = vector.load %arg2[%c0_99, %c0_100, %c0_101] : memref<3x192x128xbf16, #tpu.memory_space<vmem>>, vector<1x192x128xbf16>
    %199 = vector.shape_cast %198 : vector<1x192x128xbf16> to vector<192x128xbf16>
    %cst_102 = arith.constant dense<0.000000e+00> : vector<8x128xf32>
    %200 = tpu.matmul %197, %199, %cst_102 {dimension_numbers = #tpu.dot_dimension_numbers<[1], [0], [0], [1], [0, 0, 1, 1], [], []>} : vector<8x192xbf16>, vector<192x128xbf16>, vector<8x128xf32> -> vector<8x128xf32>
    %201 = arith.addf %195, %200 : vector<8x128xf32>
    %202 = vector.extract_strided_slice %7 {offsets = [8, 0, 0], sizes = [1, 8, 192], strides = [1, 1, 1]} : vector<10x8x192xbf16> to vector<1x8x192xbf16>
    %203 = vector.shape_cast %202 : vector<1x8x192xbf16> to vector<8x192xbf16>
    %c1_103 = arith.constant 1 : index
    %c0_104 = arith.constant 0 : index
    %c0_105 = arith.constant 0 : index
    %204 = vector.load %arg2[%c1_103, %c0_104, %c0_105] : memref<3x192x128xbf16, #tpu.memory_space<vmem>>, vector<1x192x128xbf16>
    %205 = vector.shape_cast %204 : vector<1x192x128xbf16> to vector<192x128xbf16>
    %cst_106 = arith.constant dense<0.000000e+00> : vector<8x128xf32>
    %206 = tpu.matmul %203, %205, %cst_106 {dimension_numbers = #tpu.dot_dimension_numbers<[1], [0], [0], [1], [0, 0, 1, 1], [], []>} : vector<8x192xbf16>, vector<192x128xbf16>, vector<8x128xf32> -> vector<8x128xf32>
    %207 = arith.addf %201, %206 : vector<8x128xf32>
    %208 = vector.extract_strided_slice %7 {offsets = [9, 0, 0], sizes = [1, 8, 192], strides = [1, 1, 1]} : vector<10x8x192xbf16> to vector<1x8x192xbf16>
    %209 = vector.shape_cast %208 : vector<1x8x192xbf16> to vector<8x192xbf16>
    %c2_107 = arith.constant 2 : index
    %c0_108 = arith.constant 0 : index
    %c0_109 = arith.constant 0 : index
    %210 = vector.load %arg2[%c2_107, %c0_108, %c0_109] : memref<3x192x128xbf16, #tpu.memory_space<vmem>>, vector<1x192x128xbf16>
    %211 = vector.shape_cast %210 : vector<1x192x128xbf16> to vector<192x128xbf16>
    %cst_110 = arith.constant dense<0.000000e+00> : vector<8x128xf32>
    %212 = tpu.matmul %209, %211, %cst_110 {dimension_numbers = #tpu.dot_dimension_numbers<[1], [0], [0], [1], [0, 0, 1, 1], [], []>} : vector<8x192xbf16>, vector<192x128xbf16>, vector<8x128xf32> -> vector<8x128xf32>
    %213 = arith.addf %207, %212 : vector<8x128xf32>
    %214 = arith.maximumf %194, %213 : vector<8x128xf32>
    %215 = arith.addf %214, %2 : vector<8x128xf32>
    %cst_111 = arith.constant 0.000000e+00 : f32
    %216 = vector.broadcast %cst_111 : f32 to vector<8x128xf32>
    %217 = arith.maximumf %215, %216 : vector<8x128xf32>
    %218 = vector.extract_strided_slice %217 {offsets = [0, 0], sizes = [1, 128], strides = [1, 1]} : vector<8x128xf32> to vector<1x128xf32>
    %219 = vector.extract_strided_slice %217 {offsets = [1, 0], sizes = [1, 128], strides = [1, 1]} : vector<8x128xf32> to vector<1x128xf32>
    %220 = arith.maximumf %218, %219 : vector<1x128xf32>
    %221 = vector.extract_strided_slice %217 {offsets = [2, 0], sizes = [1, 128], strides = [1, 1]} : vector<8x128xf32> to vector<1x128xf32>
    %222 = vector.extract_strided_slice %217 {offsets = [3, 0], sizes = [1, 128], strides = [1, 1]} : vector<8x128xf32> to vector<1x128xf32>
    %223 = arith.maximumf %221, %222 : vector<1x128xf32>
    %224 = vector.extract_strided_slice %217 {offsets = [4, 0], sizes = [1, 128], strides = [1, 1]} : vector<8x128xf32> to vector<1x128xf32>
    %225 = vector.extract_strided_slice %217 {offsets = [5, 0], sizes = [1, 128], strides = [1, 1]} : vector<8x128xf32> to vector<1x128xf32>
    %226 = arith.maximumf %224, %225 : vector<1x128xf32>
    %227 = vector.extract_strided_slice %217 {offsets = [6, 0], sizes = [1, 128], strides = [1, 1]} : vector<8x128xf32> to vector<1x128xf32>
    %228 = vector.extract_strided_slice %217 {offsets = [7, 0], sizes = [1, 128], strides = [1, 1]} : vector<8x128xf32> to vector<1x128xf32>
    %229 = arith.maximumf %227, %228 : vector<1x128xf32>
    %230 = tpu.concatenate %220, %223, %226, %229 in 0 : vector<1x128xf32>, vector<1x128xf32>, vector<1x128xf32>, vector<1x128xf32> -> vector<4x128xf32>
    %231 = arith.truncf %230 : vector<4x128xf32> to vector<4x128xbf16>
    %cst_112 = arith.constant 0.000000e+00 : f32
    %232 = vector.broadcast %cst_112 : f32 to vector<2x128xf32>
    %233 = vector.extract_strided_slice %63 {offsets = [0, 0], sizes = [2, 128], strides = [1, 1]} : vector<4x128xbf16> to vector<2x128xbf16>
    %c0_113 = arith.constant 0 : index
    %c0_114 = arith.constant 0 : index
    %c0_115 = arith.constant 0 : index
    %c0_116 = arith.constant 0 : index
    %234 = vector.load %arg4[%c0_113, %c0_114, %c0_115, %c0_116] : memref<3x3x128x128xbf16, #tpu.memory_space<vmem>>, vector<1x1x128x128xbf16>
    %235 = vector.shape_cast %234 : vector<1x1x128x128xbf16> to vector<128x128xbf16>
    %cst_117 = arith.constant dense<0.000000e+00> : vector<2x128xf32>
    %236 = tpu.matmul %233, %235, %cst_117 {dimension_numbers = #tpu.dot_dimension_numbers<[1], [0], [0], [1], [0, 0, 1, 1], [], []>} : vector<2x128xbf16>, vector<128x128xbf16>, vector<2x128xf32> -> vector<2x128xf32>
    %237 = arith.addf %232, %236 : vector<2x128xf32>
    %238 = vector.extract_strided_slice %63 {offsets = [1, 0], sizes = [2, 128], strides = [1, 1]} : vector<4x128xbf16> to vector<2x128xbf16>
    %c0_118 = arith.constant 0 : index
    %c1_119 = arith.constant 1 : index
    %c0_120 = arith.constant 0 : index
    %c0_121 = arith.constant 0 : index
    %239 = vector.load %arg4[%c0_118, %c1_119, %c0_120, %c0_121] : memref<3x3x128x128xbf16, #tpu.memory_space<vmem>>, vector<1x1x128x128xbf16>
    %240 = vector.shape_cast %239 : vector<1x1x128x128xbf16> to vector<128x128xbf16>
    %cst_122 = arith.constant dense<0.000000e+00> : vector<2x128xf32>
    %241 = tpu.matmul %238, %240, %cst_122 {dimension_numbers = #tpu.dot_dimension_numbers<[1], [0], [0], [1], [0, 0, 1, 1], [], []>} : vector<2x128xbf16>, vector<128x128xbf16>, vector<2x128xf32> -> vector<2x128xf32>
    %242 = arith.addf %237, %241 : vector<2x128xf32>
    %243 = vector.extract_strided_slice %63 {offsets = [2, 0], sizes = [2, 128], strides = [1, 1]} : vector<4x128xbf16> to vector<2x128xbf16>
    %c0_123 = arith.constant 0 : index
    %c2_124 = arith.constant 2 : index
    %c0_125 = arith.constant 0 : index
    %c0_126 = arith.constant 0 : index
    %244 = vector.load %arg4[%c0_123, %c2_124, %c0_125, %c0_126] : memref<3x3x128x128xbf16, #tpu.memory_space<vmem>>, vector<1x1x128x128xbf16>
    %245 = vector.shape_cast %244 : vector<1x1x128x128xbf16> to vector<128x128xbf16>
    %cst_127 = arith.constant dense<0.000000e+00> : vector<2x128xf32>
    %246 = tpu.matmul %243, %245, %cst_127 {dimension_numbers = #tpu.dot_dimension_numbers<[1], [0], [0], [1], [0, 0, 1, 1], [], []>} : vector<2x128xbf16>, vector<128x128xbf16>, vector<2x128xf32> -> vector<2x128xf32>
    %247 = arith.addf %242, %246 : vector<2x128xf32>
    %248 = vector.extract_strided_slice %119 {offsets = [0, 0], sizes = [2, 128], strides = [1, 1]} : vector<4x128xbf16> to vector<2x128xbf16>
    %c1_128 = arith.constant 1 : index
    %c0_129 = arith.constant 0 : index
    %c0_130 = arith.constant 0 : index
    %c0_131 = arith.constant 0 : index
    %249 = vector.load %arg4[%c1_128, %c0_129, %c0_130, %c0_131] : memref<3x3x128x128xbf16, #tpu.memory_space<vmem>>, vector<1x1x128x128xbf16>
    %250 = vector.shape_cast %249 : vector<1x1x128x128xbf16> to vector<128x128xbf16>
    %cst_132 = arith.constant dense<0.000000e+00> : vector<2x128xf32>
    %251 = tpu.matmul %248, %250, %cst_132 {dimension_numbers = #tpu.dot_dimension_numbers<[1], [0], [0], [1], [0, 0, 1, 1], [], []>} : vector<2x128xbf16>, vector<128x128xbf16>, vector<2x128xf32> -> vector<2x128xf32>
    %252 = arith.addf %247, %251 : vector<2x128xf32>
    %253 = vector.extract_strided_slice %119 {offsets = [1, 0], sizes = [2, 128], strides = [1, 1]} : vector<4x128xbf16> to vector<2x128xbf16>
    %c1_133 = arith.constant 1 : index
    %c1_134 = arith.constant 1 : index
    %c0_135 = arith.constant 0 : index
    %c0_136 = arith.constant 0 : index
    %254 = vector.load %arg4[%c1_133, %c1_134, %c0_135, %c0_136] : memref<3x3x128x128xbf16, #tpu.memory_space<vmem>>, vector<1x1x128x128xbf16>
    %255 = vector.shape_cast %254 : vector<1x1x128x128xbf16> to vector<128x128xbf16>
    %cst_137 = arith.constant dense<0.000000e+00> : vector<2x128xf32>
    %256 = tpu.matmul %253, %255, %cst_137 {dimension_numbers = #tpu.dot_dimension_numbers<[1], [0], [0], [1], [0, 0, 1, 1], [], []>} : vector<2x128xbf16>, vector<128x128xbf16>, vector<2x128xf32> -> vector<2x128xf32>
    %257 = arith.addf %252, %256 : vector<2x128xf32>
    %258 = vector.extract_strided_slice %119 {offsets = [2, 0], sizes = [2, 128], strides = [1, 1]} : vector<4x128xbf16> to vector<2x128xbf16>
    %c1_138 = arith.constant 1 : index
    %c2_139 = arith.constant 2 : index
    %c0_140 = arith.constant 0 : index
    %c0_141 = arith.constant 0 : index
    %259 = vector.load %arg4[%c1_138, %c2_139, %c0_140, %c0_141] : memref<3x3x128x128xbf16, #tpu.memory_space<vmem>>, vector<1x1x128x128xbf16>
    %260 = vector.shape_cast %259 : vector<1x1x128x128xbf16> to vector<128x128xbf16>
    %cst_142 = arith.constant dense<0.000000e+00> : vector<2x128xf32>
    %261 = tpu.matmul %258, %260, %cst_142 {dimension_numbers = #tpu.dot_dimension_numbers<[1], [0], [0], [1], [0, 0, 1, 1], [], []>} : vector<2x128xbf16>, vector<128x128xbf16>, vector<2x128xf32> -> vector<2x128xf32>
    %262 = arith.addf %257, %261 : vector<2x128xf32>
    %263 = vector.extract_strided_slice %175 {offsets = [0, 0], sizes = [2, 128], strides = [1, 1]} : vector<4x128xbf16> to vector<2x128xbf16>
    %c2_143 = arith.constant 2 : index
    %c0_144 = arith.constant 0 : index
    %c0_145 = arith.constant 0 : index
    %c0_146 = arith.constant 0 : index
    %264 = vector.load %arg4[%c2_143, %c0_144, %c0_145, %c0_146] : memref<3x3x128x128xbf16, #tpu.memory_space<vmem>>, vector<1x1x128x128xbf16>
    %265 = vector.shape_cast %264 : vector<1x1x128x128xbf16> to vector<128x128xbf16>
    %cst_147 = arith.constant dense<0.000000e+00> : vector<2x128xf32>
    %266 = tpu.matmul %263, %265, %cst_147 {dimension_numbers = #tpu.dot_dimension_numbers<[1], [0], [0], [1], [0, 0, 1, 1], [], []>} : vector<2x128xbf16>, vector<128x128xbf16>, vector<2x128xf32> -> vector<2x128xf32>
    %267 = arith.addf %262, %266 : vector<2x128xf32>
    %268 = vector.extract_strided_slice %175 {offsets = [1, 0], sizes = [2, 128], strides = [1, 1]} : vector<4x128xbf16> to vector<2x128xbf16>
    %c2_148 = arith.constant 2 : index
    %c1_149 = arith.constant 1 : index
    %c0_150 = arith.constant 0 : index
    %c0_151 = arith.constant 0 : index
    %269 = vector.load %arg4[%c2_148, %c1_149, %c0_150, %c0_151] : memref<3x3x128x128xbf16, #tpu.memory_space<vmem>>, vector<1x1x128x128xbf16>
    %270 = vector.shape_cast %269 : vector<1x1x128x128xbf16> to vector<128x128xbf16>
    %cst_152 = arith.constant dense<0.000000e+00> : vector<2x128xf32>
    %271 = tpu.matmul %268, %270, %cst_152 {dimension_numbers = #tpu.dot_dimension_numbers<[1], [0], [0], [1], [0, 0, 1, 1], [], []>} : vector<2x128xbf16>, vector<128x128xbf16>, vector<2x128xf32> -> vector<2x128xf32>
    %272 = arith.addf %267, %271 : vector<2x128xf32>
    %273 = vector.extract_strided_slice %175 {offsets = [2, 0], sizes = [2, 128], strides = [1, 1]} : vector<4x128xbf16> to vector<2x128xbf16>
    %c2_153 = arith.constant 2 : index
    %c2_154 = arith.constant 2 : index
    %c0_155 = arith.constant 0 : index
    %c0_156 = arith.constant 0 : index
    %274 = vector.load %arg4[%c2_153, %c2_154, %c0_155, %c0_156] : memref<3x3x128x128xbf16, #tpu.memory_space<vmem>>, vector<1x1x128x128xbf16>
    %275 = vector.shape_cast %274 : vector<1x1x128x128xbf16> to vector<128x128xbf16>
    %cst_157 = arith.constant dense<0.000000e+00> : vector<2x128xf32>
    %276 = tpu.matmul %273, %275, %cst_157 {dimension_numbers = #tpu.dot_dimension_numbers<[1], [0], [0], [1], [0, 0, 1, 1], [], []>} : vector<2x128xbf16>, vector<128x128xbf16>, vector<2x128xf32> -> vector<2x128xf32>
    %277 = arith.addf %272, %276 : vector<2x128xf32>
    %278 = arith.addf %277, %5 : vector<2x128xf32>
    %cst_158 = arith.constant 0.000000e+00 : f32
    %279 = vector.broadcast %cst_158 : f32 to vector<2x128xf32>
    %280 = arith.maximumf %278, %279 : vector<2x128xf32>
    %281 = vector.extract_strided_slice %280 {offsets = [0, 0], sizes = [1, 128], strides = [1, 1]} : vector<2x128xf32> to vector<1x128xf32>
    %282 = vector.extract_strided_slice %280 {offsets = [1, 0], sizes = [1, 128], strides = [1, 1]} : vector<2x128xf32> to vector<1x128xf32>
    %283 = arith.maximumf %281, %282 : vector<1x128xf32>
    %cst_159 = arith.constant 0.000000e+00 : f32
    %284 = vector.broadcast %cst_159 : f32 to vector<2x128xf32>
    %285 = vector.extract_strided_slice %119 {offsets = [0, 0], sizes = [2, 128], strides = [1, 1]} : vector<4x128xbf16> to vector<2x128xbf16>
    %c0_160 = arith.constant 0 : index
    %c0_161 = arith.constant 0 : index
    %c0_162 = arith.constant 0 : index
    %c0_163 = arith.constant 0 : index
    %286 = vector.load %arg4[%c0_160, %c0_161, %c0_162, %c0_163] : memref<3x3x128x128xbf16, #tpu.memory_space<vmem>>, vector<1x1x128x128xbf16>
    %287 = vector.shape_cast %286 : vector<1x1x128x128xbf16> to vector<128x128xbf16>
    %cst_164 = arith.constant dense<0.000000e+00> : vector<2x128xf32>
    %288 = tpu.matmul %285, %287, %cst_164 {dimension_numbers = #tpu.dot_dimension_numbers<[1], [0], [0], [1], [0, 0, 1, 1], [], []>} : vector<2x128xbf16>, vector<128x128xbf16>, vector<2x128xf32> -> vector<2x128xf32>
    %289 = arith.addf %284, %288 : vector<2x128xf32>
    %290 = vector.extract_strided_slice %119 {offsets = [1, 0], sizes = [2, 128], strides = [1, 1]} : vector<4x128xbf16> to vector<2x128xbf16>
    %c0_165 = arith.constant 0 : index
    %c1_166 = arith.constant 1 : index
    %c0_167 = arith.constant 0 : index
    %c0_168 = arith.constant 0 : index
    %291 = vector.load %arg4[%c0_165, %c1_166, %c0_167, %c0_168] : memref<3x3x128x128xbf16, #tpu.memory_space<vmem>>, vector<1x1x128x128xbf16>
    %292 = vector.shape_cast %291 : vector<1x1x128x128xbf16> to vector<128x128xbf16>
    %cst_169 = arith.constant dense<0.000000e+00> : vector<2x128xf32>
    %293 = tpu.matmul %290, %292, %cst_169 {dimension_numbers = #tpu.dot_dimension_numbers<[1], [0], [0], [1], [0, 0, 1, 1], [], []>} : vector<2x128xbf16>, vector<128x128xbf16>, vector<2x128xf32> -> vector<2x128xf32>
    %294 = arith.addf %289, %293 : vector<2x128xf32>
    %295 = vector.extract_strided_slice %119 {offsets = [2, 0], sizes = [2, 128], strides = [1, 1]} : vector<4x128xbf16> to vector<2x128xbf16>
    %c0_170 = arith.constant 0 : index
    %c2_171 = arith.constant 2 : index
    %c0_172 = arith.constant 0 : index
    %c0_173 = arith.constant 0 : index
    %296 = vector.load %arg4[%c0_170, %c2_171, %c0_172, %c0_173] : memref<3x3x128x128xbf16, #tpu.memory_space<vmem>>, vector<1x1x128x128xbf16>
    %297 = vector.shape_cast %296 : vector<1x1x128x128xbf16> to vector<128x128xbf16>
    %cst_174 = arith.constant dense<0.000000e+00> : vector<2x128xf32>
    %298 = tpu.matmul %295, %297, %cst_174 {dimension_numbers = #tpu.dot_dimension_numbers<[1], [0], [0], [1], [0, 0, 1, 1], [], []>} : vector<2x128xbf16>, vector<128x128xbf16>, vector<2x128xf32> -> vector<2x128xf32>
    %299 = arith.addf %294, %298 : vector<2x128xf32>
    %300 = vector.extract_strided_slice %175 {offsets = [0, 0], sizes = [2, 128], strides = [1, 1]} : vector<4x128xbf16> to vector<2x128xbf16>
    %c1_175 = arith.constant 1 : index
    %c0_176 = arith.constant 0 : index
    %c0_177 = arith.constant 0 : index
    %c0_178 = arith.constant 0 : index
    %301 = vector.load %arg4[%c1_175, %c0_176, %c0_177, %c0_178] : memref<3x3x128x128xbf16, #tpu.memory_space<vmem>>, vector<1x1x128x128xbf16>
    %302 = vector.shape_cast %301 : vector<1x1x128x128xbf16> to vector<128x128xbf16>
    %cst_179 = arith.constant dense<0.000000e+00> : vector<2x128xf32>
    %303 = tpu.matmul %300, %302, %cst_179 {dimension_numbers = #tpu.dot_dimension_numbers<[1], [0], [0], [1], [0, 0, 1, 1], [], []>} : vector<2x128xbf16>, vector<128x128xbf16>, vector<2x128xf32> -> vector<2x128xf32>
    %304 = arith.addf %299, %303 : vector<2x128xf32>
    %305 = vector.extract_strided_slice %175 {offsets = [1, 0], sizes = [2, 128], strides = [1, 1]} : vector<4x128xbf16> to vector<2x128xbf16>
    %c1_180 = arith.constant 1 : index
    %c1_181 = arith.constant 1 : index
    %c0_182 = arith.constant 0 : index
    %c0_183 = arith.constant 0 : index
    %306 = vector.load %arg4[%c1_180, %c1_181, %c0_182, %c0_183] : memref<3x3x128x128xbf16, #tpu.memory_space<vmem>>, vector<1x1x128x128xbf16>
    %307 = vector.shape_cast %306 : vector<1x1x128x128xbf16> to vector<128x128xbf16>
    %cst_184 = arith.constant dense<0.000000e+00> : vector<2x128xf32>
    %308 = tpu.matmul %305, %307, %cst_184 {dimension_numbers = #tpu.dot_dimension_numbers<[1], [0], [0], [1], [0, 0, 1, 1], [], []>} : vector<2x128xbf16>, vector<128x128xbf16>, vector<2x128xf32> -> vector<2x128xf32>
    %309 = arith.addf %304, %308 : vector<2x128xf32>
    %310 = vector.extract_strided_slice %175 {offsets = [2, 0], sizes = [2, 128], strides = [1, 1]} : vector<4x128xbf16> to vector<2x128xbf16>
    %c1_185 = arith.constant 1 : index
    %c2_186 = arith.constant 2 : index
    %c0_187 = arith.constant 0 : index
    %c0_188 = arith.constant 0 : index
    %311 = vector.load %arg4[%c1_185, %c2_186, %c0_187, %c0_188] : memref<3x3x128x128xbf16, #tpu.memory_space<vmem>>, vector<1x1x128x128xbf16>
    %312 = vector.shape_cast %311 : vector<1x1x128x128xbf16> to vector<128x128xbf16>
    %cst_189 = arith.constant dense<0.000000e+00> : vector<2x128xf32>
    %313 = tpu.matmul %310, %312, %cst_189 {dimension_numbers = #tpu.dot_dimension_numbers<[1], [0], [0], [1], [0, 0, 1, 1], [], []>} : vector<2x128xbf16>, vector<128x128xbf16>, vector<2x128xf32> -> vector<2x128xf32>
    %314 = arith.addf %309, %313 : vector<2x128xf32>
    %315 = vector.extract_strided_slice %231 {offsets = [0, 0], sizes = [2, 128], strides = [1, 1]} : vector<4x128xbf16> to vector<2x128xbf16>
    %c2_190 = arith.constant 2 : index
    %c0_191 = arith.constant 0 : index
    %c0_192 = arith.constant 0 : index
    %c0_193 = arith.constant 0 : index
    %316 = vector.load %arg4[%c2_190, %c0_191, %c0_192, %c0_193] : memref<3x3x128x128xbf16, #tpu.memory_space<vmem>>, vector<1x1x128x128xbf16>
    %317 = vector.shape_cast %316 : vector<1x1x128x128xbf16> to vector<128x128xbf16>
    %cst_194 = arith.constant dense<0.000000e+00> : vector<2x128xf32>
    %318 = tpu.matmul %315, %317, %cst_194 {dimension_numbers = #tpu.dot_dimension_numbers<[1], [0], [0], [1], [0, 0, 1, 1], [], []>} : vector<2x128xbf16>, vector<128x128xbf16>, vector<2x128xf32> -> vector<2x128xf32>
    %319 = arith.addf %314, %318 : vector<2x128xf32>
    %320 = vector.extract_strided_slice %231 {offsets = [1, 0], sizes = [2, 128], strides = [1, 1]} : vector<4x128xbf16> to vector<2x128xbf16>
    %c2_195 = arith.constant 2 : index
    %c1_196 = arith.constant 1 : index
    %c0_197 = arith.constant 0 : index
    %c0_198 = arith.constant 0 : index
    %321 = vector.load %arg4[%c2_195, %c1_196, %c0_197, %c0_198] : memref<3x3x128x128xbf16, #tpu.memory_space<vmem>>, vector<1x1x128x128xbf16>
    %322 = vector.shape_cast %321 : vector<1x1x128x128xbf16> to vector<128x128xbf16>
    %cst_199 = arith.constant dense<0.000000e+00> : vector<2x128xf32>
    %323 = tpu.matmul %320, %322, %cst_199 {dimension_numbers = #tpu.dot_dimension_numbers<[1], [0], [0], [1], [0, 0, 1, 1], [], []>} : vector<2x128xbf16>, vector<128x128xbf16>, vector<2x128xf32> -> vector<2x128xf32>
    %324 = arith.addf %319, %323 : vector<2x128xf32>
    %325 = vector.extract_strided_slice %231 {offsets = [2, 0], sizes = [2, 128], strides = [1, 1]} : vector<4x128xbf16> to vector<2x128xbf16>
    %c2_200 = arith.constant 2 : index
    %c2_201 = arith.constant 2 : index
    %c0_202 = arith.constant 0 : index
    %c0_203 = arith.constant 0 : index
    %326 = vector.load %arg4[%c2_200, %c2_201, %c0_202, %c0_203] : memref<3x3x128x128xbf16, #tpu.memory_space<vmem>>, vector<1x1x128x128xbf16>
    %327 = vector.shape_cast %326 : vector<1x1x128x128xbf16> to vector<128x128xbf16>
    %cst_204 = arith.constant dense<0.000000e+00> : vector<2x128xf32>
    %328 = tpu.matmul %325, %327, %cst_204 {dimension_numbers = #tpu.dot_dimension_numbers<[1], [0], [0], [1], [0, 0, 1, 1], [], []>} : vector<2x128xbf16>, vector<128x128xbf16>, vector<2x128xf32> -> vector<2x128xf32>
    %329 = arith.addf %324, %328 : vector<2x128xf32>
    %330 = arith.addf %329, %5 : vector<2x128xf32>
    %cst_205 = arith.constant 0.000000e+00 : f32
    %331 = vector.broadcast %cst_205 : f32 to vector<2x128xf32>
    %332 = arith.maximumf %330, %331 : vector<2x128xf32>
    %333 = vector.extract_strided_slice %332 {offsets = [0, 0], sizes = [1, 128], strides = [1, 1]} : vector<2x128xf32> to vector<1x128xf32>
    %334 = vector.extract_strided_slice %332 {offsets = [1, 0], sizes = [1, 128], strides = [1, 1]} : vector<2x128xf32> to vector<1x128xf32>
    %335 = arith.maximumf %333, %334 : vector<1x128xf32>
    %336 = arith.maximumf %283, %335 : vector<1x128xf32>
    %337 = arith.truncf %336 : vector<1x128xf32> to vector<1x128xbf16>
    %c0_206 = arith.constant 0 : index
    %c0_207 = arith.constant 0 : index
    %338 = vector.load %arg6[%c0_206, %c0_207] : memref<128x128xbf16, #tpu.memory_space<vmem>>, vector<128x128xbf16>
    %cst_208 = arith.constant dense<0.000000e+00> : vector<1x128xf32>
    %339 = tpu.matmul %337, %338, %cst_208 {dimension_numbers = #tpu.dot_dimension_numbers<[1], [0], [0], [1], [0, 0, 1, 1], [], []>} : vector<1x128xbf16>, vector<128x128xbf16>, vector<1x128xf32> -> vector<1x128xf32>
    %c0_209 = arith.constant 0 : index
    %c0_210 = arith.constant 0 : index
    %340 = vector.load %arg7[%c0_209, %c0_210] : memref<1x128xf32, #tpu.memory_space<vmem>>, vector<1x128xf32>
    %341 = arith.addf %339, %340 : vector<1x128xf32>
    %cst_211 = arith.constant 0.000000e+00 : f32
    %342 = vector.broadcast %cst_211 : f32 to vector<1x128xf32>
    %343 = arith.maximumf %341, %342 : vector<1x128xf32>
    %344 = arith.truncf %343 : vector<1x128xf32> to vector<1x128xbf16>
    %c0_212 = arith.constant 0 : index
    %c0_213 = arith.constant 0 : index
    %345 = vector.load %arg8[%c0_212, %c0_213] : memref<128x10xbf16, #tpu.memory_space<vmem>>, vector<128x10xbf16>
    %cst_214 = arith.constant dense<0.000000e+00> : vector<1x10xf32>
    %346 = tpu.matmul %344, %345, %cst_214 {dimension_numbers = #tpu.dot_dimension_numbers<[1], [0], [0], [1], [0, 0, 1, 1], [], []>} : vector<1x128xbf16>, vector<128x10xbf16>, vector<1x10xf32> -> vector<1x10xf32>
    %c0_215 = arith.constant 0 : index
    %c0_216 = arith.constant 0 : index
    %347 = vector.load %arg9[%c0_215, %c0_216] : memref<1x10xf32, #tpu.memory_space<vmem>>, vector<1x10xf32>
    %348 = arith.addf %346, %347 : vector<1x10xf32>
    %cst_217 = arith.constant dense<0xFF800000> : vector<1xf32>
    %349 = vector.multi_reduction <maximumf>, %348, %cst_217 [1] : vector<1x10xf32> to vector<1xf32>
    %350 = vector.shape_cast %349 : vector<1xf32> to vector<1x1xf32>
    %351 = vector.broadcast %350 : vector<1x1xf32> to vector<1x10xf32>
    %352 = arith.subf %348, %351 : vector<1x10xf32>
    %353 = math.exp %352 : vector<1x10xf32>
    %cst_218 = arith.constant dense<0.000000e+00> : vector<1xf32>
    %354 = vector.multi_reduction <add>, %353, %cst_218 [1] : vector<1x10xf32> to vector<1xf32>
    %355 = vector.shape_cast %354 : vector<1xf32> to vector<1x1xf32>
    %356 = tpu.reciprocal %355 {approx = true} : vector<1x1xf32> -> vector<1x1xf32>
    %357 = vector.broadcast %356 : vector<1x1xf32> to vector<1x10xf32>
    %358 = arith.mulf %353, %357 : vector<1x10xf32>
    %c0_219 = arith.constant 0 : index
    %c0_220 = arith.constant 0 : index
    %c0_221 = arith.constant 0 : index
    %359 = vector.load %arg10[%c0_219, %c0_220, %c0_221] : memref<1x1x10xf32, #tpu.memory_space<vmem>>, vector<1x1x10xf32>
    %360 = vector.shape_cast %359 : vector<1x1x10xf32> to vector<1x10xf32>
    %361 = vector.shape_cast %358 : vector<1x10xf32> to vector<1x1x10xf32>
    tpu.vector_store %arg10[%c0_219, %c0_220, %c0_221], %361 {strides = array<i32>} : memref<1x1x10xf32, #tpu.memory_space<vmem>>, vector<1x1x10xf32>,
    return
  }
  func.func @transform_0(%arg0: i32) -> (i32, i32, i32, i32) {
    %c0_i32 = arith.constant 0 : i32
    %c0_i32_0 = arith.constant 0 : i32
    %c0_i32_1 = arith.constant 0 : i32
    %c0_i32_2 = arith.constant 0 : i32
    return %arg0, %c0_i32, %c0_i32_0, %c0_i32_1 : i32, i32, i32, i32
  }
  func.func @transform_1(%arg0: i32) -> (i32, i32, i32) {
    %c0_i32 = arith.constant 0 : i32
    %c0_i32_0 = arith.constant 0 : i32
    %c0_i32_1 = arith.constant 0 : i32
    %c0_i32_2 = arith.constant 0 : i32
    return %c0_i32, %c0_i32_0, %c0_i32_1 : i32, i32, i32
  }
  func.func @transform_2(%arg0: i32) -> (i32, i32) {
    %c0_i32 = arith.constant 0 : i32
    %c0_i32_0 = arith.constant 0 : i32
    %c0_i32_1 = arith.constant 0 : i32
    return %c0_i32, %c0_i32_0 : i32, i32
  }
  func.func @transform_3(%arg0: i32) -> (i32, i32, i32, i32) {
    %c0_i32 = arith.constant 0 : i32
    %c0_i32_0 = arith.constant 0 : i32
    %c0_i32_1 = arith.constant 0 : i32
    %c0_i32_2 = arith.constant 0 : i32
    %c0_i32_3 = arith.constant 0 : i32
    return %c0_i32, %c0_i32_0, %c0_i32_1, %c0_i32_2 : i32, i32, i32, i32
  }
  func.func @transform_4(%arg0: i32) -> (i32, i32) {
    %c0_i32 = arith.constant 0 : i32
    %c0_i32_0 = arith.constant 0 : i32
    %c0_i32_1 = arith.constant 0 : i32
    return %c0_i32, %c0_i32_0 : i32, i32
  }
  func.func @transform_5(%arg0: i32) -> (i32, i32) {
    %c0_i32 = arith.constant 0 : i32
    %c0_i32_0 = arith.constant 0 : i32
    %c0_i32_1 = arith.constant 0 : i32
    return %c0_i32, %c0_i32_0 : i32, i32
  }
  func.func @transform_6(%arg0: i32) -> (i32, i32) {
    %c0_i32 = arith.constant 0 : i32
    %c0_i32_0 = arith.constant 0 : i32
    %c0_i32_1 = arith.constant 0 : i32
    return %c0_i32, %c0_i32_0 : i32, i32
  }
  func.func @transform_7(%arg0: i32) -> (i32, i32) {
    %c0_i32 = arith.constant 0 : i32
    %c0_i32_0 = arith.constant 0 : i32
    %c0_i32_1 = arith.constant 0 : i32
    return %c0_i32, %c0_i32_0 : i32, i32
  }
  func.func @transform_8(%arg0: i32) -> (i32, i32) {
    %c0_i32 = arith.constant 0 : i32
    %c0_i32_0 = arith.constant 0 : i32
    %c0_i32_1 = arith.constant 0 : i32
    return %c0_i32, %c0_i32_0 : i32, i32
  }
  func.func @transform_9(%arg0: i32) -> (i32, i32, i32) {
    %c0_i32 = arith.constant 0 : i32
    %c0_i32_0 = arith.constant 0 : i32
    %c0_i32_1 = arith.constant 0 : i32
    return %arg0, %c0_i32, %c0_i32_0 : i32, i32, i32
  }
}

</mosaic_0001>

<llo_original>
// kernel: leafnet_forward.3
$region0: #{leafnet_forward.3}
  #allocation0 [shape = 'u32[]', space=smem, size = 0x4, offset = 0x4, fixed_abs, tag = 'smem constant byte address 0x4 - core index']
  #allocation1 [shape = 'u32[144,128]{1,0:T(1,128)}', space=vmem, size = 0x12000, scoped, tag = 'internal scratch']
  %s0 = inlined_call_operand.vmem [shape: bf16[2,107,102,150], index: 0, kind: input, shape index: {}]
  %s1 = inlined_call_operand.vmem [shape: bf16[2,150,32], index: 1, kind: input, shape index: {}]
  %s2 = inlined_call_operand.vmem [shape: f32[1,32], index: 2, kind: input, shape index: {}]
  %s3 = inlined_call_operand.vmem [shape: bf16[2,34,34,32], index: 3, kind: output, shape index: {}]
  %s4 = sld [smem:[#allocation0]]
  $region52: #{leafnet_forward.3} parent=0
    _
  %s6 = ssub.s32 1, %s4
  %s7 = scalar_select 0, %s6, %s4
  loop: start=0, step=1, limit=6
  $region2: #{leafnet_forward.3} parent=0 // loop_pre_header
    _
  $region3: #{leafnet_forward.3} parent=0 // loop_header
    %s9 = sphi 0, %s13
    %p10 = scmp.ge.s32.totalorder %s9, 6
    %s16 = sphi 0, %s28
    %s17 = sphi 0, %s24
    %s18 = sphi 0, %s16
    %s19 = sphi 0, %s17
    %s20 = sphi 0, %s18
    %s21 = sphi 0, %s19
    %s31 = sphi 0, %s33
    %s34 = sphi 0, %s31
    %s35 = sphi 0, %s34
    %s51 = sphi 0, %s35
    %s55 = sphi 0, %s55
    %s57 = sphi 0, %s55
    %s58 = sphi 0, %s57
    %s72 = sphi 0, %s58
    %s76 = sphi 0, %s76
    %s78 = sphi 0, %s76
    %s79 = sphi 0, %s78
    %s93 = sphi 0, %s79
    %s101 = sphi 0, %s103
    %s104 = sphi 0, %s101
    %s105 = sphi 0, %s104
    %s121 = sphi 0, %s105
  $region4: #{leafnet_forward.3} parent=0 // loop_header_branch
    %12 = sbr.rel (%p10) target = $region8
  $region5: #{leafnet_forward.3} parent=0 // loop_body
    %s14 = ssub.s32 %s9, 1
    %s15 = ssub.s32 %s9, 2
    %s22 = sadd.s32 1, %s17
    %p23 = scmp.ge.s32.totalorder %s22, 2
    %s24 = scalar_select %p23, 0, %s22
    %s25 = sadd.s32 1, %s16
    %s26 = scalar_select %p23, %s25, %s16
    %p27 = scmp.ge.s32.totalorder %s26, 2
    %s28 = scalar_select %p27, 0, %s26
    %s29 = ssub.s32 %s16, %s28
    %p30 = scmp.eq.s32.totalorder %s29, 0
    %s32 = sadd.s32 %s31, 1
    %s33 = scalar_select %p30, %s31, %s32
    %p36 = pneg %p30
    %p37 = scmp.eq.s32.totalorder %s9, 3
    %p38 = por %p36, %p37
    %p39 = scmp.ne.s32.totalorder %s31, %s34
    %p40 = scmp.eq.s32.totalorder %s9, 0
    %p41 = por %p39, %p40
    %p42 = scmp.ne.s32.totalorder %s31, %s34
    %p43 = scmp.eq.s32.totalorder %s14, 3
    %p44 = por %p42, %p43
    %p45 = scmp.ne.s32.totalorder %s34, %s35
    %p46 = scmp.eq.s32.totalorder %s14, 0
    %p47 = por %p45, %p46
    %p48 = scmp.ne.s32.totalorder %s34, %s35
    %p49 = scmp.eq.s32.totalorder %s15, 3
    %p50 = por %p48, %p49
    %p52 = scmp.ne.s32.totalorder %s35, %s51
    %p53 = scmp.eq.s32.totalorder %s15, 0
    %p54 = por %p52, %p53
    %s56 = sadd.s32 %s55, 1
    %p59 = scmp.eq.s32.totalorder %s9, 3
    %p60 = scmp.ne.s32.totalorder %s55, %s57
    %p61 = scmp.eq.s32.totalorder %s9, 0
    %p62 = por %p60, %p61
    %p63 = scmp.ne.s32.totalorder %s55, %s57
    %p64 = scmp.eq.s32.totalorder %s14, 3
    %p65 = por %p63, %p64
    %p66 = scmp.ne.s32.totalorder %s57, %s58
    %p67 = scmp.eq.s32.totalorder %s14, 0
    %p68 = por %p66, %p67
    %p69 = scmp.ne.s32.totalorder %s57, %s58
    %p70 = scmp.eq.s32.totalorder %s15, 3
    %p71 = por %p69, %p70
    %p73 = scmp.ne.s32.totalorder %s58, %s72
    %p74 = scmp.eq.s32.totalorder %s15, 0
    %p75 = por %p73, %p74
    %s77 = sadd.s32 %s76, 1
    %p80 = scmp.eq.s32.totalorder %s9, 3
    %p81 = scmp.ne.s32.totalorder %s76, %s78
    %p82 = scmp.eq.s32.totalorder %s9, 0
    %p83 = por %p81, %p82
    %p84 = scmp.ne.s32.totalorder %s76, %s78
    %p85 = scmp.eq.s32.totalorder %s14, 3
    %p86 = por %p84, %p85
    %p87 = scmp.ne.s32.totalorder %s78, %s79
    %p88 = scmp.eq.s32.totalorder %s14, 0
    %p89 = por %p87, %p88
    %p90 = scmp.ne.s32.totalorder %s78, %s79
    %p91 = scmp.eq.s32.totalorder %s15, 3
    %p92 = por %p90, %p91
    %p94 = scmp.ne.s32.totalorder %s79, %s93
    %p95 = scmp.eq.s32.totalorder %s15, 0
    %p96 = por %p94, %p95
    %s97 = ssub.s32 %s16, %s28
    %s98 = ssub.s32 %s17, %s24
    %s99 = sor.u32 %s97, %s98
    %p100 = scmp.eq.s32.totalorder %s99, 0
    %s102 = sadd.s32 %s101, 1
    %s103 = scalar_select %p100, %s101, %s102
    %p106 = pneg %p100
    %p107 = scmp.eq.s32.totalorder %s9, 3
    %p108 = por %p106, %p107
    %p109 = scmp.ne.s32.totalorder %s101, %s104
    %p110 = scmp.eq.s32.totalorder %s9, 0
    %p111 = por %p109, %p110
    %p112 = scmp.ne.s32.totalorder %s101, %s104
    %p113 = scmp.eq.s32.totalorder %s14, 3
    %p114 = por %p112, %p113
    %p115 = scmp.ne.s32.totalorder %s104, %s105
    %p116 = scmp.eq.s32.totalorder %s14, 0
    %p117 = por %p115, %p116
    %p118 = scmp.ne.s32.totalorder %s104, %s105
    %p119 = scmp.eq.s32.totalorder %s15, 3
    %p120 = por %p118, %p119
    %p122 = scmp.ne.s32.totalorder %s105, %s121
    %p123 = scmp.eq.s32.totalorder %s15, 0
    %p124 = por %p122, %p123
    %p125 = scmp.le.s32.totalorder 1, %s9
    %p126 = scmp.lt.s32.totalorder %s9, 5
    %p127 = pnand %p125, %p126
    %p128 = pneg %p127
    // Predicated region
    $region9: #{leafnet_forward.3} parent=5 // pred_check
      _
    $region10: #{leafnet_forward.3} parent=5 // pred_check_branch
      %130 = sbr.rel (%p127) target = $region12
    $region11: #{leafnet_forward.3} parent=5 // pred_region
      %s131 = ssub.s32 %s9, 1
      // Predicated region
      $region13: #{leafnet_forward.3} parent=11 // pred_check
        %p132 = pneg %p68
      $region14: #{leafnet_forward.3} parent=11 // pred_check_branch
        %134 = sbr.rel (%p132) target = $region16
      $region15: #{leafnet_forward.3} parent=11 // pred_region
        _
      $region16: #{leafnet_forward.3} parent=11 // pred_fallthru
        _
      // Predicated region
      $region17: #{leafnet_forward.3} parent=11 // pred_check
        %p135 = pneg %p89
      $region18: #{leafnet_forward.3} parent=11 // pred_check_branch
        %137 = sbr.rel (%p135) target = $region20
      $region19: #{leafnet_forward.3} parent=11 // pred_region
        _
      $region20: #{leafnet_forward.3} parent=11 // pred_fallthru
        _
    $region12: #{leafnet_forward.3} parent=5 // pred_fallthru
      _
    %p138 = scmp.lt.s32.totalorder %s9, 4
    // Predicated region
    $region21: #{leafnet_forward.3} parent=5 // pred_check
      %p139 = pneg %p138
    $region22: #{leafnet_forward.3} parent=5 // pred_check_branch
      %141 = sbr.rel (%p139) target = $region24
    $region23: #{leafnet_forward.3} parent=5 // pred_region
      // Predicated region
      $region25: #{leafnet_forward.3} parent=23 // pred_check
        %p142 = pneg %p41
      $region26: #{leafnet_forward.3} parent=23 // pred_check_branch
        %144 = sbr.rel (%p142) target = $region28
      $region27: #{leafnet_forward.3} parent=23 // pred_region
        %p145 = scmp.lt.s32.totalorder %s16, 1
        %s146 = scalar_select %p145, %s16, 1
        %s147 = smul.addr %s146, 2782
        %s148 = smul.addr %s147, 4
        %s149 = scalar_lea.vmem %s0, %s148
      $region28: #{leafnet_forward.3} parent=23 // pred_fallthru
        _
    $region24: #{leafnet_forward.3} parent=5 // pred_fallthru
      _
    %p150 = scmp.le.s32.totalorder 1, %s9
    %p151 = scmp.lt.s32.totalorder %s9, 5
    %p152 = pnand %p150, %p151
    %p153 = pneg %p152
    // Predicated region
    $region29: #{leafnet_forward.3} parent=5 // pred_check
      _
    $region30: #{leafnet_forward.3} parent=5 // pred_check_branch
      %155 = sbr.rel (%p152) target = $region32
    $region31: #{leafnet_forward.3} parent=5 // pred_region
      %s156 = ssub.s32 %s9, 1
      %p157 = scmp.lt.s32.totalorder %s18, 1
      %s158 = scalar_select %p157, %s18, 1
      %s159 = smul.addr %s158, 2782
      %s160 = smul.addr %s159, 4
      %s161 = scalar_lea.vmem %s0, %s160
      %p162 = pneg %p47
      %p163 = pneg %p44
      %p164 = pneg %p68
      %p165 = pneg %p65
      %p166 = pneg %p89
      %p167 = pneg %p86
      %p168 = pneg %p117
      %p169 = pneg %p114
      %s170 = smul.u32 17, %s19
      %p171 = scmp.lt.s32.totalorder %s18, 1
      %s172 = scalar_select %p171, %s18, 1
      %p173 = scmp.lt.s32.totalorder %s170, 33
      %s174 = scalar_select %p173, %s170, 33
      %s175 = smul.addr %s174, 5
      %s176 = smul.addr %s172, 170
      %s177 = sadd.s32 %s175, %s176
      %s178 = smul.addr %s177, 4
      %s179 = scalar_lea.vmem %s3, %s178
      %p180 = scmp.lt.s32.totalorder %s18, 1
      %s181 = scalar_select %p180, %s18, 1
      %s182 = smul.addr %s181, 2782
      %s183 = smul.addr %s182, 4
      %s184 = scalar_lea.vmem %s0, %s183
      %s185 = smul.u32 17, %s19
      %p186 = scmp.lt.s32.totalorder %s18, 1
      %s187 = scalar_select %p186, %s18, 1
      %p188 = scmp.lt.s32.totalorder %s185, 33
      %s189 = scalar_select %p188, %s185, 33
      %s190 = smul.addr %s189, 5
      %s191 = smul.addr %s187, 170
      %s192 = sadd.s32 %s190, %s191
      %s193 = smul.addr %s192, 4
      %s194 = scalar_lea.vmem %s3, %s193
      %s195 = smul.u32 17, %s19
      %v197 = vld [vmem:[%s2] sm:$0x1]
      %v199 = vlaneseq
      %v200 = vshrl.u32 %v199, 7
      %v201 = vsub.s32 0, %v200
      %v202 = vrot.slane %v197, %v201
      loop: start=0, step=1, limit=17
      $region33: #{leafnet_forward.3} parent=31 // loop_pre_header
        _
      $region34: #{leafnet_forward.3} parent=31 // loop_header
        %s205 = sphi 0, %s209
        %p206 = scmp.ge.s32.totalorder %s205, 17
      $region35: #{leafnet_forward.3} parent=31 // loop_header_branch
        %208 = sbr.rel (%p206) target = $region39
      $region36: #{leafnet_forward.3} parent=31 // loop_body
        %s210 = smul.u32 %s19, 17
        %s211 = sadd.s32 %s210, %s205
        %s212 = smul.u32 %s211, 3
        %v213 = vld [vmem:[%s1] sm:$0xf]
        %v214 = vld [vmem:[%s1 + $0x4] sm:$0xf]
        %v215 = vld [vmem:[%s1 + $0x8] sm:$0xf]
        %v216 = vld [vmem:[%s1 + $0xc] sm:$0xf]
        %v217 = vld [vmem:[%s1 + $0x10] sm:$0xf]
        %v218 = vld [vmem:[%s1 + $0x14] sm:$0xf]
        %v219 = vld [vmem:[%s1 + $0x18] sm:$0xf]
        %v220 = vld [vmem:[%s1 + $0x1c] sm:$0xf]
        %v221 = vld [vmem:[%s1 + $0x20] sm:$0xf]
        %v222 = vld [vmem:[%s1 + $0x24] sm:$0xf]
        %v223 = vld [vmem:[%s1 + $0x28] sm:$0xf]
        %v224 = vld [vmem:[%s1 + $0x2c] sm:$0xf]
        %v225 = vld [vmem:[%s1 + $0x30] sm:$0xf]
        %v226 = vld [vmem:[%s1 + $0x34] sm:$0xf]
        %v227 = vld [vmem:[%s1 + $0x38] sm:$0xf]
        %v228 = vld [vmem:[%s1 + $0x3c] sm:$0xf]
        %v229 = vld [vmem:[%s1 + $0x40] sm:$0xf]
        %v230 = vld [vmem:[%s1 + $0x44] sm:$0xf]
        %v231 = vld [vmem:[%s1 + $0x48] sm:$0x7]
        %s232 = smul.u32 %s212, 26
        %s233 = smul.addr %s232, 4
        %s234 = scalar_lea.vmem %s184, %s233
        %v235 = vld [vmem:[%s234] sm:$0xff]
        %v236 = vld [vmem:[%s234 + $0x8] sm:$0xff]
        %v237 = vld [vmem:[%s234 + $0x10] sm:$0xff]
        %v238 = vld [vmem:[%s234 + $0x18] sm:$0xff]
        %v239 = vld [vmem:[%s234 + $0x20] sm:$0xff]
        %v240 = vld [vmem:[%s234 + $0x28] sm:$0xff]
        %v241 = vld [vmem:[%s234 + $0x30] sm:$0xff]
        %v242 = vld [vmem:[%s234 + $0x38] sm:$0xff]
        %v243 = vld [vmem:[%s234 + $0x40] sm:$0xff]
        %v244 = vld [vmem:[%s234 + $0x48] sm:$0xff]
        %v245 = vld [vmem:[%s234 + $0x50] sm:$0xff]
        %v246 = vld [vmem:[%s234 + $0x58] sm:$0xff]
        %v247 = vld [vmem:[%s234 + $0x60] sm:$0x77]
        %s248 = sadd.s32 %s212, 1
        %s249 = smul.u32 %s248, 26
        %s250 = smul.addr %s249, 4
        %s251 = scalar_lea.vmem %s184, %s250
        %v252 = vld [vmem:[%s251] sm:$0xff]
        %v253 = vld [vmem:[%s251 + $0x8] sm:$0xff]
        %v254 = vld [vmem:[%s251 + $0x10] sm:$0xff]
        %v255 = vld [vmem:[%s251 + $0x18] sm:$0xff]
        %v256 = vld [vmem:[%s251 + $0x20] sm:$0xff]
        %v257 = vld [vmem:[%s251 + $0x28] sm:$0xff]
        %v258 = vld [vmem:[%s251 + $0x30] sm:$0xff]
        %v259 = vld [vmem:[%s251 + $0x38] sm:$0xff]
        %v260 = vld [vmem:[%s251 + $0x40] sm:$0xff]
        %v261 = vld [vmem:[%s251 + $0x48] sm:$0xff]
        %v262 = vld [vmem:[%s251 + $0x50] sm:$0xff]
        %v263 = vld [vmem:[%s251 + $0x58] sm:$0xff]
        %v264 = vld [vmem:[%s251 + $0x60] sm:$0x77]
        %s265 = sadd.s32 %s212, 2
        %s266 = smul.u32 %s265, 26
        %s267 = smul.addr %s266, 4
        %s268 = scalar_lea.vmem %s184, %s267
        %v269 = vld [vmem:[%s268] sm:$0xff]
        %v270 = vld [vmem:[%s268 + $0x8] sm:$0xff]
        %v271 = vld [vmem:[%s268 + $0x10] sm:$0xff]
        %v272 = vld [vmem:[%s268 + $0x18] sm:$0xff]
        %v273 = vld [vmem:[%s268 + $0x20] sm:$0xff]
        %v274 = vld [vmem:[%s268 + $0x28] sm:$0xff]
        %v275 = vld [vmem:[%s268 + $0x30] sm:$0xff]
        %v276 = vld [vmem:[%s268 + $0x38] sm:$0xff]
        %v277 = vld [vmem:[%s268 + $0x40] sm:$0xff]
        %v278 = vld [vmem:[%s268 + $0x48] sm:$0xff]
        %v279 = vld [vmem:[%s268 + $0x50] sm:$0xff]
        %v280 = vld [vmem:[%s268 + $0x58] sm:$0xff]
        %v281 = vld [vmem:[%s268 + $0x60] sm:$0x77]
        %s282 = scalar_lea.vmem %s1, 76
        %v283 = vld [vmem:[%s282] sm:$0xf]
        %v284 = vld [vmem:[%s282 + $0x4] sm:$0xf]
        %v285 = vld [vmem:[%s282 + $0x8] sm:$0xf]
        %v286 = vld [vmem:[%s282 + $0xc] sm:$0xf]
        %v287 = vld [vmem:[%s282 + $0x10] sm:$0xf]
        %v288 = vld [vmem:[%s282 + $0x14] sm:$0xf]
        %v289 = vld [vmem:[%s282 + $0x18] sm:$0xf]
        %v290 = vld [vmem:[%s282 + $0x1c] sm:$0xf]
        %v291 = vld [vmem:[%s282 + $0x20] sm:$0xf]
        %v292 = vld [vmem:[%s282 + $0x24] sm:$0xf]
        %v293 = vld [vmem:[%s282 + $0x28] sm:$0xf]
        %v294 = vld [vmem:[%s282 + $0x2c] sm:$0xf]
        %v295 = vld [vmem:[%s282 + $0x30] sm:$0xf]
        %v296 = vld [vmem:[%s282 + $0x34] sm:$0xf]
        %v297 = vld [vmem:[%s282 + $0x38] sm:$0xf]
        %v298 = vld [vmem:[%s282 + $0x3c] sm:$0xf]
        %v299 = vld [vmem:[%s282 + $0x40] sm:$0xf]
        %v300 = vld [vmem:[%s282 + $0x44] sm:$0xf]
        %v301 = vld [vmem:[%s282 + $0x48] sm:$0x7]
        %s302 = sadd.s32 %s212, 5
        %s303 = smul.u32 %s302, 26
        %s304 = smul.addr %s303, 4
        %s305 = scalar_lea.vmem %s184, %s304
        %v306 = vld [vmem:[%s305] sm:$0xff]
        %v307 = vld [vmem:[%s305 + $0x8] sm:$0xff]
        %v308 = vld [vmem:[%s305 + $0x10] sm:$0xff]
        %v309 = vld [vmem:[%s305 + $0x18] sm:$0xff]
        %v310 = vld [vmem:[%s305 + $0x20] sm:$0xff]
        %v311 = vld [vmem:[%s305 + $0x28] sm:$0xff]
        %v312 = vld [vmem:[%s305 + $0x30] sm:$0xff]
        %v313 = vld [vmem:[%s305 + $0x38] sm:$0xff]
        %v314 = vld [vmem:[%s305 + $0x40] sm:$0xff]
        %v315 = vld [vmem:[%s305 + $0x48] sm:$0xff]
        %v316 = vld [vmem:[%s305 + $0x50] sm:$0xff]
        %v317 = vld [vmem:[%s305 + $0x58] sm:$0xff]
        %v318 = vld [vmem:[%s305 + $0x60] sm:$0x77]
        %v332 = vunpack.c.l.b16 %v306
        %v333 = vunpack.c.h.b16 %v306
        %v334 = vunpack.c.l.b16 %v307
        %v335 = vunpack.c.h.b16 %v307
        %v336 = vunpack.c.l.b16 %v308
        %v337 = vunpack.c.h.b16 %v308
        %v338 = vunpack.c.l.b16 %v309
        %v339 = vunpack.c.h.b16 %v309
        %v340 = vunpack.c.l.b16 %v310
        %v341 = vunpack.c.h.b16 %v310
        %v342 = vunpack.c.l.b16 %v311
        %v343 = vunpack.c.h.b16 %v311
        %v344 = vunpack.c.l.b16 %v312
        %v345 = vunpack.c.h.b16 %v312
        %v346 = vunpack.c.l.b16 %v313
        %v347 = vunpack.c.h.b16 %v313
        %v348 = vunpack.c.l.b16 %v314
        %v349 = vunpack.c.h.b16 %v314
        %v350 = vunpack.c.l.b16 %v315
        %v351 = vunpack.c.h.b16 %v315
        %v352 = vunpack.c.l.b16 %v316
        %v353 = vunpack.c.h.b16 %v316
        %v354 = vunpack.c.l.b16 %v317
        %v355 = vunpack.c.h.b16 %v317
        %v356 = vunpack.c.l.b16 %v318
        %v357 = vunpack.c.h.b16 %v318
        %v358 = vpack.c.b16 %v334, %v332
        %v359 = vpack.c.b16 %v335, %v333
        %v360 = vpack.c.b16 %v338, %v336
        %v361 = vpack.c.b16 %v339, %v337
        %v362 = vpack.c.b16 %v342, %v340
        %v363 = vpack.c.b16 %v343, %v341
        %v364 = vpack.c.b16 %v346, %v344
        %v365 = vpack.c.b16 %v347, %v345
        %v366 = vpack.c.b16 %v350, %v348
        %v367 = vpack.c.b16 %v351, %v349
        %v368 = vpack.c.b16 %v354, %v352
        %v369 = vpack.c.b16 %v355, %v353
        %v370 = vpack.c.b16 %v356, %v356
        %v371 = vpack.c.b16 %v357, %v357
        %v398 = vunpack.c.l.b16 %v283
        %v399 = vunpack.c.l.b16 %v284
        %v400 = vunpack.c.l.b16 %v285
        %v401 = vunpack.c.l.b16 %v286
        %v402 = vunpack.c.l.b16 %v287
        %v403 = vunpack.c.l.b16 %v288
        %v404 = vunpack.c.l.b16 %v289
        %v405 = vunpack.c.l.b16 %v290
        %v406 = vunpack.c.l.b16 %v291
        %v407 = vunpack.c.l.b16 %v292
        %v408 = vunpack.c.l.b16 %v293
        %v409 = vunpack.c.l.b16 %v294
        %v410 = vunpack.c.l.b16 %v295
        %v411 = vunpack.c.l.b16 %v296
        %v412 = vunpack.c.l.b16 %v297
        %v413 = vunpack.c.l.b16 %v298
        %v414 = vunpack.c.l.b16 %v299
        %v415 = vunpack.c.l.b16 %v300
        %v416 = vunpack.c.l.b16 %v301
        %v417 = vpack.c.b16 %v399, %v398
        %v418 = vpack.c.b16 %v401, %v400
        %v419 = vpack.c.b16 %v403, %v402
        %v420 = vpack.c.b16 %v405, %v404
        %v421 = vpack.c.b16 %v407, %v406
        %v422 = vpack.c.b16 %v409, %v408
        %v423 = vpack.c.b16 %v411, %v410
        %v424 = vpack.c.b16 %v413, %v412
        %v425 = vpack.c.b16 %v415, %v414
        %v426 = vpack.c.b16 %v416, %v416
        %vm436 = vcmask 179200
        %v438 = vsel %vm436, %v359, 0
        %v441 = vsel %vm436, %v361, 0
        %v444 = vsel %vm436, %v363, 0
        %v447 = vsel %vm436, %v365, 0
        %v450 = vsel %vm436, %v367, 0
        %v453 = vsel %vm436, %v369, 0
        %v456 = vsel %vm436, %v371, 0
        %vm458 = vcmask 1042432
        %v460 = vsel %vm458, %v426, 0
        %462 = vmatprep.subr.bf16.mxu0 0
        %463 = vmatpush1.bf16.msra.mxu0 %v417
        %464 = vmatprep.subr.bf16.mxu0 0
        %465 = vmatpush1.bf16.msra.mxu0 %v418
        %466 = vmatprep.subr.bf16.mxu0 0
        %467 = vmatpush1.bf16.msra.mxu0 %v419
        %468 = vmatprep.subr.bf16.mxu0 0
        %469 = vmatpush1.bf16.msra.mxu0 %v420
        %470 = vmatprep.subr.bf16.mxu0 0
        %471 = vmatpush1.bf16.msra.mxu0 %v421
        %472 = vmatprep.subr.bf16.mxu0 0
        %473 = vmatpush1.bf16.msra.mxu0 %v422
        %474 = vmatprep.subr.bf16.mxu0 0
        %475 = vmatpush1.bf16.msra.mxu0 %v423
        %476 = vmatprep.subr.bf16.mxu0 0
        %477 = vmatpush1.bf16.msra.mxu0 %v424
        %478 = vmatprep.subr.bf16.mxu0 0
        %479 = vmatpush1.bf16.msra.mxu0 %v425
        %480 = vmatprep.subr.bf16.mxu0 0
        %481 = vmatpush1.bf16.msra.mxu0 %v460
        %482 = vmatprep.subr.bf16.mxu0 0
        %483 = vmatpush1.bf16.msra.mxu0 0
        %484 = vmatprep.subr.bf16.mxu0 0
        %485 = vmatpush1.bf16.msra.mxu0 0
        %486 = vmatprep.subr.bf16.mxu0 0
        %487 = vmatpush1.bf16.msra.mxu0 0
        %488 = vmatprep.subr.bf16.mxu0 0
        %489 = vmatpush1.bf16.msra.mxu0 0
        %490 = vmatprep.subr.bf16.mxu0 0
        %491 = vmatpush1.bf16.msra.mxu0 0
        %492 = vmatprep.subr.bf16.mxu0 0
        %493 = vmatpush1.bf16.msra.mxu0 0
        %494 = vmatprep.mubr.bf16.mxu0 %v438
        %495 = vmatmul.mubr.bf16.gmra.mrb[0].mxu0 %v358
        %v496 = vpop.f32.mrb[0].mxu0
        %v497 = vadd.f32 0.0, %v496
        %v498 = vpop.f32.mrb[0].mxu0
        %v499 = vpop.f32.mrb[0].mxu0
        %v500 = vadd.f32 0.0, %v499
        %v501 = vpop.f32.mrb[0].mxu0
        %502 = vmatprep.mubr.bf16.mxu0 %v441
        %503 = vmatmul.mubr.bf16.gmra.mrb[0].mxu0 %v360
        %v504 = vpop.f32.mrb[0].mxu0
        %v505 = vadd.f32 0.0, %v504
        %v506 = vpop.f32.mrb[0].mxu0
        %v507 = vpop.f32.mrb[0].mxu0
        %v508 = vadd.f32 0.0, %v507
        %v509 = vpop.f32.mrb[0].mxu0
        %510 = vmatprep.mubr.bf16.mxu0 %v444
        %511 = vmatmul.mubr.bf16.gmra.mrb[0].mxu0 %v362
        %v512 = vpop.f32.mrb[0].mxu0
        %v513 = vadd.f32 0.0, %v512
        %v514 = vpop.f32.mrb[0].mxu0
        %v515 = vpop.f32.mrb[0].mxu0
        %v516 = vadd.f32 0.0, %v515
        %v517 = vpop.f32.mrb[0].mxu0
        %518 = vmatprep.mubr.bf16.mxu0 %v447
        %519 = vmatmul.mubr.bf16.gmra.mrb[0].mxu0 %v364
        %v520 = vpop.f32.mrb[0].mxu0
        %v521 = vadd.f32 0.0, %v520
        %v522 = vpop.f32.mrb[0].mxu0
        %v523 = vpop.f32.mrb[0].mxu0
        %v524 = vadd.f32 0.0, %v523
        %v525 = vpop.f32.mrb[0].mxu0
        %526 = vmatprep.mubr.bf16.mxu0 %v450
        %527 = vmatmul.mubr.bf16.gmra.mrb[0].mxu0 %v366
        %v528 = vpop.f32.mrb[0].mxu0
        %v529 = vadd.f32 0.0, %v528
        %v530 = vpop.f32.mrb[0].mxu0
        %v531 = vpop.f32.mrb[0].mxu0
        %v532 = vadd.f32 0.0, %v531
        %v533 = vpop.f32.mrb[0].mxu0
        %534 = vmatprep.mubr.bf16.mxu0 %v453
        %535 = vmatmul.mubr.bf16.gmra.mrb[0].mxu0 %v368
        %v536 = vpop.f32.mrb[0].mxu0
        %v537 = vadd.f32 0.0, %v536
        %v538 = vpop.f32.mrb[0].mxu0
        %v539 = vpop.f32.mrb[0].mxu0
        %v540 = vadd.f32 0.0, %v539
        %v541 = vpop.f32.mrb[0].mxu0
        %542 = vmatprep.mubr.bf16.mxu0 %v456
        %543 = vmatmul.mubr.bf16.gmra.mrb[0].mxu0 %v370
        %v544 = vpop.f32.mrb[0].mxu0
        %v545 = vadd.f32 0.0, %v544
        %v546 = vpop.f32.mrb[0].mxu0
        %v547 = vpop.f32.mrb[0].mxu0
        %v548 = vpop.f32.mrb[0].mxu0
        %549 = vdwg.mxu0
        %v563 = vunpack.c.l.b16 %v235
        %v564 = vunpack.c.h.b16 %v235
        %v565 = vunpack.c.l.b16 %v236
        %v566 = vunpack.c.h.b16 %v236
        %v567 = vunpack.c.l.b16 %v237
        %v568 = vunpack.c.h.b16 %v237
        %v569 = vunpack.c.l.b16 %v238
        %v570 = vunpack.c.h.b16 %v238
        %v571 = vunpack.c.l.b16 %v239
        %v572 = vunpack.c.h.b16 %v239
        %v573 = vunpack.c.l.b16 %v240
        %v574 = vunpack.c.h.b16 %v240
        %v575 = vunpack.c.l.b16 %v241
        %v576 = vunpack.c.h.b16 %v241
        %v577 = vunpack.c.l.b16 %v242
        %v578 = vunpack.c.h.b16 %v242
        %v579 = vunpack.c.l.b16 %v243
        %v580 = vunpack.c.h.b16 %v243
        %v581 = vunpack.c.l.b16 %v244
        %v582 = vunpack.c.h.b16 %v244
        %v583 = vunpack.c.l.b16 %v245
        %v584 = vunpack.c.h.b16 %v245
        %v585 = vunpack.c.l.b16 %v246
        %v586 = vunpack.c.h.b16 %v246
        %v587 = vunpack.c.l.b16 %v247
        %v588 = vunpack.c.h.b16 %v247
        %v589 = vpack.c.b16 %v565, %v563
        %v590 = vpack.c.b16 %v566, %v564
        %v591 = vpack.c.b16 %v569, %v567
        %v592 = vpack.c.b16 %v570, %v568
        %v593 = vpack.c.b16 %v573, %v571
        %v594 = vpack.c.b16 %v574, %v572
        %v595 = vpack.c.b16 %v577, %v575
        %v596 = vpack.c.b16 %v578, %v576
        %v597 = vpack.c.b16 %v581, %v579
        %v598 = vpack.c.b16 %v582, %v580
        %v599 = vpack.c.b16 %v585, %v583
        %v600 = vpack.c.b16 %v586, %v584
        %v601 = vpack.c.b16 %v587, %v587
        %v602 = vpack.c.b16 %v588, %v588
        %v629 = vunpack.c.l.b16 %v213
        %v630 = vunpack.c.l.b16 %v214
        %v631 = vunpack.c.l.b16 %v215
        %v632 = vunpack.c.l.b16 %v216
        %v633 = vunpack.c.l.b16 %v217
        %v634 = vunpack.c.l.b16 %v218
        %v635 = vunpack.c.l.b16 %v219
        %v636 = vunpack.c.l.b16 %v220
        %v637 = vunpack.c.l.b16 %v221
        %v638 = vunpack.c.l.b16 %v222
        %v639 = vunpack.c.l.b16 %v223
        %v640 = vunpack.c.l.b16 %v224
        %v641 = vunpack.c.l.b16 %v225
        %v642 = vunpack.c.l.b16 %v226
        %v643 = vunpack.c.l.b16 %v227
        %v644 = vunpack.c.l.b16 %v228
        %v645 = vunpack.c.l.b16 %v229
        %v646 = vunpack.c.l.b16 %v230
        %v647 = vunpack.c.l.b16 %v231
        %v648 = vpack.c.b16 %v630, %v629
        %v649 = vpack.c.b16 %v632, %v631
        %v650 = vpack.c.b16 %v634, %v633
        %v651 = vpack.c.b16 %v636, %v635
        %v652 = vpack.c.b16 %v638, %v637
        %v653 = vpack.c.b16 %v640, %v639
        %v654 = vpack.c.b16 %v642, %v641
        %v655 = vpack.c.b16 %v644, %v643
        %v656 = vpack.c.b16 %v646, %v645
        %v657 = vpack.c.b16 %v647, %v647
        %v668 = vsel %vm436, %v590, 0
        %v671 = vsel %vm436, %v592, 0
        %v674 = vsel %vm436, %v594, 0
        %v677 = vsel %vm436, %v596, 0
        %v680 = vsel %vm436, %v598, 0
        %v683 = vsel %vm436, %v600, 0
        %v686 = vsel %vm436, %v602, 0
        %v689 = vsel %vm458, %v657, 0
        %691 = vmatprep.subr.bf16.mxu0 0
        %692 = vmatpush1.bf16.msra.mxu0 %v648
        %693 = vmatprep.subr.bf16.mxu0 0
        %694 = vmatpush1.bf16.msra.mxu0 %v649
        %695 = vmatprep.subr.bf16.mxu0 0
        %696 = vmatpush1.bf16.msra.mxu0 %v650
        %697 = vmatprep.subr.bf16.mxu0 0
        %698 = vmatpush1.bf16.msra.mxu0 %v651
        %699 = vmatprep.subr.bf16.mxu0 0
        %700 = vmatpush1.bf16.msra.mxu0 %v652
        %701 = vmatprep.subr.bf16.mxu0 0
        %702 = vmatpush1.bf16.msra.mxu0 %v653
        %703 = vmatprep.subr.bf16.mxu0 0
        %704 = vmatpush1.bf16.msra.mxu0 %v654
        %705 = vmatprep.subr.bf16.mxu0 0
        %706 = vmatpush1.bf16.msra.mxu0 %v655
        %707 = vmatprep.subr.bf16.mxu0 0
        %708 = vmatpush1.bf16.msra.mxu0 %v656
        %709 = vmatprep.subr.bf16.mxu0 0
        %710 = vmatpush1.bf16.msra.mxu0 %v689
        %711 = vmatprep.subr.bf16.mxu0 0
        %712 = vmatpush1.bf16.msra.mxu0 0
        %713 = vmatprep.subr.bf16.mxu0 0
        %714 = vmatpush1.bf16.msra.mxu0 0
        %715 = vmatprep.subr.bf16.mxu0 0
        %716 = vmatpush1.bf16.msra.mxu0 0
        %717 = vmatprep.subr.bf16.mxu0 0
        %718 = vmatpush1.bf16.msra.mxu0 0
        %719 = vmatprep.subr.bf16.mxu0 0
        %720 = vmatpush1.bf16.msra.mxu0 0
        %721 = vmatprep.subr.bf16.mxu0 0
        %722 = vmatpush1.bf16.msra.mxu0 0
        %723 = vmatprep.mubr.bf16.mxu0 %v668
        %724 = vmatmul.mubr.bf16.gmra.mrb[0].mxu0 %v589
        %v725 = vpop.f32.mrb[0].mxu0
        %v726 = vadd.f32 %v497, %v725
        %v727 = vpop.f32.mrb[0].mxu0
        %v728 = vpop.f32.mrb[0].mxu0
        %v729 = vadd.f32 %v500, %v728
        %v730 = vpop.f32.mrb[0].mxu0
        %731 = vmatprep.mubr.bf16.mxu0 %v671
        %732 = vmatmul.mubr.bf16.gmra.mrb[0].mxu0 %v591
        %v733 = vpop.f32.mrb[0].mxu0
        %v734 = vadd.f32 %v505, %v733
        %v735 = vpop.f32.mrb[0].mxu0
        %v736 = vpop.f32.mrb[0].mxu0
        %v737 = vadd.f32 %v508, %v736
        %v738 = vpop.f32.mrb[0].mxu0
        %739 = vmatprep.mubr.bf16.mxu0 %v674
        %740 = vmatmul.mubr.bf16.gmra.mrb[0].mxu0 %v593
        %v741 = vpop.f32.mrb[0].mxu0
        %v742 = vadd.f32 %v513, %v741
        %v743 = vpop.f32.mrb[0].mxu0
        %v744 = vpop.f32.mrb[0].mxu0
        %v745 = vadd.f32 %v516, %v744
        %v746 = vpop.f32.mrb[0].mxu0
        %747 = vmatprep.mubr.bf16.mxu0 %v677
        %748 = vmatmul.mubr.bf16.gmra.mrb[0].mxu0 %v595
        %v749 = vpop.f32.mrb[0].mxu0
        %v750 = vadd.f32 %v521, %v749
        %v751 = vpop.f32.mrb[0].mxu0
        %v752 = vpop.f32.mrb[0].mxu0
        %v753 = vadd.f32 %v524, %v752
        %v754 = vpop.f32.mrb[0].mxu0
        %755 = vmatprep.mubr.bf16.mxu0 %v680
        %756 = vmatmul.mubr.bf16.gmra.mrb[0].mxu0 %v597
        %v757 = vpop.f32.mrb[0].mxu0
        %v758 = vadd.f32 %v529, %v757
        %v759 = vpop.f32.mrb[0].mxu0
        %v760 = vpop.f32.mrb[0].mxu0
        %v761 = vadd.f32 %v532, %v760
        %v762 = vpop.f32.mrb[0].mxu0
        %763 = vmatprep.mubr.bf16.mxu0 %v683
        %764 = vmatmul.mubr.bf16.gmra.mrb[0].mxu0 %v599
        %v765 = vpop.f32.mrb[0].mxu0
        %v766 = vadd.f32 %v537, %v765
        %v767 = vpop.f32.mrb[0].mxu0
        %v768 = vpop.f32.mrb[0].mxu0
        %v769 = vadd.f32 %v540, %v768
        %v770 = vpop.f32.mrb[0].mxu0
        %771 = vmatprep.mubr.bf16.mxu0 %v686
        %772 = vmatmul.mubr.bf16.gmra.mrb[0].mxu0 %v601
        %v773 = vpop.f32.mrb[0].mxu0
        %v774 = vadd.f32 %v545, %v773
        %v775 = vpop.f32.mrb[0].mxu0
        %v776 = vpop.f32.mrb[0].mxu0
        %v777 = vpop.f32.mrb[0].mxu0
        %778 = vdwg.mxu0
        %s779 = sadd.s32 %s212, 6
        %s780 = smul.u32 %s779, 26
        %s781 = smul.addr %s780, 4
        %s782 = scalar_lea.vmem %s184, %s781
        %v783 = vld [vmem:[%s782] sm:$0xff]
        %v784 = vld [vmem:[%s782 + $0x8] sm:$0xff]
        %v785 = vld [vmem:[%s782 + $0x10] sm:$0xff]
        %v786 = vld [vmem:[%s782 + $0x18] sm:$0xff]
        %v787 = vld [vmem:[%s782 + $0x20] sm:$0xff]
        %v788 = vld [vmem:[%s782 + $0x28] sm:$0xff]
        %v789 = vld [vmem:[%s782 + $0x30] sm:$0xff]
        %v790 = vld [vmem:[%s782 + $0x38] sm:$0xff]
        %v791 = vld [vmem:[%s782 + $0x40] sm:$0xff]
        %v792 = vld [vmem:[%s782 + $0x48] sm:$0xff]
        %v793 = vld [vmem:[%s782 + $0x50] sm:$0xff]
        %v794 = vld [vmem:[%s782 + $0x58] sm:$0xff]
        %v795 = vld [vmem:[%s782 + $0x60] sm:$0x77]
        %v809 = vunpack.c.l.b16 %v783
        %v810 = vunpack.c.h.b16 %v783
        %v811 = vunpack.c.l.b16 %v784
        %v812 = vunpack.c.h.b16 %v784
        %v813 = vunpack.c.l.b16 %v785
        %v814 = vunpack.c.h.b16 %v785
        %v815 = vunpack.c.l.b16 %v786
        %v816 = vunpack.c.h.b16 %v786
        %v817 = vunpack.c.l.b16 %v787
        %v818 = vunpack.c.h.b16 %v787
        %v819 = vunpack.c.l.b16 %v788
        %v820 = vunpack.c.h.b16 %v788
        %v821 = vunpack.c.l.b16 %v789
        %v822 = vunpack.c.h.b16 %v789
        %v823 = vunpack.c.l.b16 %v790
        %v824 = vunpack.c.h.b16 %v790
        %v825 = vunpack.c.l.b16 %v791
        %v826 = vunpack.c.h.b16 %v791
        %v827 = vunpack.c.l.b16 %v792
        %v828 = vunpack.c.h.b16 %v792
        %v829 = vunpack.c.l.b16 %v793
        %v830 = vunpack.c.h.b16 %v793
        %v831 = vunpack.c.l.b16 %v794
        %v832 = vunpack.c.h.b16 %v794
        %v833 = vunpack.c.l.b16 %v795
        %v834 = vunpack.c.h.b16 %v795
        %v835 = vpack.c.b16 %v811, %v809
        %v836 = vpack.c.b16 %v812, %v810
        %v837 = vpack.c.b16 %v815, %v813
        %v838 = vpack.c.b16 %v816, %v814
        %v839 = vpack.c.b16 %v819, %v817
        %v840 = vpack.c.b16 %v820, %v818
        %v841 = vpack.c.b16 %v823, %v821
        %v842 = vpack.c.b16 %v824, %v822
        %v843 = vpack.c.b16 %v827, %v825
        %v844 = vpack.c.b16 %v828, %v826
        %v845 = vpack.c.b16 %v831, %v829
        %v846 = vpack.c.b16 %v832, %v830
        %v847 = vpack.c.b16 %v833, %v833
        %v848 = vpack.c.b16 %v834, %v834
        %v857 = vsel %vm436, %v836, 0
        %v860 = vsel %vm436, %v838, 0
        %v863 = vsel %vm436, %v840, 0
        %v866 = vsel %vm436, %v842, 0
        %v869 = vsel %vm436, %v844, 0
        %v872 = vsel %vm436, %v846, 0
        %v875 = vsel %vm436, %v848, 0
        %877 = vmatprep.subr.bf16.mxu0 0
        %878 = vmatpush1.bf16.msra.mxu0 %v417
        %879 = vmatprep.subr.bf16.mxu0 0
        %880 = vmatpush1.bf16.msra.mxu0 %v418
        %881 = vmatprep.subr.bf16.mxu0 0
        %882 = vmatpush1.bf16.msra.mxu0 %v419
        %883 = vmatprep.subr.bf16.mxu0 0
        %884 = vmatpush1.bf16.msra.mxu0 %v420
        %885 = vmatprep.subr.bf16.mxu0 0
        %886 = vmatpush1.bf16.msra.mxu0 %v421
        %887 = vmatprep.subr.bf16.mxu0 0
        %888 = vmatpush1.bf16.msra.mxu0 %v422
        %889 = vmatprep.subr.bf16.mxu0 0
        %890 = vmatpush1.bf16.msra.mxu0 %v423
        %891 = vmatprep.subr.bf16.mxu0 0
        %892 = vmatpush1.bf16.msra.mxu0 %v424
        %893 = vmatprep.subr.bf16.mxu0 0
        %894 = vmatpush1.bf16.msra.mxu0 %v425
        %895 = vmatprep.subr.bf16.mxu0 0
        %896 = vmatpush1.bf16.msra.mxu0 %v460
        %897 = vmatprep.subr.bf16.mxu0 0
        %898 = vmatpush1.bf16.msra.mxu0 0
        %899 = vmatprep.subr.bf16.mxu0 0
        %900 = vmatpush1.bf16.msra.mxu0 0
        %901 = vmatprep.subr.bf16.mxu0 0
        %902 = vmatpush1.bf16.msra.mxu0 0
        %903 = vmatprep.subr.bf16.mxu0 0
        %904 = vmatpush1.bf16.msra.mxu0 0
        %905 = vmatprep.subr.bf16.mxu0 0
        %906 = vmatpush1.bf16.msra.mxu0 0
        %907 = vmatprep.subr.bf16.mxu0 0
        %908 = vmatpush1.bf16.msra.mxu0 0
        %909 = vmatprep.mubr.bf16.mxu0 %v857
        %910 = vmatmul.mubr.bf16.gmra.mrb[0].mxu0 %v835
        %v911 = vpop.f32.mrb[0].mxu0
        %v912 = vadd.f32 0.0, %v911
        %v913 = vpop.f32.mrb[0].mxu0
        %v914 = vpop.f32.mrb[0].mxu0
        %v915 = vadd.f32 0.0, %v914
        %v916 = vpop.f32.mrb[0].mxu0
        %917 = vmatprep.mubr.bf16.mxu0 %v860
        %918 = vmatmul.mubr.bf16.gmra.mrb[0].mxu0 %v837
        %v919 = vpop.f32.mrb[0].mxu0
        %v920 = vadd.f32 0.0, %v919
        %v921 = vpop.f32.mrb[0].mxu0
        %v922 = vpop.f32.mrb[0].mxu0
        %v923 = vadd.f32 0.0, %v922
        %v924 = vpop.f32.mrb[0].mxu0
        %925 = vmatprep.mubr.bf16.mxu0 %v863
        %926 = vmatmul.mubr.bf16.gmra.mrb[0].mxu0 %v839
        %v927 = vpop.f32.mrb[0].mxu0
        %v928 = vadd.f32 0.0, %v927
        %v929 = vpop.f32.mrb[0].mxu0
        %v930 = vpop.f32.mrb[0].mxu0
        %v931 = vadd.f32 0.0, %v930
        %v932 = vpop.f32.mrb[0].mxu0
        %933 = vmatprep.mubr.bf16.mxu0 %v866
        %934 = vmatmul.mubr.bf16.gmra.mrb[0].mxu0 %v841
        %v935 = vpop.f32.mrb[0].mxu0
        %v936 = vadd.f32 0.0, %v935
        %v937 = vpop.f32.mrb[0].mxu0
        %v938 = vpop.f32.mrb[0].mxu0
        %v939 = vadd.f32 0.0, %v938
        %v940 = vpop.f32.mrb[0].mxu0
        %941 = vmatprep.mubr.bf16.mxu0 %v869
        %942 = vmatmul.mubr.bf16.gmra.mrb[0].mxu0 %v843
        %v943 = vpop.f32.mrb[0].mxu0
        %v944 = vadd.f32 0.0, %v943
        %v945 = vpop.f32.mrb[0].mxu0
        %v946 = vpop.f32.mrb[0].mxu0
        %v947 = vadd.f32 0.0, %v946
        %v948 = vpop.f32.mrb[0].mxu0
        %949 = vmatprep.mubr.bf16.mxu0 %v872
        %950 = vmatmul.mubr.bf16.gmra.mrb[0].mxu0 %v845
        %v951 = vpop.f32.mrb[0].mxu0
        %v952 = vadd.f32 0.0, %v951
        %v953 = vpop.f32.mrb[0].mxu0
        %v954 = vpop.f32.mrb[0].mxu0
        %v955 = vadd.f32 0.0, %v954
        %v956 = vpop.f32.mrb[0].mxu0
        %957 = vmatprep.mubr.bf16.mxu0 %v875
        %958 = vmatmul.mubr.bf16.gmra.mrb[0].mxu0 %v847
        %v959 = vpop.f32.mrb[0].mxu0
        %v960 = vadd.f32 0.0, %v959
        %v961 = vpop.f32.mrb[0].mxu0
        %v962 = vpop.f32.mrb[0].mxu0
        %v963 = vpop.f32.mrb[0].mxu0
        %964 = vdwg.mxu0
        %v978 = vunpack.c.l.b16 %v252
        %v979 = vunpack.c.h.b16 %v252
        %v980 = vunpack.c.l.b16 %v253
        %v981 = vunpack.c.h.b16 %v253
        %v982 = vunpack.c.l.b16 %v254
        %v983 = vunpack.c.h.b16 %v254
        %v984 = vunpack.c.l.b16 %v255
        %v985 = vunpack.c.h.b16 %v255
        %v986 = vunpack.c.l.b16 %v256
        %v987 = vunpack.c.h.b16 %v256
        %v988 = vunpack.c.l.b16 %v257
        %v989 = vunpack.c.h.b16 %v257
        %v990 = vunpack.c.l.b16 %v258
        %v991 = vunpack.c.h.b16 %v258
        %v992 = vunpack.c.l.b16 %v259
        %v993 = vunpack.c.h.b16 %v259
        %v994 = vunpack.c.l.b16 %v260
        %v995 = vunpack.c.h.b16 %v260
        %v996 = vunpack.c.l.b16 %v261
        %v997 = vunpack.c.h.b16 %v261
        %v998 = vunpack.c.l.b16 %v262
        %v999 = vunpack.c.h.b16 %v262
        %v1000 = vunpack.c.l.b16 %v263
        %v1001 = vunpack.c.h.b16 %v263
        %v1002 = vunpack.c.l.b16 %v264
        %v1003 = vunpack.c.h.b16 %v264
        %v1004 = vpack.c.b16 %v980, %v978
        %v1005 = vpack.c.b16 %v981, %v979
        %v1006 = vpack.c.b16 %v984, %v982
        %v1007 = vpack.c.b16 %v985, %v983
        %v1008 = vpack.c.b16 %v988, %v986
        %v1009 = vpack.c.b16 %v989, %v987
        %v1010 = vpack.c.b16 %v992, %v990
        %v1011 = vpack.c.b16 %v993, %v991
        %v1012 = vpack.c.b16 %v996, %v994
        %v1013 = vpack.c.b16 %v997, %v995
        %v1014 = vpack.c.b16 %v1000, %v998
        %v1015 = vpack.c.b16 %v1001, %v999
        %v1016 = vpack.c.b16 %v1002, %v1002
        %v1017 = vpack.c.b16 %v1003, %v1003
        %v1026 = vsel %vm436, %v1005, 0
        %v1029 = vsel %vm436, %v1007, 0
        %v1032 = vsel %vm436, %v1009, 0
        %v1035 = vsel %vm436, %v1011, 0
        %v1038 = vsel %vm436, %v1013, 0
        %v1041 = vsel %vm436, %v1015, 0
        %v1044 = vsel %vm436, %v1017, 0
        %1046 = vmatprep.subr.bf16.mxu0 0
        %1047 = vmatpush1.bf16.msra.mxu0 %v648
        %1048 = vmatprep.subr.bf16.mxu0 0
        %1049 = vmatpush1.bf16.msra.mxu0 %v649
        %1050 = vmatprep.subr.bf16.mxu0 0
        %1051 = vmatpush1.bf16.msra.mxu0 %v650
        %1052 = vmatprep.subr.bf16.mxu0 0
        %1053 = vmatpush1.bf16.msra.mxu0 %v651
        %1054 = vmatprep.subr.bf16.mxu0 0
        %1055 = vmatpush1.bf16.msra.mxu0 %v652
        %1056 = vmatprep.subr.bf16.mxu0 0
        %1057 = vmatpush1.bf16.msra.mxu0 %v653
        %1058 = vmatprep.subr.bf16.mxu0 0
        %1059 = vmatpush1.bf16.msra.mxu0 %v654
        %1060 = vmatprep.subr.bf16.mxu0 0
        %1061 = vmatpush1.bf16.msra.mxu0 %v655
        %1062 = vmatprep.subr.bf16.mxu0 0
        %1063 = vmatpush1.bf16.msra.mxu0 %v656
        %1064 = vmatprep.subr.bf16.mxu0 0
        %1065 = vmatpush1.bf16.msra.mxu0 %v689
        %1066 = vmatprep.subr.bf16.mxu0 0
        %1067 = vmatpush1.bf16.msra.mxu0 0
        %1068 = vmatprep.subr.bf16.mxu0 0
        %1069 = vmatpush1.bf16.msra.mxu0 0
        %1070 = vmatprep.subr.bf16.mxu0 0
        %1071 = vmatpush1.bf16.msra.mxu0 0
        %1072 = vmatprep.subr.bf16.mxu0 0
        %1073 = vmatpush1.bf16.msra.mxu0 0
        %1074 = vmatprep.subr.bf16.mxu0 0
        %1075 = vmatpush1.bf16.msra.mxu0 0
        %1076 = vmatprep.subr.bf16.mxu0 0
        %1077 = vmatpush1.bf16.msra.mxu0 0
        %1078 = vmatprep.mubr.bf16.mxu0 %v1026
        %1079 = vmatmul.mubr.bf16.gmra.mrb[0].mxu0 %v1004
        %v1080 = vpop.f32.mrb[0].mxu0
        %v1081 = vadd.f32 %v912, %v1080
        %v1082 = vpop.f32.mrb[0].mxu0
        %v1083 = vpop.f32.mrb[0].mxu0
        %v1084 = vadd.f32 %v915, %v1083
        %v1085 = vpop.f32.mrb[0].mxu0
        %1086 = vmatprep.mubr.bf16.mxu0 %v1029
        %1087 = vmatmul.mubr.bf16.gmra.mrb[0].mxu0 %v1006
        %v1088 = vpop.f32.mrb[0].mxu0
        %v1089 = vadd.f32 %v920, %v1088
        %v1090 = vpop.f32.mrb[0].mxu0
        %v1091 = vpop.f32.mrb[0].mxu0
        %v1092 = vadd.f32 %v923, %v1091
        %v1093 = vpop.f32.mrb[0].mxu0
        %1094 = vmatprep.mubr.bf16.mxu0 %v1032
        %1095 = vmatmul.mubr.bf16.gmra.mrb[0].mxu0 %v1008
        %v1096 = vpop.f32.mrb[0].mxu0
        %v1097 = vadd.f32 %v928, %v1096
        %v1098 = vpop.f32.mrb[0].mxu0
        %v1099 = vpop.f32.mrb[0].mxu0
        %v1100 = vadd.f32 %v931, %v1099
        %v1101 = vpop.f32.mrb[0].mxu0
        %1102 = vmatprep.mubr.bf16.mxu0 %v1035
        %1103 = vmatmul.mubr.bf16.gmra.mrb[0].mxu0 %v1010
        %v1104 = vpop.f32.mrb[0].mxu0
        %v1105 = vadd.f32 %v936, %v1104
        %v1106 = vpop.f32.mrb[0].mxu0
        %v1107 = vpop.f32.mrb[0].mxu0
        %v1108 = vadd.f32 %v939, %v1107
        %v1109 = vpop.f32.mrb[0].mxu0
        %1110 = vmatprep.mubr.bf16.mxu0 %v1038
        %1111 = vmatmul.mubr.bf16.gmra.mrb[0].mxu0 %v1012
        %v1112 = vpop.f32.mrb[0].mxu0
        %v1113 = vadd.f32 %v944, %v1112
        %v1114 = vpop.f32.mrb[0].mxu0
        %v1115 = vpop.f32.mrb[0].mxu0
        %v1116 = vadd.f32 %v947, %v1115
        %v1117 = vpop.f32.mrb[0].mxu0
        %1118 = vmatprep.mubr.bf16.mxu0 %v1041
        %1119 = vmatmul.mubr.bf16.gmra.mrb[0].mxu0 %v1014
        %v1120 = vpop.f32.mrb[0].mxu0
        %v1121 = vadd.f32 %v952, %v1120
        %v1122 = vpop.f32.mrb[0].mxu0
        %v1123 = vpop.f32.mrb[0].mxu0
        %v1124 = vadd.f32 %v955, %v1123
        %v1125 = vpop.f32.mrb[0].mxu0
        %1126 = vmatprep.mubr.bf16.mxu0 %v1044
        %1127 = vmatmul.mubr.bf16.gmra.mrb[0].mxu0 %v1016
        %v1128 = vpop.f32.mrb[0].mxu0
        %v1129 = vadd.f32 %v960, %v1128
        %v1130 = vpop.f32.mrb[0].mxu0
        %v1131 = vpop.f32.mrb[0].mxu0
        %v1132 = vpop.f32.mrb[0].mxu0
        %1133 = vdwg.mxu0
        %s1134 = sadd.s32 %s212, 7
        %s1135 = smul.u32 %s1134, 26
        %s1136 = smul.addr %s1135, 4
        %s1137 = scalar_lea.vmem %s184, %s1136
        %v1138 = vld [vmem:[%s1137] sm:$0xff]
        %v1139 = vld [vmem:[%s1137 + $0x8] sm:$0xff]
        %v1140 = vld [vmem:[%s1137 + $0x10] sm:$0xff]
        %v1141 = vld [vmem:[%s1137 + $0x18] sm:$0xff]
        %v1142 = vld [vmem:[%s1137 + $0x20] sm:$0xff]
        %v1143 = vld [vmem:[%s1137 + $0x28] sm:$0xff]
        %v1144 = vld [vmem:[%s1137 + $0x30] sm:$0xff]
        %v1145 = vld [vmem:[%s1137 + $0x38] sm:$0xff]
        %v1146 = vld [vmem:[%s1137 + $0x40] sm:$0xff]
        %v1147 = vld [vmem:[%s1137 + $0x48] sm:$0xff]
        %v1148 = vld [vmem:[%s1137 + $0x50] sm:$0xff]
        %v1149 = vld [vmem:[%s1137 + $0x58] sm:$0xff]
        %v1150 = vld [vmem:[%s1137 + $0x60] sm:$0x77]
        %v1164 = vunpack.c.l.b16 %v1138
        %v1165 = vunpack.c.h.b16 %v1138
        %v1166 = vunpack.c.l.b16 %v1139
        %v1167 = vunpack.c.h.b16 %v1139
        %v1168 = vunpack.c.l.b16 %v1140
        %v1169 = vunpack.c.h.b16 %v1140
        %v1170 = vunpack.c.l.b16 %v1141
        %v1171 = vunpack.c.h.b16 %v1141
        %v1172 = vunpack.c.l.b16 %v1142
        %v1173 = vunpack.c.h.b16 %v1142
        %v1174 = vunpack.c.l.b16 %v1143
        %v1175 = vunpack.c.h.b16 %v1143
        %v1176 = vunpack.c.l.b16 %v1144
        %v1177 = vunpack.c.h.b16 %v1144
        %v1178 = vunpack.c.l.b16 %v1145
        %v1179 = vunpack.c.h.b16 %v1145
        %v1180 = vunpack.c.l.b16 %v1146
        %v1181 = vunpack.c.h.b16 %v1146
        %v1182 = vunpack.c.l.b16 %v1147
        %v1183 = vunpack.c.h.b16 %v1147
        %v1184 = vunpack.c.l.b16 %v1148
        %v1185 = vunpack.c.h.b16 %v1148
        %v1186 = vunpack.c.l.b16 %v1149
        %v1187 = vunpack.c.h.b16 %v1149
        %v1188 = vunpack.c.l.b16 %v1150
        %v1189 = vunpack.c.h.b16 %v1150
        %v1190 = vpack.c.b16 %v1166, %v1164
        %v1191 = vpack.c.b16 %v1167, %v1165
        %v1192 = vpack.c.b16 %v1170, %v1168
        %v1193 = vpack.c.b16 %v1171, %v1169
        %v1194 = vpack.c.b16 %v1174, %v1172
        %v1195 = vpack.c.b16 %v1175, %v1173
        %v1196 = vpack.c.b16 %v1178, %v1176
        %v1197 = vpack.c.b16 %v1179, %v1177
        %v1198 = vpack.c.b16 %v1182, %v1180
        %v1199 = vpack.c.b16 %v1183, %v1181
        %v1200 = vpack.c.b16 %v1186, %v1184
        %v1201 = vpack.c.b16 %v1187, %v1185
        %v1202 = vpack.c.b16 %v1188, %v1188
        %v1203 = vpack.c.b16 %v1189, %v1189
        %v1212 = vsel %vm436, %v1191, 0
        %v1215 = vsel %vm436, %v1193, 0
        %v1218 = vsel %vm436, %v1195, 0
        %v1221 = vsel %vm436, %v1197, 0
        %v1224 = vsel %vm436, %v1199, 0
        %v1227 = vsel %vm436, %v1201, 0
        %v1230 = vsel %vm436, %v1203, 0
        %1232 = vmatprep.subr.bf16.mxu0 0
        %1233 = vmatpush1.bf16.msra.mxu0 %v417
        %1234 = vmatprep.subr.bf16.mxu0 0
        %1235 = vmatpush1.bf16.msra.mxu0 %v418
        %1236 = vmatprep.subr.bf16.mxu0 0
        %1237 = vmatpush1.bf16.msra.mxu0 %v419
        %1238 = vmatprep.subr.bf16.mxu0 0
        %1239 = vmatpush1.bf16.msra.mxu0 %v420
        %1240 = vmatprep.subr.bf16.mxu0 0
        %1241 = vmatpush1.bf16.msra.mxu0 %v421
        %1242 = vmatprep.subr.bf16.mxu0 0
        %1243 = vmatpush1.bf16.msra.mxu0 %v422
        %1244 = vmatprep.subr.bf16.mxu0 0
        %1245 = vmatpush1.bf16.msra.mxu0 %v423
        %1246 = vmatprep.subr.bf16.mxu0 0
        %1247 = vmatpush1.bf16.msra.mxu0 %v424
        %1248 = vmatprep.subr.bf16.mxu0 0
        %1249 = vmatpush1.bf16.msra.mxu0 %v425
        %1250 = vmatprep.subr.bf16.mxu0 0
        %1251 = vmatpush1.bf16.msra.mxu0 %v460
        %1252 = vmatprep.subr.bf16.mxu0 0
        %1253 = vmatpush1.bf16.msra.mxu0 0
        %1254 = vmatprep.subr.bf16.mxu0 0
        %1255 = vmatpush1.bf16.msra.mxu0 0
        %1256 = vmatprep.subr.bf16.mxu0 0
        %1257 = vmatpush1.bf16.msra.mxu0 0
        %1258 = vmatprep.subr.bf16.mxu0 0
        %1259 = vmatpush1.bf16.msra.mxu0 0
        %1260 = vmatprep.subr.bf16.mxu0 0
        %1261 = vmatpush1.bf16.msra.mxu0 0
        %1262 = vmatprep.subr.bf16.mxu0 0
        %1263 = vmatpush1.bf16.msra.mxu0 0
        %1264 = vmatprep.mubr.bf16.mxu0 %v1212
        %1265 = vmatmul.mubr.bf16.gmra.mrb[0].mxu0 %v1190
        %v1266 = vpop.f32.mrb[0].mxu0
        %v1267 = vadd.f32 0.0, %v1266
        %v1268 = vpop.f32.mrb[0].mxu0
        %v1269 = vpop.f32.mrb[0].mxu0
        %v1270 = vadd.f32 0.0, %v1269
        %v1271 = vpop.f32.mrb[0].mxu0
        %1272 = vmatprep.mubr.bf16.mxu0 %v1215
        %1273 = vmatmul.mubr.bf16.gmra.mrb[0].mxu0 %v1192
        %v1274 = vpop.f32.mrb[0].mxu0
        %v1275 = vadd.f32 0.0, %v1274
        %v1276 = vpop.f32.mrb[0].mxu0
        %v1277 = vpop.f32.mrb[0].mxu0
        %v1278 = vadd.f32 0.0, %v1277
        %v1279 = vpop.f32.mrb[0].mxu0
        %1280 = vmatprep.mubr.bf16.mxu0 %v1218
        %1281 = vmatmul.mubr.bf16.gmra.mrb[0].mxu0 %v1194
        %v1282 = vpop.f32.mrb[0].mxu0
        %v1283 = vadd.f32 0.0, %v1282
        %v1284 = vpop.f32.mrb[0].mxu0
        %v1285 = vpop.f32.mrb[0].mxu0
        %v1286 = vadd.f32 0.0, %v1285
        %v1287 = vpop.f32.mrb[0].mxu0
        %1288 = vmatprep.mubr.bf16.mxu0 %v1221
        %1289 = vmatmul.mubr.bf16.gmra.mrb[0].mxu0 %v1196
        %v1290 = vpop.f32.mrb[0].mxu0
        %v1291 = vadd.f32 0.0, %v1290
        %v1292 = vpop.f32.mrb[0].mxu0
        %v1293 = vpop.f32.mrb[0].mxu0
        %v1294 = vadd.f32 0.0, %v1293
        %v1295 = vpop.f32.mrb[0].mxu0
        %1296 = vmatprep.mubr.bf16.mxu0 %v1224
        %1297 = vmatmul.mubr.bf16.gmra.mrb[0].mxu0 %v1198
        %v1298 = vpop.f32.mrb[0].mxu0
        %v1299 = vadd.f32 0.0, %v1298
        %v1300 = vpop.f32.mrb[0].mxu0
        %v1301 = vpop.f32.mrb[0].mxu0
        %v1302 = vadd.f32 0.0, %v1301
        %v1303 = vpop.f32.mrb[0].mxu0
        %1304 = vmatprep.mubr.bf16.mxu0 %v1227
        %1305 = vmatmul.mubr.bf16.gmra.mrb[0].mxu0 %v1200
        %v1306 = vpop.f32.mrb[0].mxu0
        %v1307 = vadd.f32 0.0, %v1306
        %v1308 = vpop.f32.mrb[0].mxu0
        %v1309 = vpop.f32.mrb[0].mxu0
        %v1310 = vadd.f32 0.0, %v1309
        %v1311 = vpop.f32.mrb[0].mxu0
        %1312 = vmatprep.mubr.bf16.mxu0 %v1230
        %1313 = vmatmul.mubr.bf16.gmra.mrb[0].mxu0 %v1202
        %v1314 = vpop.f32.mrb[0].mxu0
        %v1315 = vadd.f32 0.0, %v1314
        %v1316 = vpop.f32.mrb[0].mxu0
        %v1317 = vpop.f32.mrb[0].mxu0
        %v1318 = vpop.f32.mrb[0].mxu0
        %1319 = vdwg.mxu0
        %v1333 = vunpack.c.l.b16 %v269
        %v1334 = vunpack.c.h.b16 %v269
        %v1335 = vunpack.c.l.b16 %v270
        %v1336 = vunpack.c.h.b16 %v270
        %v1337 = vunpack.c.l.b16 %v271
        %v1338 = vunpack.c.h.b16 %v271
        %v1339 = vunpack.c.l.b16 %v272
        %v1340 = vunpack.c.h.b16 %v272
        %v1341 = vunpack.c.l.b16 %v273
        %v1342 = vunpack.c.h.b16 %v273
        %v1343 = vunpack.c.l.b16 %v274
        %v1344 = vunpack.c.h.b16 %v274
        %v1345 = vunpack.c.l.b16 %v275
        %v1346 = vunpack.c.h.b16 %v275
        %v1347 = vunpack.c.l.b16 %v276
        %v1348 = vunpack.c.h.b16 %v276
        %v1349 = vunpack.c.l.b16 %v277
        %v1350 = vunpack.c.h.b16 %v277
        %v1351 = vunpack.c.l.b16 %v278
        %v1352 = vunpack.c.h.b16 %v278
        %v1353 = vunpack.c.l.b16 %v279
        %v1354 = vunpack.c.h.b16 %v279
        %v1355 = vunpack.c.l.b16 %v280
        %v1356 = vunpack.c.h.b16 %v280
        %v1357 = vunpack.c.l.b16 %v281
        %v1358 = vunpack.c.h.b16 %v281
        %v1359 = vpack.c.b16 %v1335, %v1333
        %v1360 = vpack.c.b16 %v1336, %v1334
        %v1361 = vpack.c.b16 %v1339, %v1337
        %v1362 = vpack.c.b16 %v1340, %v1338
        %v1363 = vpack.c.b16 %v1343, %v1341
        %v1364 = vpack.c.b16 %v1344, %v1342
        %v1365 = vpack.c.b16 %v1347, %v1345
        %v1366 = vpack.c.b16 %v1348, %v1346
        %v1367 = vpack.c.b16 %v1351, %v1349
        %v1368 = vpack.c.b16 %v1352, %v1350
        %v1369 = vpack.c.b16 %v1355, %v1353
        %v1370 = vpack.c.b16 %v1356, %v1354
        %v1371 = vpack.c.b16 %v1357, %v1357
        %v1372 = vpack.c.b16 %v1358, %v1358
        %v1381 = vsel %vm436, %v1360, 0
        %v1384 = vsel %vm436, %v1362, 0
        %v1387 = vsel %vm436, %v1364, 0
        %v1390 = vsel %vm436, %v1366, 0
        %v1393 = vsel %vm436, %v1368, 0
        %v1396 = vsel %vm436, %v1370, 0
        %v1399 = vsel %vm436, %v1372, 0
        %1401 = vmatprep.subr.bf16.mxu0 0
        %1402 = vmatpush1.bf16.msra.mxu0 %v648
        %1403 = vmatprep.subr.bf16.mxu0 0
        %1404 = vmatpush1.bf16.msra.mxu0 %v649
        %1405 = vmatprep.subr.bf16.mxu0 0
        %1406 = vmatpush1.bf16.msra.mxu0 %v650
        %1407 = vmatprep.subr.bf16.mxu0 0
        %1408 = vmatpush1.bf16.msra.mxu0 %v651
        %1409 = vmatprep.subr.bf16.mxu0 0
        %1410 = vmatpush1.bf16.msra.mxu0 %v652
        %1411 = vmatprep.subr.bf16.mxu0 0
        %1412 = vmatpush1.bf16.msra.mxu0 %v653
        %1413 = vmatprep.subr.bf16.mxu0 0
        %1414 = vmatpush1.bf16.msra.mxu0 %v654
        %1415 = vmatprep.subr.bf16.mxu0 0
        %1416 = vmatpush1.bf16.msra.mxu0 %v655
        %1417 = vmatprep.subr.bf16.mxu0 0
        %1418 = vmatpush1.bf16.msra.mxu0 %v656
        %1419 = vmatprep.subr.bf16.mxu0 0
        %1420 = vmatpush1.bf16.msra.mxu0 %v689
        %1421 = vmatprep.subr.bf16.mxu0 0
        %1422 = vmatpush1.bf16.msra.mxu0 0
        %1423 = vmatprep.subr.bf16.mxu0 0
        %1424 = vmatpush1.bf16.msra.mxu0 0
        %1425 = vmatprep.subr.bf16.mxu0 0
        %1426 = vmatpush1.bf16.msra.mxu0 0
        %1427 = vmatprep.subr.bf16.mxu0 0
        %1428 = vmatpush1.bf16.msra.mxu0 0
        %1429 = vmatprep.subr.bf16.mxu0 0
        %1430 = vmatpush1.bf16.msra.mxu0 0
        %1431 = vmatprep.subr.bf16.mxu0 0
        %1432 = vmatpush1.bf16.msra.mxu0 0
        %1433 = vmatprep.mubr.bf16.mxu0 %v1381
        %1434 = vmatmul.mubr.bf16.gmra.mrb[0].mxu0 %v1359
        %v1435 = vpop.f32.mrb[0].mxu0
        %v1436 = vadd.f32 %v1267, %v1435
        %v1437 = vpop.f32.mrb[0].mxu0
        %v1438 = vpop.f32.mrb[0].mxu0
        %v1439 = vadd.f32 %v1270, %v1438
        %v1440 = vpop.f32.mrb[0].mxu0
        %1441 = vmatprep.mubr.bf16.mxu0 %v1384
        %1442 = vmatmul.mubr.bf16.gmra.mrb[0].mxu0 %v1361
        %v1443 = vpop.f32.mrb[0].mxu0
        %v1444 = vadd.f32 %v1275, %v1443
        %v1445 = vpop.f32.mrb[0].mxu0
        %v1446 = vpop.f32.mrb[0].mxu0
        %v1447 = vadd.f32 %v1278, %v1446
        %v1448 = vpop.f32.mrb[0].mxu0
        %1449 = vmatprep.mubr.bf16.mxu0 %v1387
        %1450 = vmatmul.mubr.bf16.gmra.mrb[0].mxu0 %v1363
        %v1451 = vpop.f32.mrb[0].mxu0
        %v1452 = vadd.f32 %v1283, %v1451
        %v1453 = vpop.f32.mrb[0].mxu0
        %v1454 = vpop.f32.mrb[0].mxu0
        %v1455 = vadd.f32 %v1286, %v1454
        %v1456 = vpop.f32.mrb[0].mxu0
        %1457 = vmatprep.mubr.bf16.mxu0 %v1390
        %1458 = vmatmul.mubr.bf16.gmra.mrb[0].mxu0 %v1365
        %v1459 = vpop.f32.mrb[0].mxu0
        %v1460 = vadd.f32 %v1291, %v1459
        %v1461 = vpop.f32.mrb[0].mxu0
        %v1462 = vpop.f32.mrb[0].mxu0
        %v1463 = vadd.f32 %v1294, %v1462
        %v1464 = vpop.f32.mrb[0].mxu0
        %1465 = vmatprep.mubr.bf16.mxu0 %v1393
        %1466 = vmatmul.mubr.bf16.gmra.mrb[0].mxu0 %v1367
        %v1467 = vpop.f32.mrb[0].mxu0
        %v1468 = vadd.f32 %v1299, %v1467
        %v1469 = vpop.f32.mrb[0].mxu0
        %v1470 = vpop.f32.mrb[0].mxu0
        %v1471 = vadd.f32 %v1302, %v1470
        %v1472 = vpop.f32.mrb[0].mxu0
        %1473 = vmatprep.mubr.bf16.mxu0 %v1396
        %1474 = vmatmul.mubr.bf16.gmra.mrb[0].mxu0 %v1369
        %v1475 = vpop.f32.mrb[0].mxu0
        %v1476 = vadd.f32 %v1307, %v1475
        %v1477 = vpop.f32.mrb[0].mxu0
        %v1478 = vpop.f32.mrb[0].mxu0
        %v1479 = vadd.f32 %v1310, %v1478
        %v1480 = vpop.f32.mrb[0].mxu0
        %1481 = vmatprep.mubr.bf16.mxu0 %v1399
        %1482 = vmatmul.mubr.bf16.gmra.mrb[0].mxu0 %v1371
        %v1483 = vpop.f32.mrb[0].mxu0
        %v1484 = vadd.f32 %v1315, %v1483
        %v1485 = vpop.f32.mrb[0].mxu0
        %v1486 = vpop.f32.mrb[0].mxu0
        %v1487 = vpop.f32.mrb[0].mxu0
        %1488 = vdwg.mxu0
        %v1489 = vmax.f32 %v726, %v1081
        %v1490 = vmax.f32 %v729, %v1084
        %v1491 = vmax.f32 %v734, %v1089
        %v1492 = vmax.f32 %v737, %v1092
        %v1493 = vmax.f32 %v742, %v1097
        %v1494 = vmax.f32 %v745, %v1100
        %v1495 = vmax.f32 %v750, %v1105
        %v1496 = vmax.f32 %v753, %v1108
        %v1497 = vmax.f32 %v758, %v1113
        %v1498 = vmax.f32 %v761, %v1116
        %v1499 = vmax.f32 %v766, %v1121
        %v1500 = vmax.f32 %v769, %v1124
        %v1501 = vmax.f32 %v774, %v1129
        %v1502 = vmax.f32 %v1489, %v1436
        %v1503 = vmax.f32 %v1490, %v1439
        %v1504 = vmax.f32 %v1491, %v1444
        %v1505 = vmax.f32 %v1492, %v1447
        %v1506 = vmax.f32 %v1493, %v1452
        %v1507 = vmax.f32 %v1494, %v1455
        %v1508 = vmax.f32 %v1495, %v1460
        %v1509 = vmax.f32 %v1496, %v1463
        %v1510 = vmax.f32 %v1497, %v1468
        %v1511 = vmax.f32 %v1498, %v1471
        %v1512 = vmax.f32 %v1499, %v1476
        %v1513 = vmax.f32 %v1500, %v1479
        %v1514 = vmax.f32 %v1501, %v1484
        %vm1520 = vcmask 1045504
        %v1521 = vrot.slane %v1506, 2
        %v1522 = vrot.slane %v1507, 2
        %v1523 = vsel %vm1520, %v1521, %v1522
        %v1524 = vrot.slane %v1508, 2
        %v1525 = vsel %vm1520, %v1522, %v1524
        %v1526 = vrot.slane %v1509, 2
        %v1527 = vsel %vm1520, %v1524, %v1526
        %v1528 = vrot.slane %v1510, 2
        %v1529 = vsel %vm1520, %v1526, %v1528
        %v1535 = vmax.f32 %v1502, %v1523
        %v1536 = vmax.f32 %v1503, %v1525
        %v1537 = vmax.f32 %v1504, %v1527
        %v1538 = vmax.f32 %v1505, %v1529
        %v1539 = vmax.f32 %v1506, %v1528
        %vm1544 = vcmask 1043456
        %v1545 = vrot.slane %v1510, 4
        %v1546 = vrot.slane %v1511, 4
        %v1547 = vsel %vm1544, %v1545, %v1546
        %v1548 = vrot.slane %v1512, 4
        %v1549 = vsel %vm1544, %v1546, %v1548
        %v1550 = vrot.slane %v1513, 4
        %v1551 = vsel %vm1544, %v1548, %v1550
        %v1552 = vrot.slane %v1514, 4
        %v1553 = vsel %vm1544, %v1550, %v1552
        %v1559 = vmax.f32 %v1535, %v1547
        %v1560 = vmax.f32 %v1536, %v1549
        %v1561 = vmax.f32 %v1537, %v1551
        %v1562 = vmax.f32 %v1538, %v1553
        %v1563 = vmax.f32 %v1539, %v1552
        %v1564 = vadd.f32 %v1559, %v202
        %v1565 = vadd.f32 %v1560, %v202
        %v1566 = vadd.f32 %v1561, %v202
        %v1567 = vadd.f32 %v1562, %v202
        %v1568 = vadd.f32 %v1563, %v202
        %v1569 = vmax.f32 %v1564, 0.0
        %v1570 = vmax.f32 %v1565, 0.0
        %v1571 = vmax.f32 %v1566, 0.0
        %v1572 = vmax.f32 %v1567, 0.0
        %v1573 = vmax.f32 %v1568, 0.0
        %v1574 = vpack.c.bf16 %v1570, %v1569
        %v1575 = vpack.c.bf16 %v1572, %v1571
        %v1576 = vpack.c.bf16 %v1573, %v1573
        %v1580 = vunpack.c.l.b16 %v1574
        %v1581 = vunpack.c.h.b16 %v1574
        %v1582 = vunpack.c.l.b16 %v1575
        %v1583 = vunpack.c.h.b16 %v1575
        %v1584 = vunpack.c.l.b16 %v1576
        %v1585 = vpack.c.b16 %v1580, %v1580
        %v1586 = vpack.c.b16 %v1581, %v1581
        %v1587 = vpack.c.b16 %v1582, %v1582
        %v1588 = vpack.c.b16 %v1583, %v1583
        %v1589 = vpack.c.b16 %v1584, %v1584
        %s1595 = smul.u32 %s205, 5
        %s1596 = smul.addr %s1595, 4
        %s1597 = scalar_lea.vmem %s194, %s1596
        %vm1598 = vcmask 257024
        %1599 = vst.msk [vmem:[%s1597] sm:$0xf] %vm1598, %v1585
        %1600 = vst.msk [vmem:[%s1597 + $0x4] sm:$0xf] %vm1598, %v1586
        %1601 = vst.msk [vmem:[%s1597 + $0x8] sm:$0xf] %vm1598, %v1587
        %1602 = vst.msk [vmem:[%s1597 + $0xc] sm:$0xf] %vm1598, %v1588
        %vm1603 = vcmask 253952
        %1604 = vst.msk [vmem:[%s1597 + $0x10] sm:$0x1] %vm1603, %v1589
      $region37: #{leafnet_forward.3} parent=31 // loop_footer
        %s209 = sadd.s32 1, %s205
      $region38: #{leafnet_forward.3} parent=31 // loop_footer_branch
        %204 = sbr.rel target = $region34
      $region39: #{leafnet_forward.3} parent=31 // loop_exit
        _
      %s1605 = smul.u32 17, %s19
      %p1606 = scmp.lt.s32.totalorder %s18, 1
      %s1607 = scalar_select %p1606, %s18, 1
      %p1608 = scmp.lt.s32.totalorder %s1605, 33
      %s1609 = scalar_select %p1608, %s1605, 33
      %s1610 = smul.addr %s1609, 5
      %s1611 = smul.addr %s1607, 170
      %s1612 = sadd.s32 %s1610, %s1611
      %s1613 = smul.addr %s1612, 4
      %s1614 = scalar_lea.vmem %s3, %s1613
      // Predicated region
      $region40: #{leafnet_forward.3} parent=31 // pred_check
        %p1615 = pneg %p114
      $region41: #{leafnet_forward.3} parent=31 // pred_check_branch
        %1617 = sbr.rel (%p1615) target = $region43
      $region42: #{leafnet_forward.3} parent=31 // pred_region
        %s1618 = smul.u32 17, %s19
      $region43: #{leafnet_forward.3} parent=31 // pred_fallthru
        _
    $region32: #{leafnet_forward.3} parent=5 // pred_fallthru
      _
    %p1619 = scmp.le.s32.totalorder 2, %s9
    // Predicated region
    $region44: #{leafnet_forward.3} parent=5 // pred_check
      %p1620 = pneg %p1619
    $region45: #{leafnet_forward.3} parent=5 // pred_check_branch
      %1622 = sbr.rel (%p1620) target = $region47
    $region46: #{leafnet_forward.3} parent=5 // pred_region
      %s1623 = ssub.s32 %s9, 2
      // Predicated region
      $region48: #{leafnet_forward.3} parent=46 // pred_check
        %p1624 = pneg %p120
      $region49: #{leafnet_forward.3} parent=46 // pred_check_branch
        %1626 = sbr.rel (%p1624) target = $region51
      $region50: #{leafnet_forward.3} parent=46 // pred_region
        %s1627 = smul.u32 17, %s21
        %p1628 = scmp.lt.s32.totalorder %s20, 1
        %s1629 = scalar_select %p1628, %s20, 1
        %p1630 = scmp.lt.s32.totalorder %s1627, 33
        %s1631 = scalar_select %p1630, %s1627, 33
        %s1632 = smul.addr %s1631, 5
        %s1633 = smul.addr %s1629, 170
        %s1634 = sadd.s32 %s1632, %s1633
        %s1635 = smul.addr %s1634, 4
        %s1636 = scalar_lea.vmem %s3, %s1635
      $region51: #{leafnet_forward.3} parent=46 // pred_fallthru
        _
    $region47: #{leafnet_forward.3} parent=5 // pred_fallthru
      _
  $region6: #{leafnet_forward.3} parent=0 // loop_footer
    %s13 = sadd.s32 1, %s9
  $region7: #{leafnet_forward.3} parent=0 // loop_footer_branch
    %8 = sbr.rel target = $region3
  $region8: #{leafnet_forward.3} parent=0 // loop_exit
    _

// kernel: leafnet_forward.4
$region0: #{leafnet_forward.4}
  #allocation0 [shape = 'u32[]', space=smem, size = 0x4, offset = 0x4, fixed_abs, tag = 'smem constant byte address 0x4 - core index']
  #allocation1 [shape = 'u32[144,128]{1,0:T(1,128)}', space=vmem, size = 0x12000, scoped, tag = 'internal scratch']
  %s0 = inlined_call_operand.vmem [shape: bf16[2,30,30,800], index: 0, kind: input, shape index: {}]
  %s1 = inlined_call_operand.vmem [shape: bf16[1,800,64], index: 1, kind: input, shape index: {}]
  %s2 = inlined_call_operand.vmem [shape: f32[1,64], index: 2, kind: input, shape index: {}]
  %s3 = inlined_call_operand.vmem [shape: bf16[2,10,10,64], index: 3, kind: output, shape index: {}]
  %s4 = sld [smem:[#allocation0]]
  $region52: #{leafnet_forward.4} parent=0
    _
  %s6 = ssub.s32 1, %s4
  %s7 = scalar_select 0, %s6, %s4
  loop: start=0, step=1, limit=6
  $region2: #{leafnet_forward.4} parent=0 // loop_pre_header
    _
  $region3: #{leafnet_forward.4} parent=0 // loop_header
    %s9 = sphi 0, %s13
    %p10 = scmp.ge.s32.totalorder %s9, 6
    %s16 = sphi 0, %s28
    %s17 = sphi 0, %s24
    %s18 = sphi 0, %s16
    %s19 = sphi 0, %s17
    %s20 = sphi 0, %s18
    %s21 = sphi 0, %s19
    %s31 = sphi 0, %s33
    %s34 = sphi 0, %s31
    %s35 = sphi 0, %s34
    %s51 = sphi 0, %s35
    %s55 = sphi 0, %s55
    %s57 = sphi 0, %s55
    %s58 = sphi 0, %s57
    %s72 = sphi 0, %s58
    %s76 = sphi 0, %s76
    %s78 = sphi 0, %s76
    %s79 = sphi 0, %s78
    %s93 = sphi 0, %s79
    %s101 = sphi 0, %s103
    %s104 = sphi 0, %s101
    %s105 = sphi 0, %s104
    %s121 = sphi 0, %s105
  $region4: #{leafnet_forward.4} parent=0 // loop_header_branch
    %12 = sbr.rel (%p10) target = $region8
  $region5: #{leafnet_forward.4} parent=0 // loop_body
    %s14 = ssub.s32 %s9, 1
    %s15 = ssub.s32 %s9, 2
    %s22 = sadd.s32 1, %s17
    %p23 = scmp.ge.s32.totalorder %s22, 2
    %s24 = scalar_select %p23, 0, %s22
    %s25 = sadd.s32 1, %s16
    %s26 = scalar_select %p23, %s25, %s16
    %p27 = scmp.ge.s32.totalorder %s26, 2
    %s28 = scalar_select %p27, 0, %s26
    %s29 = ssub.s32 %s16, %s28
    %p30 = scmp.eq.s32.totalorder %s29, 0
    %s32 = sadd.s32 %s31, 1
    %s33 = scalar_select %p30, %s31, %s32
    %p36 = pneg %p30
    %p37 = scmp.eq.s32.totalorder %s9, 3
    %p38 = por %p36, %p37
    %p39 = scmp.ne.s32.totalorder %s31, %s34
    %p40 = scmp.eq.s32.totalorder %s9, 0
    %p41 = por %p39, %p40
    %p42 = scmp.ne.s32.totalorder %s31, %s34
    %p43 = scmp.eq.s32.totalorder %s14, 3
    %p44 = por %p42, %p43
    %p45 = scmp.ne.s32.totalorder %s34, %s35
    %p46 = scmp.eq.s32.totalorder %s14, 0
    %p47 = por %p45, %p46
    %p48 = scmp.ne.s32.totalorder %s34, %s35
    %p49 = scmp.eq.s32.totalorder %s15, 3
    %p50 = por %p48, %p49
    %p52 = scmp.ne.s32.totalorder %s35, %s51
    %p53 = scmp.eq.s32.totalorder %s15, 0
    %p54 = por %p52, %p53
    %s56 = sadd.s32 %s55, 1
    %p59 = scmp.eq.s32.totalorder %s9, 3
    %p60 = scmp.ne.s32.totalorder %s55, %s57
    %p61 = scmp.eq.s32.totalorder %s9, 0
    %p62 = por %p60, %p61
    %p63 = scmp.ne.s32.totalorder %s55, %s57
    %p64 = scmp.eq.s32.totalorder %s14, 3
    %p65 = por %p63, %p64
    %p66 = scmp.ne.s32.totalorder %s57, %s58
    %p67 = scmp.eq.s32.totalorder %s14, 0
    %p68 = por %p66, %p67
    %p69 = scmp.ne.s32.totalorder %s57, %s58
    %p70 = scmp.eq.s32.totalorder %s15, 3
    %p71 = por %p69, %p70
    %p73 = scmp.ne.s32.totalorder %s58, %s72
    %p74 = scmp.eq.s32.totalorder %s15, 0
    %p75 = por %p73, %p74
    %s77 = sadd.s32 %s76, 1
    %p80 = scmp.eq.s32.totalorder %s9, 3
    %p81 = scmp.ne.s32.totalorder %s76, %s78
    %p82 = scmp.eq.s32.totalorder %s9, 0
    %p83 = por %p81, %p82
    %p84 = scmp.ne.s32.totalorder %s76, %s78
    %p85 = scmp.eq.s32.totalorder %s14, 3
    %p86 = por %p84, %p85
    %p87 = scmp.ne.s32.totalorder %s78, %s79
    %p88 = scmp.eq.s32.totalorder %s14, 0
    %p89 = por %p87, %p88
    %p90 = scmp.ne.s32.totalorder %s78, %s79
    %p91 = scmp.eq.s32.totalorder %s15, 3
    %p92 = por %p90, %p91
    %p94 = scmp.ne.s32.totalorder %s79, %s93
    %p95 = scmp.eq.s32.totalorder %s15, 0
    %p96 = por %p94, %p95
    %s97 = ssub.s32 %s16, %s28
    %s98 = ssub.s32 %s17, %s24
    %s99 = sor.u32 %s97, %s98
    %p100 = scmp.eq.s32.totalorder %s99, 0
    %s102 = sadd.s32 %s101, 1
    %s103 = scalar_select %p100, %s101, %s102
    %p106 = pneg %p100
    %p107 = scmp.eq.s32.totalorder %s9, 3
    %p108 = por %p106, %p107
    %p109 = scmp.ne.s32.totalorder %s101, %s104
    %p110 = scmp.eq.s32.totalorder %s9, 0
    %p111 = por %p109, %p110
    %p112 = scmp.ne.s32.totalorder %s101, %s104
    %p113 = scmp.eq.s32.totalorder %s14, 3
    %p114 = por %p112, %p113
    %p115 = scmp.ne.s32.totalorder %s104, %s105
    %p116 = scmp.eq.s32.totalorder %s14, 0
    %p117 = por %p115, %p116
    %p118 = scmp.ne.s32.totalorder %s104, %s105
    %p119 = scmp.eq.s32.totalorder %s15, 3
    %p120 = por %p118, %p119
    %p122 = scmp.ne.s32.totalorder %s105, %s121
    %p123 = scmp.eq.s32.totalorder %s15, 0
    %p124 = por %p122, %p123
    %p125 = scmp.le.s32.totalorder 1, %s9
    %p126 = scmp.lt.s32.totalorder %s9, 5
    %p127 = pnand %p125, %p126
    %p128 = pneg %p127
    // Predicated region
    $region9: #{leafnet_forward.4} parent=5 // pred_check
      _
    $region10: #{leafnet_forward.4} parent=5 // pred_check_branch
      %130 = sbr.rel (%p127) target = $region12
    $region11: #{leafnet_forward.4} parent=5 // pred_region
      %s131 = ssub.s32 %s9, 1
      // Predicated region
      $region13: #{leafnet_forward.4} parent=11 // pred_check
        %p132 = pneg %p68
      $region14: #{leafnet_forward.4} parent=11 // pred_check_branch
        %134 = sbr.rel (%p132) target = $region16
      $region15: #{leafnet_forward.4} parent=11 // pred_region
        _
      $region16: #{leafnet_forward.4} parent=11 // pred_fallthru
        _
      // Predicated region
      $region17: #{leafnet_forward.4} parent=11 // pred_check
        %p135 = pneg %p89
      $region18: #{leafnet_forward.4} parent=11 // pred_check_branch
        %137 = sbr.rel (%p135) target = $region20
      $region19: #{leafnet_forward.4} parent=11 // pred_region
        _
      $region20: #{leafnet_forward.4} parent=11 // pred_fallthru
        _
    $region12: #{leafnet_forward.4} parent=5 // pred_fallthru
      _
    %p138 = scmp.lt.s32.totalorder %s9, 4
    // Predicated region
    $region21: #{leafnet_forward.4} parent=5 // pred_check
      %p139 = pneg %p138
    $region22: #{leafnet_forward.4} parent=5 // pred_check_branch
      %141 = sbr.rel (%p139) target = $region24
    $region23: #{leafnet_forward.4} parent=5 // pred_region
      // Predicated region
      $region25: #{leafnet_forward.4} parent=23 // pred_check
        %p142 = pneg %p41
      $region26: #{leafnet_forward.4} parent=23 // pred_check_branch
        %144 = sbr.rel (%p142) target = $region28
      $region27: #{leafnet_forward.4} parent=23 // pred_region
        %p145 = scmp.lt.s32.totalorder %s16, 1
        %s146 = scalar_select %p145, %s16, 1
        %s147 = smul.addr %s146, 840
        %s148 = smul.addr %s147, 4
        %s149 = scalar_lea.vmem %s0, %s148
      $region28: #{leafnet_forward.4} parent=23 // pred_fallthru
        _
    $region24: #{leafnet_forward.4} parent=5 // pred_fallthru
      _
    %p150 = scmp.le.s32.totalorder 1, %s9
    %p151 = scmp.lt.s32.totalorder %s9, 5
    %p152 = pnand %p150, %p151
    %p153 = pneg %p152
    // Predicated region
    $region29: #{leafnet_forward.4} parent=5 // pred_check
      _
    $region30: #{leafnet_forward.4} parent=5 // pred_check_branch
      %155 = sbr.rel (%p152) target = $region32
    $region31: #{leafnet_forward.4} parent=5 // pred_region
      %s156 = ssub.s32 %s9, 1
      %p157 = scmp.lt.s32.totalorder %s18, 1
      %s158 = scalar_select %p157, %s18, 1
      %s159 = smul.addr %s158, 840
      %s160 = smul.addr %s159, 4
      %s161 = scalar_lea.vmem %s0, %s160
      %p162 = pneg %p47
      %p163 = pneg %p44
      %p164 = pneg %p68
      %p165 = pneg %p65
      %p166 = pneg %p89
      %p167 = pneg %p86
      %p168 = pneg %p117
      %p169 = pneg %p114
      %s170 = smul.u32 5, %s19
      %p171 = scmp.lt.s32.totalorder %s18, 1
      %s172 = scalar_select %p171, %s18, 1
      %p173 = scmp.lt.s32.totalorder %s170, 9
      %s174 = scalar_select %p173, %s170, 9
      %s175 = smul.addr %s174, 2
      %s176 = smul.addr %s172, 20
      %s177 = sadd.s32 %s175, %s176
      %s178 = smul.addr %s177, 4
      %s179 = scalar_lea.vmem %s3, %s178
      %p180 = scmp.lt.s32.totalorder %s18, 1
      %s181 = scalar_select %p180, %s18, 1
      %s182 = smul.addr %s181, 840
      %s183 = smul.addr %s182, 4
      %s184 = scalar_lea.vmem %s0, %s183
      %s185 = smul.u32 5, %s19
      %p186 = scmp.lt.s32.totalorder %s18, 1
      %s187 = scalar_select %p186, %s18, 1
      %p188 = scmp.lt.s32.totalorder %s185, 9
      %s189 = scalar_select %p188, %s185, 9
      %s190 = smul.addr %s189, 2
      %s191 = smul.addr %s187, 20
      %s192 = sadd.s32 %s190, %s191
      %s193 = smul.addr %s192, 4
      %s194 = scalar_lea.vmem %s3, %s193
      %s195 = smul.u32 5, %s19
      %v197 = vld [vmem:[%s2] sm:$0x1]
      %v199 = vlaneseq
      %v200 = vshrl.u32 %v199, 7
      %v201 = vsub.s32 0, %v200
      %v202 = vrot.slane %v197, %v201
      loop: start=0, step=1, limit=5
      $region33: #{leafnet_forward.4} parent=31 // loop_pre_header
        _
      $region34: #{leafnet_forward.4} parent=31 // loop_header
        %s205 = sphi 0, %s209
        %p206 = scmp.ge.s32.totalorder %s205, 5
      $region35: #{leafnet_forward.4} parent=31 // loop_header_branch
        %208 = sbr.rel (%p206) target = $region39
      $region36: #{leafnet_forward.4} parent=31 // loop_body
        %s210 = smul.u32 %s19, 5
        %s211 = sadd.s32 %s210, %s205
        %s212 = smul.u32 %s211, 3
        %v213 = vld [vmem:[%s1] sm:$0xf]
        %v214 = vld [vmem:[%s1 + $0x4] sm:$0xf]
        %v215 = vld [vmem:[%s1 + $0x8] sm:$0xf]
        %v216 = vld [vmem:[%s1 + $0xc] sm:$0xf]
        %v217 = vld [vmem:[%s1 + $0x10] sm:$0xf]
        %v218 = vld [vmem:[%s1 + $0x14] sm:$0xf]
        %v219 = vld [vmem:[%s1 + $0x18] sm:$0xf]
        %v220 = vld [vmem:[%s1 + $0x1c] sm:$0xf]
        %v221 = vld [vmem:[%s1 + $0x20] sm:$0xf]
        %v222 = vld [vmem:[%s1 + $0x24] sm:$0xf]
        %v223 = vld [vmem:[%s1 + $0x28] sm:$0xf]
        %v224 = vld [vmem:[%s1 + $0x2c] sm:$0xf]
        %v225 = vld [vmem:[%s1 + $0x30] sm:$0xf]
        %v226 = vld [vmem:[%s1 + $0x34] sm:$0xf]
        %v227 = vld [vmem:[%s1 + $0x38] sm:$0xf]
        %v228 = vld [vmem:[%s1 + $0x3c] sm:$0xf]
        %v229 = vld [vmem:[%s1 + $0x40] sm:$0xf]
        %v230 = vld [vmem:[%s1 + $0x44] sm:$0xf]
        %v231 = vld [vmem:[%s1 + $0x48] sm:$0xf]
        %v232 = vld [vmem:[%s1 + $0x4c] sm:$0xf]
        %v233 = vld [vmem:[%s1 + $0x50] sm:$0xf]
        %v234 = vld [vmem:[%s1 + $0x54] sm:$0xf]
        %v235 = vld [vmem:[%s1 + $0x58] sm:$0xf]
        %v236 = vld [vmem:[%s1 + $0x5c] sm:$0xf]
        %v237 = vld [vmem:[%s1 + $0x60] sm:$0xf]
        %v238 = vld [vmem:[%s1 + $0x64] sm:$0xf]
        %v239 = vld [vmem:[%s1 + $0x68] sm:$0xf]
        %v240 = vld [vmem:[%s1 + $0x6c] sm:$0xf]
        %v241 = vld [vmem:[%s1 + $0x70] sm:$0xf]
        %v242 = vld [vmem:[%s1 + $0x74] sm:$0xf]
        %v243 = vld [vmem:[%s1 + $0x78] sm:$0xf]
        %v244 = vld [vmem:[%s1 + $0x7c] sm:$0xf]
        %v245 = vld [vmem:[%s1 + $0x80] sm:$0xf]
        %v246 = vld [vmem:[%s1 + $0x84] sm:$0xf]
        %v247 = vld [vmem:[%s1 + $0x88] sm:$0xf]
        %v248 = vld [vmem:[%s1 + $0x8c] sm:$0xf]
        %v249 = vld [vmem:[%s1 + $0x90] sm:$0xf]
        %v250 = vld [vmem:[%s1 + $0x94] sm:$0xf]
        %v251 = vld [vmem:[%s1 + $0x98] sm:$0xf]
        %v252 = vld [vmem:[%s1 + $0x9c] sm:$0xf]
        %v253 = vld [vmem:[%s1 + $0xa0] sm:$0xf]
        %v254 = vld [vmem:[%s1 + $0xa4] sm:$0xf]
        %v255 = vld [vmem:[%s1 + $0xa8] sm:$0xf]
        %v256 = vld [vmem:[%s1 + $0xac] sm:$0xf]
        %v257 = vld [vmem:[%s1 + $0xb0] sm:$0xf]
        %v258 = vld [vmem:[%s1 + $0xb4] sm:$0xf]
        %v259 = vld [vmem:[%s1 + $0xb8] sm:$0xf]
        %v260 = vld [vmem:[%s1 + $0xbc] sm:$0xf]
        %v261 = vld [vmem:[%s1 + $0xc0] sm:$0xf]
        %v262 = vld [vmem:[%s1 + $0xc4] sm:$0xf]
        %v263 = vld [vmem:[%s1 + $0xc8] sm:$0xf]
        %v264 = vld [vmem:[%s1 + $0xcc] sm:$0xf]
        %v265 = vld [vmem:[%s1 + $0xd0] sm:$0xf]
        %v266 = vld [vmem:[%s1 + $0xd4] sm:$0xf]
        %v267 = vld [vmem:[%s1 + $0xd8] sm:$0xf]
        %v268 = vld [vmem:[%s1 + $0xdc] sm:$0xf]
        %v269 = vld [vmem:[%s1 + $0xe0] sm:$0xf]
        %v270 = vld [vmem:[%s1 + $0xe4] sm:$0xf]
        %v271 = vld [vmem:[%s1 + $0xe8] sm:$0xf]
        %v272 = vld [vmem:[%s1 + $0xec] sm:$0xf]
        %v273 = vld [vmem:[%s1 + $0xf0] sm:$0xf]
        %v274 = vld [vmem:[%s1 + $0xf4] sm:$0xf]
        %v275 = vld [vmem:[%s1 + $0xf8] sm:$0xf]
        %v276 = vld [vmem:[%s1 + $0xfc] sm:$0xf]
        %v277 = vld [vmem:[%s1 + $0x100] sm:$0xf]
        %v278 = vld [vmem:[%s1 + $0x104] sm:$0xf]
        %v279 = vld [vmem:[%s1 + $0x108] sm:$0xf]
        %v280 = vld [vmem:[%s1 + $0x10c] sm:$0xf]
        %v281 = vld [vmem:[%s1 + $0x110] sm:$0xf]
        %v282 = vld [vmem:[%s1 + $0x114] sm:$0xf]
        %v283 = vld [vmem:[%s1 + $0x118] sm:$0xf]
        %v284 = vld [vmem:[%s1 + $0x11c] sm:$0xf]
        %v285 = vld [vmem:[%s1 + $0x120] sm:$0xf]
        %v286 = vld [vmem:[%s1 + $0x124] sm:$0xf]
        %v287 = vld [vmem:[%s1 + $0x128] sm:$0xf]
        %v288 = vld [vmem:[%s1 + $0x12c] sm:$0xf]
        %v289 = vld [vmem:[%s1 + $0x130] sm:$0xf]
        %v290 = vld [vmem:[%s1 + $0x134] sm:$0xf]
        %v291 = vld [vmem:[%s1 + $0x138] sm:$0xf]
        %v292 = vld [vmem:[%s1 + $0x13c] sm:$0xf]
        %v293 = vld [vmem:[%s1 + $0x140] sm:$0xf]
        %v294 = vld [vmem:[%s1 + $0x144] sm:$0xf]
        %v295 = vld [vmem:[%s1 + $0x148] sm:$0xf]
        %v296 = vld [vmem:[%s1 + $0x14c] sm:$0xf]
        %v297 = vld [vmem:[%s1 + $0x150] sm:$0xf]
        %v298 = vld [vmem:[%s1 + $0x154] sm:$0xf]
        %v299 = vld [vmem:[%s1 + $0x158] sm:$0xf]
        %v300 = vld [vmem:[%s1 + $0x15c] sm:$0xf]
        %v301 = vld [vmem:[%s1 + $0x160] sm:$0xf]
        %v302 = vld [vmem:[%s1 + $0x164] sm:$0xf]
        %v303 = vld [vmem:[%s1 + $0x168] sm:$0xf]
        %v304 = vld [vmem:[%s1 + $0x16c] sm:$0xf]
        %v305 = vld [vmem:[%s1 + $0x170] sm:$0xf]
        %v306 = vld [vmem:[%s1 + $0x174] sm:$0xf]
        %v307 = vld [vmem:[%s1 + $0x178] sm:$0xf]
        %v308 = vld [vmem:[%s1 + $0x17c] sm:$0xf]
        %v309 = vld [vmem:[%s1 + $0x180] sm:$0xf]
        %v310 = vld [vmem:[%s1 + $0x184] sm:$0xf]
        %v311 = vld [vmem:[%s1 + $0x188] sm:$0xf]
        %v312 = vld [vmem:[%s1 + $0x18c] sm:$0xf]
        %s313 = smul.u32 %s212, 28
        %s314 = smul.addr %s313, 4
        %s315 = scalar_lea.vmem %s184, %s314
        %v316 = vld [vmem:[%s315] sm:$0xff]
        %v317 = vld [vmem:[%s315 + $0x8] sm:$0xff]
        %v318 = vld [vmem:[%s315 + $0x10] sm:$0xff]
        %v319 = vld [vmem:[%s315 + $0x18] sm:$0xf]
        %v320 = vld [vmem:[%s315 + $0x1c] sm:$0xff]
        %v321 = vld [vmem:[%s315 + $0x24] sm:$0xff]
        %v322 = vld [vmem:[%s315 + $0x2c] sm:$0xff]
        %v323 = vld [vmem:[%s315 + $0x34] sm:$0xf]
        %v324 = vld [vmem:[%s315 + $0x38] sm:$0xff]
        %v325 = vld [vmem:[%s315 + $0x40] sm:$0xff]
        %v326 = vld [vmem:[%s315 + $0x48] sm:$0xff]
        %v327 = vld [vmem:[%s315 + $0x50] sm:$0xf]
        %v328 = vld [vmem:[%s315 + $0x54] sm:$0x77]
        %v329 = vld [vmem:[%s315 + $0x5c] sm:$0x77]
        %v330 = vld [vmem:[%s315 + $0x64] sm:$0x77]
        %v331 = vld [vmem:[%s315 + $0x6c] sm:$0x7]
        %v348 = vunpack.c.l.b16 %v316
        %v349 = vunpack.c.h.b16 %v316
        %v350 = vunpack.c.l.b16 %v317
        %v351 = vunpack.c.h.b16 %v317
        %v352 = vunpack.c.l.b16 %v318
        %v353 = vunpack.c.h.b16 %v318
        %v354 = vunpack.c.l.b16 %v319
        %v355 = vunpack.c.l.b16 %v320
        %v356 = vunpack.c.h.b16 %v320
        %v357 = vunpack.c.l.b16 %v321
        %v358 = vunpack.c.h.b16 %v321
        %v359 = vunpack.c.l.b16 %v322
        %v360 = vunpack.c.h.b16 %v322
        %v361 = vunpack.c.l.b16 %v323
        %v362 = vunpack.c.l.b16 %v324
        %v363 = vunpack.c.h.b16 %v324
        %v364 = vunpack.c.l.b16 %v325
        %v365 = vunpack.c.h.b16 %v325
        %v366 = vunpack.c.l.b16 %v326
        %v367 = vunpack.c.h.b16 %v326
        %v368 = vunpack.c.l.b16 %v327
        %v369 = vunpack.c.l.b16 %v328
        %v370 = vunpack.c.h.b16 %v328
        %v371 = vunpack.c.l.b16 %v329
        %v372 = vunpack.c.h.b16 %v329
        %v373 = vunpack.c.l.b16 %v330
        %v374 = vunpack.c.h.b16 %v330
        %v375 = vunpack.c.l.b16 %v331
        %v376 = vpack.c.b16 %v355, %v348
        %v377 = vpack.c.b16 %v356, %v349
        %v378 = vpack.c.b16 %v357, %v350
        %v379 = vpack.c.b16 %v358, %v351
        %v380 = vpack.c.b16 %v359, %v352
        %v381 = vpack.c.b16 %v360, %v353
        %v382 = vpack.c.b16 %v361, %v354
        %v383 = vpack.c.b16 %v369, %v362
        %v384 = vpack.c.b16 %v370, %v363
        %v385 = vpack.c.b16 %v371, %v364
        %v386 = vpack.c.b16 %v372, %v365
        %v387 = vpack.c.b16 %v373, %v366
        %v388 = vpack.c.b16 %v374, %v367
        %v389 = vpack.c.b16 %v375, %v368
        %v502 = vunpack.c.l.b16 %v213
        %v503 = vunpack.c.l.b16 %v214
        %v504 = vunpack.c.l.b16 %v215
        %v505 = vunpack.c.l.b16 %v216
        %v506 = vunpack.c.l.b16 %v217
        %v507 = vunpack.c.l.b16 %v218
        %v508 = vunpack.c.l.b16 %v219
        %v509 = vunpack.c.l.b16 %v220
        %v510 = vunpack.c.l.b16 %v221
        %v511 = vunpack.c.l.b16 %v222
        %v512 = vunpack.c.l.b16 %v223
        %v513 = vunpack.c.l.b16 %v224
        %v514 = vunpack.c.l.b16 %v225
        %v515 = vunpack.c.l.b16 %v226
        %v516 = vunpack.c.l.b16 %v227
        %v517 = vunpack.c.l.b16 %v228
        %v518 = vunpack.c.l.b16 %v229
        %v519 = vunpack.c.l.b16 %v230
        %v520 = vunpack.c.l.b16 %v231
        %v521 = vunpack.c.l.b16 %v232
        %v522 = vunpack.c.l.b16 %v233
        %v523 = vunpack.c.l.b16 %v234
        %v524 = vunpack.c.l.b16 %v235
        %v525 = vunpack.c.l.b16 %v236
        %v526 = vunpack.c.l.b16 %v237
        %v527 = vunpack.c.l.b16 %v238
        %v528 = vunpack.c.l.b16 %v239
        %v529 = vunpack.c.l.b16 %v240
        %v530 = vunpack.c.l.b16 %v241
        %v531 = vunpack.c.l.b16 %v242
        %v532 = vunpack.c.l.b16 %v243
        %v533 = vunpack.c.l.b16 %v244
        %v534 = vunpack.c.l.b16 %v245
        %v535 = vunpack.c.l.b16 %v246
        %v536 = vunpack.c.l.b16 %v247
        %v537 = vunpack.c.l.b16 %v248
        %v538 = vunpack.c.l.b16 %v249
        %v539 = vunpack.c.l.b16 %v250
        %v540 = vunpack.c.l.b16 %v251
        %v541 = vunpack.c.l.b16 %v252
        %v542 = vunpack.c.l.b16 %v253
        %v543 = vunpack.c.l.b16 %v254
        %v544 = vunpack.c.l.b16 %v255
        %v545 = vunpack.c.l.b16 %v256
        %v546 = vunpack.c.l.b16 %v257
        %v547 = vunpack.c.l.b16 %v258
        %v548 = vunpack.c.l.b16 %v259
        %v549 = vunpack.c.l.b16 %v260
        %v550 = vunpack.c.l.b16 %v261
        %v551 = vunpack.c.l.b16 %v262
        %v552 = vunpack.c.l.b16 %v263
        %v553 = vunpack.c.l.b16 %v264
        %v554 = vunpack.c.l.b16 %v265
        %v555 = vunpack.c.l.b16 %v266
        %v556 = vunpack.c.l.b16 %v267
        %v557 = vunpack.c.l.b16 %v268
        %v558 = vunpack.c.l.b16 %v269
        %v559 = vunpack.c.l.b16 %v270
        %v560 = vunpack.c.l.b16 %v271
        %v561 = vunpack.c.l.b16 %v272
        %v562 = vunpack.c.l.b16 %v273
        %v563 = vunpack.c.l.b16 %v274
        %v564 = vunpack.c.l.b16 %v275
        %v565 = vunpack.c.l.b16 %v276
        %v566 = vunpack.c.l.b16 %v277
        %v567 = vunpack.c.l.b16 %v278
        %v568 = vunpack.c.l.b16 %v279
        %v569 = vunpack.c.l.b16 %v280
        %v570 = vunpack.c.l.b16 %v281
        %v571 = vunpack.c.l.b16 %v282
        %v572 = vunpack.c.l.b16 %v283
        %v573 = vunpack.c.l.b16 %v284
        %v574 = vunpack.c.l.b16 %v285
        %v575 = vunpack.c.l.b16 %v286
        %v576 = vunpack.c.l.b16 %v287
        %v577 = vunpack.c.l.b16 %v288
        %v578 = vunpack.c.l.b16 %v289
        %v579 = vunpack.c.l.b16 %v290
        %v580 = vunpack.c.l.b16 %v291
        %v581 = vunpack.c.l.b16 %v292
        %v582 = vunpack.c.l.b16 %v293
        %v583 = vunpack.c.l.b16 %v294
        %v584 = vunpack.c.l.b16 %v295
        %v585 = vunpack.c.l.b16 %v296
        %v586 = vunpack.c.l.b16 %v297
        %v587 = vunpack.c.l.b16 %v298
        %v588 = vunpack.c.l.b16 %v299
        %v589 = vunpack.c.l.b16 %v300
        %v590 = vunpack.c.l.b16 %v301
        %v591 = vunpack.c.l.b16 %v302
        %v592 = vunpack.c.l.b16 %v303
        %v593 = vunpack.c.l.b16 %v304
        %v594 = vunpack.c.l.b16 %v305
        %v595 = vunpack.c.l.b16 %v306
        %v596 = vunpack.c.l.b16 %v307
        %v597 = vunpack.c.l.b16 %v308
        %v598 = vunpack.c.l.b16 %v309
        %v599 = vunpack.c.l.b16 %v310
        %v600 = vunpack.c.l.b16 %v311
        %v601 = vunpack.c.l.b16 %v312
        %v602 = vpack.c.b16 %v503, %v502
        %v603 = vpack.c.b16 %v505, %v504
        %v604 = vpack.c.b16 %v507, %v506
        %v605 = vpack.c.b16 %v509, %v508
        %v606 = vpack.c.b16 %v511, %v510
        %v607 = vpack.c.b16 %v513, %v512
        %v608 = vpack.c.b16 %v515, %v514
        %v609 = vpack.c.b16 %v517, %v516
        %v610 = vpack.c.b16 %v519, %v518
        %v611 = vpack.c.b16 %v521, %v520
        %v612 = vpack.c.b16 %v523, %v522
        %v613 = vpack.c.b16 %v525, %v524
        %v614 = vpack.c.b16 %v527, %v526
        %v615 = vpack.c.b16 %v529, %v528
        %v616 = vpack.c.b16 %v531, %v530
        %v617 = vpack.c.b16 %v533, %v532
        %v618 = vpack.c.b16 %v535, %v534
        %v619 = vpack.c.b16 %v537, %v536
        %v620 = vpack.c.b16 %v539, %v538
        %v621 = vpack.c.b16 %v541, %v540
        %v622 = vpack.c.b16 %v543, %v542
        %v623 = vpack.c.b16 %v545, %v544
        %v624 = vpack.c.b16 %v547, %v546
        %v625 = vpack.c.b16 %v549, %v548
        %v626 = vpack.c.b16 %v551, %v550
        %v627 = vpack.c.b16 %v553, %v552
        %v628 = vpack.c.b16 %v555, %v554
        %v629 = vpack.c.b16 %v557, %v556
        %v630 = vpack.c.b16 %v559, %v558
        %v631 = vpack.c.b16 %v561, %v560
        %v632 = vpack.c.b16 %v563, %v562
        %v633 = vpack.c.b16 %v565, %v564
        %v634 = vpack.c.b16 %v567, %v566
        %v635 = vpack.c.b16 %v569, %v568
        %v636 = vpack.c.b16 %v571, %v570
        %v637 = vpack.c.b16 %v573, %v572
        %v638 = vpack.c.b16 %v575, %v574
        %v639 = vpack.c.b16 %v577, %v576
        %v640 = vpack.c.b16 %v579, %v578
        %v641 = vpack.c.b16 %v581, %v580
        %v642 = vpack.c.b16 %v583, %v582
        %v643 = vpack.c.b16 %v585, %v584
        %v644 = vpack.c.b16 %v587, %v586
        %v645 = vpack.c.b16 %v589, %v588
        %v646 = vpack.c.b16 %v591, %v590
        %v647 = vpack.c.b16 %v593, %v592
        %v648 = vpack.c.b16 %v595, %v594
        %v649 = vpack.c.b16 %v597, %v596
        %v650 = vpack.c.b16 %v599, %v598
        %v651 = vpack.c.b16 %v601, %v600
        %vm702 = vcmask 261120
        %v704 = vsel %vm702, %v382, 0
        %v707 = vsel %vm702, %v389, 0
        %709 = vmatprep.subr.bf16.mxu0 0
        %710 = vmatpush1.bf16.msra.mxu0 %v602
        %711 = vmatprep.subr.bf16.mxu0 0
        %712 = vmatpush1.bf16.msra.mxu0 %v603
        %713 = vmatprep.subr.bf16.mxu0 0
        %714 = vmatpush1.bf16.msra.mxu0 %v604
        %715 = vmatprep.subr.bf16.mxu0 0
        %716 = vmatpush1.bf16.msra.mxu0 %v605
        %717 = vmatprep.subr.bf16.mxu0 0
        %718 = vmatpush1.bf16.msra.mxu0 %v606
        %719 = vmatprep.subr.bf16.mxu0 0
        %720 = vmatpush1.bf16.msra.mxu0 %v607
        %721 = vmatprep.subr.bf16.mxu0 0
        %722 = vmatpush1.bf16.msra.mxu0 %v608
        %723 = vmatprep.subr.bf16.mxu0 0
        %724 = vmatpush1.bf16.msra.mxu0 %v609
        %725 = vmatprep.subr.bf16.mxu0 0
        %726 = vmatpush1.bf16.msra.mxu0 %v610
        %727 = vmatprep.subr.bf16.mxu0 0
        %728 = vmatpush1.bf16.msra.mxu0 %v611
        %729 = vmatprep.subr.bf16.mxu0 0
        %730 = vmatpush1.bf16.msra.mxu0 %v612
        %731 = vmatprep.subr.bf16.mxu0 0
        %732 = vmatpush1.bf16.msra.mxu0 %v613
        %733 = vmatprep.subr.bf16.mxu0 0
        %734 = vmatpush1.bf16.msra.mxu0 %v614
        %735 = vmatprep.subr.bf16.mxu0 0
        %736 = vmatpush1.bf16.msra.mxu0 %v615
        %737 = vmatprep.subr.bf16.mxu0 0
        %738 = vmatpush1.bf16.msra.mxu0 %v616
        %739 = vmatprep.subr.bf16.mxu0 0
        %740 = vmatpush1.bf16.msra.mxu0 %v617
        %741 = vmatprep.mubr.bf16.mxu0 %v377
        %742 = vmatmul.mubr.bf16.gmra.mrb[0].mxu0 %v376
        %v743 = vpop.f32.mrb[0].mxu0
        %v744 = vadd.f32 0.0, %v743
        %v745 = vpop.f32.mrb[0].mxu0
        %v746 = vpop.f32.mrb[0].mxu0
        %v747 = vadd.f32 0.0, %v746
        %v748 = vpop.f32.mrb[0].mxu0
        %749 = vmatprep.mubr.bf16.mxu0 %v384
        %750 = vmatmul.mubr.bf16.gmra.mrb[0].mxu0 %v383
        %v751 = vpop.f32.mrb[0].mxu0
        %v752 = vadd.f32 0.0, %v751
        %v753 = vpop.f32.mrb[0].mxu0
        %v754 = vpop.f32.mrb[0].mxu0
        %v755 = vadd.f32 0.0, %v754
        %v756 = vpop.f32.mrb[0].mxu0
        %757 = vdwg.mxu0
        %758 = vmatprep.subr.bf16.mxu0 0
        %759 = vmatpush1.bf16.msra.mxu0 %v618
        %760 = vmatprep.subr.bf16.mxu0 0
        %761 = vmatpush1.bf16.msra.mxu0 %v619
        %762 = vmatprep.subr.bf16.mxu0 0
        %763 = vmatpush1.bf16.msra.mxu0 %v620
        %764 = vmatprep.subr.bf16.mxu0 0
        %765 = vmatpush1.bf16.msra.mxu0 %v621
        %766 = vmatprep.subr.bf16.mxu0 0
        %767 = vmatpush1.bf16.msra.mxu0 %v622
        %768 = vmatprep.subr.bf16.mxu0 0
        %769 = vmatpush1.bf16.msra.mxu0 %v623
        %770 = vmatprep.subr.bf16.mxu0 0
        %771 = vmatpush1.bf16.msra.mxu0 %v624
        %772 = vmatprep.subr.bf16.mxu0 0
        %773 = vmatpush1.bf16.msra.mxu0 %v625
        %774 = vmatprep.subr.bf16.mxu0 0
        %775 = vmatpush1.bf16.msra.mxu0 %v626
        %776 = vmatprep.subr.bf16.mxu0 0
        %777 = vmatpush1.bf16.msra.mxu0 %v627
        %778 = vmatprep.subr.bf16.mxu0 0
        %779 = vmatpush1.bf16.msra.mxu0 %v628
        %780 = vmatprep.subr.bf16.mxu0 0
        %781 = vmatpush1.bf16.msra.mxu0 %v629
        %782 = vmatprep.subr.bf16.mxu0 0
        %783 = vmatpush1.bf16.msra.mxu0 %v630
        %784 = vmatprep.subr.bf16.mxu0 0
        %785 = vmatpush1.bf16.msra.mxu0 %v631
        %786 = vmatprep.subr.bf16.mxu0 0
        %787 = vmatpush1.bf16.msra.mxu0 %v632
        %788 = vmatprep.subr.bf16.mxu0 0
        %789 = vmatpush1.bf16.msra.mxu0 %v633
        %790 = vmatprep.mubr.bf16.mxu0 %v379
        %791 = vmatmul.mubr.bf16.gmra.mrb[0].mxu0 %v378
        %v792 = vpop.f32.mrb[0].mxu0
        %v793 = vadd.f32 %v744, %v792
        %v794 = vpop.f32.mrb[0].mxu0
        %v795 = vpop.f32.mrb[0].mxu0
        %v796 = vadd.f32 %v747, %v795
        %v797 = vpop.f32.mrb[0].mxu0
        %798 = vmatprep.mubr.bf16.mxu0 %v386
        %799 = vmatmul.mubr.bf16.gmra.mrb[0].mxu0 %v385
        %v800 = vpop.f32.mrb[0].mxu0
        %v801 = vadd.f32 %v752, %v800
        %v802 = vpop.f32.mrb[0].mxu0
        %v803 = vpop.f32.mrb[0].mxu0
        %v804 = vadd.f32 %v755, %v803
        %v805 = vpop.f32.mrb[0].mxu0
        %806 = vdwg.mxu0
        %807 = vmatprep.subr.bf16.mxu0 0
        %808 = vmatpush1.bf16.msra.mxu0 %v634
        %809 = vmatprep.subr.bf16.mxu0 0
        %810 = vmatpush1.bf16.msra.mxu0 %v635
        %811 = vmatprep.subr.bf16.mxu0 0
        %812 = vmatpush1.bf16.msra.mxu0 %v636
        %813 = vmatprep.subr.bf16.mxu0 0
        %814 = vmatpush1.bf16.msra.mxu0 %v637
        %815 = vmatprep.subr.bf16.mxu0 0
        %816 = vmatpush1.bf16.msra.mxu0 %v638
        %817 = vmatprep.subr.bf16.mxu0 0
        %818 = vmatpush1.bf16.msra.mxu0 %v639
        %819 = vmatprep.subr.bf16.mxu0 0
        %820 = vmatpush1.bf16.msra.mxu0 %v640
        %821 = vmatprep.subr.bf16.mxu0 0
        %822 = vmatpush1.bf16.msra.mxu0 %v641
        %823 = vmatprep.subr.bf16.mxu0 0
        %824 = vmatpush1.bf16.msra.mxu0 %v642
        %825 = vmatprep.subr.bf16.mxu0 0
        %826 = vmatpush1.bf16.msra.mxu0 %v643
        %827 = vmatprep.subr.bf16.mxu0 0
        %828 = vmatpush1.bf16.msra.mxu0 %v644
        %829 = vmatprep.subr.bf16.mxu0 0
        %830 = vmatpush1.bf16.msra.mxu0 %v645
        %831 = vmatprep.subr.bf16.mxu0 0
        %832 = vmatpush1.bf16.msra.mxu0 %v646
        %833 = vmatprep.subr.bf16.mxu0 0
        %834 = vmatpush1.bf16.msra.mxu0 %v647
        %835 = vmatprep.subr.bf16.mxu0 0
        %836 = vmatpush1.bf16.msra.mxu0 %v648
        %837 = vmatprep.subr.bf16.mxu0 0
        %838 = vmatpush1.bf16.msra.mxu0 %v649
        %839 = vmatprep.mubr.bf16.mxu0 %v381
        %840 = vmatmul.mubr.bf16.gmra.mrb[0].mxu0 %v380
        %v841 = vpop.f32.mrb[0].mxu0
        %v842 = vadd.f32 %v793, %v841
        %v843 = vpop.f32.mrb[0].mxu0
        %v844 = vpop.f32.mrb[0].mxu0
        %v845 = vadd.f32 %v796, %v844
        %v846 = vpop.f32.mrb[0].mxu0
        %847 = vmatprep.mubr.bf16.mxu0 %v388
        %848 = vmatmul.mubr.bf16.gmra.mrb[0].mxu0 %v387
        %v849 = vpop.f32.mrb[0].mxu0
        %v850 = vadd.f32 %v801, %v849
        %v851 = vpop.f32.mrb[0].mxu0
        %v852 = vpop.f32.mrb[0].mxu0
        %v853 = vadd.f32 %v804, %v852
        %v854 = vpop.f32.mrb[0].mxu0
        %855 = vdwg.mxu0
        %856 = vmatprep.subr.bf16.mxu0 0
        %857 = vmatpush1.bf16.msra.mxu0 %v650
        %858 = vmatprep.subr.bf16.mxu0 0
        %859 = vmatpush1.bf16.msra.mxu0 %v651
        %860 = vmatprep.subr.bf16.mxu0 0
        %861 = vmatpush1.bf16.msra.mxu0 0
        %862 = vmatprep.subr.bf16.mxu0 0
        %863 = vmatpush1.bf16.msra.mxu0 0
        %864 = vmatprep.subr.bf16.mxu0 0
        %865 = vmatpush1.bf16.msra.mxu0 0
        %866 = vmatprep.subr.bf16.mxu0 0
        %867 = vmatpush1.bf16.msra.mxu0 0
        %868 = vmatprep.subr.bf16.mxu0 0
        %869 = vmatpush1.bf16.msra.mxu0 0
        %870 = vmatprep.subr.bf16.mxu0 0
        %871 = vmatpush1.bf16.msra.mxu0 0
        %872 = vmatprep.subr.bf16.mxu0 0
        %873 = vmatpush1.bf16.msra.mxu0 0
        %874 = vmatprep.subr.bf16.mxu0 0
        %875 = vmatpush1.bf16.msra.mxu0 0
        %876 = vmatprep.subr.bf16.mxu0 0
        %877 = vmatpush1.bf16.msra.mxu0 0
        %878 = vmatprep.subr.bf16.mxu0 0
        %879 = vmatpush1.bf16.msra.mxu0 0
        %880 = vmatprep.subr.bf16.mxu0 0
        %881 = vmatpush1.bf16.msra.mxu0 0
        %882 = vmatprep.subr.bf16.mxu0 0
        %883 = vmatpush1.bf16.msra.mxu0 0
        %884 = vmatprep.subr.bf16.mxu0 0
        %885 = vmatpush1.bf16.msra.mxu0 0
        %886 = vmatprep.subr.bf16.mxu0 0
        %887 = vmatpush1.bf16.msra.mxu0 0
        %888 = vmatprep.mubr.bf16.mxu0 0
        %889 = vmatmul.mubr.bf16.gmra.mrb[0].mxu0 %v704
        %v890 = vpop.f32.mrb[0].mxu0
        %v891 = vadd.f32 %v842, %v890
        %v892 = vpop.f32.mrb[0].mxu0
        %v893 = vpop.f32.mrb[0].mxu0
        %v894 = vadd.f32 %v845, %v893
        %v895 = vpop.f32.mrb[0].mxu0
        %896 = vmatprep.mubr.bf16.mxu0 0
        %897 = vmatmul.mubr.bf16.gmra.mrb[0].mxu0 %v707
        %v898 = vpop.f32.mrb[0].mxu0
        %v899 = vadd.f32 %v850, %v898
        %v900 = vpop.f32.mrb[0].mxu0
        %v901 = vpop.f32.mrb[0].mxu0
        %v902 = vadd.f32 %v853, %v901
        %v903 = vpop.f32.mrb[0].mxu0
        %904 = vdwg.mxu0
        %s905 = sadd.s32 %s212, 1
        %s906 = smul.u32 %s905, 28
        %s907 = smul.addr %s906, 4
        %s908 = scalar_lea.vmem %s184, %s907
        %v909 = vld [vmem:[%s908] sm:$0xff]
        %v910 = vld [vmem:[%s908 + $0x8] sm:$0xff]
        %v911 = vld [vmem:[%s908 + $0x10] sm:$0xff]
        %v912 = vld [vmem:[%s908 + $0x18] sm:$0xf]
        %v913 = vld [vmem:[%s908 + $0x1c] sm:$0xff]
        %v914 = vld [vmem:[%s908 + $0x24] sm:$0xff]
        %v915 = vld [vmem:[%s908 + $0x2c] sm:$0xff]
        %v916 = vld [vmem:[%s908 + $0x34] sm:$0xf]
        %v917 = vld [vmem:[%s908 + $0x38] sm:$0xff]
        %v918 = vld [vmem:[%s908 + $0x40] sm:$0xff]
        %v919 = vld [vmem:[%s908 + $0x48] sm:$0xff]
        %v920 = vld [vmem:[%s908 + $0x50] sm:$0xf]
        %v921 = vld [vmem:[%s908 + $0x54] sm:$0x77]
        %v922 = vld [vmem:[%s908 + $0x5c] sm:$0x77]
        %v923 = vld [vmem:[%s908 + $0x64] sm:$0x77]
        %v924 = vld [vmem:[%s908 + $0x6c] sm:$0x7]
        %v941 = vunpack.c.l.b16 %v909
        %v942 = vunpack.c.h.b16 %v909
        %v943 = vunpack.c.l.b16 %v910
        %v944 = vunpack.c.h.b16 %v910
        %v945 = vunpack.c.l.b16 %v911
        %v946 = vunpack.c.h.b16 %v911
        %v947 = vunpack.c.l.b16 %v912
        %v948 = vunpack.c.l.b16 %v913
        %v949 = vunpack.c.h.b16 %v913
        %v950 = vunpack.c.l.b16 %v914
        %v951 = vunpack.c.h.b16 %v914
        %v952 = vunpack.c.l.b16 %v915
        %v953 = vunpack.c.h.b16 %v915
        %v954 = vunpack.c.l.b16 %v916
        %v955 = vunpack.c.l.b16 %v917
        %v956 = vunpack.c.h.b16 %v917
        %v957 = vunpack.c.l.b16 %v918
        %v958 = vunpack.c.h.b16 %v918
        %v959 = vunpack.c.l.b16 %v919
        %v960 = vunpack.c.h.b16 %v919
        %v961 = vunpack.c.l.b16 %v920
        %v962 = vunpack.c.l.b16 %v921
        %v963 = vunpack.c.h.b16 %v921
        %v964 = vunpack.c.l.b16 %v922
        %v965 = vunpack.c.h.b16 %v922
        %v966 = vunpack.c.l.b16 %v923
        %v967 = vunpack.c.h.b16 %v923
        %v968 = vunpack.c.l.b16 %v924
        %v969 = vpack.c.b16 %v948, %v941
        %v970 = vpack.c.b16 %v949, %v942
        %v971 = vpack.c.b16 %v950, %v943
        %v972 = vpack.c.b16 %v951, %v944
        %v973 = vpack.c.b16 %v952, %v945
        %v974 = vpack.c.b16 %v953, %v946
        %v975 = vpack.c.b16 %v954, %v947
        %v976 = vpack.c.b16 %v962, %v955
        %v977 = vpack.c.b16 %v963, %v956
        %v978 = vpack.c.b16 %v964, %v957
        %v979 = vpack.c.b16 %v965, %v958
        %v980 = vpack.c.b16 %v966, %v959
        %v981 = vpack.c.b16 %v967, %v960
        %v982 = vpack.c.b16 %v968, %v961
        %v996 = vsel %vm702, %v975, 0
        %v999 = vsel %vm702, %v982, 0
        %1001 = vmatprep.subr.bf16.mxu0 0
        %1002 = vmatpush1.bf16.msra.mxu0 %v602
        %1003 = vmatprep.subr.bf16.mxu0 0
        %1004 = vmatpush1.bf16.msra.mxu0 %v603
        %1005 = vmatprep.subr.bf16.mxu0 0
        %1006 = vmatpush1.bf16.msra.mxu0 %v604
        %1007 = vmatprep.subr.bf16.mxu0 0
        %1008 = vmatpush1.bf16.msra.mxu0 %v605
        %1009 = vmatprep.subr.bf16.mxu0 0
        %1010 = vmatpush1.bf16.msra.mxu0 %v606
        %1011 = vmatprep.subr.bf16.mxu0 0
        %1012 = vmatpush1.bf16.msra.mxu0 %v607
        %1013 = vmatprep.subr.bf16.mxu0 0
        %1014 = vmatpush1.bf16.msra.mxu0 %v608
        %1015 = vmatprep.subr.bf16.mxu0 0
        %1016 = vmatpush1.bf16.msra.mxu0 %v609
        %1017 = vmatprep.subr.bf16.mxu0 0
        %1018 = vmatpush1.bf16.msra.mxu0 %v610
        %1019 = vmatprep.subr.bf16.mxu0 0
        %1020 = vmatpush1.bf16.msra.mxu0 %v611
        %1021 = vmatprep.subr.bf16.mxu0 0
        %1022 = vmatpush1.bf16.msra.mxu0 %v612
        %1023 = vmatprep.subr.bf16.mxu0 0
        %1024 = vmatpush1.bf16.msra.mxu0 %v613
        %1025 = vmatprep.subr.bf16.mxu0 0
        %1026 = vmatpush1.bf16.msra.mxu0 %v614
        %1027 = vmatprep.subr.bf16.mxu0 0
        %1028 = vmatpush1.bf16.msra.mxu0 %v615
        %1029 = vmatprep.subr.bf16.mxu0 0
        %1030 = vmatpush1.bf16.msra.mxu0 %v616
        %1031 = vmatprep.subr.bf16.mxu0 0
        %1032 = vmatpush1.bf16.msra.mxu0 %v617
        %1033 = vmatprep.mubr.bf16.mxu0 %v970
        %1034 = vmatmul.mubr.bf16.gmra.mrb[0].mxu0 %v969
        %v1035 = vpop.f32.mrb[0].mxu0
        %v1036 = vadd.f32 0.0, %v1035
        %v1037 = vpop.f32.mrb[0].mxu0
        %v1038 = vpop.f32.mrb[0].mxu0
        %v1039 = vadd.f32 0.0, %v1038
        %v1040 = vpop.f32.mrb[0].mxu0
        %1041 = vmatprep.mubr.bf16.mxu0 %v977
        %1042 = vmatmul.mubr.bf16.gmra.mrb[0].mxu0 %v976
        %v1043 = vpop.f32.mrb[0].mxu0
        %v1044 = vadd.f32 0.0, %v1043
        %v1045 = vpop.f32.mrb[0].mxu0
        %v1046 = vpop.f32.mrb[0].mxu0
        %v1047 = vadd.f32 0.0, %v1046
        %v1048 = vpop.f32.mrb[0].mxu0
        %1049 = vdwg.mxu0
        %1050 = vmatprep.subr.bf16.mxu0 0
        %1051 = vmatpush1.bf16.msra.mxu0 %v618
        %1052 = vmatprep.subr.bf16.mxu0 0
        %1053 = vmatpush1.bf16.msra.mxu0 %v619
        %1054 = vmatprep.subr.bf16.mxu0 0
        %1055 = vmatpush1.bf16.msra.mxu0 %v620
        %1056 = vmatprep.subr.bf16.mxu0 0
        %1057 = vmatpush1.bf16.msra.mxu0 %v621
        %1058 = vmatprep.subr.bf16.mxu0 0
        %1059 = vmatpush1.bf16.msra.mxu0 %v622
        %1060 = vmatprep.subr.bf16.mxu0 0
        %1061 = vmatpush1.bf16.msra.mxu0 %v623
        %1062 = vmatprep.subr.bf16.mxu0 0
        %1063 = vmatpush1.bf16.msra.mxu0 %v624
        %1064 = vmatprep.subr.bf16.mxu0 0
        %1065 = vmatpush1.bf16.msra.mxu0 %v625
        %1066 = vmatprep.subr.bf16.mxu0 0
        %1067 = vmatpush1.bf16.msra.mxu0 %v626
        %1068 = vmatprep.subr.bf16.mxu0 0
        %1069 = vmatpush1.bf16.msra.mxu0 %v627
        %1070 = vmatprep.subr.bf16.mxu0 0
        %1071 = vmatpush1.bf16.msra.mxu0 %v628
        %1072 = vmatprep.subr.bf16.mxu0 0
        %1073 = vmatpush1.bf16.msra.mxu0 %v629
        %1074 = vmatprep.subr.bf16.mxu0 0
        %1075 = vmatpush1.bf16.msra.mxu0 %v630
        %1076 = vmatprep.subr.bf16.mxu0 0
        %1077 = vmatpush1.bf16.msra.mxu0 %v631
        %1078 = vmatprep.subr.bf16.mxu0 0
        %1079 = vmatpush1.bf16.msra.mxu0 %v632
        %1080 = vmatprep.subr.bf16.mxu0 0
        %1081 = vmatpush1.bf16.msra.mxu0 %v633
        %1082 = vmatprep.mubr.bf16.mxu0 %v972
        %1083 = vmatmul.mubr.bf16.gmra.mrb[0].mxu0 %v971
        %v1084 = vpop.f32.mrb[0].mxu0
        %v1085 = vadd.f32 %v1036, %v1084
        %v1086 = vpop.f32.mrb[0].mxu0
        %v1087 = vpop.f32.mrb[0].mxu0
        %v1088 = vadd.f32 %v1039, %v1087
        %v1089 = vpop.f32.mrb[0].mxu0
        %1090 = vmatprep.mubr.bf16.mxu0 %v979
        %1091 = vmatmul.mubr.bf16.gmra.mrb[0].mxu0 %v978
        %v1092 = vpop.f32.mrb[0].mxu0
        %v1093 = vadd.f32 %v1044, %v1092
        %v1094 = vpop.f32.mrb[0].mxu0
        %v1095 = vpop.f32.mrb[0].mxu0
        %v1096 = vadd.f32 %v1047, %v1095
        %v1097 = vpop.f32.mrb[0].mxu0
        %1098 = vdwg.mxu0
        %1099 = vmatprep.subr.bf16.mxu0 0
        %1100 = vmatpush1.bf16.msra.mxu0 %v634
        %1101 = vmatprep.subr.bf16.mxu0 0
        %1102 = vmatpush1.bf16.msra.mxu0 %v635
        %1103 = vmatprep.subr.bf16.mxu0 0
        %1104 = vmatpush1.bf16.msra.mxu0 %v636
        %1105 = vmatprep.subr.bf16.mxu0 0
        %1106 = vmatpush1.bf16.msra.mxu0 %v637
        %1107 = vmatprep.subr.bf16.mxu0 0
        %1108 = vmatpush1.bf16.msra.mxu0 %v638
        %1109 = vmatprep.subr.bf16.mxu0 0
        %1110 = vmatpush1.bf16.msra.mxu0 %v639
        %1111 = vmatprep.subr.bf16.mxu0 0
        %1112 = vmatpush1.bf16.msra.mxu0 %v640
        %1113 = vmatprep.subr.bf16.mxu0 0
        %1114 = vmatpush1.bf16.msra.mxu0 %v641
        %1115 = vmatprep.subr.bf16.mxu0 0
        %1116 = vmatpush1.bf16.msra.mxu0 %v642
        %1117 = vmatprep.subr.bf16.mxu0 0
        %1118 = vmatpush1.bf16.msra.mxu0 %v643
        %1119 = vmatprep.subr.bf16.mxu0 0
        %1120 = vmatpush1.bf16.msra.mxu0 %v644
        %1121 = vmatprep.subr.bf16.mxu0 0
        %1122 = vmatpush1.bf16.msra.mxu0 %v645
        %1123 = vmatprep.subr.bf16.mxu0 0
        %1124 = vmatpush1.bf16.msra.mxu0 %v646
        %1125 = vmatprep.subr.bf16.mxu0 0
        %1126 = vmatpush1.bf16.msra.mxu0 %v647
        %1127 = vmatprep.subr.bf16.mxu0 0
        %1128 = vmatpush1.bf16.msra.mxu0 %v648
        %1129 = vmatprep.subr.bf16.mxu0 0
        %1130 = vmatpush1.bf16.msra.mxu0 %v649
        %1131 = vmatprep.mubr.bf16.mxu0 %v974
        %1132 = vmatmul.mubr.bf16.gmra.mrb[0].mxu0 %v973
        %v1133 = vpop.f32.mrb[0].mxu0
        %v1134 = vadd.f32 %v1085, %v1133
        %v1135 = vpop.f32.mrb[0].mxu0
        %v1136 = vpop.f32.mrb[0].mxu0
        %v1137 = vadd.f32 %v1088, %v1136
        %v1138 = vpop.f32.mrb[0].mxu0
        %1139 = vmatprep.mubr.bf16.mxu0 %v981
        %1140 = vmatmul.mubr.bf16.gmra.mrb[0].mxu0 %v980
        %v1141 = vpop.f32.mrb[0].mxu0
        %v1142 = vadd.f32 %v1093, %v1141
        %v1143 = vpop.f32.mrb[0].mxu0
        %v1144 = vpop.f32.mrb[0].mxu0
        %v1145 = vadd.f32 %v1096, %v1144
        %v1146 = vpop.f32.mrb[0].mxu0
        %1147 = vdwg.mxu0
        %1148 = vmatprep.subr.bf16.mxu0 0
        %1149 = vmatpush1.bf16.msra.mxu0 %v650
        %1150 = vmatprep.subr.bf16.mxu0 0
        %1151 = vmatpush1.bf16.msra.mxu0 %v651
        %1152 = vmatprep.subr.bf16.mxu0 0
        %1153 = vmatpush1.bf16.msra.mxu0 0
        %1154 = vmatprep.subr.bf16.mxu0 0
        %1155 = vmatpush1.bf16.msra.mxu0 0
        %1156 = vmatprep.subr.bf16.mxu0 0
        %1157 = vmatpush1.bf16.msra.mxu0 0
        %1158 = vmatprep.subr.bf16.mxu0 0
        %1159 = vmatpush1.bf16.msra.mxu0 0
        %1160 = vmatprep.subr.bf16.mxu0 0
        %1161 = vmatpush1.bf16.msra.mxu0 0
        %1162 = vmatprep.subr.bf16.mxu0 0
        %1163 = vmatpush1.bf16.msra.mxu0 0
        %1164 = vmatprep.subr.bf16.mxu0 0
        %1165 = vmatpush1.bf16.msra.mxu0 0
        %1166 = vmatprep.subr.bf16.mxu0 0
        %1167 = vmatpush1.bf16.msra.mxu0 0
        %1168 = vmatprep.subr.bf16.mxu0 0
        %1169 = vmatpush1.bf16.msra.mxu0 0
        %1170 = vmatprep.subr.bf16.mxu0 0
        %1171 = vmatpush1.bf16.msra.mxu0 0
        %1172 = vmatprep.subr.bf16.mxu0 0
        %1173 = vmatpush1.bf16.msra.mxu0 0
        %1174 = vmatprep.subr.bf16.mxu0 0
        %1175 = vmatpush1.bf16.msra.mxu0 0
        %1176 = vmatprep.subr.bf16.mxu0 0
        %1177 = vmatpush1.bf16.msra.mxu0 0
        %1178 = vmatprep.subr.bf16.mxu0 0
        %1179 = vmatpush1.bf16.msra.mxu0 0
        %1180 = vmatprep.mubr.bf16.mxu0 0
        %1181 = vmatmul.mubr.bf16.gmra.mrb[0].mxu0 %v996
        %v1182 = vpop.f32.mrb[0].mxu0
        %v1183 = vadd.f32 %v1134, %v1182
        %v1184 = vpop.f32.mrb[0].mxu0
        %v1185 = vpop.f32.mrb[0].mxu0
        %v1186 = vadd.f32 %v1137, %v1185
        %v1187 = vpop.f32.mrb[0].mxu0
        %1188 = vmatprep.mubr.bf16.mxu0 0
        %1189 = vmatmul.mubr.bf16.gmra.mrb[0].mxu0 %v999
        %v1190 = vpop.f32.mrb[0].mxu0
        %v1191 = vadd.f32 %v1142, %v1190
        %v1192 = vpop.f32.mrb[0].mxu0
        %v1193 = vpop.f32.mrb[0].mxu0
        %v1194 = vadd.f32 %v1145, %v1193
        %v1195 = vpop.f32.mrb[0].mxu0
        %1196 = vdwg.mxu0
        %s1197 = sadd.s32 %s212, 2
        %s1198 = smul.u32 %s1197, 28
        %s1199 = smul.addr %s1198, 4
        %s1200 = scalar_lea.vmem %s184, %s1199
        %v1201 = vld [vmem:[%s1200] sm:$0xff]
        %v1202 = vld [vmem:[%s1200 + $0x8] sm:$0xff]
        %v1203 = vld [vmem:[%s1200 + $0x10] sm:$0xff]
        %v1204 = vld [vmem:[%s1200 + $0x18] sm:$0xf]
        %v1205 = vld [vmem:[%s1200 + $0x1c] sm:$0xff]
        %v1206 = vld [vmem:[%s1200 + $0x24] sm:$0xff]
        %v1207 = vld [vmem:[%s1200 + $0x2c] sm:$0xff]
        %v1208 = vld [vmem:[%s1200 + $0x34] sm:$0xf]
        %v1209 = vld [vmem:[%s1200 + $0x38] sm:$0xff]
        %v1210 = vld [vmem:[%s1200 + $0x40] sm:$0xff]
        %v1211 = vld [vmem:[%s1200 + $0x48] sm:$0xff]
        %v1212 = vld [vmem:[%s1200 + $0x50] sm:$0xf]
        %v1213 = vld [vmem:[%s1200 + $0x54] sm:$0x77]
        %v1214 = vld [vmem:[%s1200 + $0x5c] sm:$0x77]
        %v1215 = vld [vmem:[%s1200 + $0x64] sm:$0x77]
        %v1216 = vld [vmem:[%s1200 + $0x6c] sm:$0x7]
        %v1233 = vunpack.c.l.b16 %v1201
        %v1234 = vunpack.c.h.b16 %v1201
        %v1235 = vunpack.c.l.b16 %v1202
        %v1236 = vunpack.c.h.b16 %v1202
        %v1237 = vunpack.c.l.b16 %v1203
        %v1238 = vunpack.c.h.b16 %v1203
        %v1239 = vunpack.c.l.b16 %v1204
        %v1240 = vunpack.c.l.b16 %v1205
        %v1241 = vunpack.c.h.b16 %v1205
        %v1242 = vunpack.c.l.b16 %v1206
        %v1243 = vunpack.c.h.b16 %v1206
        %v1244 = vunpack.c.l.b16 %v1207
        %v1245 = vunpack.c.h.b16 %v1207
        %v1246 = vunpack.c.l.b16 %v1208
        %v1247 = vunpack.c.l.b16 %v1209
        %v1248 = vunpack.c.h.b16 %v1209
        %v1249 = vunpack.c.l.b16 %v1210
        %v1250 = vunpack.c.h.b16 %v1210
        %v1251 = vunpack.c.l.b16 %v1211
        %v1252 = vunpack.c.h.b16 %v1211
        %v1253 = vunpack.c.l.b16 %v1212
        %v1254 = vunpack.c.l.b16 %v1213
        %v1255 = vunpack.c.h.b16 %v1213
        %v1256 = vunpack.c.l.b16 %v1214
        %v1257 = vunpack.c.h.b16 %v1214
        %v1258 = vunpack.c.l.b16 %v1215
        %v1259 = vunpack.c.h.b16 %v1215
        %v1260 = vunpack.c.l.b16 %v1216
        %v1261 = vpack.c.b16 %v1240, %v1233
        %v1262 = vpack.c.b16 %v1241, %v1234
        %v1263 = vpack.c.b16 %v1242, %v1235
        %v1264 = vpack.c.b16 %v1243, %v1236
        %v1265 = vpack.c.b16 %v1244, %v1237
        %v1266 = vpack.c.b16 %v1245, %v1238
        %v1267 = vpack.c.b16 %v1246, %v1239
        %v1268 = vpack.c.b16 %v1254, %v1247
        %v1269 = vpack.c.b16 %v1255, %v1248
        %v1270 = vpack.c.b16 %v1256, %v1249
        %v1271 = vpack.c.b16 %v1257, %v1250
        %v1272 = vpack.c.b16 %v1258, %v1251
        %v1273 = vpack.c.b16 %v1259, %v1252
        %v1274 = vpack.c.b16 %v1260, %v1253
        %v1288 = vsel %vm702, %v1267, 0
        %v1291 = vsel %vm702, %v1274, 0
        %1293 = vmatprep.subr.bf16.mxu0 0
        %1294 = vmatpush1.bf16.msra.mxu0 %v602
        %1295 = vmatprep.subr.bf16.mxu0 0
        %1296 = vmatpush1.bf16.msra.mxu0 %v603
        %1297 = vmatprep.subr.bf16.mxu0 0
        %1298 = vmatpush1.bf16.msra.mxu0 %v604
        %1299 = vmatprep.subr.bf16.mxu0 0
        %1300 = vmatpush1.bf16.msra.mxu0 %v605
        %1301 = vmatprep.subr.bf16.mxu0 0
        %1302 = vmatpush1.bf16.msra.mxu0 %v606
        %1303 = vmatprep.subr.bf16.mxu0 0
        %1304 = vmatpush1.bf16.msra.mxu0 %v607
        %1305 = vmatprep.subr.bf16.mxu0 0
        %1306 = vmatpush1.bf16.msra.mxu0 %v608
        %1307 = vmatprep.subr.bf16.mxu0 0
        %1308 = vmatpush1.bf16.msra.mxu0 %v609
        %1309 = vmatprep.subr.bf16.mxu0 0
        %1310 = vmatpush1.bf16.msra.mxu0 %v610
        %1311 = vmatprep.subr.bf16.mxu0 0
        %1312 = vmatpush1.bf16.msra.mxu0 %v611
        %1313 = vmatprep.subr.bf16.mxu0 0
        %1314 = vmatpush1.bf16.msra.mxu0 %v612
        %1315 = vmatprep.subr.bf16.mxu0 0
        %1316 = vmatpush1.bf16.msra.mxu0 %v613
        %1317 = vmatprep.subr.bf16.mxu0 0
        %1318 = vmatpush1.bf16.msra.mxu0 %v614
        %1319 = vmatprep.subr.bf16.mxu0 0
        %1320 = vmatpush1.bf16.msra.mxu0 %v615
        %1321 = vmatprep.subr.bf16.mxu0 0
        %1322 = vmatpush1.bf16.msra.mxu0 %v616
        %1323 = vmatprep.subr.bf16.mxu0 0
        %1324 = vmatpush1.bf16.msra.mxu0 %v617
        %1325 = vmatprep.mubr.bf16.mxu0 %v1262
        %1326 = vmatmul.mubr.bf16.gmra.mrb[0].mxu0 %v1261
        %v1327 = vpop.f32.mrb[0].mxu0
        %v1328 = vadd.f32 0.0, %v1327
        %v1329 = vpop.f32.mrb[0].mxu0
        %v1330 = vpop.f32.mrb[0].mxu0
        %v1331 = vadd.f32 0.0, %v1330
        %v1332 = vpop.f32.mrb[0].mxu0
        %1333 = vmatprep.mubr.bf16.mxu0 %v1269
        %1334 = vmatmul.mubr.bf16.gmra.mrb[0].mxu0 %v1268
        %v1335 = vpop.f32.mrb[0].mxu0
        %v1336 = vadd.f32 0.0, %v1335
        %v1337 = vpop.f32.mrb[0].mxu0
        %v1338 = vpop.f32.mrb[0].mxu0
        %v1339 = vadd.f32 0.0, %v1338
        %v1340 = vpop.f32.mrb[0].mxu0
        %1341 = vdwg.mxu0
        %1342 = vmatprep.subr.bf16.mxu0 0
        %1343 = vmatpush1.bf16.msra.mxu0 %v618
        %1344 = vmatprep.subr.bf16.mxu0 0
        %1345 = vmatpush1.bf16.msra.mxu0 %v619
        %1346 = vmatprep.subr.bf16.mxu0 0
        %1347 = vmatpush1.bf16.msra.mxu0 %v620
        %1348 = vmatprep.subr.bf16.mxu0 0
        %1349 = vmatpush1.bf16.msra.mxu0 %v621
        %1350 = vmatprep.subr.bf16.mxu0 0
        %1351 = vmatpush1.bf16.msra.mxu0 %v622
        %1352 = vmatprep.subr.bf16.mxu0 0
        %1353 = vmatpush1.bf16.msra.mxu0 %v623
        %1354 = vmatprep.subr.bf16.mxu0 0
        %1355 = vmatpush1.bf16.msra.mxu0 %v624
        %1356 = vmatprep.subr.bf16.mxu0 0
        %1357 = vmatpush1.bf16.msra.mxu0 %v625
        %1358 = vmatprep.subr.bf16.mxu0 0
        %1359 = vmatpush1.bf16.msra.mxu0 %v626
        %1360 = vmatprep.subr.bf16.mxu0 0
        %1361 = vmatpush1.bf16.msra.mxu0 %v627
        %1362 = vmatprep.subr.bf16.mxu0 0
        %1363 = vmatpush1.bf16.msra.mxu0 %v628
        %1364 = vmatprep.subr.bf16.mxu0 0
        %1365 = vmatpush1.bf16.msra.mxu0 %v629
        %1366 = vmatprep.subr.bf16.mxu0 0
        %1367 = vmatpush1.bf16.msra.mxu0 %v630
        %1368 = vmatprep.subr.bf16.mxu0 0
        %1369 = vmatpush1.bf16.msra.mxu0 %v631
        %1370 = vmatprep.subr.bf16.mxu0 0
        %1371 = vmatpush1.bf16.msra.mxu0 %v632
        %1372 = vmatprep.subr.bf16.mxu0 0
        %1373 = vmatpush1.bf16.msra.mxu0 %v633
        %1374 = vmatprep.mubr.bf16.mxu0 %v1264
        %1375 = vmatmul.mubr.bf16.gmra.mrb[0].mxu0 %v1263
        %v1376 = vpop.f32.mrb[0].mxu0
        %v1377 = vadd.f32 %v1328, %v1376
        %v1378 = vpop.f32.mrb[0].mxu0
        %v1379 = vpop.f32.mrb[0].mxu0
        %v1380 = vadd.f32 %v1331, %v1379
        %v1381 = vpop.f32.mrb[0].mxu0
        %1382 = vmatprep.mubr.bf16.mxu0 %v1271
        %1383 = vmatmul.mubr.bf16.gmra.mrb[0].mxu0 %v1270
        %v1384 = vpop.f32.mrb[0].mxu0
        %v1385 = vadd.f32 %v1336, %v1384
        %v1386 = vpop.f32.mrb[0].mxu0
        %v1387 = vpop.f32.mrb[0].mxu0
        %v1388 = vadd.f32 %v1339, %v1387
        %v1389 = vpop.f32.mrb[0].mxu0
        %1390 = vdwg.mxu0
        %1391 = vmatprep.subr.bf16.mxu0 0
        %1392 = vmatpush1.bf16.msra.mxu0 %v634
        %1393 = vmatprep.subr.bf16.mxu0 0
        %1394 = vmatpush1.bf16.msra.mxu0 %v635
        %1395 = vmatprep.subr.bf16.mxu0 0
        %1396 = vmatpush1.bf16.msra.mxu0 %v636
        %1397 = vmatprep.subr.bf16.mxu0 0
        %1398 = vmatpush1.bf16.msra.mxu0 %v637
        %1399 = vmatprep.subr.bf16.mxu0 0
        %1400 = vmatpush1.bf16.msra.mxu0 %v638
        %1401 = vmatprep.subr.bf16.mxu0 0
        %1402 = vmatpush1.bf16.msra.mxu0 %v639
        %1403 = vmatprep.subr.bf16.mxu0 0
        %1404 = vmatpush1.bf16.msra.mxu0 %v640
        %1405 = vmatprep.subr.bf16.mxu0 0
        %1406 = vmatpush1.bf16.msra.mxu0 %v641
        %1407 = vmatprep.subr.bf16.mxu0 0
        %1408 = vmatpush1.bf16.msra.mxu0 %v642
        %1409 = vmatprep.subr.bf16.mxu0 0
        %1410 = vmatpush1.bf16.msra.mxu0 %v643
        %1411 = vmatprep.subr.bf16.mxu0 0
        %1412 = vmatpush1.bf16.msra.mxu0 %v644
        %1413 = vmatprep.subr.bf16.mxu0 0
        %1414 = vmatpush1.bf16.msra.mxu0 %v645
        %1415 = vmatprep.subr.bf16.mxu0 0
        %1416 = vmatpush1.bf16.msra.mxu0 %v646
        %1417 = vmatprep.subr.bf16.mxu0 0
        %1418 = vmatpush1.bf16.msra.mxu0 %v647
        %1419 = vmatprep.subr.bf16.mxu0 0
        %1420 = vmatpush1.bf16.msra.mxu0 %v648
        %1421 = vmatprep.subr.bf16.mxu0 0
        %1422 = vmatpush1.bf16.msra.mxu0 %v649
        %1423 = vmatprep.mubr.bf16.mxu0 %v1266
        %1424 = vmatmul.mubr.bf16.gmra.mrb[0].mxu0 %v1265
        %v1425 = vpop.f32.mrb[0].mxu0
        %v1426 = vadd.f32 %v1377, %v1425
        %v1427 = vpop.f32.mrb[0].mxu0
        %v1428 = vpop.f32.mrb[0].mxu0
        %v1429 = vadd.f32 %v1380, %v1428
        %v1430 = vpop.f32.mrb[0].mxu0
        %1431 = vmatprep.mubr.bf16.mxu0 %v1273
        %1432 = vmatmul.mubr.bf16.gmra.mrb[0].mxu0 %v1272
        %v1433 = vpop.f32.mrb[0].mxu0
        %v1434 = vadd.f32 %v1385, %v1433
        %v1435 = vpop.f32.mrb[0].mxu0
        %v1436 = vpop.f32.mrb[0].mxu0
        %v1437 = vadd.f32 %v1388, %v1436
        %v1438 = vpop.f32.mrb[0].mxu0
        %1439 = vdwg.mxu0
        %1440 = vmatprep.subr.bf16.mxu0 0
        %1441 = vmatpush1.bf16.msra.mxu0 %v650
        %1442 = vmatprep.subr.bf16.mxu0 0
        %1443 = vmatpush1.bf16.msra.mxu0 %v651
        %1444 = vmatprep.subr.bf16.mxu0 0
        %1445 = vmatpush1.bf16.msra.mxu0 0
        %1446 = vmatprep.subr.bf16.mxu0 0
        %1447 = vmatpush1.bf16.msra.mxu0 0
        %1448 = vmatprep.subr.bf16.mxu0 0
        %1449 = vmatpush1.bf16.msra.mxu0 0
        %1450 = vmatprep.subr.bf16.mxu0 0
        %1451 = vmatpush1.bf16.msra.mxu0 0
        %1452 = vmatprep.subr.bf16.mxu0 0
        %1453 = vmatpush1.bf16.msra.mxu0 0
        %1454 = vmatprep.subr.bf16.mxu0 0
        %1455 = vmatpush1.bf16.msra.mxu0 0
        %1456 = vmatprep.subr.bf16.mxu0 0
        %1457 = vmatpush1.bf16.msra.mxu0 0
        %1458 = vmatprep.subr.bf16.mxu0 0
        %1459 = vmatpush1.bf16.msra.mxu0 0
        %1460 = vmatprep.subr.bf16.mxu0 0
        %1461 = vmatpush1.bf16.msra.mxu0 0
        %1462 = vmatprep.subr.bf16.mxu0 0
        %1463 = vmatpush1.bf16.msra.mxu0 0
        %1464 = vmatprep.subr.bf16.mxu0 0
        %1465 = vmatpush1.bf16.msra.mxu0 0
        %1466 = vmatprep.subr.bf16.mxu0 0
        %1467 = vmatpush1.bf16.msra.mxu0 0
        %1468 = vmatprep.subr.bf16.mxu0 0
        %1469 = vmatpush1.bf16.msra.mxu0 0
        %1470 = vmatprep.subr.bf16.mxu0 0
        %1471 = vmatpush1.bf16.msra.mxu0 0
        %1472 = vmatprep.mubr.bf16.mxu0 0
        %1473 = vmatmul.mubr.bf16.gmra.mrb[0].mxu0 %v1288
        %v1474 = vpop.f32.mrb[0].mxu0
        %v1475 = vadd.f32 %v1426, %v1474
        %v1476 = vpop.f32.mrb[0].mxu0
        %v1477 = vpop.f32.mrb[0].mxu0
        %v1478 = vadd.f32 %v1429, %v1477
        %v1479 = vpop.f32.mrb[0].mxu0
        %1480 = vmatprep.mubr.bf16.mxu0 0
        %1481 = vmatmul.mubr.bf16.gmra.mrb[0].mxu0 %v1291
        %v1482 = vpop.f32.mrb[0].mxu0
        %v1483 = vadd.f32 %v1434, %v1482
        %v1484 = vpop.f32.mrb[0].mxu0
        %v1485 = vpop.f32.mrb[0].mxu0
        %v1486 = vadd.f32 %v1437, %v1485
        %v1487 = vpop.f32.mrb[0].mxu0
        %1488 = vdwg.mxu0
        %v1489 = vmax.f32 %v891, %v1183
        %v1490 = vmax.f32 %v894, %v1186
        %v1491 = vmax.f32 %v899, %v1191
        %v1492 = vmax.f32 %v902, %v1194
        %v1493 = vmax.f32 %v1489, %v1475
        %v1494 = vmax.f32 %v1490, %v1478
        %v1495 = vmax.f32 %v1491, %v1483
        %v1496 = vmax.f32 %v1492, %v1486
        %vm1499 = vcmask 1045504
        %v1500 = vrot.slane %v1494, 2
        %v1501 = vrot.slane %v1495, 2
        %v1502 = vsel %vm1499, %v1500, %v1501
        %v1505 = vmax.f32 %v1493, %v1502
        %v1506 = vmax.f32 %v1494, %v1501
        %vm1508 = vcmask 1043456
        %v1509 = vrot.slane %v1495, 4
        %v1510 = vrot.slane %v1496, 4
        %v1511 = vsel %vm1508, %v1509, %v1510
        %v1514 = vmax.f32 %v1505, %v1511
        %v1515 = vmax.f32 %v1506, %v1510
        %v1516 = vadd.f32 %v1514, %v202
        %v1517 = vadd.f32 %v1515, %v202
        %v1518 = vmax.f32 %v1516, 0.0
        %v1519 = vmax.f32 %v1517, 0.0
        %v1520 = vpack.c.bf16 %v1519, %v1518
        %v1522 = vunpack.c.l.b16 %v1520
        %v1523 = vunpack.c.h.b16 %v1520
        %v1524 = vpack.c.b16 %v1522, %v1522
        %v1525 = vpack.c.b16 %v1523, %v1523
        %s1528 = smul.u32 %s205, 2
        %s1529 = smul.addr %s1528, 4
        %s1530 = scalar_lea.vmem %s194, %s1529
        %vm1531 = vcmask 519168
        %1532 = vst.msk [vmem:[%s1530] sm:$0xf] %vm1531, %v1524
        %vm1533 = vcmask 516096
        %1534 = vst.msk [vmem:[%s1530 + $0x4] sm:$0x1] %vm1533, %v1525
      $region37: #{leafnet_forward.4} parent=31 // loop_footer
        %s209 = sadd.s32 1, %s205
      $region38: #{leafnet_forward.4} parent=31 // loop_footer_branch
        %204 = sbr.rel target = $region34
      $region39: #{leafnet_forward.4} parent=31 // loop_exit
        _
      %s1535 = smul.u32 5, %s19
      %p1536 = scmp.lt.s32.totalorder %s18, 1
      %s1537 = scalar_select %p1536, %s18, 1
      %p1538 = scmp.lt.s32.totalorder %s1535, 9
      %s1539 = scalar_select %p1538, %s1535, 9
      %s1540 = smul.addr %s1539, 2
      %s1541 = smul.addr %s1537, 20
      %s1542 = sadd.s32 %s1540, %s1541
      %s1543 = smul.addr %s1542, 4
      %s1544 = scalar_lea.vmem %s3, %s1543
      // Predicated region
      $region40: #{leafnet_forward.4} parent=31 // pred_check
        %p1545 = pneg %p114
      $region41: #{leafnet_forward.4} parent=31 // pred_check_branch
        %1547 = sbr.rel (%p1545) target = $region43
      $region42: #{leafnet_forward.4} parent=31 // pred_region
        %s1548 = smul.u32 5, %s19
      $region43: #{leafnet_forward.4} parent=31 // pred_fallthru
        _
    $region32: #{leafnet_forward.4} parent=5 // pred_fallthru
      _
    %p1549 = scmp.le.s32.totalorder 2, %s9
    // Predicated region
    $region44: #{leafnet_forward.4} parent=5 // pred_check
      %p1550 = pneg %p1549
    $region45: #{leafnet_forward.4} parent=5 // pred_check_branch
      %1552 = sbr.rel (%p1550) target = $region47
    $region46: #{leafnet_forward.4} parent=5 // pred_region
      %s1553 = ssub.s32 %s9, 2
      // Predicated region
      $region48: #{leafnet_forward.4} parent=46 // pred_check
        %p1554 = pneg %p120
      $region49: #{leafnet_forward.4} parent=46 // pred_check_branch
        %1556 = sbr.rel (%p1554) target = $region51
      $region50: #{leafnet_forward.4} parent=46 // pred_region
        %s1557 = smul.u32 5, %s21
        %p1558 = scmp.lt.s32.totalorder %s20, 1
        %s1559 = scalar_select %p1558, %s20, 1
        %p1560 = scmp.lt.s32.totalorder %s1557, 9
        %s1561 = scalar_select %p1560, %s1557, 9
        %s1562 = smul.addr %s1561, 2
        %s1563 = smul.addr %s1559, 20
        %s1564 = sadd.s32 %s1562, %s1563
        %s1565 = smul.addr %s1564, 4
        %s1566 = scalar_lea.vmem %s3, %s1565
      $region51: #{leafnet_forward.4} parent=46 // pred_fallthru
        _
    $region47: #{leafnet_forward.4} parent=5 // pred_fallthru
      _
  $region6: #{leafnet_forward.4} parent=0 // loop_footer
    %s13 = sadd.s32 1, %s9
  $region7: #{leafnet_forward.4} parent=0 // loop_footer_branch
    %8 = sbr.rel target = $region3
  $region8: #{leafnet_forward.4} parent=0 // loop_exit
    _

// kernel: leafnet_forward.5
$region0: #{leafnet_forward.5}
  #allocation0 [shape = 'u32[]', space=smem, size = 0x4, offset = 0x4, fixed_abs, tag = 'smem constant byte address 0x4 - core index']
  #allocation1 [shape = 'u32[144,128]{1,0:T(1,128)}', space=vmem, size = 0x12000, scoped, tag = 'internal scratch']
  %s0 = inlined_call_operand.vmem [shape: bf16[2,10,8,192], index: 0, kind: input, shape index: {}]
  %s1 = inlined_call_operand.vmem [shape: bf16[3,192,128], index: 1, kind: input, shape index: {}]
  %s2 = inlined_call_operand.vmem [shape: f32[1,128], index: 2, kind: input, shape index: {}]
  %s3 = inlined_call_operand.vmem [shape: bf16[3,3,128,128], index: 3, kind: input, shape index: {}]
  %s4 = inlined_call_operand.vmem [shape: f32[1,128], index: 4, kind: input, shape index: {}]
  %s5 = inlined_call_operand.vmem [shape: bf16[128,128], index: 5, kind: input, shape index: {}]
  %s6 = inlined_call_operand.vmem [shape: f32[1,128], index: 6, kind: input, shape index: {}]
  %s7 = inlined_call_operand.vmem [shape: bf16[128,10], index: 7, kind: input, shape index: {}]
  %s8 = inlined_call_operand.vmem [shape: f32[1,10], index: 8, kind: input, shape index: {}]
  %s9 = inlined_call_operand.hbm [shape: f32[2,1,10], index: 9, kind: output, shape index: {}]
  %s10 = sld [smem:[#allocation0]]
  $region69: #{leafnet_forward.5} parent=0
    _
  %s12 = ssub.s32 1, %s10
  %s13 = scalar_select 0, %s12, %s10
  $region1: #{leafnet_forward.5} parent=0
    #allocation2 [shape = 'u8[1024]{0}', space=vmem, size = 0x400, scoped, tag = 'output window, operand 0']
    #allocation3 [shape = 's32[2]{0}', space=sflag, size = 0x8, scoped, tag = 'scoped memory for leafnet_forward.5']
    %14 = vsyncpa [#allocation3], 0
    %s15 = scalar_lea.sflag [#allocation3], 1
    %16 = vsyncpa %s15, 0
    loop: start=0, step=1, limit=4
    $region2: #{leafnet_forward.5} parent=1 // loop_pre_header
      _
    $region3: #{leafnet_forward.5} parent=1 // loop_header
      %s18 = sphi 0, %s22
      %p19 = scmp.ge.s32.totalorder %s18, 4
      %s28 = sphi 0, %s30
      %s31 = sphi 0, %s28
      %s32 = sphi 0, %s31
      %s48 = sphi 0, %s32
      %s52 = sphi 0, %s52
      %s54 = sphi 0, %s52
      %s55 = sphi 0, %s54
      %s69 = sphi 0, %s55
      %s73 = sphi 0, %s73
      %s75 = sphi 0, %s73
      %s76 = sphi 0, %s75
      %s90 = sphi 0, %s76
      %s94 = sphi 0, %s94
      %s96 = sphi 0, %s94
      %s97 = sphi 0, %s96
      %s111 = sphi 0, %s97
      %s115 = sphi 0, %s115
      %s117 = sphi 0, %s115
      %s118 = sphi 0, %s117
      %s132 = sphi 0, %s118
      %s136 = sphi 0, %s136
      %s138 = sphi 0, %s136
      %s139 = sphi 0, %s138
      %s153 = sphi 0, %s139
      %s157 = sphi 0, %s157
      %s159 = sphi 0, %s157
      %s160 = sphi 0, %s159
      %s174 = sphi 0, %s160
      %s178 = sphi 0, %s178
      %s180 = sphi 0, %s178
      %s181 = sphi 0, %s180
      %s195 = sphi 0, %s181
      %s199 = sphi 0, %s199
      %s201 = sphi 0, %s199
      %s202 = sphi 0, %s201
      %s216 = sphi 0, %s202
      %s222 = sphi 0, %s224
      %s225 = sphi 0, %s222
      %s226 = sphi 0, %s225
      %s242 = sphi 0, %s226
    $region4: #{leafnet_forward.5} parent=1 // loop_header_branch
      %21 = sbr.rel (%p19) target = $region8
    $region5: #{leafnet_forward.5} parent=1 // loop_body
      %s23 = ssub.s32 %s18, 1
      %s24 = ssub.s32 %s18, 2
      %s25 = sadd.s32 %s18, 1
      %s26 = ssub.s32 %s18, %s25
      %p27 = scmp.eq.s32.totalorder %s26, 0
      %s29 = sadd.s32 %s28, 1
      %s30 = scalar_select %p27, %s28, %s29
      %p33 = pneg %p27
      %p34 = scmp.eq.s32.totalorder %s18, 1
      %p35 = por %p33, %p34
      %p36 = scmp.ne.s32.totalorder %s28, %s31
      %p37 = scmp.eq.s32.totalorder %s18, 0
      %p38 = por %p36, %p37
      %p39 = scmp.ne.s32.totalorder %s28, %s31
      %p40 = scmp.eq.s32.totalorder %s23, 1
      %p41 = por %p39, %p40
      %p42 = scmp.ne.s32.totalorder %s31, %s32
      %p43 = scmp.eq.s32.totalorder %s23, 0
      %p44 = por %p42, %p43
      %p45 = scmp.ne.s32.totalorder %s31, %s32
      %p46 = scmp.eq.s32.totalorder %s24, 1
      %p47 = por %p45, %p46
      %p49 = scmp.ne.s32.totalorder %s32, %s48
      %p50 = scmp.eq.s32.totalorder %s24, 0
      %p51 = por %p49, %p50
      %s53 = sadd.s32 %s52, 1
      %p56 = scmp.eq.s32.totalorder %s18, 1
      %p57 = scmp.ne.s32.totalorder %s52, %s54
      %p58 = scmp.eq.s32.totalorder %s18, 0
      %p59 = por %p57, %p58
      %p60 = scmp.ne.s32.totalorder %s52, %s54
      %p61 = scmp.eq.s32.totalorder %s23, 1
      %p62 = por %p60, %p61
      %p63 = scmp.ne.s32.totalorder %s54, %s55
      %p64 = scmp.eq.s32.totalorder %s23, 0
      %p65 = por %p63, %p64
      %p66 = scmp.ne.s32.totalorder %s54, %s55
      %p67 = scmp.eq.s32.totalorder %s24, 1
      %p68 = por %p66, %p67
      %p70 = scmp.ne.s32.totalorder %s55, %s69
      %p71 = scmp.eq.s32.totalorder %s24, 0
      %p72 = por %p70, %p71
      %s74 = sadd.s32 %s73, 1
      %p77 = scmp.eq.s32.totalorder %s18, 1
      %p78 = scmp.ne.s32.totalorder %s73, %s75
      %p79 = scmp.eq.s32.totalorder %s18, 0
      %p80 = por %p78, %p79
      %p81 = scmp.ne.s32.totalorder %s73, %s75
      %p82 = scmp.eq.s32.totalorder %s23, 1
      %p83 = por %p81, %p82
      %p84 = scmp.ne.s32.totalorder %s75, %s76
      %p85 = scmp.eq.s32.totalorder %s23, 0
      %p86 = por %p84, %p85
      %p87 = scmp.ne.s32.totalorder %s75, %s76
      %p88 = scmp.eq.s32.totalorder %s24, 1
      %p89 = por %p87, %p88
      %p91 = scmp.ne.s32.totalorder %s76, %s90
      %p92 = scmp.eq.s32.totalorder %s24, 0
      %p93 = por %p91, %p92
      %s95 = sadd.s32 %s94, 1
      %p98 = scmp.eq.s32.totalorder %s18, 1
      %p99 = scmp.ne.s32.totalorder %s94, %s96
      %p100 = scmp.eq.s32.totalorder %s18, 0
      %p101 = por %p99, %p100
      %p102 = scmp.ne.s32.totalorder %s94, %s96
      %p103 = scmp.eq.s32.totalorder %s23, 1
      %p104 = por %p102, %p103
      %p105 = scmp.ne.s32.totalorder %s96, %s97
      %p106 = scmp.eq.s32.totalorder %s23, 0
      %p107 = por %p105, %p106
      %p108 = scmp.ne.s32.totalorder %s96, %s97
      %p109 = scmp.eq.s32.totalorder %s24, 1
      %p110 = por %p108, %p109
      %p112 = scmp.ne.s32.totalorder %s97, %s111
      %p113 = scmp.eq.s32.totalorder %s24, 0
      %p114 = por %p112, %p113
      %s116 = sadd.s32 %s115, 1
      %p119 = scmp.eq.s32.totalorder %s18, 1
      %p120 = scmp.ne.s32.totalorder %s115, %s117
      %p121 = scmp.eq.s32.totalorder %s18, 0
      %p122 = por %p120, %p121
      %p123 = scmp.ne.s32.totalorder %s115, %s117
      %p124 = scmp.eq.s32.totalorder %s23, 1
      %p125 = por %p123, %p124
      %p126 = scmp.ne.s32.totalorder %s117, %s118
      %p127 = scmp.eq.s32.totalorder %s23, 0
      %p128 = por %p126, %p127
      %p129 = scmp.ne.s32.totalorder %s117, %s118
      %p130 = scmp.eq.s32.totalorder %s24, 1
      %p131 = por %p129, %p130
      %p133 = scmp.ne.s32.totalorder %s118, %s132
      %p134 = scmp.eq.s32.totalorder %s24, 0
      %p135 = por %p133, %p134
      %s137 = sadd.s32 %s136, 1
      %p140 = scmp.eq.s32.totalorder %s18, 1
      %p141 = scmp.ne.s32.totalorder %s136, %s138
      %p142 = scmp.eq.s32.totalorder %s18, 0
      %p143 = por %p141, %p142
      %p144 = scmp.ne.s32.totalorder %s136, %s138
      %p145 = scmp.eq.s32.totalorder %s23, 1
      %p146 = por %p144, %p145
      %p147 = scmp.ne.s32.totalorder %s138, %s139
      %p148 = scmp.eq.s32.totalorder %s23, 0
      %p149 = por %p147, %p148
      %p150 = scmp.ne.s32.totalorder %s138, %s139
      %p151 = scmp.eq.s32.totalorder %s24, 1
      %p152 = por %p150, %p151
      %p154 = scmp.ne.s32.totalorder %s139, %s153
      %p155 = scmp.eq.s32.totalorder %s24, 0
      %p156 = por %p154, %p155
      %s158 = sadd.s32 %s157, 1
      %p161 = scmp.eq.s32.totalorder %s18, 1
      %p162 = scmp.ne.s32.totalorder %s157, %s159
      %p163 = scmp.eq.s32.totalorder %s18, 0
      %p164 = por %p162, %p163
      %p165 = scmp.ne.s32.totalorder %s157, %s159
      %p166 = scmp.eq.s32.totalorder %s23, 1
      %p167 = por %p165, %p166
      %p168 = scmp.ne.s32.totalorder %s159, %s160
      %p169 = scmp.eq.s32.totalorder %s23, 0
      %p170 = por %p168, %p169
      %p171 = scmp.ne.s32.totalorder %s159, %s160
      %p172 = scmp.eq.s32.totalorder %s24, 1
      %p173 = por %p171, %p172
      %p175 = scmp.ne.s32.totalorder %s160, %s174
      %p176 = scmp.eq.s32.totalorder %s24, 0
      %p177 = por %p175, %p176
      %s179 = sadd.s32 %s178, 1
      %p182 = scmp.eq.s32.totalorder %s18, 1
      %p183 = scmp.ne.s32.totalorder %s178, %s180
      %p184 = scmp.eq.s32.totalorder %s18, 0
      %p185 = por %p183, %p184
      %p186 = scmp.ne.s32.totalorder %s178, %s180
      %p187 = scmp.eq.s32.totalorder %s23, 1
      %p188 = por %p186, %p187
      %p189 = scmp.ne.s32.totalorder %s180, %s181
      %p190 = scmp.eq.s32.totalorder %s23, 0
      %p191 = por %p189, %p190
      %p192 = scmp.ne.s32.totalorder %s180, %s181
      %p193 = scmp.eq.s32.totalorder %s24, 1
      %p194 = por %p192, %p193
      %p196 = scmp.ne.s32.totalorder %s181, %s195
      %p197 = scmp.eq.s32.totalorder %s24, 0
      %p198 = por %p196, %p197
      %s200 = sadd.s32 %s199, 1
      %p203 = scmp.eq.s32.totalorder %s18, 1
      %p204 = scmp.ne.s32.totalorder %s199, %s201
      %p205 = scmp.eq.s32.totalorder %s18, 0
      %p206 = por %p204, %p205
      %p207 = scmp.ne.s32.totalorder %s199, %s201
      %p208 = scmp.eq.s32.totalorder %s23, 1
      %p209 = por %p207, %p208
      %p210 = scmp.ne.s32.totalorder %s201, %s202
      %p211 = scmp.eq.s32.totalorder %s23, 0
      %p212 = por %p210, %p211
      %p213 = scmp.ne.s32.totalorder %s201, %s202
      %p214 = scmp.eq.s32.totalorder %s24, 1
      %p215 = por %p213, %p214
      %p217 = scmp.ne.s32.totalorder %s202, %s216
      %p218 = scmp.eq.s32.totalorder %s24, 0
      %p219 = por %p217, %p218
      %s220 = ssub.s32 %s18, %s25
      %p221 = scmp.eq.s32.totalorder %s220, 0
      %s223 = sadd.s32 %s222, 1
      %s224 = scalar_select %p221, %s222, %s223
      %p227 = pneg %p221
      %p228 = scmp.eq.s32.totalorder %s18, 1
      %p229 = por %p227, %p228
      %p230 = scmp.ne.s32.totalorder %s222, %s225
      %p231 = scmp.eq.s32.totalorder %s18, 0
      %p232 = por %p230, %p231
      %p233 = scmp.ne.s32.totalorder %s222, %s225
      %p234 = scmp.eq.s32.totalorder %s23, 1
      %p235 = por %p233, %p234
      %p236 = scmp.ne.s32.totalorder %s225, %s226
      %p237 = scmp.eq.s32.totalorder %s23, 0
      %p238 = por %p236, %p237
      %p239 = scmp.ne.s32.totalorder %s225, %s226
      %p240 = scmp.eq.s32.totalorder %s24, 1
      %p241 = por %p239, %p240
      %p243 = scmp.ne.s32.totalorder %s226, %s242
      %p244 = scmp.eq.s32.totalorder %s24, 0
      %p245 = por %p243, %p244
      %p246 = scmp.le.s32.totalorder 1, %s18
      %p247 = scmp.lt.s32.totalorder %s18, 3
      %p248 = pnand %p246, %p247
      %p249 = pneg %p248
      // Predicated region
      $region9: #{leafnet_forward.5} parent=5 // pred_check
        _
      $region10: #{leafnet_forward.5} parent=5 // pred_check_branch
        %251 = sbr.rel (%p248) target = $region12
      $region11: #{leafnet_forward.5} parent=5 // pred_region
        %s252 = ssub.s32 %s18, 1
        // Predicated region
        $region13: #{leafnet_forward.5} parent=11 // pred_check
          %p253 = pneg %p65
        $region14: #{leafnet_forward.5} parent=11 // pred_check_branch
          %255 = sbr.rel (%p253) target = $region16
        $region15: #{leafnet_forward.5} parent=11 // pred_region
          _
        $region16: #{leafnet_forward.5} parent=11 // pred_fallthru
          _
        // Predicated region
        $region17: #{leafnet_forward.5} parent=11 // pred_check
          %p256 = pneg %p86
        $region18: #{leafnet_forward.5} parent=11 // pred_check_branch
          %258 = sbr.rel (%p256) target = $region20
        $region19: #{leafnet_forward.5} parent=11 // pred_region
          _
        $region20: #{leafnet_forward.5} parent=11 // pred_fallthru
          _
        // Predicated region
        $region21: #{leafnet_forward.5} parent=11 // pred_check
          %p259 = pneg %p107
        $region22: #{leafnet_forward.5} parent=11 // pred_check_branch
          %261 = sbr.rel (%p259) target = $region24
        $region23: #{leafnet_forward.5} parent=11 // pred_region
          _
        $region24: #{leafnet_forward.5} parent=11 // pred_fallthru
          _
        // Predicated region
        $region25: #{leafnet_forward.5} parent=11 // pred_check
          %p262 = pneg %p128
        $region26: #{leafnet_forward.5} parent=11 // pred_check_branch
          %264 = sbr.rel (%p262) target = $region28
        $region27: #{leafnet_forward.5} parent=11 // pred_region
          _
        $region28: #{leafnet_forward.5} parent=11 // pred_fallthru
          _
        // Predicated region
        $region29: #{leafnet_forward.5} parent=11 // pred_check
          %p265 = pneg %p149
        $region30: #{leafnet_forward.5} parent=11 // pred_check_branch
          %267 = sbr.rel (%p265) target = $region32
        $region31: #{leafnet_forward.5} parent=11 // pred_region
          _
        $region32: #{leafnet_forward.5} parent=11 // pred_fallthru
          _
        // Predicated region
        $region33: #{leafnet_forward.5} parent=11 // pred_check
          %p268 = pneg %p170
        $region34: #{leafnet_forward.5} parent=11 // pred_check_branch
          %270 = sbr.rel (%p268) target = $region36
        $region35: #{leafnet_forward.5} parent=11 // pred_region
          _
        $region36: #{leafnet_forward.5} parent=11 // pred_fallthru
          _
        // Predicated region
        $region37: #{leafnet_forward.5} parent=11 // pred_check
          %p271 = pneg %p191
        $region38: #{leafnet_forward.5} parent=11 // pred_check_branch
          %273 = sbr.rel (%p271) target = $region40
        $region39: #{leafnet_forward.5} parent=11 // pred_region
          _
        $region40: #{leafnet_forward.5} parent=11 // pred_fallthru
          _
        // Predicated region
        $region41: #{leafnet_forward.5} parent=11 // pred_check
          %p274 = pneg %p212
        $region42: #{leafnet_forward.5} parent=11 // pred_check_branch
          %276 = sbr.rel (%p274) target = $region44
        $region43: #{leafnet_forward.5} parent=11 // pred_region
          _
        $region44: #{leafnet_forward.5} parent=11 // pred_fallthru
          _
      $region12: #{leafnet_forward.5} parent=5 // pred_fallthru
        _
      %p277 = scmp.lt.s32.totalorder %s18, 2
      // Predicated region
      $region45: #{leafnet_forward.5} parent=5 // pred_check
        %p278 = pneg %p277
      $region46: #{leafnet_forward.5} parent=5 // pred_check_branch
        %280 = sbr.rel (%p278) target = $region48
      $region47: #{leafnet_forward.5} parent=5 // pred_region
        // Predicated region
        $region49: #{leafnet_forward.5} parent=47 // pred_check
          %p281 = pneg %p38
        $region50: #{leafnet_forward.5} parent=47 // pred_check_branch
          %283 = sbr.rel (%p281) target = $region52
        $region51: #{leafnet_forward.5} parent=47 // pred_region
          %p284 = scmp.lt.s32.totalorder %s18, 1
          %s285 = scalar_select %p284, %s18, 1
          %s286 = smul.addr %s285, 20
          %s287 = smul.addr %s286, 4
          %s288 = scalar_lea.vmem %s0, %s287
        $region52: #{leafnet_forward.5} parent=47 // pred_fallthru
          _
      $region48: #{leafnet_forward.5} parent=5 // pred_fallthru
        _
      %p289 = scmp.le.s32.totalorder 1, %s18
      %p290 = scmp.lt.s32.totalorder %s18, 3
      %p291 = pnand %p289, %p290
      %p292 = pneg %p291
      // Predicated region
      $region53: #{leafnet_forward.5} parent=5 // pred_check
        _
      $region54: #{leafnet_forward.5} parent=5 // pred_check_branch
        %294 = sbr.rel (%p291) target = $region56
      $region55: #{leafnet_forward.5} parent=5 // pred_region
        %s295 = ssub.s32 %s18, 1
        %p296 = scmp.lt.s32.totalorder %s23, 1
        %s297 = scalar_select %p296, %s23, 1
        %s298 = smul.addr %s297, 20
        %s299 = smul.addr %s298, 4
        %s300 = scalar_lea.vmem %s0, %s299
        %p301 = pneg %p44
        %p302 = pneg %p41
        %p303 = pneg %p65
        %p304 = pneg %p62
        %p305 = pneg %p86
        %p306 = pneg %p83
        %p307 = pneg %p107
        %p308 = pneg %p104
        %p309 = pneg %p128
        %p310 = pneg %p125
        %p311 = pneg %p149
        %p312 = pneg %p146
        %p313 = pneg %p170
        %p314 = pneg %p167
        %p315 = pneg %p191
        %p316 = pneg %p188
        %p317 = pneg %p212
        %p318 = pneg %p209
        %p319 = pneg %p238
        %p320 = pneg %p235
        %s321 = sand.u32 %s225, 1
        %s322 = scalar_lea.sflag [#allocation3], %s321
        %s323 = sand.u32 %s225, 1
        %s324 = scalar_lea.vmem [#allocation2], %s323
        %p325 = scmp.lt.s32.totalorder %s23, 1
        %s326 = scalar_select %p325, %s23, 1
        %s327 = smul.addr %s326, 20
        %s328 = smul.addr %s327, 4
        %s329 = scalar_lea.vmem %s0, %s328
        %v331 = vld [vmem:[%s2] sm:$0x1]
        %v333 = vlaneseq
        %v334 = vshrl.u32 %v333, 7
        %v335 = vsub.s32 0, %v334
        %v336 = vrot.slane %v331, %v335
        %v338 = vld [vmem:[%s4] sm:$0x1]
        %v340 = vlaneseq
        %v341 = vshrl.u32 %v340, 7
        %v342 = vsub.s32 0, %v341
        %v343 = vrot.slane %v338, %v342
        %v345 = vld [vmem:[%s329] sm:$0xff]
        %v346 = vld [vmem:[%s329 + $0x8] sm:$0xff]
        %v347 = vld [vmem:[%s329 + $0x10] sm:$0xff]
        %v348 = vld [vmem:[%s329 + $0x18] sm:$0xff]
        %v349 = vld [vmem:[%s329 + $0x20] sm:$0xff]
        %v350 = vld [vmem:[%s329 + $0x28] sm:$0xff]
        %v351 = vld [vmem:[%s329 + $0x30] sm:$0xff]
        %v352 = vld [vmem:[%s329 + $0x38] sm:$0xff]
        %v353 = vld [vmem:[%s329 + $0x40] sm:$0xff]
        %v354 = vld [vmem:[%s329 + $0x48] sm:$0xff]
        %v355 = vld [vmem:[%s1] sm:$0xf]
        %v356 = vld [vmem:[%s1 + $0x4] sm:$0xf]
        %v357 = vld [vmem:[%s1 + $0x8] sm:$0xf]
        %v358 = vld [vmem:[%s1 + $0xc] sm:$0xf]
        %v359 = vld [vmem:[%s1 + $0x10] sm:$0xf]
        %v360 = vld [vmem:[%s1 + $0x14] sm:$0xf]
        %v361 = vld [vmem:[%s1 + $0x18] sm:$0xf]
        %v362 = vld [vmem:[%s1 + $0x1c] sm:$0xf]
        %v363 = vld [vmem:[%s1 + $0x20] sm:$0xf]
        %v364 = vld [vmem:[%s1 + $0x24] sm:$0xf]
        %v365 = vld [vmem:[%s1 + $0x28] sm:$0xf]
        %v366 = vld [vmem:[%s1 + $0x2c] sm:$0xf]
        %v367 = vld [vmem:[%s1 + $0x30] sm:$0xf]
        %v368 = vld [vmem:[%s1 + $0x34] sm:$0xf]
        %v369 = vld [vmem:[%s1 + $0x38] sm:$0xf]
        %v370 = vld [vmem:[%s1 + $0x3c] sm:$0xf]
        %v371 = vld [vmem:[%s1 + $0x40] sm:$0xf]
        %v372 = vld [vmem:[%s1 + $0x44] sm:$0xf]
        %v373 = vld [vmem:[%s1 + $0x48] sm:$0xf]
        %v374 = vld [vmem:[%s1 + $0x4c] sm:$0xf]
        %v375 = vld [vmem:[%s1 + $0x50] sm:$0xf]
        %v376 = vld [vmem:[%s1 + $0x54] sm:$0xf]
        %v377 = vld [vmem:[%s1 + $0x58] sm:$0xf]
        %v378 = vld [vmem:[%s1 + $0x5c] sm:$0xf]
        %s379 = scalar_lea.vmem %s1, 96
        %v380 = vld [vmem:[%s379] sm:$0xf]
        %v381 = vld [vmem:[%s379 + $0x4] sm:$0xf]
        %v382 = vld [vmem:[%s379 + $0x8] sm:$0xf]
        %v383 = vld [vmem:[%s379 + $0xc] sm:$0xf]
        %v384 = vld [vmem:[%s379 + $0x10] sm:$0xf]
        %v385 = vld [vmem:[%s379 + $0x14] sm:$0xf]
        %v386 = vld [vmem:[%s379 + $0x18] sm:$0xf]
        %v387 = vld [vmem:[%s379 + $0x1c] sm:$0xf]
        %v388 = vld [vmem:[%s379 + $0x20] sm:$0xf]
        %v389 = vld [vmem:[%s379 + $0x24] sm:$0xf]
        %v390 = vld [vmem:[%s379 + $0x28] sm:$0xf]
        %v391 = vld [vmem:[%s379 + $0x2c] sm:$0xf]
        %v392 = vld [vmem:[%s379 + $0x30] sm:$0xf]
        %v393 = vld [vmem:[%s379 + $0x34] sm:$0xf]
        %v394 = vld [vmem:[%s379 + $0x38] sm:$0xf]
        %v395 = vld [vmem:[%s379 + $0x3c] sm:$0xf]
        %v396 = vld [vmem:[%s379 + $0x40] sm:$0xf]
        %v397 = vld [vmem:[%s379 + $0x44] sm:$0xf]
        %v398 = vld [vmem:[%s379 + $0x48] sm:$0xf]
        %v399 = vld [vmem:[%s379 + $0x4c] sm:$0xf]
        %v400 = vld [vmem:[%s379 + $0x50] sm:$0xf]
        %v401 = vld [vmem:[%s379 + $0x54] sm:$0xf]
        %v402 = vld [vmem:[%s379 + $0x58] sm:$0xf]
        %v403 = vld [vmem:[%s379 + $0x5c] sm:$0xf]
        %v405 = vunpack.c.l.b16 %v346
        %v406 = vunpack.c.h.b16 %v346
        %v407 = vpack.c.b16 %v405, %v405
        %v408 = vpack.c.b16 %v406, %v406
        %v434 = vunpack.c.l.b16 %v380
        %v435 = vunpack.c.l.b16 %v381
        %v436 = vunpack.c.l.b16 %v382
        %v437 = vunpack.c.l.b16 %v383
        %v438 = vunpack.c.l.b16 %v384
        %v439 = vunpack.c.l.b16 %v385
        %v440 = vunpack.c.l.b16 %v386
        %v441 = vunpack.c.l.b16 %v387
        %v442 = vunpack.c.l.b16 %v388
        %v443 = vunpack.c.l.b16 %v389
        %v444 = vunpack.c.l.b16 %v390
        %v445 = vunpack.c.l.b16 %v391
        %v446 = vunpack.c.l.b16 %v392
        %v447 = vunpack.c.l.b16 %v393
        %v448 = vunpack.c.l.b16 %v394
        %v449 = vunpack.c.l.b16 %v395
        %v450 = vunpack.c.l.b16 %v396
        %v451 = vunpack.c.l.b16 %v397
        %v452 = vunpack.c.l.b16 %v398
        %v453 = vunpack.c.l.b16 %v399
        %v454 = vunpack.c.l.b16 %v400
        %v455 = vunpack.c.l.b16 %v401
        %v456 = vunpack.c.l.b16 %v402
        %v457 = vunpack.c.l.b16 %v403
        %v458 = vpack.c.b16 %v435, %v434
        %v459 = vpack.c.b16 %v437, %v436
        %v460 = vpack.c.b16 %v439, %v438
        %v461 = vpack.c.b16 %v441, %v440
        %v462 = vpack.c.b16 %v443, %v442
        %v463 = vpack.c.b16 %v445, %v444
        %v464 = vpack.c.b16 %v447, %v446
        %v465 = vpack.c.b16 %v449, %v448
        %v466 = vpack.c.b16 %v451, %v450
        %v467 = vpack.c.b16 %v453, %v452
        %v468 = vpack.c.b16 %v455, %v454
        %v469 = vpack.c.b16 %v457, %v456
        %vm482 = vcmask 523264
        %v484 = vsel %vm482, %v408, 0
        %486 = vmatprep.subr.bf16.mxu0 0
        %487 = vmatpush1.bf16.msra.mxu0 %v458
        %488 = vmatprep.subr.bf16.mxu0 0
        %489 = vmatpush1.bf16.msra.mxu0 %v459
        %490 = vmatprep.subr.bf16.mxu0 0
        %491 = vmatpush1.bf16.msra.mxu0 %v460
        %492 = vmatprep.subr.bf16.mxu0 0
        %493 = vmatpush1.bf16.msra.mxu0 %v461
        %494 = vmatprep.subr.bf16.mxu0 0
        %495 = vmatpush1.bf16.msra.mxu0 %v462
        %496 = vmatprep.subr.bf16.mxu0 0
        %497 = vmatpush1.bf16.msra.mxu0 %v463
        %498 = vmatprep.subr.bf16.mxu0 0
        %499 = vmatpush1.bf16.msra.mxu0 %v464
        %500 = vmatprep.subr.bf16.mxu0 0
        %501 = vmatpush1.bf16.msra.mxu0 %v465
        %502 = vmatprep.subr.bf16.mxu0 0
        %503 = vmatpush1.bf16.msra.mxu0 %v466
        %504 = vmatprep.subr.bf16.mxu0 0
        %505 = vmatpush1.bf16.msra.mxu0 %v467
        %506 = vmatprep.subr.bf16.mxu0 0
        %507 = vmatpush1.bf16.msra.mxu0 %v468
        %508 = vmatprep.subr.bf16.mxu0 0
        %509 = vmatpush1.bf16.msra.mxu0 %v469
        %510 = vmatprep.subr.bf16.mxu0 0
        %511 = vmatpush1.bf16.msra.mxu0 0
        %512 = vmatprep.subr.bf16.mxu0 0
        %513 = vmatpush1.bf16.msra.mxu0 0
        %514 = vmatprep.subr.bf16.mxu0 0
        %515 = vmatpush1.bf16.msra.mxu0 0
        %516 = vmatprep.subr.bf16.mxu0 0
        %517 = vmatpush1.bf16.msra.mxu0 0
        %518 = vmatprep.mubr.bf16.mxu0 %v484
        %519 = vmatmul.mubr.bf16.gmra.mrb[0].mxu0 %v407
        %v520 = vpop.f32.mrb[0].mxu0
        %v521 = vadd.f32 0.0, %v520
        %v522 = vpop.f32.mrb[0].mxu0
        %v523 = vpop.f32.mrb[0].mxu0
        %v524 = vpop.f32.mrb[0].mxu0
        %525 = vdwg.mxu0
        %v527 = vunpack.c.l.b16 %v345
        %v528 = vunpack.c.h.b16 %v345
        %v529 = vpack.c.b16 %v527, %v527
        %v530 = vpack.c.b16 %v528, %v528
        %v556 = vunpack.c.l.b16 %v355
        %v557 = vunpack.c.l.b16 %v356
        %v558 = vunpack.c.l.b16 %v357
        %v559 = vunpack.c.l.b16 %v358
        %v560 = vunpack.c.l.b16 %v359
        %v561 = vunpack.c.l.b16 %v360
        %v562 = vunpack.c.l.b16 %v361
        %v563 = vunpack.c.l.b16 %v362
        %v564 = vunpack.c.l.b16 %v363
        %v565 = vunpack.c.l.b16 %v364
        %v566 = vunpack.c.l.b16 %v365
        %v567 = vunpack.c.l.b16 %v366
        %v568 = vunpack.c.l.b16 %v367
        %v569 = vunpack.c.l.b16 %v368
        %v570 = vunpack.c.l.b16 %v369
        %v571 = vunpack.c.l.b16 %v370
        %v572 = vunpack.c.l.b16 %v371
        %v573 = vunpack.c.l.b16 %v372
        %v574 = vunpack.c.l.b16 %v373
        %v575 = vunpack.c.l.b16 %v374
        %v576 = vunpack.c.l.b16 %v375
        %v577 = vunpack.c.l.b16 %v376
        %v578 = vunpack.c.l.b16 %v377
        %v579 = vunpack.c.l.b16 %v378
        %v580 = vpack.c.b16 %v557, %v556
        %v581 = vpack.c.b16 %v559, %v558
        %v582 = vpack.c.b16 %v561, %v560
        %v583 = vpack.c.b16 %v563, %v562
        %v584 = vpack.c.b16 %v565, %v564
        %v585 = vpack.c.b16 %v567, %v566
        %v586 = vpack.c.b16 %v569, %v568
        %v587 = vpack.c.b16 %v571, %v570
        %v588 = vpack.c.b16 %v573, %v572
        %v589 = vpack.c.b16 %v575, %v574
        %v590 = vpack.c.b16 %v577, %v576
        %v591 = vpack.c.b16 %v579, %v578
        %v605 = vsel %vm482, %v530, 0
        %607 = vmatprep.subr.bf16.mxu0 0
        %608 = vmatpush1.bf16.msra.mxu0 %v580
        %609 = vmatprep.subr.bf16.mxu0 0
        %610 = vmatpush1.bf16.msra.mxu0 %v581
        %611 = vmatprep.subr.bf16.mxu0 0
        %612 = vmatpush1.bf16.msra.mxu0 %v582
        %613 = vmatprep.subr.bf16.mxu0 0
        %614 = vmatpush1.bf16.msra.mxu0 %v583
        %615 = vmatprep.subr.bf16.mxu0 0
        %616 = vmatpush1.bf16.msra.mxu0 %v584
        %617 = vmatprep.subr.bf16.mxu0 0
        %618 = vmatpush1.bf16.msra.mxu0 %v585
        %619 = vmatprep.subr.bf16.mxu0 0
        %620 = vmatpush1.bf16.msra.mxu0 %v586
        %621 = vmatprep.subr.bf16.mxu0 0
        %622 = vmatpush1.bf16.msra.mxu0 %v587
        %623 = vmatprep.subr.bf16.mxu0 0
        %624 = vmatpush1.bf16.msra.mxu0 %v588
        %625 = vmatprep.subr.bf16.mxu0 0
        %626 = vmatpush1.bf16.msra.mxu0 %v589
        %627 = vmatprep.subr.bf16.mxu0 0
        %628 = vmatpush1.bf16.msra.mxu0 %v590
        %629 = vmatprep.subr.bf16.mxu0 0
        %630 = vmatpush1.bf16.msra.mxu0 %v591
        %631 = vmatprep.subr.bf16.mxu0 0
        %632 = vmatpush1.bf16.msra.mxu0 0
        %633 = vmatprep.subr.bf16.mxu0 0
        %634 = vmatpush1.bf16.msra.mxu0 0
        %635 = vmatprep.subr.bf16.mxu0 0
        %636 = vmatpush1.bf16.msra.mxu0 0
        %637 = vmatprep.subr.bf16.mxu0 0
        %638 = vmatpush1.bf16.msra.mxu0 0
        %639 = vmatprep.mubr.bf16.mxu0 %v605
        %640 = vmatmul.mubr.bf16.gmra.mrb[0].mxu0 %v529
        %v641 = vpop.f32.mrb[0].mxu0
        %v642 = vadd.f32 %v521, %v641
        %v643 = vpop.f32.mrb[0].mxu0
        %v644 = vpop.f32.mrb[0].mxu0
        %v645 = vpop.f32.mrb[0].mxu0
        %646 = vdwg.mxu0
        %s647 = scalar_lea.vmem %s1, 192
        %v648 = vld [vmem:[%s647] sm:$0xf]
        %v649 = vld [vmem:[%s647 + $0x4] sm:$0xf]
        %v650 = vld [vmem:[%s647 + $0x8] sm:$0xf]
        %v651 = vld [vmem:[%s647 + $0xc] sm:$0xf]
        %v652 = vld [vmem:[%s647 + $0x10] sm:$0xf]
        %v653 = vld [vmem:[%s647 + $0x14] sm:$0xf]
        %v654 = vld [vmem:[%s647 + $0x18] sm:$0xf]
        %v655 = vld [vmem:[%s647 + $0x1c] sm:$0xf]
        %v656 = vld [vmem:[%s647 + $0x20] sm:$0xf]
        %v657 = vld [vmem:[%s647 + $0x24] sm:$0xf]
        %v658 = vld [vmem:[%s647 + $0x28] sm:$0xf]
        %v659 = vld [vmem:[%s647 + $0x2c] sm:$0xf]
        %v660 = vld [vmem:[%s647 + $0x30] sm:$0xf]
        %v661 = vld [vmem:[%s647 + $0x34] sm:$0xf]
        %v662 = vld [vmem:[%s647 + $0x38] sm:$0xf]
        %v663 = vld [vmem:[%s647 + $0x3c] sm:$0xf]
        %v664 = vld [vmem:[%s647 + $0x40] sm:$0xf]
        %v665 = vld [vmem:[%s647 + $0x44] sm:$0xf]
        %v666 = vld [vmem:[%s647 + $0x48] sm:$0xf]
        %v667 = vld [vmem:[%s647 + $0x4c] sm:$0xf]
        %v668 = vld [vmem:[%s647 + $0x50] sm:$0xf]
        %v669 = vld [vmem:[%s647 + $0x54] sm:$0xf]
        %v670 = vld [vmem:[%s647 + $0x58] sm:$0xf]
        %v671 = vld [vmem:[%s647 + $0x5c] sm:$0xf]
        %v673 = vunpack.c.l.b16 %v347
        %v674 = vunpack.c.h.b16 %v347
        %v675 = vpack.c.b16 %v673, %v673
        %v676 = vpack.c.b16 %v674, %v674
        %v702 = vunpack.c.l.b16 %v648
        %v703 = vunpack.c.l.b16 %v649
        %v704 = vunpack.c.l.b16 %v650
        %v705 = vunpack.c.l.b16 %v651
        %v706 = vunpack.c.l.b16 %v652
        %v707 = vunpack.c.l.b16 %v653
        %v708 = vunpack.c.l.b16 %v654
        %v709 = vunpack.c.l.b16 %v655
        %v710 = vunpack.c.l.b16 %v656
        %v711 = vunpack.c.l.b16 %v657
        %v712 = vunpack.c.l.b16 %v658
        %v713 = vunpack.c.l.b16 %v659
        %v714 = vunpack.c.l.b16 %v660
        %v715 = vunpack.c.l.b16 %v661
        %v716 = vunpack.c.l.b16 %v662
        %v717 = vunpack.c.l.b16 %v663
        %v718 = vunpack.c.l.b16 %v664
        %v719 = vunpack.c.l.b16 %v665
        %v720 = vunpack.c.l.b16 %v666
        %v721 = vunpack.c.l.b16 %v667
        %v722 = vunpack.c.l.b16 %v668
        %v723 = vunpack.c.l.b16 %v669
        %v724 = vunpack.c.l.b16 %v670
        %v725 = vunpack.c.l.b16 %v671
        %v726 = vpack.c.b16 %v703, %v702
        %v727 = vpack.c.b16 %v705, %v704
        %v728 = vpack.c.b16 %v707, %v706
        %v729 = vpack.c.b16 %v709, %v708
        %v730 = vpack.c.b16 %v711, %v710
        %v731 = vpack.c.b16 %v713, %v712
        %v732 = vpack.c.b16 %v715, %v714
        %v733 = vpack.c.b16 %v717, %v716
        %v734 = vpack.c.b16 %v719, %v718
        %v735 = vpack.c.b16 %v721, %v720
        %v736 = vpack.c.b16 %v723, %v722
        %v737 = vpack.c.b16 %v725, %v724
        %v751 = vsel %vm482, %v676, 0
        %753 = vmatprep.subr.bf16.mxu0 0
        %754 = vmatpush1.bf16.msra.mxu0 %v726
        %755 = vmatprep.subr.bf16.mxu0 0
        %756 = vmatpush1.bf16.msra.mxu0 %v727
        %757 = vmatprep.subr.bf16.mxu0 0
        %758 = vmatpush1.bf16.msra.mxu0 %v728
        %759 = vmatprep.subr.bf16.mxu0 0
        %760 = vmatpush1.bf16.msra.mxu0 %v729
        %761 = vmatprep.subr.bf16.mxu0 0
        %762 = vmatpush1.bf16.msra.mxu0 %v730
        %763 = vmatprep.subr.bf16.mxu0 0
        %764 = vmatpush1.bf16.msra.mxu0 %v731
        %765 = vmatprep.subr.bf16.mxu0 0
        %766 = vmatpush1.bf16.msra.mxu0 %v732
        %767 = vmatprep.subr.bf16.mxu0 0
        %768 = vmatpush1.bf16.msra.mxu0 %v733
        %769 = vmatprep.subr.bf16.mxu0 0
        %770 = vmatpush1.bf16.msra.mxu0 %v734
        %771 = vmatprep.subr.bf16.mxu0 0
        %772 = vmatpush1.bf16.msra.mxu0 %v735
        %773 = vmatprep.subr.bf16.mxu0 0
        %774 = vmatpush1.bf16.msra.mxu0 %v736
        %775 = vmatprep.subr.bf16.mxu0 0
        %776 = vmatpush1.bf16.msra.mxu0 %v737
        %777 = vmatprep.subr.bf16.mxu0 0
        %778 = vmatpush1.bf16.msra.mxu0 0
        %779 = vmatprep.subr.bf16.mxu0 0
        %780 = vmatpush1.bf16.msra.mxu0 0
        %781 = vmatprep.subr.bf16.mxu0 0
        %782 = vmatpush1.bf16.msra.mxu0 0
        %783 = vmatprep.subr.bf16.mxu0 0
        %784 = vmatpush1.bf16.msra.mxu0 0
        %785 = vmatprep.mubr.bf16.mxu0 %v751
        %786 = vmatmul.mubr.bf16.gmra.mrb[0].mxu0 %v675
        %v787 = vpop.f32.mrb[0].mxu0
        %v788 = vadd.f32 0.0, %v787
        %v789 = vpop.f32.mrb[0].mxu0
        %v790 = vpop.f32.mrb[0].mxu0
        %v791 = vpop.f32.mrb[0].mxu0
        %792 = vdwg.mxu0
        %v793 = vadd.f32 %v642, %v788
        %794 = vmatprep.subr.bf16.mxu0 0
        %795 = vmatpush1.bf16.msra.mxu0 %v458
        %796 = vmatprep.subr.bf16.mxu0 0
        %797 = vmatpush1.bf16.msra.mxu0 %v459
        %798 = vmatprep.subr.bf16.mxu0 0
        %799 = vmatpush1.bf16.msra.mxu0 %v460
        %800 = vmatprep.subr.bf16.mxu0 0
        %801 = vmatpush1.bf16.msra.mxu0 %v461
        %802 = vmatprep.subr.bf16.mxu0 0
        %803 = vmatpush1.bf16.msra.mxu0 %v462
        %804 = vmatprep.subr.bf16.mxu0 0
        %805 = vmatpush1.bf16.msra.mxu0 %v463
        %806 = vmatprep.subr.bf16.mxu0 0
        %807 = vmatpush1.bf16.msra.mxu0 %v464
        %808 = vmatprep.subr.bf16.mxu0 0
        %809 = vmatpush1.bf16.msra.mxu0 %v465
        %810 = vmatprep.subr.bf16.mxu0 0
        %811 = vmatpush1.bf16.msra.mxu0 %v466
        %812 = vmatprep.subr.bf16.mxu0 0
        %813 = vmatpush1.bf16.msra.mxu0 %v467
        %814 = vmatprep.subr.bf16.mxu0 0
        %815 = vmatpush1.bf16.msra.mxu0 %v468
        %816 = vmatprep.subr.bf16.mxu0 0
        %817 = vmatpush1.bf16.msra.mxu0 %v469
        %818 = vmatprep.subr.bf16.mxu0 0
        %819 = vmatpush1.bf16.msra.mxu0 0
        %820 = vmatprep.subr.bf16.mxu0 0
        %821 = vmatpush1.bf16.msra.mxu0 0
        %822 = vmatprep.subr.bf16.mxu0 0
        %823 = vmatpush1.bf16.msra.mxu0 0
        %824 = vmatprep.subr.bf16.mxu0 0
        %825 = vmatpush1.bf16.msra.mxu0 0
        %826 = vmatprep.mubr.bf16.mxu0 %v751
        %827 = vmatmul.mubr.bf16.gmra.mrb[0].mxu0 %v675
        %v828 = vpop.f32.mrb[0].mxu0
        %v829 = vadd.f32 0.0, %v828
        %v830 = vpop.f32.mrb[0].mxu0
        %v831 = vpop.f32.mrb[0].mxu0
        %v832 = vpop.f32.mrb[0].mxu0
        %833 = vdwg.mxu0
        %834 = vmatprep.subr.bf16.mxu0 0
        %835 = vmatpush1.bf16.msra.mxu0 %v580
        %836 = vmatprep.subr.bf16.mxu0 0
        %837 = vmatpush1.bf16.msra.mxu0 %v581
        %838 = vmatprep.subr.bf16.mxu0 0
        %839 = vmatpush1.bf16.msra.mxu0 %v582
        %840 = vmatprep.subr.bf16.mxu0 0
        %841 = vmatpush1.bf16.msra.mxu0 %v583
        %842 = vmatprep.subr.bf16.mxu0 0
        %843 = vmatpush1.bf16.msra.mxu0 %v584
        %844 = vmatprep.subr.bf16.mxu0 0
        %845 = vmatpush1.bf16.msra.mxu0 %v585
        %846 = vmatprep.subr.bf16.mxu0 0
        %847 = vmatpush1.bf16.msra.mxu0 %v586
        %848 = vmatprep.subr.bf16.mxu0 0
        %849 = vmatpush1.bf16.msra.mxu0 %v587
        %850 = vmatprep.subr.bf16.mxu0 0
        %851 = vmatpush1.bf16.msra.mxu0 %v588
        %852 = vmatprep.subr.bf16.mxu0 0
        %853 = vmatpush1.bf16.msra.mxu0 %v589
        %854 = vmatprep.subr.bf16.mxu0 0
        %855 = vmatpush1.bf16.msra.mxu0 %v590
        %856 = vmatprep.subr.bf16.mxu0 0
        %857 = vmatpush1.bf16.msra.mxu0 %v591
        %858 = vmatprep.subr.bf16.mxu0 0
        %859 = vmatpush1.bf16.msra.mxu0 0
        %860 = vmatprep.subr.bf16.mxu0 0
        %861 = vmatpush1.bf16.msra.mxu0 0
        %862 = vmatprep.subr.bf16.mxu0 0
        %863 = vmatpush1.bf16.msra.mxu0 0
        %864 = vmatprep.subr.bf16.mxu0 0
        %865 = vmatpush1.bf16.msra.mxu0 0
        %866 = vmatprep.mubr.bf16.mxu0 %v484
        %867 = vmatmul.mubr.bf16.gmra.mrb[0].mxu0 %v407
        %v868 = vpop.f32.mrb[0].mxu0
        %v869 = vadd.f32 %v829, %v868
        %v870 = vpop.f32.mrb[0].mxu0
        %v871 = vpop.f32.mrb[0].mxu0
        %v872 = vpop.f32.mrb[0].mxu0
        %873 = vdwg.mxu0
        %v875 = vunpack.c.l.b16 %v348
        %v876 = vunpack.c.h.b16 %v348
        %v877 = vpack.c.b16 %v875, %v875
        %v878 = vpack.c.b16 %v876, %v876
        %v881 = vsel %vm482, %v878, 0
        %883 = vmatprep.subr.bf16.mxu0 0
        %884 = vmatpush1.bf16.msra.mxu0 %v726
        %885 = vmatprep.subr.bf16.mxu0 0
        %886 = vmatpush1.bf16.msra.mxu0 %v727
        %887 = vmatprep.subr.bf16.mxu0 0
        %888 = vmatpush1.bf16.msra.mxu0 %v728
        %889 = vmatprep.subr.bf16.mxu0 0
        %890 = vmatpush1.bf16.msra.mxu0 %v729
        %891 = vmatprep.subr.bf16.mxu0 0
        %892 = vmatpush1.bf16.msra.mxu0 %v730
        %893 = vmatprep.subr.bf16.mxu0 0
        %894 = vmatpush1.bf16.msra.mxu0 %v731
        %895 = vmatprep.subr.bf16.mxu0 0
        %896 = vmatpush1.bf16.msra.mxu0 %v732
        %897 = vmatprep.subr.bf16.mxu0 0
        %898 = vmatpush1.bf16.msra.mxu0 %v733
        %899 = vmatprep.subr.bf16.mxu0 0
        %900 = vmatpush1.bf16.msra.mxu0 %v734
        %901 = vmatprep.subr.bf16.mxu0 0
        %902 = vmatpush1.bf16.msra.mxu0 %v735
        %903 = vmatprep.subr.bf16.mxu0 0
        %904 = vmatpush1.bf16.msra.mxu0 %v736
        %905 = vmatprep.subr.bf16.mxu0 0
        %906 = vmatpush1.bf16.msra.mxu0 %v737
        %907 = vmatprep.subr.bf16.mxu0 0
        %908 = vmatpush1.bf16.msra.mxu0 0
        %909 = vmatprep.subr.bf16.mxu0 0
        %910 = vmatpush1.bf16.msra.mxu0 0
        %911 = vmatprep.subr.bf16.mxu0 0
        %912 = vmatpush1.bf16.msra.mxu0 0
        %913 = vmatprep.subr.bf16.mxu0 0
        %914 = vmatpush1.bf16.msra.mxu0 0
        %915 = vmatprep.mubr.bf16.mxu0 %v881
        %916 = vmatmul.mubr.bf16.gmra.mrb[0].mxu0 %v877
        %v917 = vpop.f32.mrb[0].mxu0
        %v918 = vadd.f32 0.0, %v917
        %v919 = vpop.f32.mrb[0].mxu0
        %v920 = vpop.f32.mrb[0].mxu0
        %v921 = vpop.f32.mrb[0].mxu0
        %922 = vdwg.mxu0
        %v923 = vadd.f32 %v869, %v918
        %v924 = vmax.f32 %v793, %v923
        %v925 = vadd.f32 %v924, %v336
        %v926 = vmax.f32 %v925, 0.0
        %v928 = vrot.slane %v926, 1
        %v930 = vmax.f32 %v926, %v928
        %v932 = vrot.slane %v930, 1
        %v934 = vrot.slane %v930, 2
        %v936 = vrot.slane %v930, 3
        %vm938 = vcmask 1040384
        %v939 = vsel %vm938, %v930, %v932
        %vm940 = vcmask 1041408
        %v941 = vsel %vm940, %v939, %v934
        %vm942 = vcmask 1042432
        %v943 = vsel %vm942, %v941, %v936
        %v944 = vpack.c.bf16 %v943, %v943
        %945 = vmatprep.subr.bf16.mxu0 0
        %946 = vmatpush1.bf16.msra.mxu0 %v458
        %947 = vmatprep.subr.bf16.mxu0 0
        %948 = vmatpush1.bf16.msra.mxu0 %v459
        %949 = vmatprep.subr.bf16.mxu0 0
        %950 = vmatpush1.bf16.msra.mxu0 %v460
        %951 = vmatprep.subr.bf16.mxu0 0
        %952 = vmatpush1.bf16.msra.mxu0 %v461
        %953 = vmatprep.subr.bf16.mxu0 0
        %954 = vmatpush1.bf16.msra.mxu0 %v462
        %955 = vmatprep.subr.bf16.mxu0 0
        %956 = vmatpush1.bf16.msra.mxu0 %v463
        %957 = vmatprep.subr.bf16.mxu0 0
        %958 = vmatpush1.bf16.msra.mxu0 %v464
        %959 = vmatprep.subr.bf16.mxu0 0
        %960 = vmatpush1.bf16.msra.mxu0 %v465
        %961 = vmatprep.subr.bf16.mxu0 0
        %962 = vmatpush1.bf16.msra.mxu0 %v466
        %963 = vmatprep.subr.bf16.mxu0 0
        %964 = vmatpush1.bf16.msra.mxu0 %v467
        %965 = vmatprep.subr.bf16.mxu0 0
        %966 = vmatpush1.bf16.msra.mxu0 %v468
        %967 = vmatprep.subr.bf16.mxu0 0
        %968 = vmatpush1.bf16.msra.mxu0 %v469
        %969 = vmatprep.subr.bf16.mxu0 0
        %970 = vmatpush1.bf16.msra.mxu0 0
        %971 = vmatprep.subr.bf16.mxu0 0
        %972 = vmatpush1.bf16.msra.mxu0 0
        %973 = vmatprep.subr.bf16.mxu0 0
        %974 = vmatpush1.bf16.msra.mxu0 0
        %975 = vmatprep.subr.bf16.mxu0 0
        %976 = vmatpush1.bf16.msra.mxu0 0
        %977 = vmatprep.mubr.bf16.mxu0 %v881
        %978 = vmatmul.mubr.bf16.gmra.mrb[0].mxu0 %v877
        %v979 = vpop.f32.mrb[0].mxu0
        %v980 = vadd.f32 0.0, %v979
        %v981 = vpop.f32.mrb[0].mxu0
        %v982 = vpop.f32.mrb[0].mxu0
        %v983 = vpop.f32.mrb[0].mxu0
        %984 = vdwg.mxu0
        %985 = vmatprep.subr.bf16.mxu0 0
        %986 = vmatpush1.bf16.msra.mxu0 %v580
        %987 = vmatprep.subr.bf16.mxu0 0
        %988 = vmatpush1.bf16.msra.mxu0 %v581
        %989 = vmatprep.subr.bf16.mxu0 0
        %990 = vmatpush1.bf16.msra.mxu0 %v582
        %991 = vmatprep.subr.bf16.mxu0 0
        %992 = vmatpush1.bf16.msra.mxu0 %v583
        %993 = vmatprep.subr.bf16.mxu0 0
        %994 = vmatpush1.bf16.msra.mxu0 %v584
        %995 = vmatprep.subr.bf16.mxu0 0
        %996 = vmatpush1.bf16.msra.mxu0 %v585
        %997 = vmatprep.subr.bf16.mxu0 0
        %998 = vmatpush1.bf16.msra.mxu0 %v586
        %999 = vmatprep.subr.bf16.mxu0 0
        %1000 = vmatpush1.bf16.msra.mxu0 %v587
        %1001 = vmatprep.subr.bf16.mxu0 0
        %1002 = vmatpush1.bf16.msra.mxu0 %v588
        %1003 = vmatprep.subr.bf16.mxu0 0
        %1004 = vmatpush1.bf16.msra.mxu0 %v589
        %1005 = vmatprep.subr.bf16.mxu0 0
        %1006 = vmatpush1.bf16.msra.mxu0 %v590
        %1007 = vmatprep.subr.bf16.mxu0 0
        %1008 = vmatpush1.bf16.msra.mxu0 %v591
        %1009 = vmatprep.subr.bf16.mxu0 0
        %1010 = vmatpush1.bf16.msra.mxu0 0
        %1011 = vmatprep.subr.bf16.mxu0 0
        %1012 = vmatpush1.bf16.msra.mxu0 0
        %1013 = vmatprep.subr.bf16.mxu0 0
        %1014 = vmatpush1.bf16.msra.mxu0 0
        %1015 = vmatprep.subr.bf16.mxu0 0
        %1016 = vmatpush1.bf16.msra.mxu0 0
        %1017 = vmatprep.mubr.bf16.mxu0 %v751
        %1018 = vmatmul.mubr.bf16.gmra.mrb[0].mxu0 %v675
        %v1019 = vpop.f32.mrb[0].mxu0
        %v1020 = vadd.f32 %v980, %v1019
        %v1021 = vpop.f32.mrb[0].mxu0
        %v1022 = vpop.f32.mrb[0].mxu0
        %v1023 = vpop.f32.mrb[0].mxu0
        %1024 = vdwg.mxu0
        %v1026 = vunpack.c.l.b16 %v349
        %v1027 = vunpack.c.h.b16 %v349
        %v1028 = vpack.c.b16 %v1026, %v1026
        %v1029 = vpack.c.b16 %v1027, %v1027
        %v1032 = vsel %vm482, %v1029, 0
        %1034 = vmatprep.subr.bf16.mxu0 0
        %1035 = vmatpush1.bf16.msra.mxu0 %v726
        %1036 = vmatprep.subr.bf16.mxu0 0
        %1037 = vmatpush1.bf16.msra.mxu0 %v727
        %1038 = vmatprep.subr.bf16.mxu0 0
        %1039 = vmatpush1.bf16.msra.mxu0 %v728
        %1040 = vmatprep.subr.bf16.mxu0 0
        %1041 = vmatpush1.bf16.msra.mxu0 %v729
        %1042 = vmatprep.subr.bf16.mxu0 0
        %1043 = vmatpush1.bf16.msra.mxu0 %v730
        %1044 = vmatprep.subr.bf16.mxu0 0
        %1045 = vmatpush1.bf16.msra.mxu0 %v731
        %1046 = vmatprep.subr.bf16.mxu0 0
        %1047 = vmatpush1.bf16.msra.mxu0 %v732
        %1048 = vmatprep.subr.bf16.mxu0 0
        %1049 = vmatpush1.bf16.msra.mxu0 %v733
        %1050 = vmatprep.subr.bf16.mxu0 0
        %1051 = vmatpush1.bf16.msra.mxu0 %v734
        %1052 = vmatprep.subr.bf16.mxu0 0
        %1053 = vmatpush1.bf16.msra.mxu0 %v735
        %1054 = vmatprep.subr.bf16.mxu0 0
        %1055 = vmatpush1.bf16.msra.mxu0 %v736
        %1056 = vmatprep.subr.bf16.mxu0 0
        %1057 = vmatpush1.bf16.msra.mxu0 %v737
        %1058 = vmatprep.subr.bf16.mxu0 0
        %1059 = vmatpush1.bf16.msra.mxu0 0
        %1060 = vmatprep.subr.bf16.mxu0 0
        %1061 = vmatpush1.bf16.msra.mxu0 0
        %1062 = vmatprep.subr.bf16.mxu0 0
        %1063 = vmatpush1.bf16.msra.mxu0 0
        %1064 = vmatprep.subr.bf16.mxu0 0
        %1065 = vmatpush1.bf16.msra.mxu0 0
        %1066 = vmatprep.mubr.bf16.mxu0 %v1032
        %1067 = vmatmul.mubr.bf16.gmra.mrb[0].mxu0 %v1028
        %v1068 = vpop.f32.mrb[0].mxu0
        %v1069 = vadd.f32 0.0, %v1068
        %v1070 = vpop.f32.mrb[0].mxu0
        %v1071 = vpop.f32.mrb[0].mxu0
        %v1072 = vpop.f32.mrb[0].mxu0
        %1073 = vdwg.mxu0
        %v1074 = vadd.f32 %v1020, %v1069
        %1075 = vmatprep.subr.bf16.mxu0 0
        %1076 = vmatpush1.bf16.msra.mxu0 %v458
        %1077 = vmatprep.subr.bf16.mxu0 0
        %1078 = vmatpush1.bf16.msra.mxu0 %v459
        %1079 = vmatprep.subr.bf16.mxu0 0
        %1080 = vmatpush1.bf16.msra.mxu0 %v460
        %1081 = vmatprep.subr.bf16.mxu0 0
        %1082 = vmatpush1.bf16.msra.mxu0 %v461
        %1083 = vmatprep.subr.bf16.mxu0 0
        %1084 = vmatpush1.bf16.msra.mxu0 %v462
        %1085 = vmatprep.subr.bf16.mxu0 0
        %1086 = vmatpush1.bf16.msra.mxu0 %v463
        %1087 = vmatprep.subr.bf16.mxu0 0
        %1088 = vmatpush1.bf16.msra.mxu0 %v464
        %1089 = vmatprep.subr.bf16.mxu0 0
        %1090 = vmatpush1.bf16.msra.mxu0 %v465
        %1091 = vmatprep.subr.bf16.mxu0 0
        %1092 = vmatpush1.bf16.msra.mxu0 %v466
        %1093 = vmatprep.subr.bf16.mxu0 0
        %1094 = vmatpush1.bf16.msra.mxu0 %v467
        %1095 = vmatprep.subr.bf16.mxu0 0
        %1096 = vmatpush1.bf16.msra.mxu0 %v468
        %1097 = vmatprep.subr.bf16.mxu0 0
        %1098 = vmatpush1.bf16.msra.mxu0 %v469
        %1099 = vmatprep.subr.bf16.mxu0 0
        %1100 = vmatpush1.bf16.msra.mxu0 0
        %1101 = vmatprep.subr.bf16.mxu0 0
        %1102 = vmatpush1.bf16.msra.mxu0 0
        %1103 = vmatprep.subr.bf16.mxu0 0
        %1104 = vmatpush1.bf16.msra.mxu0 0
        %1105 = vmatprep.subr.bf16.mxu0 0
        %1106 = vmatpush1.bf16.msra.mxu0 0
        %1107 = vmatprep.mubr.bf16.mxu0 %v1032
        %1108 = vmatmul.mubr.bf16.gmra.mrb[0].mxu0 %v1028
        %v1109 = vpop.f32.mrb[0].mxu0
        %v1110 = vadd.f32 0.0, %v1109
        %v1111 = vpop.f32.mrb[0].mxu0
        %v1112 = vpop.f32.mrb[0].mxu0
        %v1113 = vpop.f32.mrb[0].mxu0
        %1114 = vdwg.mxu0
        %1115 = vmatprep.subr.bf16.mxu0 0
        %1116 = vmatpush1.bf16.msra.mxu0 %v580
        %1117 = vmatprep.subr.bf16.mxu0 0
        %1118 = vmatpush1.bf16.msra.mxu0 %v581
        %1119 = vmatprep.subr.bf16.mxu0 0
        %1120 = vmatpush1.bf16.msra.mxu0 %v582
        %1121 = vmatprep.subr.bf16.mxu0 0
        %1122 = vmatpush1.bf16.msra.mxu0 %v583
        %1123 = vmatprep.subr.bf16.mxu0 0
        %1124 = vmatpush1.bf16.msra.mxu0 %v584
        %1125 = vmatprep.subr.bf16.mxu0 0
        %1126 = vmatpush1.bf16.msra.mxu0 %v585
        %1127 = vmatprep.subr.bf16.mxu0 0
        %1128 = vmatpush1.bf16.msra.mxu0 %v586
        %1129 = vmatprep.subr.bf16.mxu0 0
        %1130 = vmatpush1.bf16.msra.mxu0 %v587
        %1131 = vmatprep.subr.bf16.mxu0 0
        %1132 = vmatpush1.bf16.msra.mxu0 %v588
        %1133 = vmatprep.subr.bf16.mxu0 0
        %1134 = vmatpush1.bf16.msra.mxu0 %v589
        %1135 = vmatprep.subr.bf16.mxu0 0
        %1136 = vmatpush1.bf16.msra.mxu0 %v590
        %1137 = vmatprep.subr.bf16.mxu0 0
        %1138 = vmatpush1.bf16.msra.mxu0 %v591
        %1139 = vmatprep.subr.bf16.mxu0 0
        %1140 = vmatpush1.bf16.msra.mxu0 0
        %1141 = vmatprep.subr.bf16.mxu0 0
        %1142 = vmatpush1.bf16.msra.mxu0 0
        %1143 = vmatprep.subr.bf16.mxu0 0
        %1144 = vmatpush1.bf16.msra.mxu0 0
        %1145 = vmatprep.subr.bf16.mxu0 0
        %1146 = vmatpush1.bf16.msra.mxu0 0
        %1147 = vmatprep.mubr.bf16.mxu0 %v881
        %1148 = vmatmul.mubr.bf16.gmra.mrb[0].mxu0 %v877
        %v1149 = vpop.f32.mrb[0].mxu0
        %v1150 = vadd.f32 %v1110, %v1149
        %v1151 = vpop.f32.mrb[0].mxu0
        %v1152 = vpop.f32.mrb[0].mxu0
        %v1153 = vpop.f32.mrb[0].mxu0
        %1154 = vdwg.mxu0
        %v1156 = vunpack.c.l.b16 %v350
        %v1157 = vunpack.c.h.b16 %v350
        %v1158 = vpack.c.b16 %v1156, %v1156
        %v1159 = vpack.c.b16 %v1157, %v1157
        %v1162 = vsel %vm482, %v1159, 0
        %1164 = vmatprep.subr.bf16.mxu0 0
        %1165 = vmatpush1.bf16.msra.mxu0 %v726
        %1166 = vmatprep.subr.bf16.mxu0 0
        %1167 = vmatpush1.bf16.msra.mxu0 %v727
        %1168 = vmatprep.subr.bf16.mxu0 0
        %1169 = vmatpush1.bf16.msra.mxu0 %v728
        %1170 = vmatprep.subr.bf16.mxu0 0
        %1171 = vmatpush1.bf16.msra.mxu0 %v729
        %1172 = vmatprep.subr.bf16.mxu0 0
        %1173 = vmatpush1.bf16.msra.mxu0 %v730
        %1174 = vmatprep.subr.bf16.mxu0 0
        %1175 = vmatpush1.bf16.msra.mxu0 %v731
        %1176 = vmatprep.subr.bf16.mxu0 0
        %1177 = vmatpush1.bf16.msra.mxu0 %v732
        %1178 = vmatprep.subr.bf16.mxu0 0
        %1179 = vmatpush1.bf16.msra.mxu0 %v733
        %1180 = vmatprep.subr.bf16.mxu0 0
        %1181 = vmatpush1.bf16.msra.mxu0 %v734
        %1182 = vmatprep.subr.bf16.mxu0 0
        %1183 = vmatpush1.bf16.msra.mxu0 %v735
        %1184 = vmatprep.subr.bf16.mxu0 0
        %1185 = vmatpush1.bf16.msra.mxu0 %v736
        %1186 = vmatprep.subr.bf16.mxu0 0
        %1187 = vmatpush1.bf16.msra.mxu0 %v737
        %1188 = vmatprep.subr.bf16.mxu0 0
        %1189 = vmatpush1.bf16.msra.mxu0 0
        %1190 = vmatprep.subr.bf16.mxu0 0
        %1191 = vmatpush1.bf16.msra.mxu0 0
        %1192 = vmatprep.subr.bf16.mxu0 0
        %1193 = vmatpush1.bf16.msra.mxu0 0
        %1194 = vmatprep.subr.bf16.mxu0 0
        %1195 = vmatpush1.bf16.msra.mxu0 0
        %1196 = vmatprep.mubr.bf16.mxu0 %v1162
        %1197 = vmatmul.mubr.bf16.gmra.mrb[0].mxu0 %v1158
        %v1198 = vpop.f32.mrb[0].mxu0
        %v1199 = vadd.f32 0.0, %v1198
        %v1200 = vpop.f32.mrb[0].mxu0
        %v1201 = vpop.f32.mrb[0].mxu0
        %v1202 = vpop.f32.mrb[0].mxu0
        %1203 = vdwg.mxu0
        %v1204 = vadd.f32 %v1150, %v1199
        %v1205 = vmax.f32 %v1074, %v1204
        %v1206 = vadd.f32 %v1205, %v336
        %v1207 = vmax.f32 %v1206, 0.0
        %v1209 = vrot.slane %v1207, 1
        %v1211 = vmax.f32 %v1207, %v1209
        %v1213 = vrot.slane %v1211, 1
        %v1215 = vrot.slane %v1211, 2
        %v1217 = vrot.slane %v1211, 3
        %v1219 = vsel %vm938, %v1211, %v1213
        %v1220 = vsel %vm940, %v1219, %v1215
        %v1221 = vsel %vm942, %v1220, %v1217
        %v1222 = vpack.c.bf16 %v1221, %v1221
        %1223 = vmatprep.subr.bf16.mxu0 0
        %1224 = vmatpush1.bf16.msra.mxu0 %v458
        %1225 = vmatprep.subr.bf16.mxu0 0
        %1226 = vmatpush1.bf16.msra.mxu0 %v459
        %1227 = vmatprep.subr.bf16.mxu0 0
        %1228 = vmatpush1.bf16.msra.mxu0 %v460
        %1229 = vmatprep.subr.bf16.mxu0 0
        %1230 = vmatpush1.bf16.msra.mxu0 %v461
        %1231 = vmatprep.subr.bf16.mxu0 0
        %1232 = vmatpush1.bf16.msra.mxu0 %v462
        %1233 = vmatprep.subr.bf16.mxu0 0
        %1234 = vmatpush1.bf16.msra.mxu0 %v463
        %1235 = vmatprep.subr.bf16.mxu0 0
        %1236 = vmatpush1.bf16.msra.mxu0 %v464
        %1237 = vmatprep.subr.bf16.mxu0 0
        %1238 = vmatpush1.bf16.msra.mxu0 %v465
        %1239 = vmatprep.subr.bf16.mxu0 0
        %1240 = vmatpush1.bf16.msra.mxu0 %v466
        %1241 = vmatprep.subr.bf16.mxu0 0
        %1242 = vmatpush1.bf16.msra.mxu0 %v467
        %1243 = vmatprep.subr.bf16.mxu0 0
        %1244 = vmatpush1.bf16.msra.mxu0 %v468
        %1245 = vmatprep.subr.bf16.mxu0 0
        %1246 = vmatpush1.bf16.msra.mxu0 %v469
        %1247 = vmatprep.subr.bf16.mxu0 0
        %1248 = vmatpush1.bf16.msra.mxu0 0
        %1249 = vmatprep.subr.bf16.mxu0 0
        %1250 = vmatpush1.bf16.msra.mxu0 0
        %1251 = vmatprep.subr.bf16.mxu0 0
        %1252 = vmatpush1.bf16.msra.mxu0 0
        %1253 = vmatprep.subr.bf16.mxu0 0
        %1254 = vmatpush1.bf16.msra.mxu0 0
        %1255 = vmatprep.mubr.bf16.mxu0 %v1162
        %1256 = vmatmul.mubr.bf16.gmra.mrb[0].mxu0 %v1158
        %v1257 = vpop.f32.mrb[0].mxu0
        %v1258 = vadd.f32 0.0, %v1257
        %v1259 = vpop.f32.mrb[0].mxu0
        %v1260 = vpop.f32.mrb[0].mxu0
        %v1261 = vpop.f32.mrb[0].mxu0
        %1262 = vdwg.mxu0
        %1263 = vmatprep.subr.bf16.mxu0 0
        %1264 = vmatpush1.bf16.msra.mxu0 %v580
        %1265 = vmatprep.subr.bf16.mxu0 0
        %1266 = vmatpush1.bf16.msra.mxu0 %v581
        %1267 = vmatprep.subr.bf16.mxu0 0
        %1268 = vmatpush1.bf16.msra.mxu0 %v582
        %1269 = vmatprep.subr.bf16.mxu0 0
        %1270 = vmatpush1.bf16.msra.mxu0 %v583
        %1271 = vmatprep.subr.bf16.mxu0 0
        %1272 = vmatpush1.bf16.msra.mxu0 %v584
        %1273 = vmatprep.subr.bf16.mxu0 0
        %1274 = vmatpush1.bf16.msra.mxu0 %v585
        %1275 = vmatprep.subr.bf16.mxu0 0
        %1276 = vmatpush1.bf16.msra.mxu0 %v586
        %1277 = vmatprep.subr.bf16.mxu0 0
        %1278 = vmatpush1.bf16.msra.mxu0 %v587
        %1279 = vmatprep.subr.bf16.mxu0 0
        %1280 = vmatpush1.bf16.msra.mxu0 %v588
        %1281 = vmatprep.subr.bf16.mxu0 0
        %1282 = vmatpush1.bf16.msra.mxu0 %v589
        %1283 = vmatprep.subr.bf16.mxu0 0
        %1284 = vmatpush1.bf16.msra.mxu0 %v590
        %1285 = vmatprep.subr.bf16.mxu0 0
        %1286 = vmatpush1.bf16.msra.mxu0 %v591
        %1287 = vmatprep.subr.bf16.mxu0 0
        %1288 = vmatpush1.bf16.msra.mxu0 0
        %1289 = vmatprep.subr.bf16.mxu0 0
        %1290 = vmatpush1.bf16.msra.mxu0 0
        %1291 = vmatprep.subr.bf16.mxu0 0
        %1292 = vmatpush1.bf16.msra.mxu0 0
        %1293 = vmatprep.subr.bf16.mxu0 0
        %1294 = vmatpush1.bf16.msra.mxu0 0
        %1295 = vmatprep.mubr.bf16.mxu0 %v1032
        %1296 = vmatmul.mubr.bf16.gmra.mrb[0].mxu0 %v1028
        %v1297 = vpop.f32.mrb[0].mxu0
        %v1298 = vadd.f32 %v1258, %v1297
        %v1299 = vpop.f32.mrb[0].mxu0
        %v1300 = vpop.f32.mrb[0].mxu0
        %v1301 = vpop.f32.mrb[0].mxu0
        %1302 = vdwg.mxu0
        %v1304 = vunpack.c.l.b16 %v351
        %v1305 = vunpack.c.h.b16 %v351
        %v1306 = vpack.c.b16 %v1304, %v1304
        %v1307 = vpack.c.b16 %v1305, %v1305
        %v1310 = vsel %vm482, %v1307, 0
        %1312 = vmatprep.subr.bf16.mxu0 0
        %1313 = vmatpush1.bf16.msra.mxu0 %v726
        %1314 = vmatprep.subr.bf16.mxu0 0
        %1315 = vmatpush1.bf16.msra.mxu0 %v727
        %1316 = vmatprep.subr.bf16.mxu0 0
        %1317 = vmatpush1.bf16.msra.mxu0 %v728
        %1318 = vmatprep.subr.bf16.mxu0 0
        %1319 = vmatpush1.bf16.msra.mxu0 %v729
        %1320 = vmatprep.subr.bf16.mxu0 0
        %1321 = vmatpush1.bf16.msra.mxu0 %v730
        %1322 = vmatprep.subr.bf16.mxu0 0
        %1323 = vmatpush1.bf16.msra.mxu0 %v731
        %1324 = vmatprep.subr.bf16.mxu0 0
        %1325 = vmatpush1.bf16.msra.mxu0 %v732
        %1326 = vmatprep.subr.bf16.mxu0 0
        %1327 = vmatpush1.bf16.msra.mxu0 %v733
        %1328 = vmatprep.subr.bf16.mxu0 0
        %1329 = vmatpush1.bf16.msra.mxu0 %v734
        %1330 = vmatprep.subr.bf16.mxu0 0
        %1331 = vmatpush1.bf16.msra.mxu0 %v735
        %1332 = vmatprep.subr.bf16.mxu0 0
        %1333 = vmatpush1.bf16.msra.mxu0 %v736
        %1334 = vmatprep.subr.bf16.mxu0 0
        %1335 = vmatpush1.bf16.msra.mxu0 %v737
        %1336 = vmatprep.subr.bf16.mxu0 0
        %1337 = vmatpush1.bf16.msra.mxu0 0
        %1338 = vmatprep.subr.bf16.mxu0 0
        %1339 = vmatpush1.bf16.msra.mxu0 0
        %1340 = vmatprep.subr.bf16.mxu0 0
        %1341 = vmatpush1.bf16.msra.mxu0 0
        %1342 = vmatprep.subr.bf16.mxu0 0
        %1343 = vmatpush1.bf16.msra.mxu0 0
        %1344 = vmatprep.mubr.bf16.mxu0 %v1310
        %1345 = vmatmul.mubr.bf16.gmra.mrb[0].mxu0 %v1306
        %v1346 = vpop.f32.mrb[0].mxu0
        %v1347 = vadd.f32 0.0, %v1346
        %v1348 = vpop.f32.mrb[0].mxu0
        %v1349 = vpop.f32.mrb[0].mxu0
        %v1350 = vpop.f32.mrb[0].mxu0
        %1351 = vdwg.mxu0
        %v1352 = vadd.f32 %v1298, %v1347
        %1353 = vmatprep.subr.bf16.mxu0 0
        %1354 = vmatpush1.bf16.msra.mxu0 %v458
        %1355 = vmatprep.subr.bf16.mxu0 0
        %1356 = vmatpush1.bf16.msra.mxu0 %v459
        %1357 = vmatprep.subr.bf16.mxu0 0
        %1358 = vmatpush1.bf16.msra.mxu0 %v460
        %1359 = vmatprep.subr.bf16.mxu0 0
        %1360 = vmatpush1.bf16.msra.mxu0 %v461
        %1361 = vmatprep.subr.bf16.mxu0 0
        %1362 = vmatpush1.bf16.msra.mxu0 %v462
        %1363 = vmatprep.subr.bf16.mxu0 0
        %1364 = vmatpush1.bf16.msra.mxu0 %v463
        %1365 = vmatprep.subr.bf16.mxu0 0
        %1366 = vmatpush1.bf16.msra.mxu0 %v464
        %1367 = vmatprep.subr.bf16.mxu0 0
        %1368 = vmatpush1.bf16.msra.mxu0 %v465
        %1369 = vmatprep.subr.bf16.mxu0 0
        %1370 = vmatpush1.bf16.msra.mxu0 %v466
        %1371 = vmatprep.subr.bf16.mxu0 0
        %1372 = vmatpush1.bf16.msra.mxu0 %v467
        %1373 = vmatprep.subr.bf16.mxu0 0
        %1374 = vmatpush1.bf16.msra.mxu0 %v468
        %1375 = vmatprep.subr.bf16.mxu0 0
        %1376 = vmatpush1.bf16.msra.mxu0 %v469
        %1377 = vmatprep.subr.bf16.mxu0 0
        %1378 = vmatpush1.bf16.msra.mxu0 0
        %1379 = vmatprep.subr.bf16.mxu0 0
        %1380 = vmatpush1.bf16.msra.mxu0 0
        %1381 = vmatprep.subr.bf16.mxu0 0
        %1382 = vmatpush1.bf16.msra.mxu0 0
        %1383 = vmatprep.subr.bf16.mxu0 0
        %1384 = vmatpush1.bf16.msra.mxu0 0
        %1385 = vmatprep.mubr.bf16.mxu0 %v1310
        %1386 = vmatmul.mubr.bf16.gmra.mrb[0].mxu0 %v1306
        %v1387 = vpop.f32.mrb[0].mxu0
        %v1388 = vadd.f32 0.0, %v1387
        %v1389 = vpop.f32.mrb[0].mxu0
        %v1390 = vpop.f32.mrb[0].mxu0
        %v1391 = vpop.f32.mrb[0].mxu0
        %1392 = vdwg.mxu0
        %1393 = vmatprep.subr.bf16.mxu0 0
        %1394 = vmatpush1.bf16.msra.mxu0 %v580
        %1395 = vmatprep.subr.bf16.mxu0 0
        %1396 = vmatpush1.bf16.msra.mxu0 %v581
        %1397 = vmatprep.subr.bf16.mxu0 0
        %1398 = vmatpush1.bf16.msra.mxu0 %v582
        %1399 = vmatprep.subr.bf16.mxu0 0
        %1400 = vmatpush1.bf16.msra.mxu0 %v583
        %1401 = vmatprep.subr.bf16.mxu0 0
        %1402 = vmatpush1.bf16.msra.mxu0 %v584
        %1403 = vmatprep.subr.bf16.mxu0 0
        %1404 = vmatpush1.bf16.msra.mxu0 %v585
        %1405 = vmatprep.subr.bf16.mxu0 0
        %1406 = vmatpush1.bf16.msra.mxu0 %v586
        %1407 = vmatprep.subr.bf16.mxu0 0
        %1408 = vmatpush1.bf16.msra.mxu0 %v587
        %1409 = vmatprep.subr.bf16.mxu0 0
        %1410 = vmatpush1.bf16.msra.mxu0 %v588
        %1411 = vmatprep.subr.bf16.mxu0 0
        %1412 = vmatpush1.bf16.msra.mxu0 %v589
        %1413 = vmatprep.subr.bf16.mxu0 0
        %1414 = vmatpush1.bf16.msra.mxu0 %v590
        %1415 = vmatprep.subr.bf16.mxu0 0
        %1416 = vmatpush1.bf16.msra.mxu0 %v591
        %1417 = vmatprep.subr.bf16.mxu0 0
        %1418 = vmatpush1.bf16.msra.mxu0 0
        %1419 = vmatprep.subr.bf16.mxu0 0
        %1420 = vmatpush1.bf16.msra.mxu0 0
        %1421 = vmatprep.subr.bf16.mxu0 0
        %1422 = vmatpush1.bf16.msra.mxu0 0
        %1423 = vmatprep.subr.bf16.mxu0 0
        %1424 = vmatpush1.bf16.msra.mxu0 0
        %1425 = vmatprep.mubr.bf16.mxu0 %v1162
        %1426 = vmatmul.mubr.bf16.gmra.mrb[0].mxu0 %v1158
        %v1427 = vpop.f32.mrb[0].mxu0
        %v1428 = vadd.f32 %v1388, %v1427
        %v1429 = vpop.f32.mrb[0].mxu0
        %v1430 = vpop.f32.mrb[0].mxu0
        %v1431 = vpop.f32.mrb[0].mxu0
        %1432 = vdwg.mxu0
        %v1434 = vunpack.c.l.b16 %v352
        %v1435 = vunpack.c.h.b16 %v352
        %v1436 = vpack.c.b16 %v1434, %v1434
        %v1437 = vpack.c.b16 %v1435, %v1435
        %v1440 = vsel %vm482, %v1437, 0
        %1442 = vmatprep.subr.bf16.mxu0 0
        %1443 = vmatpush1.bf16.msra.mxu0 %v726
        %1444 = vmatprep.subr.bf16.mxu0 0
        %1445 = vmatpush1.bf16.msra.mxu0 %v727
        %1446 = vmatprep.subr.bf16.mxu0 0
        %1447 = vmatpush1.bf16.msra.mxu0 %v728
        %1448 = vmatprep.subr.bf16.mxu0 0
        %1449 = vmatpush1.bf16.msra.mxu0 %v729
        %1450 = vmatprep.subr.bf16.mxu0 0
        %1451 = vmatpush1.bf16.msra.mxu0 %v730
        %1452 = vmatprep.subr.bf16.mxu0 0
        %1453 = vmatpush1.bf16.msra.mxu0 %v731
        %1454 = vmatprep.subr.bf16.mxu0 0
        %1455 = vmatpush1.bf16.msra.mxu0 %v732
        %1456 = vmatprep.subr.bf16.mxu0 0
        %1457 = vmatpush1.bf16.msra.mxu0 %v733
        %1458 = vmatprep.subr.bf16.mxu0 0
        %1459 = vmatpush1.bf16.msra.mxu0 %v734
        %1460 = vmatprep.subr.bf16.mxu0 0
        %1461 = vmatpush1.bf16.msra.mxu0 %v735
        %1462 = vmatprep.subr.bf16.mxu0 0
        %1463 = vmatpush1.bf16.msra.mxu0 %v736
        %1464 = vmatprep.subr.bf16.mxu0 0
        %1465 = vmatpush1.bf16.msra.mxu0 %v737
        %1466 = vmatprep.subr.bf16.mxu0 0
        %1467 = vmatpush1.bf16.msra.mxu0 0
        %1468 = vmatprep.subr.bf16.mxu0 0
        %1469 = vmatpush1.bf16.msra.mxu0 0
        %1470 = vmatprep.subr.bf16.mxu0 0
        %1471 = vmatpush1.bf16.msra.mxu0 0
        %1472 = vmatprep.subr.bf16.mxu0 0
        %1473 = vmatpush1.bf16.msra.mxu0 0
        %1474 = vmatprep.mubr.bf16.mxu0 %v1440
        %1475 = vmatmul.mubr.bf16.gmra.mrb[0].mxu0 %v1436
        %v1476 = vpop.f32.mrb[0].mxu0
        %v1477 = vadd.f32 0.0, %v1476
        %v1478 = vpop.f32.mrb[0].mxu0
        %v1479 = vpop.f32.mrb[0].mxu0
        %v1480 = vpop.f32.mrb[0].mxu0
        %1481 = vdwg.mxu0
        %v1482 = vadd.f32 %v1428, %v1477
        %v1483 = vmax.f32 %v1352, %v1482
        %v1484 = vadd.f32 %v1483, %v336
        %v1485 = vmax.f32 %v1484, 0.0
        %v1487 = vrot.slane %v1485, 1
        %v1489 = vmax.f32 %v1485, %v1487
        %v1491 = vrot.slane %v1489, 1
        %v1493 = vrot.slane %v1489, 2
        %v1495 = vrot.slane %v1489, 3
        %v1497 = vsel %vm938, %v1489, %v1491
        %v1498 = vsel %vm940, %v1497, %v1493
        %v1499 = vsel %vm942, %v1498, %v1495
        %v1500 = vpack.c.bf16 %v1499, %v1499
        %1501 = vmatprep.subr.bf16.mxu0 0
        %1502 = vmatpush1.bf16.msra.mxu0 %v458
        %1503 = vmatprep.subr.bf16.mxu0 0
        %1504 = vmatpush1.bf16.msra.mxu0 %v459
        %1505 = vmatprep.subr.bf16.mxu0 0
        %1506 = vmatpush1.bf16.msra.mxu0 %v460
        %1507 = vmatprep.subr.bf16.mxu0 0
        %1508 = vmatpush1.bf16.msra.mxu0 %v461
        %1509 = vmatprep.subr.bf16.mxu0 0
        %1510 = vmatpush1.bf16.msra.mxu0 %v462
        %1511 = vmatprep.subr.bf16.mxu0 0
        %1512 = vmatpush1.bf16.msra.mxu0 %v463
        %1513 = vmatprep.subr.bf16.mxu0 0
        %1514 = vmatpush1.bf16.msra.mxu0 %v464
        %1515 = vmatprep.subr.bf16.mxu0 0
        %1516 = vmatpush1.bf16.msra.mxu0 %v465
        %1517 = vmatprep.subr.bf16.mxu0 0
        %1518 = vmatpush1.bf16.msra.mxu0 %v466
        %1519 = vmatprep.subr.bf16.mxu0 0
        %1520 = vmatpush1.bf16.msra.mxu0 %v467
        %1521 = vmatprep.subr.bf16.mxu0 0
        %1522 = vmatpush1.bf16.msra.mxu0 %v468
        %1523 = vmatprep.subr.bf16.mxu0 0
        %1524 = vmatpush1.bf16.msra.mxu0 %v469
        %1525 = vmatprep.subr.bf16.mxu0 0
        %1526 = vmatpush1.bf16.msra.mxu0 0
        %1527 = vmatprep.subr.bf16.mxu0 0
        %1528 = vmatpush1.bf16.msra.mxu0 0
        %1529 = vmatprep.subr.bf16.mxu0 0
        %1530 = vmatpush1.bf16.msra.mxu0 0
        %1531 = vmatprep.subr.bf16.mxu0 0
        %1532 = vmatpush1.bf16.msra.mxu0 0
        %1533 = vmatprep.mubr.bf16.mxu0 %v1440
        %1534 = vmatmul.mubr.bf16.gmra.mrb[0].mxu0 %v1436
        %v1535 = vpop.f32.mrb[0].mxu0
        %v1536 = vadd.f32 0.0, %v1535
        %v1537 = vpop.f32.mrb[0].mxu0
        %v1538 = vpop.f32.mrb[0].mxu0
        %v1539 = vpop.f32.mrb[0].mxu0
        %1540 = vdwg.mxu0
        %1541 = vmatprep.subr.bf16.mxu0 0
        %1542 = vmatpush1.bf16.msra.mxu0 %v580
        %1543 = vmatprep.subr.bf16.mxu0 0
        %1544 = vmatpush1.bf16.msra.mxu0 %v581
        %1545 = vmatprep.subr.bf16.mxu0 0
        %1546 = vmatpush1.bf16.msra.mxu0 %v582
        %1547 = vmatprep.subr.bf16.mxu0 0
        %1548 = vmatpush1.bf16.msra.mxu0 %v583
        %1549 = vmatprep.subr.bf16.mxu0 0
        %1550 = vmatpush1.bf16.msra.mxu0 %v584
        %1551 = vmatprep.subr.bf16.mxu0 0
        %1552 = vmatpush1.bf16.msra.mxu0 %v585
        %1553 = vmatprep.subr.bf16.mxu0 0
        %1554 = vmatpush1.bf16.msra.mxu0 %v586
        %1555 = vmatprep.subr.bf16.mxu0 0
        %1556 = vmatpush1.bf16.msra.mxu0 %v587
        %1557 = vmatprep.subr.bf16.mxu0 0
        %1558 = vmatpush1.bf16.msra.mxu0 %v588
        %1559 = vmatprep.subr.bf16.mxu0 0
        %1560 = vmatpush1.bf16.msra.mxu0 %v589
        %1561 = vmatprep.subr.bf16.mxu0 0
        %1562 = vmatpush1.bf16.msra.mxu0 %v590
        %1563 = vmatprep.subr.bf16.mxu0 0
        %1564 = vmatpush1.bf16.msra.mxu0 %v591
        %1565 = vmatprep.subr.bf16.mxu0 0
        %1566 = vmatpush1.bf16.msra.mxu0 0
        %1567 = vmatprep.subr.bf16.mxu0 0
        %1568 = vmatpush1.bf16.msra.mxu0 0
        %1569 = vmatprep.subr.bf16.mxu0 0
        %1570 = vmatpush1.bf16.msra.mxu0 0
        %1571 = vmatprep.subr.bf16.mxu0 0
        %1572 = vmatpush1.bf16.msra.mxu0 0
        %1573 = vmatprep.mubr.bf16.mxu0 %v1310
        %1574 = vmatmul.mubr.bf16.gmra.mrb[0].mxu0 %v1306
        %v1575 = vpop.f32.mrb[0].mxu0
        %v1576 = vadd.f32 %v1536, %v1575
        %v1577 = vpop.f32.mrb[0].mxu0
        %v1578 = vpop.f32.mrb[0].mxu0
        %v1579 = vpop.f32.mrb[0].mxu0
        %1580 = vdwg.mxu0
        %v1582 = vunpack.c.l.b16 %v353
        %v1583 = vunpack.c.h.b16 %v353
        %v1584 = vpack.c.b16 %v1582, %v1582
        %v1585 = vpack.c.b16 %v1583, %v1583
        %v1588 = vsel %vm482, %v1585, 0
        %1590 = vmatprep.subr.bf16.mxu0 0
        %1591 = vmatpush1.bf16.msra.mxu0 %v726
        %1592 = vmatprep.subr.bf16.mxu0 0
        %1593 = vmatpush1.bf16.msra.mxu0 %v727
        %1594 = vmatprep.subr.bf16.mxu0 0
        %1595 = vmatpush1.bf16.msra.mxu0 %v728
        %1596 = vmatprep.subr.bf16.mxu0 0
        %1597 = vmatpush1.bf16.msra.mxu0 %v729
        %1598 = vmatprep.subr.bf16.mxu0 0
        %1599 = vmatpush1.bf16.msra.mxu0 %v730
        %1600 = vmatprep.subr.bf16.mxu0 0
        %1601 = vmatpush1.bf16.msra.mxu0 %v731
        %1602 = vmatprep.subr.bf16.mxu0 0
        %1603 = vmatpush1.bf16.msra.mxu0 %v732
        %1604 = vmatprep.subr.bf16.mxu0 0
        %1605 = vmatpush1.bf16.msra.mxu0 %v733
        %1606 = vmatprep.subr.bf16.mxu0 0
        %1607 = vmatpush1.bf16.msra.mxu0 %v734
        %1608 = vmatprep.subr.bf16.mxu0 0
        %1609 = vmatpush1.bf16.msra.mxu0 %v735
        %1610 = vmatprep.subr.bf16.mxu0 0
        %1611 = vmatpush1.bf16.msra.mxu0 %v736
        %1612 = vmatprep.subr.bf16.mxu0 0
        %1613 = vmatpush1.bf16.msra.mxu0 %v737
        %1614 = vmatprep.subr.bf16.mxu0 0
        %1615 = vmatpush1.bf16.msra.mxu0 0
        %1616 = vmatprep.subr.bf16.mxu0 0
        %1617 = vmatpush1.bf16.msra.mxu0 0
        %1618 = vmatprep.subr.bf16.mxu0 0
        %1619 = vmatpush1.bf16.msra.mxu0 0
        %1620 = vmatprep.subr.bf16.mxu0 0
        %1621 = vmatpush1.bf16.msra.mxu0 0
        %1622 = vmatprep.mubr.bf16.mxu0 %v1588
        %1623 = vmatmul.mubr.bf16.gmra.mrb[0].mxu0 %v1584
        %v1624 = vpop.f32.mrb[0].mxu0
        %v1625 = vadd.f32 0.0, %v1624
        %v1626 = vpop.f32.mrb[0].mxu0
        %v1627 = vpop.f32.mrb[0].mxu0
        %v1628 = vpop.f32.mrb[0].mxu0
        %1629 = vdwg.mxu0
        %v1630 = vadd.f32 %v1576, %v1625
        %1631 = vmatprep.subr.bf16.mxu0 0
        %1632 = vmatpush1.bf16.msra.mxu0 %v458
        %1633 = vmatprep.subr.bf16.mxu0 0
        %1634 = vmatpush1.bf16.msra.mxu0 %v459
        %1635 = vmatprep.subr.bf16.mxu0 0
        %1636 = vmatpush1.bf16.msra.mxu0 %v460
        %1637 = vmatprep.subr.bf16.mxu0 0
        %1638 = vmatpush1.bf16.msra.mxu0 %v461
        %1639 = vmatprep.subr.bf16.mxu0 0
        %1640 = vmatpush1.bf16.msra.mxu0 %v462
        %1641 = vmatprep.subr.bf16.mxu0 0
        %1642 = vmatpush1.bf16.msra.mxu0 %v463
        %1643 = vmatprep.subr.bf16.mxu0 0
        %1644 = vmatpush1.bf16.msra.mxu0 %v464
        %1645 = vmatprep.subr.bf16.mxu0 0
        %1646 = vmatpush1.bf16.msra.mxu0 %v465
        %1647 = vmatprep.subr.bf16.mxu0 0
        %1648 = vmatpush1.bf16.msra.mxu0 %v466
        %1649 = vmatprep.subr.bf16.mxu0 0
        %1650 = vmatpush1.bf16.msra.mxu0 %v467
        %1651 = vmatprep.subr.bf16.mxu0 0
        %1652 = vmatpush1.bf16.msra.mxu0 %v468
        %1653 = vmatprep.subr.bf16.mxu0 0
        %1654 = vmatpush1.bf16.msra.mxu0 %v469
        %1655 = vmatprep.subr.bf16.mxu0 0
        %1656 = vmatpush1.bf16.msra.mxu0 0
        %1657 = vmatprep.subr.bf16.mxu0 0
        %1658 = vmatpush1.bf16.msra.mxu0 0
        %1659 = vmatprep.subr.bf16.mxu0 0
        %1660 = vmatpush1.bf16.msra.mxu0 0
        %1661 = vmatprep.subr.bf16.mxu0 0
        %1662 = vmatpush1.bf16.msra.mxu0 0
        %1663 = vmatprep.mubr.bf16.mxu0 %v1588
        %1664 = vmatmul.mubr.bf16.gmra.mrb[0].mxu0 %v1584
        %v1665 = vpop.f32.mrb[0].mxu0
        %v1666 = vadd.f32 0.0, %v1665
        %v1667 = vpop.f32.mrb[0].mxu0
        %v1668 = vpop.f32.mrb[0].mxu0
        %v1669 = vpop.f32.mrb[0].mxu0
        %1670 = vdwg.mxu0
        %1671 = vmatprep.subr.bf16.mxu0 0
        %1672 = vmatpush1.bf16.msra.mxu0 %v580
        %1673 = vmatprep.subr.bf16.mxu0 0
        %1674 = vmatpush1.bf16.msra.mxu0 %v581
        %1675 = vmatprep.subr.bf16.mxu0 0
        %1676 = vmatpush1.bf16.msra.mxu0 %v582
        %1677 = vmatprep.subr.bf16.mxu0 0
        %1678 = vmatpush1.bf16.msra.mxu0 %v583
        %1679 = vmatprep.subr.bf16.mxu0 0
        %1680 = vmatpush1.bf16.msra.mxu0 %v584
        %1681 = vmatprep.subr.bf16.mxu0 0
        %1682 = vmatpush1.bf16.msra.mxu0 %v585
        %1683 = vmatprep.subr.bf16.mxu0 0
        %1684 = vmatpush1.bf16.msra.mxu0 %v586
        %1685 = vmatprep.subr.bf16.mxu0 0
        %1686 = vmatpush1.bf16.msra.mxu0 %v587
        %1687 = vmatprep.subr.bf16.mxu0 0
        %1688 = vmatpush1.bf16.msra.mxu0 %v588
        %1689 = vmatprep.subr.bf16.mxu0 0
        %1690 = vmatpush1.bf16.msra.mxu0 %v589
        %1691 = vmatprep.subr.bf16.mxu0 0
        %1692 = vmatpush1.bf16.msra.mxu0 %v590
        %1693 = vmatprep.subr.bf16.mxu0 0
        %1694 = vmatpush1.bf16.msra.mxu0 %v591
        %1695 = vmatprep.subr.bf16.mxu0 0
        %1696 = vmatpush1.bf16.msra.mxu0 0
        %1697 = vmatprep.subr.bf16.mxu0 0
        %1698 = vmatpush1.bf16.msra.mxu0 0
        %1699 = vmatprep.subr.bf16.mxu0 0
        %1700 = vmatpush1.bf16.msra.mxu0 0
        %1701 = vmatprep.subr.bf16.mxu0 0
        %1702 = vmatpush1.bf16.msra.mxu0 0
        %1703 = vmatprep.mubr.bf16.mxu0 %v1440
        %1704 = vmatmul.mubr.bf16.gmra.mrb[0].mxu0 %v1436
        %v1705 = vpop.f32.mrb[0].mxu0
        %v1706 = vadd.f32 %v1666, %v1705
        %v1707 = vpop.f32.mrb[0].mxu0
        %v1708 = vpop.f32.mrb[0].mxu0
        %v1709 = vpop.f32.mrb[0].mxu0
        %1710 = vdwg.mxu0
        %v1712 = vunpack.c.l.b16 %v354
        %v1713 = vunpack.c.h.b16 %v354
        %v1714 = vpack.c.b16 %v1712, %v1712
        %v1715 = vpack.c.b16 %v1713, %v1713
        %v1718 = vsel %vm482, %v1715, 0
        %1720 = vmatprep.subr.bf16.mxu0 0
        %1721 = vmatpush1.bf16.msra.mxu0 %v726
        %1722 = vmatprep.subr.bf16.mxu0 0
        %1723 = vmatpush1.bf16.msra.mxu0 %v727
        %1724 = vmatprep.subr.bf16.mxu0 0
        %1725 = vmatpush1.bf16.msra.mxu0 %v728
        %1726 = vmatprep.subr.bf16.mxu0 0
        %1727 = vmatpush1.bf16.msra.mxu0 %v729
        %1728 = vmatprep.subr.bf16.mxu0 0
        %1729 = vmatpush1.bf16.msra.mxu0 %v730
        %1730 = vmatprep.subr.bf16.mxu0 0
        %1731 = vmatpush1.bf16.msra.mxu0 %v731
        %1732 = vmatprep.subr.bf16.mxu0 0
        %1733 = vmatpush1.bf16.msra.mxu0 %v732
        %1734 = vmatprep.subr.bf16.mxu0 0
        %1735 = vmatpush1.bf16.msra.mxu0 %v733
        %1736 = vmatprep.subr.bf16.mxu0 0
        %1737 = vmatpush1.bf16.msra.mxu0 %v734
        %1738 = vmatprep.subr.bf16.mxu0 0
        %1739 = vmatpush1.bf16.msra.mxu0 %v735
        %1740 = vmatprep.subr.bf16.mxu0 0
        %1741 = vmatpush1.bf16.msra.mxu0 %v736
        %1742 = vmatprep.subr.bf16.mxu0 0
        %1743 = vmatpush1.bf16.msra.mxu0 %v737
        %1744 = vmatprep.subr.bf16.mxu0 0
        %1745 = vmatpush1.bf16.msra.mxu0 0
        %1746 = vmatprep.subr.bf16.mxu0 0
        %1747 = vmatpush1.bf16.msra.mxu0 0
        %1748 = vmatprep.subr.bf16.mxu0 0
        %1749 = vmatpush1.bf16.msra.mxu0 0
        %1750 = vmatprep.subr.bf16.mxu0 0
        %1751 = vmatpush1.bf16.msra.mxu0 0
        %1752 = vmatprep.mubr.bf16.mxu0 %v1718
        %1753 = vmatmul.mubr.bf16.gmra.mrb[0].mxu0 %v1714
        %v1754 = vpop.f32.mrb[0].mxu0
        %v1755 = vadd.f32 0.0, %v1754
        %v1756 = vpop.f32.mrb[0].mxu0
        %v1757 = vpop.f32.mrb[0].mxu0
        %v1758 = vpop.f32.mrb[0].mxu0
        %1759 = vdwg.mxu0
        %v1760 = vadd.f32 %v1706, %v1755
        %v1761 = vmax.f32 %v1630, %v1760
        %v1762 = vadd.f32 %v1761, %v336
        %v1763 = vmax.f32 %v1762, 0.0
        %v1765 = vrot.slane %v1763, 1
        %v1767 = vmax.f32 %v1763, %v1765
        %v1769 = vrot.slane %v1767, 1
        %v1771 = vrot.slane %v1767, 2
        %v1773 = vrot.slane %v1767, 3
        %v1775 = vsel %vm938, %v1767, %v1769
        %v1776 = vsel %vm940, %v1775, %v1771
        %v1777 = vsel %vm942, %v1776, %v1773
        %v1778 = vpack.c.bf16 %v1777, %v1777
        %v1779 = vld [vmem:[%s3] sm:$0xf]
        %v1780 = vld [vmem:[%s3 + $0x4] sm:$0xf]
        %v1781 = vld [vmem:[%s3 + $0x8] sm:$0xf]
        %v1782 = vld [vmem:[%s3 + $0xc] sm:$0xf]
        %v1783 = vld [vmem:[%s3 + $0x10] sm:$0xf]
        %v1784 = vld [vmem:[%s3 + $0x14] sm:$0xf]
        %v1785 = vld [vmem:[%s3 + $0x18] sm:$0xf]
        %v1786 = vld [vmem:[%s3 + $0x1c] sm:$0xf]
        %v1787 = vld [vmem:[%s3 + $0x20] sm:$0xf]
        %v1788 = vld [vmem:[%s3 + $0x24] sm:$0xf]
        %v1789 = vld [vmem:[%s3 + $0x28] sm:$0xf]
        %v1790 = vld [vmem:[%s3 + $0x2c] sm:$0xf]
        %v1791 = vld [vmem:[%s3 + $0x30] sm:$0xf]
        %v1792 = vld [vmem:[%s3 + $0x34] sm:$0xf]
        %v1793 = vld [vmem:[%s3 + $0x38] sm:$0xf]
        %v1794 = vld [vmem:[%s3 + $0x3c] sm:$0xf]
        %s1795 = scalar_lea.vmem %s3, 64
        %v1796 = vld [vmem:[%s1795] sm:$0xf]
        %v1797 = vld [vmem:[%s1795 + $0x4] sm:$0xf]
        %v1798 = vld [vmem:[%s1795 + $0x8] sm:$0xf]
        %v1799 = vld [vmem:[%s1795 + $0xc] sm:$0xf]
        %v1800 = vld [vmem:[%s1795 + $0x10] sm:$0xf]
        %v1801 = vld [vmem:[%s1795 + $0x14] sm:$0xf]
        %v1802 = vld [vmem:[%s1795 + $0x18] sm:$0xf]
        %v1803 = vld [vmem:[%s1795 + $0x1c] sm:$0xf]
        %v1804 = vld [vmem:[%s1795 + $0x20] sm:$0xf]
        %v1805 = vld [vmem:[%s1795 + $0x24] sm:$0xf]
        %v1806 = vld [vmem:[%s1795 + $0x28] sm:$0xf]
        %v1807 = vld [vmem:[%s1795 + $0x2c] sm:$0xf]
        %v1808 = vld [vmem:[%s1795 + $0x30] sm:$0xf]
        %v1809 = vld [vmem:[%s1795 + $0x34] sm:$0xf]
        %v1810 = vld [vmem:[%s1795 + $0x38] sm:$0xf]
        %v1811 = vld [vmem:[%s1795 + $0x3c] sm:$0xf]
        %v1813 = vshrl.u32 %v944, 16
        %v1815 = vshll.u32 %v944, 16
        %v1817 = vrot.slane %v1815, 1
        %v1818 = vor.u32 %v1813, %v1817
        %v1836 = vunpack.c.l.b16 %v1796
        %v1837 = vunpack.c.l.b16 %v1797
        %v1838 = vunpack.c.l.b16 %v1798
        %v1839 = vunpack.c.l.b16 %v1799
        %v1840 = vunpack.c.l.b16 %v1800
        %v1841 = vunpack.c.l.b16 %v1801
        %v1842 = vunpack.c.l.b16 %v1802
        %v1843 = vunpack.c.l.b16 %v1803
        %v1844 = vunpack.c.l.b16 %v1804
        %v1845 = vunpack.c.l.b16 %v1805
        %v1846 = vunpack.c.l.b16 %v1806
        %v1847 = vunpack.c.l.b16 %v1807
        %v1848 = vunpack.c.l.b16 %v1808
        %v1849 = vunpack.c.l.b16 %v1809
        %v1850 = vunpack.c.l.b16 %v1810
        %v1851 = vunpack.c.l.b16 %v1811
        %v1852 = vpack.c.b16 %v1837, %v1836
        %v1853 = vpack.c.b16 %v1839, %v1838
        %v1854 = vpack.c.b16 %v1841, %v1840
        %v1855 = vpack.c.b16 %v1843, %v1842
        %v1856 = vpack.c.b16 %v1845, %v1844
        %v1857 = vpack.c.b16 %v1847, %v1846
        %v1858 = vpack.c.b16 %v1849, %v1848
        %v1859 = vpack.c.b16 %v1851, %v1850
        %1868 = vmatprep.subr.bf16.mxu0 0
        %1869 = vmatpush1.bf16.msra.mxu0 %v1852
        %1870 = vmatprep.subr.bf16.mxu0 0
        %1871 = vmatpush1.bf16.msra.mxu0 %v1853
        %1872 = vmatprep.subr.bf16.mxu0 0
        %1873 = vmatpush1.bf16.msra.mxu0 %v1854
        %1874 = vmatprep.subr.bf16.mxu0 0
        %1875 = vmatpush1.bf16.msra.mxu0 %v1855
        %1876 = vmatprep.subr.bf16.mxu0 0
        %1877 = vmatpush1.bf16.msra.mxu0 %v1856
        %1878 = vmatprep.subr.bf16.mxu0 0
        %1879 = vmatpush1.bf16.msra.mxu0 %v1857
        %1880 = vmatprep.subr.bf16.mxu0 0
        %1881 = vmatpush1.bf16.msra.mxu0 %v1858
        %1882 = vmatprep.subr.bf16.mxu0 0
        %1883 = vmatpush1.bf16.msra.mxu0 %v1859
        %1884 = vmatprep.subr.bf16.mxu0 0
        %1885 = vmatpush1.bf16.msra.mxu0 0
        %1886 = vmatprep.subr.bf16.mxu0 0
        %1887 = vmatpush1.bf16.msra.mxu0 0
        %1888 = vmatprep.subr.bf16.mxu0 0
        %1889 = vmatpush1.bf16.msra.mxu0 0
        %1890 = vmatprep.subr.bf16.mxu0 0
        %1891 = vmatpush1.bf16.msra.mxu0 0
        %1892 = vmatprep.subr.bf16.mxu0 0
        %1893 = vmatpush1.bf16.msra.mxu0 0
        %1894 = vmatprep.subr.bf16.mxu0 0
        %1895 = vmatpush1.bf16.msra.mxu0 0
        %1896 = vmatprep.subr.bf16.mxu0 0
        %1897 = vmatpush1.bf16.msra.mxu0 0
        %1898 = vmatprep.subr.bf16.mxu0 0
        %1899 = vmatpush1.bf16.msra.mxu0 0
        %1900 = vmatprep.mubr.bf16.mxu0 0
        %1901 = vmatmul.mubr.bf16.gmra.mrb[0].mxu0 %v1818
        %v1902 = vpop.f32.mrb[0].mxu0
        %v1903 = vadd.f32 0.0, %v1902
        %v1904 = vpop.f32.mrb[0].mxu0
        %v1905 = vpop.f32.mrb[0].mxu0
        %v1906 = vpop.f32.mrb[0].mxu0
        %1907 = vdwg.mxu0
        %v1924 = vunpack.c.l.b16 %v1779
        %v1925 = vunpack.c.l.b16 %v1780
        %v1926 = vunpack.c.l.b16 %v1781
        %v1927 = vunpack.c.l.b16 %v1782
        %v1928 = vunpack.c.l.b16 %v1783
        %v1929 = vunpack.c.l.b16 %v1784
        %v1930 = vunpack.c.l.b16 %v1785
        %v1931 = vunpack.c.l.b16 %v1786
        %v1932 = vunpack.c.l.b16 %v1787
        %v1933 = vunpack.c.l.b16 %v1788
        %v1934 = vunpack.c.l.b16 %v1789
        %v1935 = vunpack.c.l.b16 %v1790
        %v1936 = vunpack.c.l.b16 %v1791
        %v1937 = vunpack.c.l.b16 %v1792
        %v1938 = vunpack.c.l.b16 %v1793
        %v1939 = vunpack.c.l.b16 %v1794
        %v1940 = vpack.c.b16 %v1925, %v1924
        %v1941 = vpack.c.b16 %v1927, %v1926
        %v1942 = vpack.c.b16 %v1929, %v1928
        %v1943 = vpack.c.b16 %v1931, %v1930
        %v1944 = vpack.c.b16 %v1933, %v1932
        %v1945 = vpack.c.b16 %v1935, %v1934
        %v1946 = vpack.c.b16 %v1937, %v1936
        %v1947 = vpack.c.b16 %v1939, %v1938
        %1956 = vmatprep.subr.bf16.mxu0 0
        %1957 = vmatpush1.bf16.msra.mxu0 %v1940
        %1958 = vmatprep.subr.bf16.mxu0 0
        %1959 = vmatpush1.bf16.msra.mxu0 %v1941
        %1960 = vmatprep.subr.bf16.mxu0 0
        %1961 = vmatpush1.bf16.msra.mxu0 %v1942
        %1962 = vmatprep.subr.bf16.mxu0 0
        %1963 = vmatpush1.bf16.msra.mxu0 %v1943
        %1964 = vmatprep.subr.bf16.mxu0 0
        %1965 = vmatpush1.bf16.msra.mxu0 %v1944
        %1966 = vmatprep.subr.bf16.mxu0 0
        %1967 = vmatpush1.bf16.msra.mxu0 %v1945
        %1968 = vmatprep.subr.bf16.mxu0 0
        %1969 = vmatpush1.bf16.msra.mxu0 %v1946
        %1970 = vmatprep.subr.bf16.mxu0 0
        %1971 = vmatpush1.bf16.msra.mxu0 %v1947
        %1972 = vmatprep.subr.bf16.mxu0 0
        %1973 = vmatpush1.bf16.msra.mxu0 0
        %1974 = vmatprep.subr.bf16.mxu0 0
        %1975 = vmatpush1.bf16.msra.mxu0 0
        %1976 = vmatprep.subr.bf16.mxu0 0
        %1977 = vmatpush1.bf16.msra.mxu0 0
        %1978 = vmatprep.subr.bf16.mxu0 0
        %1979 = vmatpush1.bf16.msra.mxu0 0
        %1980 = vmatprep.subr.bf16.mxu0 0
        %1981 = vmatpush1.bf16.msra.mxu0 0
        %1982 = vmatprep.subr.bf16.mxu0 0
        %1983 = vmatpush1.bf16.msra.mxu0 0
        %1984 = vmatprep.subr.bf16.mxu0 0
        %1985 = vmatpush1.bf16.msra.mxu0 0
        %1986 = vmatprep.subr.bf16.mxu0 0
        %1987 = vmatpush1.bf16.msra.mxu0 0
        %1988 = vmatprep.mubr.bf16.mxu0 0
        %1989 = vmatmul.mubr.bf16.gmra.mrb[0].mxu0 %v944
        %v1990 = vpop.f32.mrb[0].mxu0
        %v1991 = vadd.f32 %v1903, %v1990
        %v1992 = vpop.f32.mrb[0].mxu0
        %v1993 = vpop.f32.mrb[0].mxu0
        %v1994 = vpop.f32.mrb[0].mxu0
        %1995 = vdwg.mxu0
        %s1996 = scalar_lea.vmem %s3, 128
        %v1997 = vld [vmem:[%s1996] sm:$0xf]
        %v1998 = vld [vmem:[%s1996 + $0x4] sm:$0xf]
        %v1999 = vld [vmem:[%s1996 + $0x8] sm:$0xf]
        %v2000 = vld [vmem:[%s1996 + $0xc] sm:$0xf]
        %v2001 = vld [vmem:[%s1996 + $0x10] sm:$0xf]
        %v2002 = vld [vmem:[%s1996 + $0x14] sm:$0xf]
        %v2003 = vld [vmem:[%s1996 + $0x18] sm:$0xf]
        %v2004 = vld [vmem:[%s1996 + $0x1c] sm:$0xf]
        %v2005 = vld [vmem:[%s1996 + $0x20] sm:$0xf]
        %v2006 = vld [vmem:[%s1996 + $0x24] sm:$0xf]
        %v2007 = vld [vmem:[%s1996 + $0x28] sm:$0xf]
        %v2008 = vld [vmem:[%s1996 + $0x2c] sm:$0xf]
        %v2009 = vld [vmem:[%s1996 + $0x30] sm:$0xf]
        %v2010 = vld [vmem:[%s1996 + $0x34] sm:$0xf]
        %v2011 = vld [vmem:[%s1996 + $0x38] sm:$0xf]
        %v2012 = vld [vmem:[%s1996 + $0x3c] sm:$0xf]
        %v2014 = vrot.slane %v944, 1
        %v2032 = vunpack.c.l.b16 %v1997
        %v2033 = vunpack.c.l.b16 %v1998
        %v2034 = vunpack.c.l.b16 %v1999
        %v2035 = vunpack.c.l.b16 %v2000
        %v2036 = vunpack.c.l.b16 %v2001
        %v2037 = vunpack.c.l.b16 %v2002
        %v2038 = vunpack.c.l.b16 %v2003
        %v2039 = vunpack.c.l.b16 %v2004
        %v2040 = vunpack.c.l.b16 %v2005
        %v2041 = vunpack.c.l.b16 %v2006
        %v2042 = vunpack.c.l.b16 %v2007
        %v2043 = vunpack.c.l.b16 %v2008
        %v2044 = vunpack.c.l.b16 %v2009
        %v2045 = vunpack.c.l.b16 %v2010
        %v2046 = vunpack.c.l.b16 %v2011
        %v2047 = vunpack.c.l.b16 %v2012
        %v2048 = vpack.c.b16 %v2033, %v2032
        %v2049 = vpack.c.b16 %v2035, %v2034
        %v2050 = vpack.c.b16 %v2037, %v2036
        %v2051 = vpack.c.b16 %v2039, %v2038
        %v2052 = vpack.c.b16 %v2041, %v2040
        %v2053 = vpack.c.b16 %v2043, %v2042
        %v2054 = vpack.c.b16 %v2045, %v2044
        %v2055 = vpack.c.b16 %v2047, %v2046
        %2064 = vmatprep.subr.bf16.mxu0 0
        %2065 = vmatpush1.bf16.msra.mxu0 %v2048
        %2066 = vmatprep.subr.bf16.mxu0 0
        %2067 = vmatpush1.bf16.msra.mxu0 %v2049
        %2068 = vmatprep.subr.bf16.mxu0 0
        %2069 = vmatpush1.bf16.msra.mxu0 %v2050
        %2070 = vmatprep.subr.bf16.mxu0 0
        %2071 = vmatpush1.bf16.msra.mxu0 %v2051
        %2072 = vmatprep.subr.bf16.mxu0 0
        %2073 = vmatpush1.bf16.msra.mxu0 %v2052
        %2074 = vmatprep.subr.bf16.mxu0 0
        %2075 = vmatpush1.bf16.msra.mxu0 %v2053
        %2076 = vmatprep.subr.bf16.mxu0 0
        %2077 = vmatpush1.bf16.msra.mxu0 %v2054
        %2078 = vmatprep.subr.bf16.mxu0 0
        %2079 = vmatpush1.bf16.msra.mxu0 %v2055
        %2080 = vmatprep.subr.bf16.mxu0 0
        %2081 = vmatpush1.bf16.msra.mxu0 0
        %2082 = vmatprep.subr.bf16.mxu0 0
        %2083 = vmatpush1.bf16.msra.mxu0 0
        %2084 = vmatprep.subr.bf16.mxu0 0
        %2085 = vmatpush1.bf16.msra.mxu0 0
        %2086 = vmatprep.subr.bf16.mxu0 0
        %2087 = vmatpush1.bf16.msra.mxu0 0
        %2088 = vmatprep.subr.bf16.mxu0 0
        %2089 = vmatpush1.bf16.msra.mxu0 0
        %2090 = vmatprep.subr.bf16.mxu0 0
        %2091 = vmatpush1.bf16.msra.mxu0 0
        %2092 = vmatprep.subr.bf16.mxu0 0
        %2093 = vmatpush1.bf16.msra.mxu0 0
        %2094 = vmatprep.subr.bf16.mxu0 0
        %2095 = vmatpush1.bf16.msra.mxu0 0
        %2096 = vmatprep.mubr.bf16.mxu0 0
        %2097 = vmatmul.mubr.bf16.gmra.mrb[0].mxu0 %v2014
        %v2098 = vpop.f32.mrb[0].mxu0
        %v2099 = vadd.f32 0.0, %v2098
        %v2100 = vpop.f32.mrb[0].mxu0
        %v2101 = vpop.f32.mrb[0].mxu0
        %v2102 = vpop.f32.mrb[0].mxu0
        %2103 = vdwg.mxu0
        %v2104 = vadd.f32 %v1991, %v2099
        %s2105 = scalar_lea.vmem %s3, 192
        %v2106 = vld [vmem:[%s2105] sm:$0xf]
        %v2107 = vld [vmem:[%s2105 + $0x4] sm:$0xf]
        %v2108 = vld [vmem:[%s2105 + $0x8] sm:$0xf]
        %v2109 = vld [vmem:[%s2105 + $0xc] sm:$0xf]
        %v2110 = vld [vmem:[%s2105 + $0x10] sm:$0xf]
        %v2111 = vld [vmem:[%s2105 + $0x14] sm:$0xf]
        %v2112 = vld [vmem:[%s2105 + $0x18] sm:$0xf]
        %v2113 = vld [vmem:[%s2105 + $0x1c] sm:$0xf]
        %v2114 = vld [vmem:[%s2105 + $0x20] sm:$0xf]
        %v2115 = vld [vmem:[%s2105 + $0x24] sm:$0xf]
        %v2116 = vld [vmem:[%s2105 + $0x28] sm:$0xf]
        %v2117 = vld [vmem:[%s2105 + $0x2c] sm:$0xf]
        %v2118 = vld [vmem:[%s2105 + $0x30] sm:$0xf]
        %v2119 = vld [vmem:[%s2105 + $0x34] sm:$0xf]
        %v2120 = vld [vmem:[%s2105 + $0x38] sm:$0xf]
        %v2121 = vld [vmem:[%s2105 + $0x3c] sm:$0xf]
        %v2138 = vunpack.c.l.b16 %v2106
        %v2139 = vunpack.c.l.b16 %v2107
        %v2140 = vunpack.c.l.b16 %v2108
        %v2141 = vunpack.c.l.b16 %v2109
        %v2142 = vunpack.c.l.b16 %v2110
        %v2143 = vunpack.c.l.b16 %v2111
        %v2144 = vunpack.c.l.b16 %v2112
        %v2145 = vunpack.c.l.b16 %v2113
        %v2146 = vunpack.c.l.b16 %v2114
        %v2147 = vunpack.c.l.b16 %v2115
        %v2148 = vunpack.c.l.b16 %v2116
        %v2149 = vunpack.c.l.b16 %v2117
        %v2150 = vunpack.c.l.b16 %v2118
        %v2151 = vunpack.c.l.b16 %v2119
        %v2152 = vunpack.c.l.b16 %v2120
        %v2153 = vunpack.c.l.b16 %v2121
        %v2154 = vpack.c.b16 %v2139, %v2138
        %v2155 = vpack.c.b16 %v2141, %v2140
        %v2156 = vpack.c.b16 %v2143, %v2142
        %v2157 = vpack.c.b16 %v2145, %v2144
        %v2158 = vpack.c.b16 %v2147, %v2146
        %v2159 = vpack.c.b16 %v2149, %v2148
        %v2160 = vpack.c.b16 %v2151, %v2150
        %v2161 = vpack.c.b16 %v2153, %v2152
        %2170 = vmatprep.subr.bf16.mxu0 0
        %2171 = vmatpush1.bf16.msra.mxu0 %v2154
        %2172 = vmatprep.subr.bf16.mxu0 0
        %2173 = vmatpush1.bf16.msra.mxu0 %v2155
        %2174 = vmatprep.subr.bf16.mxu0 0
        %2175 = vmatpush1.bf16.msra.mxu0 %v2156
        %2176 = vmatprep.subr.bf16.mxu0 0
        %2177 = vmatpush1.bf16.msra.mxu0 %v2157
        %2178 = vmatprep.subr.bf16.mxu0 0
        %2179 = vmatpush1.bf16.msra.mxu0 %v2158
        %2180 = vmatprep.subr.bf16.mxu0 0
        %2181 = vmatpush1.bf16.msra.mxu0 %v2159
        %2182 = vmatprep.subr.bf16.mxu0 0
        %2183 = vmatpush1.bf16.msra.mxu0 %v2160
        %2184 = vmatprep.subr.bf16.mxu0 0
        %2185 = vmatpush1.bf16.msra.mxu0 %v2161
        %2186 = vmatprep.subr.bf16.mxu0 0
        %2187 = vmatpush1.bf16.msra.mxu0 0
        %2188 = vmatprep.subr.bf16.mxu0 0
        %2189 = vmatpush1.bf16.msra.mxu0 0
        %2190 = vmatprep.subr.bf16.mxu0 0
        %2191 = vmatpush1.bf16.msra.mxu0 0
        %2192 = vmatprep.subr.bf16.mxu0 0
        %2193 = vmatpush1.bf16.msra.mxu0 0
        %2194 = vmatprep.subr.bf16.mxu0 0
        %2195 = vmatpush1.bf16.msra.mxu0 0
        %2196 = vmatprep.subr.bf16.mxu0 0
        %2197 = vmatpush1.bf16.msra.mxu0 0
        %2198 = vmatprep.subr.bf16.mxu0 0
        %2199 = vmatpush1.bf16.msra.mxu0 0
        %2200 = vmatprep.subr.bf16.mxu0 0
        %2201 = vmatpush1.bf16.msra.mxu0 0
        %2202 = vmatprep.mubr.bf16.mxu0 0
        %2203 = vmatmul.mubr.bf16.gmra.mrb[0].mxu0 %v1222
        %v2204 = vpop.f32.mrb[0].mxu0
        %v2205 = vadd.f32 0.0, %v2204
        %v2206 = vpop.f32.mrb[0].mxu0
        %v2207 = vpop.f32.mrb[0].mxu0
        %v2208 = vpop.f32.mrb[0].mxu0
        %2209 = vdwg.mxu0
        %v2210 = vadd.f32 %v2104, %v2205
        %s2211 = scalar_lea.vmem %s3, 256
        %v2212 = vld [vmem:[%s2211] sm:$0xf]
        %v2213 = vld [vmem:[%s2211 + $0x4] sm:$0xf]
        %v2214 = vld [vmem:[%s2211 + $0x8] sm:$0xf]
        %v2215 = vld [vmem:[%s2211 + $0xc] sm:$0xf]
        %v2216 = vld [vmem:[%s2211 + $0x10] sm:$0xf]
        %v2217 = vld [vmem:[%s2211 + $0x14] sm:$0xf]
        %v2218 = vld [vmem:[%s2211 + $0x18] sm:$0xf]
        %v2219 = vld [vmem:[%s2211 + $0x1c] sm:$0xf]
        %v2220 = vld [vmem:[%s2211 + $0x20] sm:$0xf]
        %v2221 = vld [vmem:[%s2211 + $0x24] sm:$0xf]
        %v2222 = vld [vmem:[%s2211 + $0x28] sm:$0xf]
        %v2223 = vld [vmem:[%s2211 + $0x2c] sm:$0xf]
        %v2224 = vld [vmem:[%s2211 + $0x30] sm:$0xf]
        %v2225 = vld [vmem:[%s2211 + $0x34] sm:$0xf]
        %v2226 = vld [vmem:[%s2211 + $0x38] sm:$0xf]
        %v2227 = vld [vmem:[%s2211 + $0x3c] sm:$0xf]
        %v2229 = vshrl.u32 %v1222, 16
        %v2231 = vshll.u32 %v1222, 16
        %v2233 = vrot.slane %v2231, 1
        %v2234 = vor.u32 %v2229, %v2233
        %v2252 = vunpack.c.l.b16 %v2212
        %v2253 = vunpack.c.l.b16 %v2213
        %v2254 = vunpack.c.l.b16 %v2214
        %v2255 = vunpack.c.l.b16 %v2215
        %v2256 = vunpack.c.l.b16 %v2216
        %v2257 = vunpack.c.l.b16 %v2217
        %v2258 = vunpack.c.l.b16 %v2218
        %v2259 = vunpack.c.l.b16 %v2219
        %v2260 = vunpack.c.l.b16 %v2220
        %v2261 = vunpack.c.l.b16 %v2221
        %v2262 = vunpack.c.l.b16 %v2222
        %v2263 = vunpack.c.l.b16 %v2223
        %v2264 = vunpack.c.l.b16 %v2224
        %v2265 = vunpack.c.l.b16 %v2225
        %v2266 = vunpack.c.l.b16 %v2226
        %v2267 = vunpack.c.l.b16 %v2227
        %v2268 = vpack.c.b16 %v2253, %v2252
        %v2269 = vpack.c.b16 %v2255, %v2254
        %v2270 = vpack.c.b16 %v2257, %v2256
        %v2271 = vpack.c.b16 %v2259, %v2258
        %v2272 = vpack.c.b16 %v2261, %v2260
        %v2273 = vpack.c.b16 %v2263, %v2262
        %v2274 = vpack.c.b16 %v2265, %v2264
        %v2275 = vpack.c.b16 %v2267, %v2266
        %2284 = vmatprep.subr.bf16.mxu0 0
        %2285 = vmatpush1.bf16.msra.mxu0 %v2268
        %2286 = vmatprep.subr.bf16.mxu0 0
        %2287 = vmatpush1.bf16.msra.mxu0 %v2269
        %2288 = vmatprep.subr.bf16.mxu0 0
        %2289 = vmatpush1.bf16.msra.mxu0 %v2270
        %2290 = vmatprep.subr.bf16.mxu0 0
        %2291 = vmatpush1.bf16.msra.mxu0 %v2271
        %2292 = vmatprep.subr.bf16.mxu0 0
        %2293 = vmatpush1.bf16.msra.mxu0 %v2272
        %2294 = vmatprep.subr.bf16.mxu0 0
        %2295 = vmatpush1.bf16.msra.mxu0 %v2273
        %2296 = vmatprep.subr.bf16.mxu0 0
        %2297 = vmatpush1.bf16.msra.mxu0 %v2274
        %2298 = vmatprep.subr.bf16.mxu0 0
        %2299 = vmatpush1.bf16.msra.mxu0 %v2275
        %2300 = vmatprep.subr.bf16.mxu0 0
        %2301 = vmatpush1.bf16.msra.mxu0 0
        %2302 = vmatprep.subr.bf16.mxu0 0
        %2303 = vmatpush1.bf16.msra.mxu0 0
        %2304 = vmatprep.subr.bf16.mxu0 0
        %2305 = vmatpush1.bf16.msra.mxu0 0
        %2306 = vmatprep.subr.bf16.mxu0 0
        %2307 = vmatpush1.bf16.msra.mxu0 0
        %2308 = vmatprep.subr.bf16.mxu0 0
        %2309 = vmatpush1.bf16.msra.mxu0 0
        %2310 = vmatprep.subr.bf16.mxu0 0
        %2311 = vmatpush1.bf16.msra.mxu0 0
        %2312 = vmatprep.subr.bf16.mxu0 0
        %2313 = vmatpush1.bf16.msra.mxu0 0
        %2314 = vmatprep.subr.bf16.mxu0 0
        %2315 = vmatpush1.bf16.msra.mxu0 0
        %2316 = vmatprep.mubr.bf16.mxu0 0
        %2317 = vmatmul.mubr.bf16.gmra.mrb[0].mxu0 %v2234
        %v2318 = vpop.f32.mrb[0].mxu0
        %v2319 = vadd.f32 0.0, %v2318
        %v2320 = vpop.f32.mrb[0].mxu0
        %v2321 = vpop.f32.mrb[0].mxu0
        %v2322 = vpop.f32.mrb[0].mxu0
        %2323 = vdwg.mxu0
        %v2324 = vadd.f32 %v2210, %v2319
        %s2325 = scalar_lea.vmem %s3, 320
        %v2326 = vld [vmem:[%s2325] sm:$0xf]
        %v2327 = vld [vmem:[%s2325 + $0x4] sm:$0xf]
        %v2328 = vld [vmem:[%s2325 + $0x8] sm:$0xf]
        %v2329 = vld [vmem:[%s2325 + $0xc] sm:$0xf]
        %v2330 = vld [vmem:[%s2325 + $0x10] sm:$0xf]
        %v2331 = vld [vmem:[%s2325 + $0x14] sm:$0xf]
        %v2332 = vld [vmem:[%s2325 + $0x18] sm:$0xf]
        %v2333 = vld [vmem:[%s2325 + $0x1c] sm:$0xf]
        %v2334 = vld [vmem:[%s2325 + $0x20] sm:$0xf]
        %v2335 = vld [vmem:[%s2325 + $0x24] sm:$0xf]
        %v2336 = vld [vmem:[%s2325 + $0x28] sm:$0xf]
        %v2337 = vld [vmem:[%s2325 + $0x2c] sm:$0xf]
        %v2338 = vld [vmem:[%s2325 + $0x30] sm:$0xf]
        %v2339 = vld [vmem:[%s2325 + $0x34] sm:$0xf]
        %v2340 = vld [vmem:[%s2325 + $0x38] sm:$0xf]
        %v2341 = vld [vmem:[%s2325 + $0x3c] sm:$0xf]
        %v2343 = vrot.slane %v1222, 1
        %v2361 = vunpack.c.l.b16 %v2326
        %v2362 = vunpack.c.l.b16 %v2327
        %v2363 = vunpack.c.l.b16 %v2328
        %v2364 = vunpack.c.l.b16 %v2329
        %v2365 = vunpack.c.l.b16 %v2330
        %v2366 = vunpack.c.l.b16 %v2331
        %v2367 = vunpack.c.l.b16 %v2332
        %v2368 = vunpack.c.l.b16 %v2333
        %v2369 = vunpack.c.l.b16 %v2334
        %v2370 = vunpack.c.l.b16 %v2335
        %v2371 = vunpack.c.l.b16 %v2336
        %v2372 = vunpack.c.l.b16 %v2337
        %v2373 = vunpack.c.l.b16 %v2338
        %v2374 = vunpack.c.l.b16 %v2339
        %v2375 = vunpack.c.l.b16 %v2340
        %v2376 = vunpack.c.l.b16 %v2341
        %v2377 = vpack.c.b16 %v2362, %v2361
        %v2378 = vpack.c.b16 %v2364, %v2363
        %v2379 = vpack.c.b16 %v2366, %v2365
        %v2380 = vpack.c.b16 %v2368, %v2367
        %v2381 = vpack.c.b16 %v2370, %v2369
        %v2382 = vpack.c.b16 %v2372, %v2371
        %v2383 = vpack.c.b16 %v2374, %v2373
        %v2384 = vpack.c.b16 %v2376, %v2375
        %2393 = vmatprep.subr.bf16.mxu0 0
        %2394 = vmatpush1.bf16.msra.mxu0 %v2377
        %2395 = vmatprep.subr.bf16.mxu0 0
        %2396 = vmatpush1.bf16.msra.mxu0 %v2378
        %2397 = vmatprep.subr.bf16.mxu0 0
        %2398 = vmatpush1.bf16.msra.mxu0 %v2379
        %2399 = vmatprep.subr.bf16.mxu0 0
        %2400 = vmatpush1.bf16.msra.mxu0 %v2380
        %2401 = vmatprep.subr.bf16.mxu0 0
        %2402 = vmatpush1.bf16.msra.mxu0 %v2381
        %2403 = vmatprep.subr.bf16.mxu0 0
        %2404 = vmatpush1.bf16.msra.mxu0 %v2382
        %2405 = vmatprep.subr.bf16.mxu0 0
        %2406 = vmatpush1.bf16.msra.mxu0 %v2383
        %2407 = vmatprep.subr.bf16.mxu0 0
        %2408 = vmatpush1.bf16.msra.mxu0 %v2384
        %2409 = vmatprep.subr.bf16.mxu0 0
        %2410 = vmatpush1.bf16.msra.mxu0 0
        %2411 = vmatprep.subr.bf16.mxu0 0
        %2412 = vmatpush1.bf16.msra.mxu0 0
        %2413 = vmatprep.subr.bf16.mxu0 0
        %2414 = vmatpush1.bf16.msra.mxu0 0
        %2415 = vmatprep.subr.bf16.mxu0 0
        %2416 = vmatpush1.bf16.msra.mxu0 0
        %2417 = vmatprep.subr.bf16.mxu0 0
        %2418 = vmatpush1.bf16.msra.mxu0 0
        %2419 = vmatprep.subr.bf16.mxu0 0
        %2420 = vmatpush1.bf16.msra.mxu0 0
        %2421 = vmatprep.subr.bf16.mxu0 0
        %2422 = vmatpush1.bf16.msra.mxu0 0
        %2423 = vmatprep.subr.bf16.mxu0 0
        %2424 = vmatpush1.bf16.msra.mxu0 0
        %2425 = vmatprep.mubr.bf16.mxu0 0
        %2426 = vmatmul.mubr.bf16.gmra.mrb[0].mxu0 %v2343
        %v2427 = vpop.f32.mrb[0].mxu0
        %v2428 = vadd.f32 0.0, %v2427
        %v2429 = vpop.f32.mrb[0].mxu0
        %v2430 = vpop.f32.mrb[0].mxu0
        %v2431 = vpop.f32.mrb[0].mxu0
        %2432 = vdwg.mxu0
        %v2433 = vadd.f32 %v2324, %v2428
        %s2434 = scalar_lea.vmem %s3, 384
        %v2435 = vld [vmem:[%s2434] sm:$0xf]
        %v2436 = vld [vmem:[%s2434 + $0x4] sm:$0xf]
        %v2437 = vld [vmem:[%s2434 + $0x8] sm:$0xf]
        %v2438 = vld [vmem:[%s2434 + $0xc] sm:$0xf]
        %v2439 = vld [vmem:[%s2434 + $0x10] sm:$0xf]
        %v2440 = vld [vmem:[%s2434 + $0x14] sm:$0xf]
        %v2441 = vld [vmem:[%s2434 + $0x18] sm:$0xf]
        %v2442 = vld [vmem:[%s2434 + $0x1c] sm:$0xf]
        %v2443 = vld [vmem:[%s2434 + $0x20] sm:$0xf]
        %v2444 = vld [vmem:[%s2434 + $0x24] sm:$0xf]
        %v2445 = vld [vmem:[%s2434 + $0x28] sm:$0xf]
        %v2446 = vld [vmem:[%s2434 + $0x2c] sm:$0xf]
        %v2447 = vld [vmem:[%s2434 + $0x30] sm:$0xf]
        %v2448 = vld [vmem:[%s2434 + $0x34] sm:$0xf]
        %v2449 = vld [vmem:[%s2434 + $0x38] sm:$0xf]
        %v2450 = vld [vmem:[%s2434 + $0x3c] sm:$0xf]
        %v2467 = vunpack.c.l.b16 %v2435
        %v2468 = vunpack.c.l.b16 %v2436
        %v2469 = vunpack.c.l.b16 %v2437
        %v2470 = vunpack.c.l.b16 %v2438
        %v2471 = vunpack.c.l.b16 %v2439
        %v2472 = vunpack.c.l.b16 %v2440
        %v2473 = vunpack.c.l.b16 %v2441
        %v2474 = vunpack.c.l.b16 %v2442
        %v2475 = vunpack.c.l.b16 %v2443
        %v2476 = vunpack.c.l.b16 %v2444
        %v2477 = vunpack.c.l.b16 %v2445
        %v2478 = vunpack.c.l.b16 %v2446
        %v2479 = vunpack.c.l.b16 %v2447
        %v2480 = vunpack.c.l.b16 %v2448
        %v2481 = vunpack.c.l.b16 %v2449
        %v2482 = vunpack.c.l.b16 %v2450
        %v2483 = vpack.c.b16 %v2468, %v2467
        %v2484 = vpack.c.b16 %v2470, %v2469
        %v2485 = vpack.c.b16 %v2472, %v2471
        %v2486 = vpack.c.b16 %v2474, %v2473
        %v2487 = vpack.c.b16 %v2476, %v2475
        %v2488 = vpack.c.b16 %v2478, %v2477
        %v2489 = vpack.c.b16 %v2480, %v2479
        %v2490 = vpack.c.b16 %v2482, %v2481
        %2499 = vmatprep.subr.bf16.mxu0 0
        %2500 = vmatpush1.bf16.msra.mxu0 %v2483
        %2501 = vmatprep.subr.bf16.mxu0 0
        %2502 = vmatpush1.bf16.msra.mxu0 %v2484
        %2503 = vmatprep.subr.bf16.mxu0 0
        %2504 = vmatpush1.bf16.msra.mxu0 %v2485
        %2505 = vmatprep.subr.bf16.mxu0 0
        %2506 = vmatpush1.bf16.msra.mxu0 %v2486
        %2507 = vmatprep.subr.bf16.mxu0 0
        %2508 = vmatpush1.bf16.msra.mxu0 %v2487
        %2509 = vmatprep.subr.bf16.mxu0 0
        %2510 = vmatpush1.bf16.msra.mxu0 %v2488
        %2511 = vmatprep.subr.bf16.mxu0 0
        %2512 = vmatpush1.bf16.msra.mxu0 %v2489
        %2513 = vmatprep.subr.bf16.mxu0 0
        %2514 = vmatpush1.bf16.msra.mxu0 %v2490
        %2515 = vmatprep.subr.bf16.mxu0 0
        %2516 = vmatpush1.bf16.msra.mxu0 0
        %2517 = vmatprep.subr.bf16.mxu0 0
        %2518 = vmatpush1.bf16.msra.mxu0 0
        %2519 = vmatprep.subr.bf16.mxu0 0
        %2520 = vmatpush1.bf16.msra.mxu0 0
        %2521 = vmatprep.subr.bf16.mxu0 0
        %2522 = vmatpush1.bf16.msra.mxu0 0
        %2523 = vmatprep.subr.bf16.mxu0 0
        %2524 = vmatpush1.bf16.msra.mxu0 0
        %2525 = vmatprep.subr.bf16.mxu0 0
        %2526 = vmatpush1.bf16.msra.mxu0 0
        %2527 = vmatprep.subr.bf16.mxu0 0
        %2528 = vmatpush1.bf16.msra.mxu0 0
        %2529 = vmatprep.subr.bf16.mxu0 0
        %2530 = vmatpush1.bf16.msra.mxu0 0
        %2531 = vmatprep.mubr.bf16.mxu0 0
        %2532 = vmatmul.mubr.bf16.gmra.mrb[0].mxu0 %v1500
        %v2533 = vpop.f32.mrb[0].mxu0
        %v2534 = vadd.f32 0.0, %v2533
        %v2535 = vpop.f32.mrb[0].mxu0
        %v2536 = vpop.f32.mrb[0].mxu0
        %v2537 = vpop.f32.mrb[0].mxu0
        %2538 = vdwg.mxu0
        %v2539 = vadd.f32 %v2433, %v2534
        %s2540 = scalar_lea.vmem %s3, 448
        %v2541 = vld [vmem:[%s2540] sm:$0xf]
        %v2542 = vld [vmem:[%s2540 + $0x4] sm:$0xf]
        %v2543 = vld [vmem:[%s2540 + $0x8] sm:$0xf]
        %v2544 = vld [vmem:[%s2540 + $0xc] sm:$0xf]
        %v2545 = vld [vmem:[%s2540 + $0x10] sm:$0xf]
        %v2546 = vld [vmem:[%s2540 + $0x14] sm:$0xf]
        %v2547 = vld [vmem:[%s2540 + $0x18] sm:$0xf]
        %v2548 = vld [vmem:[%s2540 + $0x1c] sm:$0xf]
        %v2549 = vld [vmem:[%s2540 + $0x20] sm:$0xf]
        %v2550 = vld [vmem:[%s2540 + $0x24] sm:$0xf]
        %v2551 = vld [vmem:[%s2540 + $0x28] sm:$0xf]
        %v2552 = vld [vmem:[%s2540 + $0x2c] sm:$0xf]
        %v2553 = vld [vmem:[%s2540 + $0x30] sm:$0xf]
        %v2554 = vld [vmem:[%s2540 + $0x34] sm:$0xf]
        %v2555 = vld [vmem:[%s2540 + $0x38] sm:$0xf]
        %v2556 = vld [vmem:[%s2540 + $0x3c] sm:$0xf]
        %v2558 = vshrl.u32 %v1500, 16
        %v2560 = vshll.u32 %v1500, 16
        %v2562 = vrot.slane %v2560, 1
        %v2563 = vor.u32 %v2558, %v2562
        %v2581 = vunpack.c.l.b16 %v2541
        %v2582 = vunpack.c.l.b16 %v2542
        %v2583 = vunpack.c.l.b16 %v2543
        %v2584 = vunpack.c.l.b16 %v2544
        %v2585 = vunpack.c.l.b16 %v2545
        %v2586 = vunpack.c.l.b16 %v2546
        %v2587 = vunpack.c.l.b16 %v2547
        %v2588 = vunpack.c.l.b16 %v2548
        %v2589 = vunpack.c.l.b16 %v2549
        %v2590 = vunpack.c.l.b16 %v2550
        %v2591 = vunpack.c.l.b16 %v2551
        %v2592 = vunpack.c.l.b16 %v2552
        %v2593 = vunpack.c.l.b16 %v2553
        %v2594 = vunpack.c.l.b16 %v2554
        %v2595 = vunpack.c.l.b16 %v2555
        %v2596 = vunpack.c.l.b16 %v2556
        %v2597 = vpack.c.b16 %v2582, %v2581
        %v2598 = vpack.c.b16 %v2584, %v2583
        %v2599 = vpack.c.b16 %v2586, %v2585
        %v2600 = vpack.c.b16 %v2588, %v2587
        %v2601 = vpack.c.b16 %v2590, %v2589
        %v2602 = vpack.c.b16 %v2592, %v2591
        %v2603 = vpack.c.b16 %v2594, %v2593
        %v2604 = vpack.c.b16 %v2596, %v2595
        %2613 = vmatprep.subr.bf16.mxu0 0
        %2614 = vmatpush1.bf16.msra.mxu0 %v2597
        %2615 = vmatprep.subr.bf16.mxu0 0
        %2616 = vmatpush1.bf16.msra.mxu0 %v2598
        %2617 = vmatprep.subr.bf16.mxu0 0
        %2618 = vmatpush1.bf16.msra.mxu0 %v2599
        %2619 = vmatprep.subr.bf16.mxu0 0
        %2620 = vmatpush1.bf16.msra.mxu0 %v2600
        %2621 = vmatprep.subr.bf16.mxu0 0
        %2622 = vmatpush1.bf16.msra.mxu0 %v2601
        %2623 = vmatprep.subr.bf16.mxu0 0
        %2624 = vmatpush1.bf16.msra.mxu0 %v2602
        %2625 = vmatprep.subr.bf16.mxu0 0
        %2626 = vmatpush1.bf16.msra.mxu0 %v2603
        %2627 = vmatprep.subr.bf16.mxu0 0
        %2628 = vmatpush1.bf16.msra.mxu0 %v2604
        %2629 = vmatprep.subr.bf16.mxu0 0
        %2630 = vmatpush1.bf16.msra.mxu0 0
        %2631 = vmatprep.subr.bf16.mxu0 0
        %2632 = vmatpush1.bf16.msra.mxu0 0
        %2633 = vmatprep.subr.bf16.mxu0 0
        %2634 = vmatpush1.bf16.msra.mxu0 0
        %2635 = vmatprep.subr.bf16.mxu0 0
        %2636 = vmatpush1.bf16.msra.mxu0 0
        %2637 = vmatprep.subr.bf16.mxu0 0
        %2638 = vmatpush1.bf16.msra.mxu0 0
        %2639 = vmatprep.subr.bf16.mxu0 0
        %2640 = vmatpush1.bf16.msra.mxu0 0
        %2641 = vmatprep.subr.bf16.mxu0 0
        %2642 = vmatpush1.bf16.msra.mxu0 0
        %2643 = vmatprep.subr.bf16.mxu0 0
        %2644 = vmatpush1.bf16.msra.mxu0 0
        %2645 = vmatprep.mubr.bf16.mxu0 0
        %2646 = vmatmul.mubr.bf16.gmra.mrb[0].mxu0 %v2563
        %v2647 = vpop.f32.mrb[0].mxu0
        %v2648 = vadd.f32 0.0, %v2647
        %v2649 = vpop.f32.mrb[0].mxu0
        %v2650 = vpop.f32.mrb[0].mxu0
        %v2651 = vpop.f32.mrb[0].mxu0
        %2652 = vdwg.mxu0
        %v2653 = vadd.f32 %v2539, %v2648
        %s2654 = scalar_lea.vmem %s3, 512
        %v2655 = vld [vmem:[%s2654] sm:$0xf]
        %v2656 = vld [vmem:[%s2654 + $0x4] sm:$0xf]
        %v2657 = vld [vmem:[%s2654 + $0x8] sm:$0xf]
        %v2658 = vld [vmem:[%s2654 + $0xc] sm:$0xf]
        %v2659 = vld [vmem:[%s2654 + $0x10] sm:$0xf]
        %v2660 = vld [vmem:[%s2654 + $0x14] sm:$0xf]
        %v2661 = vld [vmem:[%s2654 + $0x18] sm:$0xf]
        %v2662 = vld [vmem:[%s2654 + $0x1c] sm:$0xf]
        %v2663 = vld [vmem:[%s2654 + $0x20] sm:$0xf]
        %v2664 = vld [vmem:[%s2654 + $0x24] sm:$0xf]
        %v2665 = vld [vmem:[%s2654 + $0x28] sm:$0xf]
        %v2666 = vld [vmem:[%s2654 + $0x2c] sm:$0xf]
        %v2667 = vld [vmem:[%s2654 + $0x30] sm:$0xf]
        %v2668 = vld [vmem:[%s2654 + $0x34] sm:$0xf]
        %v2669 = vld [vmem:[%s2654 + $0x38] sm:$0xf]
        %v2670 = vld [vmem:[%s2654 + $0x3c] sm:$0xf]
        %v2672 = vrot.slane %v1500, 1
        %v2690 = vunpack.c.l.b16 %v2655
        %v2691 = vunpack.c.l.b16 %v2656
        %v2692 = vunpack.c.l.b16 %v2657
        %v2693 = vunpack.c.l.b16 %v2658
        %v2694 = vunpack.c.l.b16 %v2659
        %v2695 = vunpack.c.l.b16 %v2660
        %v2696 = vunpack.c.l.b16 %v2661
        %v2697 = vunpack.c.l.b16 %v2662
        %v2698 = vunpack.c.l.b16 %v2663
        %v2699 = vunpack.c.l.b16 %v2664
        %v2700 = vunpack.c.l.b16 %v2665
        %v2701 = vunpack.c.l.b16 %v2666
        %v2702 = vunpack.c.l.b16 %v2667
        %v2703 = vunpack.c.l.b16 %v2668
        %v2704 = vunpack.c.l.b16 %v2669
        %v2705 = vunpack.c.l.b16 %v2670
        %v2706 = vpack.c.b16 %v2691, %v2690
        %v2707 = vpack.c.b16 %v2693, %v2692
        %v2708 = vpack.c.b16 %v2695, %v2694
        %v2709 = vpack.c.b16 %v2697, %v2696
        %v2710 = vpack.c.b16 %v2699, %v2698
        %v2711 = vpack.c.b16 %v2701, %v2700
        %v2712 = vpack.c.b16 %v2703, %v2702
        %v2713 = vpack.c.b16 %v2705, %v2704
        %2722 = vmatprep.subr.bf16.mxu0 0
        %2723 = vmatpush1.bf16.msra.mxu0 %v2706
        %2724 = vmatprep.subr.bf16.mxu0 0
        %2725 = vmatpush1.bf16.msra.mxu0 %v2707
        %2726 = vmatprep.subr.bf16.mxu0 0
        %2727 = vmatpush1.bf16.msra.mxu0 %v2708
        %2728 = vmatprep.subr.bf16.mxu0 0
        %2729 = vmatpush1.bf16.msra.mxu0 %v2709
        %2730 = vmatprep.subr.bf16.mxu0 0
        %2731 = vmatpush1.bf16.msra.mxu0 %v2710
        %2732 = vmatprep.subr.bf16.mxu0 0
        %2733 = vmatpush1.bf16.msra.mxu0 %v2711
        %2734 = vmatprep.subr.bf16.mxu0 0
        %2735 = vmatpush1.bf16.msra.mxu0 %v2712
        %2736 = vmatprep.subr.bf16.mxu0 0
        %2737 = vmatpush1.bf16.msra.mxu0 %v2713
        %2738 = vmatprep.subr.bf16.mxu0 0
        %2739 = vmatpush1.bf16.msra.mxu0 0
        %2740 = vmatprep.subr.bf16.mxu0 0
        %2741 = vmatpush1.bf16.msra.mxu0 0
        %2742 = vmatprep.subr.bf16.mxu0 0
        %2743 = vmatpush1.bf16.msra.mxu0 0
        %2744 = vmatprep.subr.bf16.mxu0 0
        %2745 = vmatpush1.bf16.msra.mxu0 0
        %2746 = vmatprep.subr.bf16.mxu0 0
        %2747 = vmatpush1.bf16.msra.mxu0 0
        %2748 = vmatprep.subr.bf16.mxu0 0
        %2749 = vmatpush1.bf16.msra.mxu0 0
        %2750 = vmatprep.subr.bf16.mxu0 0
        %2751 = vmatpush1.bf16.msra.mxu0 0
        %2752 = vmatprep.subr.bf16.mxu0 0
        %2753 = vmatpush1.bf16.msra.mxu0 0
        %2754 = vmatprep.mubr.bf16.mxu0 0
        %2755 = vmatmul.mubr.bf16.gmra.mrb[0].mxu0 %v2672
        %v2756 = vpop.f32.mrb[0].mxu0
        %v2757 = vadd.f32 0.0, %v2756
        %v2758 = vpop.f32.mrb[0].mxu0
        %v2759 = vpop.f32.mrb[0].mxu0
        %v2760 = vpop.f32.mrb[0].mxu0
        %2761 = vdwg.mxu0
        %v2762 = vadd.f32 %v2653, %v2757
        %v2763 = vadd.f32 %v2762, %v343
        %v2764 = vmax.f32 %v2763, 0.0
        %v2766 = vrot.slane %v2764, 1
        %v2768 = vmax.f32 %v2764, %v2766
        %2769 = vmatprep.subr.bf16.mxu0 0
        %2770 = vmatpush1.bf16.msra.mxu0 %v1852
        %2771 = vmatprep.subr.bf16.mxu0 0
        %2772 = vmatpush1.bf16.msra.mxu0 %v1853
        %2773 = vmatprep.subr.bf16.mxu0 0
        %2774 = vmatpush1.bf16.msra.mxu0 %v1854
        %2775 = vmatprep.subr.bf16.mxu0 0
        %2776 = vmatpush1.bf16.msra.mxu0 %v1855
        %2777 = vmatprep.subr.bf16.mxu0 0
        %2778 = vmatpush1.bf16.msra.mxu0 %v1856
        %2779 = vmatprep.subr.bf16.mxu0 0
        %2780 = vmatpush1.bf16.msra.mxu0 %v1857
        %2781 = vmatprep.subr.bf16.mxu0 0
        %2782 = vmatpush1.bf16.msra.mxu0 %v1858
        %2783 = vmatprep.subr.bf16.mxu0 0
        %2784 = vmatpush1.bf16.msra.mxu0 %v1859
        %2785 = vmatprep.subr.bf16.mxu0 0
        %2786 = vmatpush1.bf16.msra.mxu0 0
        %2787 = vmatprep.subr.bf16.mxu0 0
        %2788 = vmatpush1.bf16.msra.mxu0 0
        %2789 = vmatprep.subr.bf16.mxu0 0
        %2790 = vmatpush1.bf16.msra.mxu0 0
        %2791 = vmatprep.subr.bf16.mxu0 0
        %2792 = vmatpush1.bf16.msra.mxu0 0
        %2793 = vmatprep.subr.bf16.mxu0 0
        %2794 = vmatpush1.bf16.msra.mxu0 0
        %2795 = vmatprep.subr.bf16.mxu0 0
        %2796 = vmatpush1.bf16.msra.mxu0 0
        %2797 = vmatprep.subr.bf16.mxu0 0
        %2798 = vmatpush1.bf16.msra.mxu0 0
        %2799 = vmatprep.subr.bf16.mxu0 0
        %2800 = vmatpush1.bf16.msra.mxu0 0
        %2801 = vmatprep.mubr.bf16.mxu0 0
        %2802 = vmatmul.mubr.bf16.gmra.mrb[0].mxu0 %v2234
        %v2803 = vpop.f32.mrb[0].mxu0
        %v2804 = vadd.f32 0.0, %v2803
        %v2805 = vpop.f32.mrb[0].mxu0
        %v2806 = vpop.f32.mrb[0].mxu0
        %v2807 = vpop.f32.mrb[0].mxu0
        %2808 = vdwg.mxu0
        %2809 = vmatprep.subr.bf16.mxu0 0
        %2810 = vmatpush1.bf16.msra.mxu0 %v1940
        %2811 = vmatprep.subr.bf16.mxu0 0
        %2812 = vmatpush1.bf16.msra.mxu0 %v1941
        %2813 = vmatprep.subr.bf16.mxu0 0
        %2814 = vmatpush1.bf16.msra.mxu0 %v1942
        %2815 = vmatprep.subr.bf16.mxu0 0
        %2816 = vmatpush1.bf16.msra.mxu0 %v1943
        %2817 = vmatprep.subr.bf16.mxu0 0
        %2818 = vmatpush1.bf16.msra.mxu0 %v1944
        %2819 = vmatprep.subr.bf16.mxu0 0
        %2820 = vmatpush1.bf16.msra.mxu0 %v1945
        %2821 = vmatprep.subr.bf16.mxu0 0
        %2822 = vmatpush1.bf16.msra.mxu0 %v1946
        %2823 = vmatprep.subr.bf16.mxu0 0
        %2824 = vmatpush1.bf16.msra.mxu0 %v1947
        %2825 = vmatprep.subr.bf16.mxu0 0
        %2826 = vmatpush1.bf16.msra.mxu0 0
        %2827 = vmatprep.subr.bf16.mxu0 0
        %2828 = vmatpush1.bf16.msra.mxu0 0
        %2829 = vmatprep.subr.bf16.mxu0 0
        %2830 = vmatpush1.bf16.msra.mxu0 0
        %2831 = vmatprep.subr.bf16.mxu0 0
        %2832 = vmatpush1.bf16.msra.mxu0 0
        %2833 = vmatprep.subr.bf16.mxu0 0
        %2834 = vmatpush1.bf16.msra.mxu0 0
        %2835 = vmatprep.subr.bf16.mxu0 0
        %2836 = vmatpush1.bf16.msra.mxu0 0
        %2837 = vmatprep.subr.bf16.mxu0 0
        %2838 = vmatpush1.bf16.msra.mxu0 0
        %2839 = vmatprep.subr.bf16.mxu0 0
        %2840 = vmatpush1.bf16.msra.mxu0 0
        %2841 = vmatprep.mubr.bf16.mxu0 0
        %2842 = vmatmul.mubr.bf16.gmra.mrb[0].mxu0 %v1222
        %v2843 = vpop.f32.mrb[0].mxu0
        %v2844 = vadd.f32 %v2804, %v2843
        %v2845 = vpop.f32.mrb[0].mxu0
        %v2846 = vpop.f32.mrb[0].mxu0
        %v2847 = vpop.f32.mrb[0].mxu0
        %2848 = vdwg.mxu0
        %2849 = vmatprep.subr.bf16.mxu0 0
        %2850 = vmatpush1.bf16.msra.mxu0 %v2048
        %2851 = vmatprep.subr.bf16.mxu0 0
        %2852 = vmatpush1.bf16.msra.mxu0 %v2049
        %2853 = vmatprep.subr.bf16.mxu0 0
        %2854 = vmatpush1.bf16.msra.mxu0 %v2050
        %2855 = vmatprep.subr.bf16.mxu0 0
        %2856 = vmatpush1.bf16.msra.mxu0 %v2051
        %2857 = vmatprep.subr.bf16.mxu0 0
        %2858 = vmatpush1.bf16.msra.mxu0 %v2052
        %2859 = vmatprep.subr.bf16.mxu0 0
        %2860 = vmatpush1.bf16.msra.mxu0 %v2053
        %2861 = vmatprep.subr.bf16.mxu0 0
        %2862 = vmatpush1.bf16.msra.mxu0 %v2054
        %2863 = vmatprep.subr.bf16.mxu0 0
        %2864 = vmatpush1.bf16.msra.mxu0 %v2055
        %2865 = vmatprep.subr.bf16.mxu0 0
        %2866 = vmatpush1.bf16.msra.mxu0 0
        %2867 = vmatprep.subr.bf16.mxu0 0
        %2868 = vmatpush1.bf16.msra.mxu0 0
        %2869 = vmatprep.subr.bf16.mxu0 0
        %2870 = vmatpush1.bf16.msra.mxu0 0
        %2871 = vmatprep.subr.bf16.mxu0 0
        %2872 = vmatpush1.bf16.msra.mxu0 0
        %2873 = vmatprep.subr.bf16.mxu0 0
        %2874 = vmatpush1.bf16.msra.mxu0 0
        %2875 = vmatprep.subr.bf16.mxu0 0
        %2876 = vmatpush1.bf16.msra.mxu0 0
        %2877 = vmatprep.subr.bf16.mxu0 0
        %2878 = vmatpush1.bf16.msra.mxu0 0
        %2879 = vmatprep.subr.bf16.mxu0 0
        %2880 = vmatpush1.bf16.msra.mxu0 0
        %2881 = vmatprep.mubr.bf16.mxu0 0
        %2882 = vmatmul.mubr.bf16.gmra.mrb[0].mxu0 %v2343
        %v2883 = vpop.f32.mrb[0].mxu0
        %v2884 = vadd.f32 0.0, %v2883
        %v2885 = vpop.f32.mrb[0].mxu0
        %v2886 = vpop.f32.mrb[0].mxu0
        %v2887 = vpop.f32.mrb[0].mxu0
        %2888 = vdwg.mxu0
        %v2889 = vadd.f32 %v2844, %v2884
        %2890 = vmatprep.subr.bf16.mxu0 0
        %2891 = vmatpush1.bf16.msra.mxu0 %v2154
        %2892 = vmatprep.subr.bf16.mxu0 0
        %2893 = vmatpush1.bf16.msra.mxu0 %v2155
        %2894 = vmatprep.subr.bf16.mxu0 0
        %2895 = vmatpush1.bf16.msra.mxu0 %v2156
        %2896 = vmatprep.subr.bf16.mxu0 0
        %2897 = vmatpush1.bf16.msra.mxu0 %v2157
        %2898 = vmatprep.subr.bf16.mxu0 0
        %2899 = vmatpush1.bf16.msra.mxu0 %v2158
        %2900 = vmatprep.subr.bf16.mxu0 0
        %2901 = vmatpush1.bf16.msra.mxu0 %v2159
        %2902 = vmatprep.subr.bf16.mxu0 0
        %2903 = vmatpush1.bf16.msra.mxu0 %v2160
        %2904 = vmatprep.subr.bf16.mxu0 0
        %2905 = vmatpush1.bf16.msra.mxu0 %v2161
        %2906 = vmatprep.subr.bf16.mxu0 0
        %2907 = vmatpush1.bf16.msra.mxu0 0
        %2908 = vmatprep.subr.bf16.mxu0 0
        %2909 = vmatpush1.bf16.msra.mxu0 0
        %2910 = vmatprep.subr.bf16.mxu0 0
        %2911 = vmatpush1.bf16.msra.mxu0 0
        %2912 = vmatprep.subr.bf16.mxu0 0
        %2913 = vmatpush1.bf16.msra.mxu0 0
        %2914 = vmatprep.subr.bf16.mxu0 0
        %2915 = vmatpush1.bf16.msra.mxu0 0
        %2916 = vmatprep.subr.bf16.mxu0 0
        %2917 = vmatpush1.bf16.msra.mxu0 0
        %2918 = vmatprep.subr.bf16.mxu0 0
        %2919 = vmatpush1.bf16.msra.mxu0 0
        %2920 = vmatprep.subr.bf16.mxu0 0
        %2921 = vmatpush1.bf16.msra.mxu0 0
        %2922 = vmatprep.mubr.bf16.mxu0 0
        %2923 = vmatmul.mubr.bf16.gmra.mrb[0].mxu0 %v1500
        %v2924 = vpop.f32.mrb[0].mxu0
        %v2925 = vadd.f32 0.0, %v2924
        %v2926 = vpop.f32.mrb[0].mxu0
        %v2927 = vpop.f32.mrb[0].mxu0
        %v2928 = vpop.f32.mrb[0].mxu0
        %2929 = vdwg.mxu0
        %v2930 = vadd.f32 %v2889, %v2925
        %2931 = vmatprep.subr.bf16.mxu0 0
        %2932 = vmatpush1.bf16.msra.mxu0 %v2268
        %2933 = vmatprep.subr.bf16.mxu0 0
        %2934 = vmatpush1.bf16.msra.mxu0 %v2269
        %2935 = vmatprep.subr.bf16.mxu0 0
        %2936 = vmatpush1.bf16.msra.mxu0 %v2270
        %2937 = vmatprep.subr.bf16.mxu0 0
        %2938 = vmatpush1.bf16.msra.mxu0 %v2271
        %2939 = vmatprep.subr.bf16.mxu0 0
        %2940 = vmatpush1.bf16.msra.mxu0 %v2272
        %2941 = vmatprep.subr.bf16.mxu0 0
        %2942 = vmatpush1.bf16.msra.mxu0 %v2273
        %2943 = vmatprep.subr.bf16.mxu0 0
        %2944 = vmatpush1.bf16.msra.mxu0 %v2274
        %2945 = vmatprep.subr.bf16.mxu0 0
        %2946 = vmatpush1.bf16.msra.mxu0 %v2275
        %2947 = vmatprep.subr.bf16.mxu0 0
        %2948 = vmatpush1.bf16.msra.mxu0 0
        %2949 = vmatprep.subr.bf16.mxu0 0
        %2950 = vmatpush1.bf16.msra.mxu0 0
        %2951 = vmatprep.subr.bf16.mxu0 0
        %2952 = vmatpush1.bf16.msra.mxu0 0
        %2953 = vmatprep.subr.bf16.mxu0 0
        %2954 = vmatpush1.bf16.msra.mxu0 0
        %2955 = vmatprep.subr.bf16.mxu0 0
        %2956 = vmatpush1.bf16.msra.mxu0 0
        %2957 = vmatprep.subr.bf16.mxu0 0
        %2958 = vmatpush1.bf16.msra.mxu0 0
        %2959 = vmatprep.subr.bf16.mxu0 0
        %2960 = vmatpush1.bf16.msra.mxu0 0
        %2961 = vmatprep.subr.bf16.mxu0 0
        %2962 = vmatpush1.bf16.msra.mxu0 0
        %2963 = vmatprep.mubr.bf16.mxu0 0
        %2964 = vmatmul.mubr.bf16.gmra.mrb[0].mxu0 %v2563
        %v2965 = vpop.f32.mrb[0].mxu0
        %v2966 = vadd.f32 0.0, %v2965
        %v2967 = vpop.f32.mrb[0].mxu0
        %v2968 = vpop.f32.mrb[0].mxu0
        %v2969 = vpop.f32.mrb[0].mxu0
        %2970 = vdwg.mxu0
        %v2971 = vadd.f32 %v2930, %v2966
        %2972 = vmatprep.subr.bf16.mxu0 0
        %2973 = vmatpush1.bf16.msra.mxu0 %v2377
        %2974 = vmatprep.subr.bf16.mxu0 0
        %2975 = vmatpush1.bf16.msra.mxu0 %v2378
        %2976 = vmatprep.subr.bf16.mxu0 0
        %2977 = vmatpush1.bf16.msra.mxu0 %v2379
        %2978 = vmatprep.subr.bf16.mxu0 0
        %2979 = vmatpush1.bf16.msra.mxu0 %v2380
        %2980 = vmatprep.subr.bf16.mxu0 0
        %2981 = vmatpush1.bf16.msra.mxu0 %v2381
        %2982 = vmatprep.subr.bf16.mxu0 0
        %2983 = vmatpush1.bf16.msra.mxu0 %v2382
        %2984 = vmatprep.subr.bf16.mxu0 0
        %2985 = vmatpush1.bf16.msra.mxu0 %v2383
        %2986 = vmatprep.subr.bf16.mxu0 0
        %2987 = vmatpush1.bf16.msra.mxu0 %v2384
        %2988 = vmatprep.subr.bf16.mxu0 0
        %2989 = vmatpush1.bf16.msra.mxu0 0
        %2990 = vmatprep.subr.bf16.mxu0 0
        %2991 = vmatpush1.bf16.msra.mxu0 0
        %2992 = vmatprep.subr.bf16.mxu0 0
        %2993 = vmatpush1.bf16.msra.mxu0 0
        %2994 = vmatprep.subr.bf16.mxu0 0
        %2995 = vmatpush1.bf16.msra.mxu0 0
        %2996 = vmatprep.subr.bf16.mxu0 0
        %2997 = vmatpush1.bf16.msra.mxu0 0
        %2998 = vmatprep.subr.bf16.mxu0 0
        %2999 = vmatpush1.bf16.msra.mxu0 0
        %3000 = vmatprep.subr.bf16.mxu0 0
        %3001 = vmatpush1.bf16.msra.mxu0 0
        %3002 = vmatprep.subr.bf16.mxu0 0
        %3003 = vmatpush1.bf16.msra.mxu0 0
        %3004 = vmatprep.mubr.bf16.mxu0 0
        %3005 = vmatmul.mubr.bf16.gmra.mrb[0].mxu0 %v2672
        %v3006 = vpop.f32.mrb[0].mxu0
        %v3007 = vadd.f32 0.0, %v3006
        %v3008 = vpop.f32.mrb[0].mxu0
        %v3009 = vpop.f32.mrb[0].mxu0
        %v3010 = vpop.f32.mrb[0].mxu0
        %3011 = vdwg.mxu0
        %v3012 = vadd.f32 %v2971, %v3007
        %3013 = vmatprep.subr.bf16.mxu0 0
        %3014 = vmatpush1.bf16.msra.mxu0 %v2483
        %3015 = vmatprep.subr.bf16.mxu0 0
        %3016 = vmatpush1.bf16.msra.mxu0 %v2484
        %3017 = vmatprep.subr.bf16.mxu0 0
        %3018 = vmatpush1.bf16.msra.mxu0 %v2485
        %3019 = vmatprep.subr.bf16.mxu0 0
        %3020 = vmatpush1.bf16.msra.mxu0 %v2486
        %3021 = vmatprep.subr.bf16.mxu0 0
        %3022 = vmatpush1.bf16.msra.mxu0 %v2487
        %3023 = vmatprep.subr.bf16.mxu0 0
        %3024 = vmatpush1.bf16.msra.mxu0 %v2488
        %3025 = vmatprep.subr.bf16.mxu0 0
        %3026 = vmatpush1.bf16.msra.mxu0 %v2489
        %3027 = vmatprep.subr.bf16.mxu0 0
        %3028 = vmatpush1.bf16.msra.mxu0 %v2490
        %3029 = vmatprep.subr.bf16.mxu0 0
        %3030 = vmatpush1.bf16.msra.mxu0 0
        %3031 = vmatprep.subr.bf16.mxu0 0
        %3032 = vmatpush1.bf16.msra.mxu0 0
        %3033 = vmatprep.subr.bf16.mxu0 0
        %3034 = vmatpush1.bf16.msra.mxu0 0
        %3035 = vmatprep.subr.bf16.mxu0 0
        %3036 = vmatpush1.bf16.msra.mxu0 0
        %3037 = vmatprep.subr.bf16.mxu0 0
        %3038 = vmatpush1.bf16.msra.mxu0 0
        %3039 = vmatprep.subr.bf16.mxu0 0
        %3040 = vmatpush1.bf16.msra.mxu0 0
        %3041 = vmatprep.subr.bf16.mxu0 0
        %3042 = vmatpush1.bf16.msra.mxu0 0
        %3043 = vmatprep.subr.bf16.mxu0 0
        %3044 = vmatpush1.bf16.msra.mxu0 0
        %3045 = vmatprep.mubr.bf16.mxu0 0
        %3046 = vmatmul.mubr.bf16.gmra.mrb[0].mxu0 %v1778
        %v3047 = vpop.f32.mrb[0].mxu0
        %v3048 = vadd.f32 0.0, %v3047
        %v3049 = vpop.f32.mrb[0].mxu0
        %v3050 = vpop.f32.mrb[0].mxu0
        %v3051 = vpop.f32.mrb[0].mxu0
        %3052 = vdwg.mxu0
        %v3053 = vadd.f32 %v3012, %v3048
        %v3055 = vshrl.u32 %v1778, 16
        %v3057 = vshll.u32 %v1778, 16
        %v3059 = vrot.slane %v3057, 1
        %v3060 = vor.u32 %v3055, %v3059
        %3062 = vmatprep.subr.bf16.mxu0 0
        %3063 = vmatpush1.bf16.msra.mxu0 %v2597
        %3064 = vmatprep.subr.bf16.mxu0 0
        %3065 = vmatpush1.bf16.msra.mxu0 %v2598
        %3066 = vmatprep.subr.bf16.mxu0 0
        %3067 = vmatpush1.bf16.msra.mxu0 %v2599
        %3068 = vmatprep.subr.bf16.mxu0 0
        %3069 = vmatpush1.bf16.msra.mxu0 %v2600
        %3070 = vmatprep.subr.bf16.mxu0 0
        %3071 = vmatpush1.bf16.msra.mxu0 %v2601
        %3072 = vmatprep.subr.bf16.mxu0 0
        %3073 = vmatpush1.bf16.msra.mxu0 %v2602
        %3074 = vmatprep.subr.bf16.mxu0 0
        %3075 = vmatpush1.bf16.msra.mxu0 %v2603
        %3076 = vmatprep.subr.bf16.mxu0 0
        %3077 = vmatpush1.bf16.msra.mxu0 %v2604
        %3078 = vmatprep.subr.bf16.mxu0 0
        %3079 = vmatpush1.bf16.msra.mxu0 0
        %3080 = vmatprep.subr.bf16.mxu0 0
        %3081 = vmatpush1.bf16.msra.mxu0 0
        %3082 = vmatprep.subr.bf16.mxu0 0
        %3083 = vmatpush1.bf16.msra.mxu0 0
        %3084 = vmatprep.subr.bf16.mxu0 0
        %3085 = vmatpush1.bf16.msra.mxu0 0
        %3086 = vmatprep.subr.bf16.mxu0 0
        %3087 = vmatpush1.bf16.msra.mxu0 0
        %3088 = vmatprep.subr.bf16.mxu0 0
        %3089 = vmatpush1.bf16.msra.mxu0 0
        %3090 = vmatprep.subr.bf16.mxu0 0
        %3091 = vmatpush1.bf16.msra.mxu0 0
        %3092 = vmatprep.subr.bf16.mxu0 0
        %3093 = vmatpush1.bf16.msra.mxu0 0
        %3094 = vmatprep.mubr.bf16.mxu0 0
        %3095 = vmatmul.mubr.bf16.gmra.mrb[0].mxu0 %v3060
        %v3096 = vpop.f32.mrb[0].mxu0
        %v3097 = vadd.f32 0.0, %v3096
        %v3098 = vpop.f32.mrb[0].mxu0
        %v3099 = vpop.f32.mrb[0].mxu0
        %v3100 = vpop.f32.mrb[0].mxu0
        %3101 = vdwg.mxu0
        %v3102 = vadd.f32 %v3053, %v3097
        %v3104 = vrot.slane %v1778, 1
        %3106 = vmatprep.subr.bf16.mxu0 0
        %3107 = vmatpush1.bf16.msra.mxu0 %v2706
        %3108 = vmatprep.subr.bf16.mxu0 0
        %3109 = vmatpush1.bf16.msra.mxu0 %v2707
        %3110 = vmatprep.subr.bf16.mxu0 0
        %3111 = vmatpush1.bf16.msra.mxu0 %v2708
        %3112 = vmatprep.subr.bf16.mxu0 0
        %3113 = vmatpush1.bf16.msra.mxu0 %v2709
        %3114 = vmatprep.subr.bf16.mxu0 0
        %3115 = vmatpush1.bf16.msra.mxu0 %v2710
        %3116 = vmatprep.subr.bf16.mxu0 0
        %3117 = vmatpush1.bf16.msra.mxu0 %v2711
        %3118 = vmatprep.subr.bf16.mxu0 0
        %3119 = vmatpush1.bf16.msra.mxu0 %v2712
        %3120 = vmatprep.subr.bf16.mxu0 0
        %3121 = vmatpush1.bf16.msra.mxu0 %v2713
        %3122 = vmatprep.subr.bf16.mxu0 0
        %3123 = vmatpush1.bf16.msra.mxu0 0
        %3124 = vmatprep.subr.bf16.mxu0 0
        %3125 = vmatpush1.bf16.msra.mxu0 0
        %3126 = vmatprep.subr.bf16.mxu0 0
        %3127 = vmatpush1.bf16.msra.mxu0 0
        %3128 = vmatprep.subr.bf16.mxu0 0
        %3129 = vmatpush1.bf16.msra.mxu0 0
        %3130 = vmatprep.subr.bf16.mxu0 0
        %3131 = vmatpush1.bf16.msra.mxu0 0
        %3132 = vmatprep.subr.bf16.mxu0 0
        %3133 = vmatpush1.bf16.msra.mxu0 0
        %3134 = vmatprep.subr.bf16.mxu0 0
        %3135 = vmatpush1.bf16.msra.mxu0 0
        %3136 = vmatprep.subr.bf16.mxu0 0
        %3137 = vmatpush1.bf16.msra.mxu0 0
        %3138 = vmatprep.mubr.bf16.mxu0 0
        %3139 = vmatmul.mubr.bf16.gmra.mrb[0].mxu0 %v3104
        %v3140 = vpop.f32.mrb[0].mxu0
        %v3141 = vadd.f32 0.0, %v3140
        %v3142 = vpop.f32.mrb[0].mxu0
        %v3143 = vpop.f32.mrb[0].mxu0
        %v3144 = vpop.f32.mrb[0].mxu0
        %3145 = vdwg.mxu0
        %v3146 = vadd.f32 %v3102, %v3141
        %v3147 = vadd.f32 %v3146, %v343
        %v3148 = vmax.f32 %v3147, 0.0
        %v3150 = vrot.slane %v3148, 1
        %v3152 = vmax.f32 %v3148, %v3150
        %v3153 = vmax.f32 %v2768, %v3152
        %v3154 = vpack.c.bf16 %v3153, %v3153
        %v3155 = vld [vmem:[%s5] sm:$0xf]
        %v3156 = vld [vmem:[%s5 + $0x4] sm:$0xf]
        %v3157 = vld [vmem:[%s5 + $0x8] sm:$0xf]
        %v3158 = vld [vmem:[%s5 + $0xc] sm:$0xf]
        %v3159 = vld [vmem:[%s5 + $0x10] sm:$0xf]
        %v3160 = vld [vmem:[%s5 + $0x14] sm:$0xf]
        %v3161 = vld [vmem:[%s5 + $0x18] sm:$0xf]
        %v3162 = vld [vmem:[%s5 + $0x1c] sm:$0xf]
        %v3163 = vld [vmem:[%s5 + $0x20] sm:$0xf]
        %v3164 = vld [vmem:[%s5 + $0x24] sm:$0xf]
        %v3165 = vld [vmem:[%s5 + $0x28] sm:$0xf]
        %v3166 = vld [vmem:[%s5 + $0x2c] sm:$0xf]
        %v3167 = vld [vmem:[%s5 + $0x30] sm:$0xf]
        %v3168 = vld [vmem:[%s5 + $0x34] sm:$0xf]
        %v3169 = vld [vmem:[%s5 + $0x38] sm:$0xf]
        %v3170 = vld [vmem:[%s5 + $0x3c] sm:$0xf]
        %v3171 = vld [vmem:[%s6] sm:$0x1]
        %v3188 = vunpack.c.l.b16 %v3155
        %v3189 = vunpack.c.l.b16 %v3156
        %v3190 = vunpack.c.l.b16 %v3157
        %v3191 = vunpack.c.l.b16 %v3158
        %v3192 = vunpack.c.l.b16 %v3159
        %v3193 = vunpack.c.l.b16 %v3160
        %v3194 = vunpack.c.l.b16 %v3161
        %v3195 = vunpack.c.l.b16 %v3162
        %v3196 = vunpack.c.l.b16 %v3163
        %v3197 = vunpack.c.l.b16 %v3164
        %v3198 = vunpack.c.l.b16 %v3165
        %v3199 = vunpack.c.l.b16 %v3166
        %v3200 = vunpack.c.l.b16 %v3167
        %v3201 = vunpack.c.l.b16 %v3168
        %v3202 = vunpack.c.l.b16 %v3169
        %v3203 = vunpack.c.l.b16 %v3170
        %v3204 = vpack.c.b16 %v3189, %v3188
        %v3205 = vpack.c.b16 %v3191, %v3190
        %v3206 = vpack.c.b16 %v3193, %v3192
        %v3207 = vpack.c.b16 %v3195, %v3194
        %v3208 = vpack.c.b16 %v3197, %v3196
        %v3209 = vpack.c.b16 %v3199, %v3198
        %v3210 = vpack.c.b16 %v3201, %v3200
        %v3211 = vpack.c.b16 %v3203, %v3202
        %3220 = vmatprep.subr.bf16.mxu0 0
        %3221 = vmatpush1.bf16.msra.mxu0 %v3204
        %3222 = vmatprep.subr.bf16.mxu0 0
        %3223 = vmatpush1.bf16.msra.mxu0 %v3205
        %3224 = vmatprep.subr.bf16.mxu0 0
        %3225 = vmatpush1.bf16.msra.mxu0 %v3206
        %3226 = vmatprep.subr.bf16.mxu0 0
        %3227 = vmatpush1.bf16.msra.mxu0 %v3207
        %3228 = vmatprep.subr.bf16.mxu0 0
        %3229 = vmatpush1.bf16.msra.mxu0 %v3208
        %3230 = vmatprep.subr.bf16.mxu0 0
        %3231 = vmatpush1.bf16.msra.mxu0 %v3209
        %3232 = vmatprep.subr.bf16.mxu0 0
        %3233 = vmatpush1.bf16.msra.mxu0 %v3210
        %3234 = vmatprep.subr.bf16.mxu0 0
        %3235 = vmatpush1.bf16.msra.mxu0 %v3211
        %3236 = vmatprep.subr.bf16.mxu0 0
        %3237 = vmatpush1.bf16.msra.mxu0 0
        %3238 = vmatprep.subr.bf16.mxu0 0
        %3239 = vmatpush1.bf16.msra.mxu0 0
        %3240 = vmatprep.subr.bf16.mxu0 0
        %3241 = vmatpush1.bf16.msra.mxu0 0
        %3242 = vmatprep.subr.bf16.mxu0 0
        %3243 = vmatpush1.bf16.msra.mxu0 0
        %3244 = vmatprep.subr.bf16.mxu0 0
        %3245 = vmatpush1.bf16.msra.mxu0 0
        %3246 = vmatprep.subr.bf16.mxu0 0
        %3247 = vmatpush1.bf16.msra.mxu0 0
        %3248 = vmatprep.subr.bf16.mxu0 0
        %3249 = vmatpush1.bf16.msra.mxu0 0
        %3250 = vmatprep.subr.bf16.mxu0 0
        %3251 = vmatpush1.bf16.msra.mxu0 0
        %3252 = vmatprep.mubr.bf16.mxu0 0
        %3253 = vmatmul.mubr.bf16.gmra.mrb[0].mxu0 %v3154
        %v3254 = vpop.f32.mrb[0].mxu0
        %v3255 = vadd.f32 %v3171, %v3254
        %v3256 = vpop.f32.mrb[0].mxu0
        %v3257 = vpop.f32.mrb[0].mxu0
        %v3258 = vpop.f32.mrb[0].mxu0
        %3259 = vdwg.mxu0
        %v3260 = vmax.f32 %v3255, 0.0
        %v3261 = vpack.c.bf16 %v3260, %v3260
        %v3262 = vld [vmem:[%s7] sm:$0xf]
        %v3263 = vld [vmem:[%s7 + $0x4] sm:$0xf]
        %v3264 = vld [vmem:[%s7 + $0x8] sm:$0xf]
        %v3265 = vld [vmem:[%s7 + $0xc] sm:$0xf]
        %v3266 = vld [vmem:[%s7 + $0x10] sm:$0xf]
        %v3267 = vld [vmem:[%s7 + $0x14] sm:$0xf]
        %v3268 = vld [vmem:[%s7 + $0x18] sm:$0xf]
        %v3269 = vld [vmem:[%s7 + $0x1c] sm:$0xf]
        %v3270 = vld [vmem:[%s7 + $0x20] sm:$0xf]
        %v3271 = vld [vmem:[%s7 + $0x24] sm:$0xf]
        %v3272 = vld [vmem:[%s7 + $0x28] sm:$0xf]
        %v3273 = vld [vmem:[%s7 + $0x2c] sm:$0xf]
        %v3274 = vld [vmem:[%s7 + $0x30] sm:$0xf]
        %v3275 = vld [vmem:[%s7 + $0x34] sm:$0xf]
        %v3276 = vld [vmem:[%s7 + $0x38] sm:$0xf]
        %v3277 = vld [vmem:[%s7 + $0x3c] sm:$0xf]
        %v3278 = vld [vmem:[%s8] sm:$0x1]
        %v3295 = vunpack.c.l.b16 %v3262
        %v3296 = vunpack.c.l.b16 %v3263
        %v3297 = vunpack.c.l.b16 %v3264
        %v3298 = vunpack.c.l.b16 %v3265
        %v3299 = vunpack.c.l.b16 %v3266
        %v3300 = vunpack.c.l.b16 %v3267
        %v3301 = vunpack.c.l.b16 %v3268
        %v3302 = vunpack.c.l.b16 %v3269
        %v3303 = vunpack.c.l.b16 %v3270
        %v3304 = vunpack.c.l.b16 %v3271
        %v3305 = vunpack.c.l.b16 %v3272
        %v3306 = vunpack.c.l.b16 %v3273
        %v3307 = vunpack.c.l.b16 %v3274
        %v3308 = vunpack.c.l.b16 %v3275
        %v3309 = vunpack.c.l.b16 %v3276
        %v3310 = vunpack.c.l.b16 %v3277
        %v3311 = vpack.c.b16 %v3296, %v3295
        %v3312 = vpack.c.b16 %v3298, %v3297
        %v3313 = vpack.c.b16 %v3300, %v3299
        %v3314 = vpack.c.b16 %v3302, %v3301
        %v3315 = vpack.c.b16 %v3304, %v3303
        %v3316 = vpack.c.b16 %v3306, %v3305
        %v3317 = vpack.c.b16 %v3308, %v3307
        %v3318 = vpack.c.b16 %v3310, %v3309
        %3327 = vmatprep.subr.bf16.mxu0 0
        %3328 = vmatpush1.bf16.msra.mxu0 %v3311
        %3329 = vmatprep.subr.bf16.mxu0 0
        %3330 = vmatpush1.bf16.msra.mxu0 %v3312
        %3331 = vmatprep.subr.bf16.mxu0 0
        %3332 = vmatpush1.bf16.msra.mxu0 %v3313
        %3333 = vmatprep.subr.bf16.mxu0 0
        %3334 = vmatpush1.bf16.msra.mxu0 %v3314
        %3335 = vmatprep.subr.bf16.mxu0 0
        %3336 = vmatpush1.bf16.msra.mxu0 %v3315
        %3337 = vmatprep.subr.bf16.mxu0 0
        %3338 = vmatpush1.bf16.msra.mxu0 %v3316
        %3339 = vmatprep.subr.bf16.mxu0 0
        %3340 = vmatpush1.bf16.msra.mxu0 %v3317
        %3341 = vmatprep.subr.bf16.mxu0 0
        %3342 = vmatpush1.bf16.msra.mxu0 %v3318
        %3343 = vmatprep.subr.bf16.mxu0 0
        %3344 = vmatpush1.bf16.msra.mxu0 0
        %3345 = vmatprep.subr.bf16.mxu0 0
        %3346 = vmatpush1.bf16.msra.mxu0 0
        %3347 = vmatprep.subr.bf16.mxu0 0
        %3348 = vmatpush1.bf16.msra.mxu0 0
        %3349 = vmatprep.subr.bf16.mxu0 0
        %3350 = vmatpush1.bf16.msra.mxu0 0
        %3351 = vmatprep.subr.bf16.mxu0 0
        %3352 = vmatpush1.bf16.msra.mxu0 0
        %3353 = vmatprep.subr.bf16.mxu0 0
        %3354 = vmatpush1.bf16.msra.mxu0 0
        %3355 = vmatprep.subr.bf16.mxu0 0
        %3356 = vmatpush1.bf16.msra.mxu0 0
        %3357 = vmatprep.subr.bf16.mxu0 0
        %3358 = vmatpush1.bf16.msra.mxu0 0
        %3359 = vmatprep.mubr.bf16.mxu0 0
        %3360 = vmatmul.mubr.bf16.gmra.mrb[0].mxu0 %v3261
        %v3361 = vpop.f32.mrb[0].mxu0
        %v3362 = vadd.f32 %v3278, %v3361
        %v3363 = vpop.f32.mrb[0].mxu0
        %v3364 = vpop.f32.mrb[0].mxu0
        %v3365 = vpop.f32.mrb[0].mxu0
        %3366 = vdwg.mxu0
        %vm3367 = vcmask 73728
        %v3368 = vsel %vm3367, %v3362, -inf
        %3369 = vmax.xlane.f32.xlu0 %v3368
        %v3370 = vpop.xlane.xlu0 %3369
        %v3371 = vsub.f32 %v3362, %v3370
        %v3372 = vmul.f32 %v3371, 1.442695
        %v3373 = vpow.pop %v3372
        %v3374 = vsel %vm3367, %v3373, 0.0
        %3375 = vadd.xlane.f32.xlu0 %v3374
        %v3376 = vpop.xlane.xlu0 %3375
        %v3377 = vrcp.pop %v3376
        %v3378 = vmul.f32 %v3373, %v3377
        %3379 = vst.msk [vmem:[%s324] sm:$0x1] %vm3367, %v3378
        %s3380 = sand.u32 %s225, 1
        %s3381 = scalar_lea.sflag [#allocation3], %s3380
        %s3382 = sand.u32 %s225, 1
        %s3383 = scalar_lea.vmem [#allocation2], %s3382
        // Predicated region
        $region57: #{leafnet_forward.5} parent=55 // pred_check
          %p3384 = pneg %p235
        $region58: #{leafnet_forward.5} parent=55 // pred_check_branch
          %3386 = sbr.rel (%p3384) target = $region60
        $region59: #{leafnet_forward.5} parent=55 // pred_region
          %s3388 = ssub.s32 16, 16
          %3389 = vsyncadd %s3381, %s3388
          %s3390 = smul.addr %s23, 16
          %s3391 = scalar_lea.hbm %s9, %s3390
          %s3393 = sshll.u32 %s3383, 4
          %s3394 = int_to_ptr.vmem [resolvable:$true] %s3393
          %3396 = dma.vmem_to_hbm [thread:$0]  %s3394, 16, %s3391, %s3381
        $region60: #{leafnet_forward.5} parent=55 // pred_fallthru
          _
      $region56: #{leafnet_forward.5} parent=5 // pred_fallthru
        _
      %p3397 = scmp.le.s32.totalorder 2, %s18
      // Predicated region
      $region61: #{leafnet_forward.5} parent=5 // pred_check
        %p3398 = pneg %p3397
      $region62: #{leafnet_forward.5} parent=5 // pred_check_branch
        %3400 = sbr.rel (%p3398) target = $region64
      $region63: #{leafnet_forward.5} parent=5 // pred_region
        %s3401 = ssub.s32 %s18, 2
        // Predicated region
        $region65: #{leafnet_forward.5} parent=63 // pred_check
          %p3402 = pneg %p241
        $region66: #{leafnet_forward.5} parent=63 // pred_check_branch
          %3404 = sbr.rel (%p3402) target = $region68
        $region67: #{leafnet_forward.5} parent=63 // pred_region
          %s3405 = sand.u32 %s226, 1
          %s3406 = scalar_lea.sflag [#allocation3], %s3405
          %s3407 = sand.u32 %s226, 1
          %s3408 = scalar_lea.vmem [#allocation2], %s3407
          %3409 = dma.done %s3406, 16
        $region68: #{leafnet_forward.5} parent=63 // pred_fallthru
          _
      $region64: #{leafnet_forward.5} parent=5 // pred_fallthru
        _
    $region6: #{leafnet_forward.5} parent=1 // loop_footer
      %s22 = sadd.s32 1, %s18
    $region7: #{leafnet_forward.5} parent=1 // loop_footer_branch
      %17 = sbr.rel target = $region3
    $region8: #{leafnet_forward.5} parent=1 // loop_exit
      _
    %3410 = vsyncpa [#allocation3], 1
    %s3411 = scalar_lea.sflag [#allocation3], 1
    %3412 = vsyncpa %s3411, 1

</llo_original>
